<compile_context>
chip_gen: v7x
topology: tpu7x:2x2x1
jax: 0.10.0
libtpu: 0.0.40
codegen_flags: <defaults>
</compile_context>

<pallas_src>
import jax
import jax.numpy as jnp
import numpy as np
from jax.experimental import pallas as pl
from jax.experimental.pallas import tpu as pltpu


def _round_up(x, m):
    return ((x + m - 1) // m) * m


def _pad_cols(w, cols):
    return jnp.pad(w, ((0, 0), (0, cols - w.shape[1])))


def _pad_gates(w, H, HP):
    """(rows, 4*H) -> (rows, 4*HP); each gate block starts at a 128-multiple."""
    return jnp.concatenate(
        [_pad_cols(w[:, k * H:(k + 1) * H], HP) for k in range(4)], axis=1)


def _pick_tb(bs):
    """Batch tile: multiple of 8 sublanes when possible, capped at 128."""
    for tb in (128, 64, 32, 16, 8):
        if bs % tb == 0:
            return tb
    return bs


def _make_fused_tlstm_kernel(L, T, TB, in_dim, HPs, OP):
    """HPs[l] = padded (lane-aligned) hidden width of layer l."""
    E = float(np.e)

    def kernel(*refs):
        x_ref, td_ref = refs[0], refs[1]
        layer_refs = refs[2:2 + 4 * L]              # per layer: Wx_p, b_p, Wh_p, Wd_p
        wy_ref, by_ref = refs[2 + 4 * L], refs[3 + 4 * L]
        yhat_ref = refs[4 + 4 * L]
        hseq_refs = refs[5 + 4 * L:5 + 5 * L]
        hT_ref, cT_ref = refs[5 + 5 * L], refs[6 + 5 * L]

        # Exact elapsed-time decay, one EUP op for all T (off the serial path).
        g = 1.0 / jnp.log(E + td_ref[...])                         # (T, TB, 1)

        x_cur = x_ref[...].reshape(T * TB, in_dim)
        h = c = None
        for l in range(L):
            HP = HPs[l]
            wxp_ref, bp_ref, whp_ref, wdp_ref = layer_refs[4 * l:4 * l + 4]

            # Hoisted input projection for ALL timesteps; decay bias b_d is
            # already folded into columns 4*HP:5*HP host-side -> no concat.
            pre = (jnp.dot(x_cur, wxp_ref[...],
                           preferred_element_type=jnp.float32)
                   + bp_ref[...]).reshape(T, TB, 5 * HP)            # (T,TB,5HP)
            # Hoist the decay lane-broadcast out of the recurrence loop.
            g_b = jnp.broadcast_to(g, (T, TB, HP))                  # (T,TB,HP)

            h = jnp.zeros((TB, HP), jnp.float32)
            c = jnp.zeros((TB, HP), jnp.float32)
            hseq_ref = hseq_refs[l]
            for t in range(T):          # static unroll (T small)
                # Two lane-aligned recurrent matmuls (no [h|c] concat).
                zh = jnp.dot(h, whp_ref[...],
                             preferred_element_type=jnp.float32)    # (TB,4HP)
                cd = jnp.dot(c, wdp_ref[...],
                             preferred_element_type=jnp.float32)    # (TB, HP)
                z = pre[t]                                          # (TB,5HP)
                # All gate slices start at multiples of 128 lanes.
                c_s = jnp.tanh(z[:, 4 * HP:5 * HP] + cd)
                c_adj = (c - c_s) + c_s * g_b[t]
                i_g = jax.nn.sigmoid(z[:, 0:HP] + zh[:, 0:HP])
                f_g = jax.nn.sigmoid(z[:, HP:2 * HP] + zh[:, HP:2 * HP])
                o_g = jax.nn.sigmoid(z[:, 2 * HP:3 * HP] + zh[:, 2 * HP:3 * HP])
                c_t = jnp.tanh(z[:, 3 * HP:4 * HP] + zh[:, 3 * HP:4 * HP])
                c = f_g * c_adj + i_g * c_t
                h = o_g * jnp.tanh(c)
                hseq_ref[t] = h          # lane-dense (TB, HP) store, static t

            x_cur = hseq_ref[...].reshape(T * TB, HP)

        hT_ref[...] = h
        cT_ref[...] = c
        yhat = (jnp.dot(x_cur, wy_ref[...],
                        preferred_element_type=jnp.float32)
                + by_ref[...])                                      # (T*TB, OP)
        yhat_ref[...] = yhat.reshape(T, TB, OP)

    return kernel


def tlstm_model(params, inputs, time_deltas):
    """inputs: (B, T, input_dim); time_deltas: (B, T).
    Returns (yhat (B,T,out), [hidden_seq per layer (B,T,H_l)], (h_T, c_T))."""
    bs, seq, in_dim = inputs.shape
    cells = params["cells"]
    L = len(cells)
    Hs = [int(c["W_d"].shape[0]) for c in cells]
    HPs = [_round_up(h, 128) for h in Hs]            # lane-aligned gate widths
    out_dim = int(params["W_y"].shape[1])
    OP = _round_up(out_dim, 128)                     # lane-dense yhat

    TB = _pick_tb(bs)
    nb = bs // TB

    # Time-major inside the kernel keeps pre[t] a contiguous leading-axis slice.
    x_tm = jnp.transpose(inputs, (1, 0, 2)).astype(jnp.float32)      # (T, B, D)
    td_tm = jnp.transpose(time_deltas, (1, 0))[:, :, None].astype(jnp.float32)

    args = [x_tm, td_tm]
    in_specs = [pl.BlockSpec((seq, TB, in_dim), lambda b: (0, b, 0)),
                pl.BlockSpec((seq, TB, 1), lambda b: (0, b, 0))]

    d_prev = in_dim                                   # (padded) input width
    for l, cell in enumerate(cells):
        H, HP = Hs[l], HPs[l]
        wx = jnp.pad(cell["W_x"].astype(jnp.float32),
                     ((0, d_prev - cell["W_x"].shape[0]), (0, 0)))
        # W_x padded to (d_prev, 5*HP): gate blocks lane-aligned, zero decay cols.
        wxp = jnp.concatenate(
            [_pad_gates(wx, H, HP), jnp.zeros((d_prev, HP), jnp.float32)], axis=1)
        # b padded to (1, 5*HP) with b_d in the decay block -> no in-kernel concat.
        bp = jnp.concatenate(
            [_pad_gates(cell["b"].astype(jnp.float32), H, HP),
             _pad_cols(cell["b_d"].astype(jnp.float32), HP)], axis=1)
        whp = _pad_gates(
            jnp.pad(cell["W_h"].astype(jnp.float32), ((0, HP - H), (0, 0))), H, HP)
        wdp = jnp.pad(cell["W_d"].astype(jnp.float32),
                      ((0, HP - H), (0, HP - H)))
        args += [wxp, bp, whp, wdp]
        in_specs += [pl.BlockSpec(a.shape, lambda b: (0, 0))
                     for a in (wxp, bp, whp, wdp)]
        d_prev = HP

    wyp = jnp.pad(params["W_y"].astype(jnp.float32),
                  ((0, HPs[-1] - Hs[-1]), (0, OP - out_dim)))
    byp = jnp.pad(params["b_y"].astype(jnp.float32), ((0, 0), (0, OP - out_dim)))
    args += [wyp, byp]
    in_specs += [pl.BlockSpec(wyp.shape, lambda b: (0, 0)),
                 pl.BlockSpec(byp.shape, lambda b: (0, 0))]

    out_shape = tuple(
        [jax.ShapeDtypeStruct((seq, bs, OP), jnp.float32)]
        + [jax.ShapeDtypeStruct((seq, bs, HPs[l]), jnp.float32) for l in range(L)]
        + [jax.ShapeDtypeStruct((bs, HPs[-1]), jnp.float32),
           jax.ShapeDtypeStruct((bs, HPs[-1]), jnp.float32)])
    out_specs = tuple(
        [pl.BlockSpec((seq, TB, OP), lambda b: (0, b, 0))]
        + [pl.BlockSpec((seq, TB, HPs[l]), lambda b: (0, b, 0)) for l in range(L)]
        + [pl.BlockSpec((TB, HPs[-1]), lambda b: (b, 0)),
           pl.BlockSpec((TB, HPs[-1]), lambda b: (b, 0))])

    outs = pl.pallas_call(
        _make_fused_tlstm_kernel(L, seq, TB, in_dim, HPs, OP),
        grid=(nb,),
        out_shape=out_shape,
        in_specs=in_specs,
        out_specs=out_specs,
        compiler_params=pltpu.CompilerParams(
            dimension_semantics=("parallel",)),     # batch blocks across TCs
    )(*args)

    # Slice the lane padding back off (tiny at these shapes).
    # TODO(synk): at production sizes, have downstream consume time-major /
    # padded outputs to avoid these extra HBM round trips.
    yhat = jnp.transpose(outs[0], (1, 0, 2))[:, :, :out_dim]
    hidden_seqs = [jnp.transpose(outs[1 + l], (1, 0, 2))[:, :, :Hs[l]]
                   for l in range(L)]
    h_T = outs[1 + L][:, :Hs[-1]]
    c_T = outs[2 + L][:, :Hs[-1]]
    return yhat, hidden_seqs, (h_T, c_T)


def init_params(key, input_dim, hidden_dims, output_dim):
    """Deterministic synthetic parameter init (same shapes as the nn.Module)."""
    params = {"cells": []}
    dims = [input_dim] + list(hidden_dims)
    k = key
    for layer in range(len(hidden_dims)):
        d_in, h = dims[layer], dims[layer + 1]
        k, k1, k2, k3 = jax.random.split(k, 4)
        cell = {
            "W_x": 0.1 * jax.random.normal(k1, (d_in, 4 * h), jnp.float32),
            "W_h": 0.1 * jax.random.normal(k2, (h, 4 * h), jnp.float32),
            "b": jnp.zeros((1, 4 * h), jnp.float32),
            "W_d": 0.1 * jax.random.normal(k3, (h, h), jnp.float32),
            "b_d": jnp.zeros((1, h), jnp.float32),
        }
        params["cells"].append(cell)
    k, ky = jax.random.split(k)
    params["W_y"] = 0.1 * jax.random.normal(
        ky, (hidden_dims[-1], output_dim), jnp.float32)
    params["b_y"] = jnp.zeros((1, output_dim), jnp.float32)
    return params


def tlstm_reference(params, inputs, time_deltas):
    """Pure-JAX reference (same math as the PyTorch module)."""
    x = inputs.astype(jnp.float32)
    td = time_deltas.astype(jnp.float32)
    bs, seq, _ = x.shape
    hseqs = []
    cur = x
    h = c = None
    for cell in params["cells"]:
        H = cell["W_d"].shape[0]
        h = jnp.zeros((bs, H), jnp.float32)
        c = jnp.zeros((bs, H), jnp.float32)
        hs = []
        for t in range(seq):
            x_t = cur[:, t, :]
            dt = td[:, t][:, None]
            g = 1.0 / jnp.log(np.e + dt)
            c_s = jnp.tanh(c @ cell["W_d"] + cell["b_d"])
            c_adj = (c - c_s) + c_s * g
            z = x_t @ cell["W_x"] + h @ cell["W_h"] + cell["b"]
            i_g = jax.nn.sigmoid(z[:, 0:H])
            f_g = jax.nn.sigmoid(z[:, H:2 * H])
            o_g = jax.nn.sigmoid(z[:, 2 * H:3 * H])
            c_t = jnp.tanh(z[:, 3 * H:4 * H])
            c = f_g * c_adj + i_g * c_t
            h = o_g * jnp.tanh(c)
            hs.append(h)
        seq_h = jnp.stack(hs, axis=1)
        hseqs.append(seq_h)
        cur = seq_h
    yhat = cur.reshape(bs * seq, -1) @ params["W_y"] + params["b_y"]
    return yhat.reshape(bs, seq, -1), hseqs, (h, c)


if __name__ == "__main__":
    input_dim = 16
    hidden_dims = [32, 32]
    output_dim = 8
    num_layers = len(hidden_dims)
    bs, seq = 2, 8

    key = jax.random.PRNGKey(0)
    kx, kt, kp = jax.random.split(key, 3)
    x = jax.random.normal(kx, (bs, seq, input_dim), jnp.float32)
    time_deltas = jax.random.uniform(kt, (bs, seq), jnp.float32, 0.1, 5.0)
    params = init_params(kp, input_dim, hidden_dims, output_dim)

    yhat, hidden_seqs, (h_T, c_T) = jax.jit(tlstm_model)(params, x, time_deltas)
    jax.block_until_ready((yhat, hidden_seqs, h_T, c_T))

    assert yhat.shape == (bs, seq, output_dim)
    assert len(hidden_seqs) == num_layers
    assert hidden_seqs[-1].shape == (bs, seq, hidden_dims[-1])
    assert h_T.shape == (bs, hidden_dims[-1]) and c_T.shape == (bs, hidden_dims[-1])

    # Numerical check against a pure-JAX reference (tolerance covers the
    # default-precision f32 MXU path).
    y_r, hs_r, (h_r, c_r) = tlstm_reference(params, x, time_deltas)
    np.testing.assert_allclose(np.asarray(yhat), np.asarray(y_r), rtol=1e-2, atol=1e-2)
    np.testing.assert_allclose(np.asarray(h_T), np.asarray(h_r), rtol=1e-2, atol=1e-2)
    np.testing.assert_allclose(np.asarray(c_T), np.asarray(c_r), rtol=1e-2, atol=1e-2)
    for a, b in zip(hidden_seqs, hs_r):
        np.testing.assert_allclose(np.asarray(a), np.asarray(b), rtol=1e-2, atol=1e-2)

    print("KERNEL_OK")
</pallas_src>

<mosaic_0001>
module attributes {stable_mosaic.version = 11 : i64} {
  func.func @kernel(%arg0: i32, %arg1: memref<8x2x16xf32, #tpu.memory_space<vmem>>, %arg2: memref<8x2x1xf32, #tpu.memory_space<vmem>>, %arg3: memref<16x640xf32, #tpu.memory_space<vmem>>, %arg4: memref<1x640xf32, #tpu.memory_space<vmem>>, %arg5: memref<128x512xf32, #tpu.memory_space<vmem>>, %arg6: memref<128x128xf32, #tpu.memory_space<vmem>>, %arg7: memref<128x640xf32, #tpu.memory_space<vmem>>, %arg8: memref<1x640xf32, #tpu.memory_space<vmem>>, %arg9: memref<128x512xf32, #tpu.memory_space<vmem>>, %arg10: memref<128x128xf32, #tpu.memory_space<vmem>>, %arg11: memref<128x128xf32, #tpu.memory_space<vmem>>, %arg12: memref<1x128xf32, #tpu.memory_space<vmem>>, %arg13: memref<8x2x128xf32, #tpu.memory_space<vmem>>, %arg14: memref<8x2x128xf32, #tpu.memory_space<vmem>>, %arg15: memref<8x2x128xf32, #tpu.memory_space<vmem>>, %arg16: memref<2x128xf32, #tpu.memory_space<vmem>>, %arg17: memref<2x128xf32, #tpu.memory_space<vmem>>) attributes {dimension_semantics = [#tpu.dimension_semantics<parallel>], iteration_bounds = array<i64: 1>, scalar_prefetch = 0 : i64, scratch_operands = 0 : i64, tpu.core_type = #tpu.core_type<tc>, window_params = [{transform_indices = @transform_0, window_bounds = array<i64: 8, 2, 16>}, {transform_indices = @transform_1, window_bounds = array<i64: 8, 2, 1>}, {pipeline_mode = #tpu.pipeline_mode<synchronous>, transform_indices = @transform_2, window_bounds = array<i64: 16, 640>}, {pipeline_mode = #tpu.pipeline_mode<synchronous>, transform_indices = @transform_3, window_bounds = array<i64: 1, 640>}, {pipeline_mode = #tpu.pipeline_mode<synchronous>, transform_indices = @transform_4, window_bounds = array<i64: 128, 512>}, {pipeline_mode = #tpu.pipeline_mode<synchronous>, transform_indices = @transform_5, window_bounds = array<i64: 128, 128>}, {pipeline_mode = #tpu.pipeline_mode<synchronous>, transform_indices = @transform_6, window_bounds = array<i64: 128, 640>}, {pipeline_mode = #tpu.pipeline_mode<synchronous>, transform_indices = @transform_7, window_bounds = array<i64: 1, 640>}, {pipeline_mode = #tpu.pipeline_mode<synchronous>, transform_indices = @transform_8, window_bounds = array<i64: 128, 512>}, {pipeline_mode = #tpu.pipeline_mode<synchronous>, transform_indices = @transform_9, window_bounds = array<i64: 128, 128>}, {pipeline_mode = #tpu.pipeline_mode<synchronous>, transform_indices = @transform_10, window_bounds = array<i64: 128, 128>}, {pipeline_mode = #tpu.pipeline_mode<synchronous>, transform_indices = @transform_11, window_bounds = array<i64: 1, 128>}, {transform_indices = @transform_12, window_bounds = array<i64: 8, 2, 128>}, {transform_indices = @transform_13, window_bounds = array<i64: 8, 2, 128>}, {transform_indices = @transform_14, window_bounds = array<i64: 8, 2, 128>}, {transform_indices = @transform_15, window_bounds = array<i64: 2, 128>}, {transform_indices = @transform_16, window_bounds = array<i64: 2, 128>}]} {
    %c0 = arith.constant 0 : index
    %c0_0 = arith.constant 0 : index
    %c0_1 = arith.constant 0 : index
    %0 = vector.load %arg2[%c0, %c0_0, %c0_1] : memref<8x2x1xf32, #tpu.memory_space<vmem>>, vector<8x2x1xf32>
    %cst = arith.constant 2.71828175 : f32
    %1 = vector.broadcast %cst : f32 to vector<8x2x1xf32>
    %2 = arith.addf %1, %0 : vector<8x2x1xf32>
    %3 = math.log %2 : vector<8x2x1xf32>
    %cst_2 = arith.constant 1.000000e+00 : f32
    %4 = vector.broadcast %cst_2 : f32 to vector<8x2x1xf32>
    %5 = arith.divf %4, %3 : vector<8x2x1xf32>
    %c0_3 = arith.constant 0 : index
    %c0_4 = arith.constant 0 : index
    %c0_5 = arith.constant 0 : index
    %6 = vector.load %arg1[%c0_3, %c0_4, %c0_5] : memref<8x2x16xf32, #tpu.memory_space<vmem>>, vector<8x2x16xf32>
    %7 = vector.shape_cast %6 : vector<8x2x16xf32> to vector<16x16xf32>
    %c0_6 = arith.constant 0 : index
    %c0_7 = arith.constant 0 : index
    %8 = vector.load %arg3[%c0_6, %c0_7] : memref<16x640xf32, #tpu.memory_space<vmem>>, vector<16x640xf32>
    %cst_8 = arith.constant dense<0.000000e+00> : vector<16x640xf32>
    %9 = tpu.matmul %7, %8, %cst_8 {dimension_numbers = #tpu.dot_dimension_numbers<[1], [0], [0], [1], [0, 0, 1, 1], [], []>} : vector<16x16xf32>, vector<16x640xf32>, vector<16x640xf32> -> vector<16x640xf32>
    %c0_9 = arith.constant 0 : index
    %c0_10 = arith.constant 0 : index
    %10 = vector.load %arg4[%c0_9, %c0_10] : memref<1x640xf32, #tpu.memory_space<vmem>>, vector<1x640xf32>
    %11 = vector.broadcast %10 : vector<1x640xf32> to vector<16x640xf32>
    %12 = arith.addf %9, %11 : vector<16x640xf32>
    %13 = vector.shape_cast %12 : vector<16x640xf32> to vector<8x2x640xf32>
    %14 = vector.shape_cast %5 : vector<8x2x1xf32> to vector<8x2x1xf32>
    %15 = vector.broadcast %14 : vector<8x2x1xf32> to vector<8x2x128xf32>
    %cst_11 = arith.constant 0.000000e+00 : f32
    %16 = vector.broadcast %cst_11 : f32 to vector<2x128xf32>
    %cst_12 = arith.constant 0.000000e+00 : f32
    %17 = vector.broadcast %cst_12 : f32 to vector<2x128xf32>
    %c0_13 = arith.constant 0 : index
    %c0_14 = arith.constant 0 : index
    %18 = vector.load %arg5[%c0_13, %c0_14] : memref<128x512xf32, #tpu.memory_space<vmem>>, vector<128x512xf32>
    %cst_15 = arith.constant dense<0.000000e+00> : vector<2x512xf32>
    %19 = tpu.matmul %16, %18, %cst_15 {dimension_numbers = #tpu.dot_dimension_numbers<[1], [0], [0], [1], [0, 0, 1, 1], [], []>} : vector<2x128xf32>, vector<128x512xf32>, vector<2x512xf32> -> vector<2x512xf32>
    %c0_16 = arith.constant 0 : index
    %c0_17 = arith.constant 0 : index
    %20 = vector.load %arg6[%c0_16, %c0_17] : memref<128x128xf32, #tpu.memory_space<vmem>>, vector<128x128xf32>
    %cst_18 = arith.constant dense<0.000000e+00> : vector<2x128xf32>
    %21 = tpu.matmul %17, %20, %cst_18 {dimension_numbers = #tpu.dot_dimension_numbers<[1], [0], [0], [1], [0, 0, 1, 1], [], []>} : vector<2x128xf32>, vector<128x128xf32>, vector<2x128xf32> -> vector<2x128xf32>
    %22 = vector.extract_strided_slice %13 {offsets = [0, 0, 0], sizes = [1, 2, 640], strides = [1, 1, 1]} : vector<8x2x640xf32> to vector<1x2x640xf32>
    %23 = vector.shape_cast %22 : vector<1x2x640xf32> to vector<2x640xf32>
    %24 = vector.extract_strided_slice %23 {offsets = [0, 512], sizes = [2, 128], strides = [1, 1]} : vector<2x640xf32> to vector<2x128xf32>
    %25 = arith.addf %24, %21 : vector<2x128xf32>
    %26 = math.tanh %25 : vector<2x128xf32>
    %27 = arith.subf %17, %26 : vector<2x128xf32>
    %28 = vector.extract_strided_slice %15 {offsets = [0, 0, 0], sizes = [1, 2, 128], strides = [1, 1, 1]} : vector<8x2x128xf32> to vector<1x2x128xf32>
    %29 = vector.shape_cast %28 : vector<1x2x128xf32> to vector<2x128xf32>
    %30 = arith.mulf %26, %29 : vector<2x128xf32>
    %31 = arith.addf %27, %30 : vector<2x128xf32>
    %32 = vector.extract_strided_slice %23 {offsets = [0, 0], sizes = [2, 128], strides = [1, 1]} : vector<2x640xf32> to vector<2x128xf32>
    %33 = vector.extract_strided_slice %19 {offsets = [0, 0], sizes = [2, 128], strides = [1, 1]} : vector<2x512xf32> to vector<2x128xf32>
    %34 = arith.addf %32, %33 : vector<2x128xf32>
    %35 = arith.negf %34 : vector<2x128xf32>
    %36 = math.exp %35 : vector<2x128xf32>
    %cst_19 = arith.constant 1.000000e+00 : f32
    %37 = vector.broadcast %cst_19 : f32 to vector<2x128xf32>
    %38 = arith.addf %37, %36 : vector<2x128xf32>
    %39 = arith.divf %37, %38 : vector<2x128xf32>
    %40 = vector.extract_strided_slice %23 {offsets = [0, 128], sizes = [2, 128], strides = [1, 1]} : vector<2x640xf32> to vector<2x128xf32>
    %41 = vector.extract_strided_slice %19 {offsets = [0, 128], sizes = [2, 128], strides = [1, 1]} : vector<2x512xf32> to vector<2x128xf32>
    %42 = arith.addf %40, %41 : vector<2x128xf32>
    %43 = arith.negf %42 : vector<2x128xf32>
    %44 = math.exp %43 : vector<2x128xf32>
    %cst_20 = arith.constant 1.000000e+00 : f32
    %45 = vector.broadcast %cst_20 : f32 to vector<2x128xf32>
    %46 = arith.addf %45, %44 : vector<2x128xf32>
    %47 = arith.divf %45, %46 : vector<2x128xf32>
    %48 = vector.extract_strided_slice %23 {offsets = [0, 256], sizes = [2, 128], strides = [1, 1]} : vector<2x640xf32> to vector<2x128xf32>
    %49 = vector.extract_strided_slice %19 {offsets = [0, 256], sizes = [2, 128], strides = [1, 1]} : vector<2x512xf32> to vector<2x128xf32>
    %50 = arith.addf %48, %49 : vector<2x128xf32>
    %51 = arith.negf %50 : vector<2x128xf32>
    %52 = math.exp %51 : vector<2x128xf32>
    %cst_21 = arith.constant 1.000000e+00 : f32
    %53 = vector.broadcast %cst_21 : f32 to vector<2x128xf32>
    %54 = arith.addf %53, %52 : vector<2x128xf32>
    %55 = arith.divf %53, %54 : vector<2x128xf32>
    %56 = vector.extract_strided_slice %23 {offsets = [0, 384], sizes = [2, 128], strides = [1, 1]} : vector<2x640xf32> to vector<2x128xf32>
    %57 = vector.extract_strided_slice %19 {offsets = [0, 384], sizes = [2, 128], strides = [1, 1]} : vector<2x512xf32> to vector<2x128xf32>
    %58 = arith.addf %56, %57 : vector<2x128xf32>
    %59 = math.tanh %58 : vector<2x128xf32>
    %60 = arith.mulf %47, %31 : vector<2x128xf32>
    %61 = arith.mulf %39, %59 : vector<2x128xf32>
    %62 = arith.addf %60, %61 : vector<2x128xf32>
    %63 = math.tanh %62 : vector<2x128xf32>
    %64 = arith.mulf %55, %63 : vector<2x128xf32>
    %c0_22 = arith.constant 0 : index
    %c0_23 = arith.constant 0 : index
    %c0_24 = arith.constant 0 : index
    %65 = vector.load %arg14[%c0_22, %c0_23, %c0_24] : memref<8x2x128xf32, #tpu.memory_space<vmem>>, vector<1x2x128xf32>
    %66 = vector.shape_cast %65 : vector<1x2x128xf32> to vector<2x128xf32>
    %67 = vector.shape_cast %64 : vector<2x128xf32> to vector<1x2x128xf32>
    tpu.vector_store %arg14[%c0_22, %c0_23, %c0_24], %67 {strides = array<i32>} : memref<8x2x128xf32, #tpu.memory_space<vmem>>, vector<1x2x128xf32>,
    %c0_25 = arith.constant 0 : index
    %c0_26 = arith.constant 0 : index
    %68 = vector.load %arg5[%c0_25, %c0_26] : memref<128x512xf32, #tpu.memory_space<vmem>>, vector<128x512xf32>
    %cst_27 = arith.constant dense<0.000000e+00> : vector<2x512xf32>
    %69 = tpu.matmul %64, %68, %cst_27 {dimension_numbers = #tpu.dot_dimension_numbers<[1], [0], [0], [1], [0, 0, 1, 1], [], []>} : vector<2x128xf32>, vector<128x512xf32>, vector<2x512xf32> -> vector<2x512xf32>
    %c0_28 = arith.constant 0 : index
    %c0_29 = arith.constant 0 : index
    %70 = vector.load %arg6[%c0_28, %c0_29] : memref<128x128xf32, #tpu.memory_space<vmem>>, vector<128x128xf32>
    %cst_30 = arith.constant dense<0.000000e+00> : vector<2x128xf32>
    %71 = tpu.matmul %62, %70, %cst_30 {dimension_numbers = #tpu.dot_dimension_numbers<[1], [0], [0], [1], [0, 0, 1, 1], [], []>} : vector<2x128xf32>, vector<128x128xf32>, vector<2x128xf32> -> vector<2x128xf32>
    %72 = vector.extract_strided_slice %13 {offsets = [1, 0, 0], sizes = [1, 2, 640], strides = [1, 1, 1]} : vector<8x2x640xf32> to vector<1x2x640xf32>
    %73 = vector.shape_cast %72 : vector<1x2x640xf32> to vector<2x640xf32>
    %74 = vector.extract_strided_slice %73 {offsets = [0, 512], sizes = [2, 128], strides = [1, 1]} : vector<2x640xf32> to vector<2x128xf32>
    %75 = arith.addf %74, %71 : vector<2x128xf32>
    %76 = math.tanh %75 : vector<2x128xf32>
    %77 = arith.subf %62, %76 : vector<2x128xf32>
    %78 = vector.extract_strided_slice %15 {offsets = [1, 0, 0], sizes = [1, 2, 128], strides = [1, 1, 1]} : vector<8x2x128xf32> to vector<1x2x128xf32>
    %79 = vector.shape_cast %78 : vector<1x2x128xf32> to vector<2x128xf32>
    %80 = arith.mulf %76, %79 : vector<2x128xf32>
    %81 = arith.addf %77, %80 : vector<2x128xf32>
    %82 = vector.extract_strided_slice %73 {offsets = [0, 0], sizes = [2, 128], strides = [1, 1]} : vector<2x640xf32> to vector<2x128xf32>
    %83 = vector.extract_strided_slice %69 {offsets = [0, 0], sizes = [2, 128], strides = [1, 1]} : vector<2x512xf32> to vector<2x128xf32>
    %84 = arith.addf %82, %83 : vector<2x128xf32>
    %85 = arith.negf %84 : vector<2x128xf32>
    %86 = math.exp %85 : vector<2x128xf32>
    %cst_31 = arith.constant 1.000000e+00 : f32
    %87 = vector.broadcast %cst_31 : f32 to vector<2x128xf32>
    %88 = arith.addf %87, %86 : vector<2x128xf32>
    %89 = arith.divf %87, %88 : vector<2x128xf32>
    %90 = vector.extract_strided_slice %73 {offsets = [0, 128], sizes = [2, 128], strides = [1, 1]} : vector<2x640xf32> to vector<2x128xf32>
    %91 = vector.extract_strided_slice %69 {offsets = [0, 128], sizes = [2, 128], strides = [1, 1]} : vector<2x512xf32> to vector<2x128xf32>
    %92 = arith.addf %90, %91 : vector<2x128xf32>
    %93 = arith.negf %92 : vector<2x128xf32>
    %94 = math.exp %93 : vector<2x128xf32>
    %cst_32 = arith.constant 1.000000e+00 : f32
    %95 = vector.broadcast %cst_32 : f32 to vector<2x128xf32>
    %96 = arith.addf %95, %94 : vector<2x128xf32>
    %97 = arith.divf %95, %96 : vector<2x128xf32>
    %98 = vector.extract_strided_slice %73 {offsets = [0, 256], sizes = [2, 128], strides = [1, 1]} : vector<2x640xf32> to vector<2x128xf32>
    %99 = vector.extract_strided_slice %69 {offsets = [0, 256], sizes = [2, 128], strides = [1, 1]} : vector<2x512xf32> to vector<2x128xf32>
    %100 = arith.addf %98, %99 : vector<2x128xf32>
    %101 = arith.negf %100 : vector<2x128xf32>
    %102 = math.exp %101 : vector<2x128xf32>
    %cst_33 = arith.constant 1.000000e+00 : f32
    %103 = vector.broadcast %cst_33 : f32 to vector<2x128xf32>
    %104 = arith.addf %103, %102 : vector<2x128xf32>
    %105 = arith.divf %103, %104 : vector<2x128xf32>
    %106 = vector.extract_strided_slice %73 {offsets = [0, 384], sizes = [2, 128], strides = [1, 1]} : vector<2x640xf32> to vector<2x128xf32>
    %107 = vector.extract_strided_slice %69 {offsets = [0, 384], sizes = [2, 128], strides = [1, 1]} : vector<2x512xf32> to vector<2x128xf32>
    %108 = arith.addf %106, %107 : vector<2x128xf32>
    %109 = math.tanh %108 : vector<2x128xf32>
    %110 = arith.mulf %97, %81 : vector<2x128xf32>
    %111 = arith.mulf %89, %109 : vector<2x128xf32>
    %112 = arith.addf %110, %111 : vector<2x128xf32>
    %113 = math.tanh %112 : vector<2x128xf32>
    %114 = arith.mulf %105, %113 : vector<2x128xf32>
    %c1 = arith.constant 1 : index
    %c0_34 = arith.constant 0 : index
    %c0_35 = arith.constant 0 : index
    %115 = vector.load %arg14[%c1, %c0_34, %c0_35] : memref<8x2x128xf32, #tpu.memory_space<vmem>>, vector<1x2x128xf32>
    %116 = vector.shape_cast %115 : vector<1x2x128xf32> to vector<2x128xf32>
    %117 = vector.shape_cast %114 : vector<2x128xf32> to vector<1x2x128xf32>
    tpu.vector_store %arg14[%c1, %c0_34, %c0_35], %117 {strides = array<i32>} : memref<8x2x128xf32, #tpu.memory_space<vmem>>, vector<1x2x128xf32>,
    %c0_36 = arith.constant 0 : index
    %c0_37 = arith.constant 0 : index
    %118 = vector.load %arg5[%c0_36, %c0_37] : memref<128x512xf32, #tpu.memory_space<vmem>>, vector<128x512xf32>
    %cst_38 = arith.constant dense<0.000000e+00> : vector<2x512xf32>
    %119 = tpu.matmul %114, %118, %cst_38 {dimension_numbers = #tpu.dot_dimension_numbers<[1], [0], [0], [1], [0, 0, 1, 1], [], []>} : vector<2x128xf32>, vector<128x512xf32>, vector<2x512xf32> -> vector<2x512xf32>
    %c0_39 = arith.constant 0 : index
    %c0_40 = arith.constant 0 : index
    %120 = vector.load %arg6[%c0_39, %c0_40] : memref<128x128xf32, #tpu.memory_space<vmem>>, vector<128x128xf32>
    %cst_41 = arith.constant dense<0.000000e+00> : vector<2x128xf32>
    %121 = tpu.matmul %112, %120, %cst_41 {dimension_numbers = #tpu.dot_dimension_numbers<[1], [0], [0], [1], [0, 0, 1, 1], [], []>} : vector<2x128xf32>, vector<128x128xf32>, vector<2x128xf32> -> vector<2x128xf32>
    %122 = vector.extract_strided_slice %13 {offsets = [2, 0, 0], sizes = [1, 2, 640], strides = [1, 1, 1]} : vector<8x2x640xf32> to vector<1x2x640xf32>
    %123 = vector.shape_cast %122 : vector<1x2x640xf32> to vector<2x640xf32>
    %124 = vector.extract_strided_slice %123 {offsets = [0, 512], sizes = [2, 128], strides = [1, 1]} : vector<2x640xf32> to vector<2x128xf32>
    %125 = arith.addf %124, %121 : vector<2x128xf32>
    %126 = math.tanh %125 : vector<2x128xf32>
    %127 = arith.subf %112, %126 : vector<2x128xf32>
    %128 = vector.extract_strided_slice %15 {offsets = [2, 0, 0], sizes = [1, 2, 128], strides = [1, 1, 1]} : vector<8x2x128xf32> to vector<1x2x128xf32>
    %129 = vector.shape_cast %128 : vector<1x2x128xf32> to vector<2x128xf32>
    %130 = arith.mulf %126, %129 : vector<2x128xf32>
    %131 = arith.addf %127, %130 : vector<2x128xf32>
    %132 = vector.extract_strided_slice %123 {offsets = [0, 0], sizes = [2, 128], strides = [1, 1]} : vector<2x640xf32> to vector<2x128xf32>
    %133 = vector.extract_strided_slice %119 {offsets = [0, 0], sizes = [2, 128], strides = [1, 1]} : vector<2x512xf32> to vector<2x128xf32>
    %134 = arith.addf %132, %133 : vector<2x128xf32>
    %135 = arith.negf %134 : vector<2x128xf32>
    %136 = math.exp %135 : vector<2x128xf32>
    %cst_42 = arith.constant 1.000000e+00 : f32
    %137 = vector.broadcast %cst_42 : f32 to vector<2x128xf32>
    %138 = arith.addf %137, %136 : vector<2x128xf32>
    %139 = arith.divf %137, %138 : vector<2x128xf32>
    %140 = vector.extract_strided_slice %123 {offsets = [0, 128], sizes = [2, 128], strides = [1, 1]} : vector<2x640xf32> to vector<2x128xf32>
    %141 = vector.extract_strided_slice %119 {offsets = [0, 128], sizes = [2, 128], strides = [1, 1]} : vector<2x512xf32> to vector<2x128xf32>
    %142 = arith.addf %140, %141 : vector<2x128xf32>
    %143 = arith.negf %142 : vector<2x128xf32>
    %144 = math.exp %143 : vector<2x128xf32>
    %cst_43 = arith.constant 1.000000e+00 : f32
    %145 = vector.broadcast %cst_43 : f32 to vector<2x128xf32>
    %146 = arith.addf %145, %144 : vector<2x128xf32>
    %147 = arith.divf %145, %146 : vector<2x128xf32>
    %148 = vector.extract_strided_slice %123 {offsets = [0, 256], sizes = [2, 128], strides = [1, 1]} : vector<2x640xf32> to vector<2x128xf32>
    %149 = vector.extract_strided_slice %119 {offsets = [0, 256], sizes = [2, 128], strides = [1, 1]} : vector<2x512xf32> to vector<2x128xf32>
    %150 = arith.addf %148, %149 : vector<2x128xf32>
    %151 = arith.negf %150 : vector<2x128xf32>
    %152 = math.exp %151 : vector<2x128xf32>
    %cst_44 = arith.constant 1.000000e+00 : f32
    %153 = vector.broadcast %cst_44 : f32 to vector<2x128xf32>
    %154 = arith.addf %153, %152 : vector<2x128xf32>
    %155 = arith.divf %153, %154 : vector<2x128xf32>
    %156 = vector.extract_strided_slice %123 {offsets = [0, 384], sizes = [2, 128], strides = [1, 1]} : vector<2x640xf32> to vector<2x128xf32>
    %157 = vector.extract_strided_slice %119 {offsets = [0, 384], sizes = [2, 128], strides = [1, 1]} : vector<2x512xf32> to vector<2x128xf32>
    %158 = arith.addf %156, %157 : vector<2x128xf32>
    %159 = math.tanh %158 : vector<2x128xf32>
    %160 = arith.mulf %147, %131 : vector<2x128xf32>
    %161 = arith.mulf %139, %159 : vector<2x128xf32>
    %162 = arith.addf %160, %161 : vector<2x128xf32>
    %163 = math.tanh %162 : vector<2x128xf32>
    %164 = arith.mulf %155, %163 : vector<2x128xf32>
    %c2 = arith.constant 2 : index
    %c0_45 = arith.constant 0 : index
    %c0_46 = arith.constant 0 : index
    %165 = vector.load %arg14[%c2, %c0_45, %c0_46] : memref<8x2x128xf32, #tpu.memory_space<vmem>>, vector<1x2x128xf32>
    %166 = vector.shape_cast %165 : vector<1x2x128xf32> to vector<2x128xf32>
    %167 = vector.shape_cast %164 : vector<2x128xf32> to vector<1x2x128xf32>
    tpu.vector_store %arg14[%c2, %c0_45, %c0_46], %167 {strides = array<i32>} : memref<8x2x128xf32, #tpu.memory_space<vmem>>, vector<1x2x128xf32>,
    %c0_47 = arith.constant 0 : index
    %c0_48 = arith.constant 0 : index
    %168 = vector.load %arg5[%c0_47, %c0_48] : memref<128x512xf32, #tpu.memory_space<vmem>>, vector<128x512xf32>
    %cst_49 = arith.constant dense<0.000000e+00> : vector<2x512xf32>
    %169 = tpu.matmul %164, %168, %cst_49 {dimension_numbers = #tpu.dot_dimension_numbers<[1], [0], [0], [1], [0, 0, 1, 1], [], []>} : vector<2x128xf32>, vector<128x512xf32>, vector<2x512xf32> -> vector<2x512xf32>
    %c0_50 = arith.constant 0 : index
    %c0_51 = arith.constant 0 : index
    %170 = vector.load %arg6[%c0_50, %c0_51] : memref<128x128xf32, #tpu.memory_space<vmem>>, vector<128x128xf32>
    %cst_52 = arith.constant dense<0.000000e+00> : vector<2x128xf32>
    %171 = tpu.matmul %162, %170, %cst_52 {dimension_numbers = #tpu.dot_dimension_numbers<[1], [0], [0], [1], [0, 0, 1, 1], [], []>} : vector<2x128xf32>, vector<128x128xf32>, vector<2x128xf32> -> vector<2x128xf32>
    %172 = vector.extract_strided_slice %13 {offsets = [3, 0, 0], sizes = [1, 2, 640], strides = [1, 1, 1]} : vector<8x2x640xf32> to vector<1x2x640xf32>
    %173 = vector.shape_cast %172 : vector<1x2x640xf32> to vector<2x640xf32>
    %174 = vector.extract_strided_slice %173 {offsets = [0, 512], sizes = [2, 128], strides = [1, 1]} : vector<2x640xf32> to vector<2x128xf32>
    %175 = arith.addf %174, %171 : vector<2x128xf32>
    %176 = math.tanh %175 : vector<2x128xf32>
    %177 = arith.subf %162, %176 : vector<2x128xf32>
    %178 = vector.extract_strided_slice %15 {offsets = [3, 0, 0], sizes = [1, 2, 128], strides = [1, 1, 1]} : vector<8x2x128xf32> to vector<1x2x128xf32>
    %179 = vector.shape_cast %178 : vector<1x2x128xf32> to vector<2x128xf32>
    %180 = arith.mulf %176, %179 : vector<2x128xf32>
    %181 = arith.addf %177, %180 : vector<2x128xf32>
    %182 = vector.extract_strided_slice %173 {offsets = [0, 0], sizes = [2, 128], strides = [1, 1]} : vector<2x640xf32> to vector<2x128xf32>
    %183 = vector.extract_strided_slice %169 {offsets = [0, 0], sizes = [2, 128], strides = [1, 1]} : vector<2x512xf32> to vector<2x128xf32>
    %184 = arith.addf %182, %183 : vector<2x128xf32>
    %185 = arith.negf %184 : vector<2x128xf32>
    %186 = math.exp %185 : vector<2x128xf32>
    %cst_53 = arith.constant 1.000000e+00 : f32
    %187 = vector.broadcast %cst_53 : f32 to vector<2x128xf32>
    %188 = arith.addf %187, %186 : vector<2x128xf32>
    %189 = arith.divf %187, %188 : vector<2x128xf32>
    %190 = vector.extract_strided_slice %173 {offsets = [0, 128], sizes = [2, 128], strides = [1, 1]} : vector<2x640xf32> to vector<2x128xf32>
    %191 = vector.extract_strided_slice %169 {offsets = [0, 128], sizes = [2, 128], strides = [1, 1]} : vector<2x512xf32> to vector<2x128xf32>
    %192 = arith.addf %190, %191 : vector<2x128xf32>
    %193 = arith.negf %192 : vector<2x128xf32>
    %194 = math.exp %193 : vector<2x128xf32>
    %cst_54 = arith.constant 1.000000e+00 : f32
    %195 = vector.broadcast %cst_54 : f32 to vector<2x128xf32>
    %196 = arith.addf %195, %194 : vector<2x128xf32>
    %197 = arith.divf %195, %196 : vector<2x128xf32>
    %198 = vector.extract_strided_slice %173 {offsets = [0, 256], sizes = [2, 128], strides = [1, 1]} : vector<2x640xf32> to vector<2x128xf32>
    %199 = vector.extract_strided_slice %169 {offsets = [0, 256], sizes = [2, 128], strides = [1, 1]} : vector<2x512xf32> to vector<2x128xf32>
    %200 = arith.addf %198, %199 : vector<2x128xf32>
    %201 = arith.negf %200 : vector<2x128xf32>
    %202 = math.exp %201 : vector<2x128xf32>
    %cst_55 = arith.constant 1.000000e+00 : f32
    %203 = vector.broadcast %cst_55 : f32 to vector<2x128xf32>
    %204 = arith.addf %203, %202 : vector<2x128xf32>
    %205 = arith.divf %203, %204 : vector<2x128xf32>
    %206 = vector.extract_strided_slice %173 {offsets = [0, 384], sizes = [2, 128], strides = [1, 1]} : vector<2x640xf32> to vector<2x128xf32>
    %207 = vector.extract_strided_slice %169 {offsets = [0, 384], sizes = [2, 128], strides = [1, 1]} : vector<2x512xf32> to vector<2x128xf32>
    %208 = arith.addf %206, %207 : vector<2x128xf32>
    %209 = math.tanh %208 : vector<2x128xf32>
    %210 = arith.mulf %197, %181 : vector<2x128xf32>
    %211 = arith.mulf %189, %209 : vector<2x128xf32>
    %212 = arith.addf %210, %211 : vector<2x128xf32>
    %213 = math.tanh %212 : vector<2x128xf32>
    %214 = arith.mulf %205, %213 : vector<2x128xf32>
    %c3 = arith.constant 3 : index
    %c0_56 = arith.constant 0 : index
    %c0_57 = arith.constant 0 : index
    %215 = vector.load %arg14[%c3, %c0_56, %c0_57] : memref<8x2x128xf32, #tpu.memory_space<vmem>>, vector<1x2x128xf32>
    %216 = vector.shape_cast %215 : vector<1x2x128xf32> to vector<2x128xf32>
    %217 = vector.shape_cast %214 : vector<2x128xf32> to vector<1x2x128xf32>
    tpu.vector_store %arg14[%c3, %c0_56, %c0_57], %217 {strides = array<i32>} : memref<8x2x128xf32, #tpu.memory_space<vmem>>, vector<1x2x128xf32>,
    %c0_58 = arith.constant 0 : index
    %c0_59 = arith.constant 0 : index
    %218 = vector.load %arg5[%c0_58, %c0_59] : memref<128x512xf32, #tpu.memory_space<vmem>>, vector<128x512xf32>
    %cst_60 = arith.constant dense<0.000000e+00> : vector<2x512xf32>
    %219 = tpu.matmul %214, %218, %cst_60 {dimension_numbers = #tpu.dot_dimension_numbers<[1], [0], [0], [1], [0, 0, 1, 1], [], []>} : vector<2x128xf32>, vector<128x512xf32>, vector<2x512xf32> -> vector<2x512xf32>
    %c0_61 = arith.constant 0 : index
    %c0_62 = arith.constant 0 : index
    %220 = vector.load %arg6[%c0_61, %c0_62] : memref<128x128xf32, #tpu.memory_space<vmem>>, vector<128x128xf32>
    %cst_63 = arith.constant dense<0.000000e+00> : vector<2x128xf32>
    %221 = tpu.matmul %212, %220, %cst_63 {dimension_numbers = #tpu.dot_dimension_numbers<[1], [0], [0], [1], [0, 0, 1, 1], [], []>} : vector<2x128xf32>, vector<128x128xf32>, vector<2x128xf32> -> vector<2x128xf32>
    %222 = vector.extract_strided_slice %13 {offsets = [4, 0, 0], sizes = [1, 2, 640], strides = [1, 1, 1]} : vector<8x2x640xf32> to vector<1x2x640xf32>
    %223 = vector.shape_cast %222 : vector<1x2x640xf32> to vector<2x640xf32>
    %224 = vector.extract_strided_slice %223 {offsets = [0, 512], sizes = [2, 128], strides = [1, 1]} : vector<2x640xf32> to vector<2x128xf32>
    %225 = arith.addf %224, %221 : vector<2x128xf32>
    %226 = math.tanh %225 : vector<2x128xf32>
    %227 = arith.subf %212, %226 : vector<2x128xf32>
    %228 = vector.extract_strided_slice %15 {offsets = [4, 0, 0], sizes = [1, 2, 128], strides = [1, 1, 1]} : vector<8x2x128xf32> to vector<1x2x128xf32>
    %229 = vector.shape_cast %228 : vector<1x2x128xf32> to vector<2x128xf32>
    %230 = arith.mulf %226, %229 : vector<2x128xf32>
    %231 = arith.addf %227, %230 : vector<2x128xf32>
    %232 = vector.extract_strided_slice %223 {offsets = [0, 0], sizes = [2, 128], strides = [1, 1]} : vector<2x640xf32> to vector<2x128xf32>
    %233 = vector.extract_strided_slice %219 {offsets = [0, 0], sizes = [2, 128], strides = [1, 1]} : vector<2x512xf32> to vector<2x128xf32>
    %234 = arith.addf %232, %233 : vector<2x128xf32>
    %235 = arith.negf %234 : vector<2x128xf32>
    %236 = math.exp %235 : vector<2x128xf32>
    %cst_64 = arith.constant 1.000000e+00 : f32
    %237 = vector.broadcast %cst_64 : f32 to vector<2x128xf32>
    %238 = arith.addf %237, %236 : vector<2x128xf32>
    %239 = arith.divf %237, %238 : vector<2x128xf32>
    %240 = vector.extract_strided_slice %223 {offsets = [0, 128], sizes = [2, 128], strides = [1, 1]} : vector<2x640xf32> to vector<2x128xf32>
    %241 = vector.extract_strided_slice %219 {offsets = [0, 128], sizes = [2, 128], strides = [1, 1]} : vector<2x512xf32> to vector<2x128xf32>
    %242 = arith.addf %240, %241 : vector<2x128xf32>
    %243 = arith.negf %242 : vector<2x128xf32>
    %244 = math.exp %243 : vector<2x128xf32>
    %cst_65 = arith.constant 1.000000e+00 : f32
    %245 = vector.broadcast %cst_65 : f32 to vector<2x128xf32>
    %246 = arith.addf %245, %244 : vector<2x128xf32>
    %247 = arith.divf %245, %246 : vector<2x128xf32>
    %248 = vector.extract_strided_slice %223 {offsets = [0, 256], sizes = [2, 128], strides = [1, 1]} : vector<2x640xf32> to vector<2x128xf32>
    %249 = vector.extract_strided_slice %219 {offsets = [0, 256], sizes = [2, 128], strides = [1, 1]} : vector<2x512xf32> to vector<2x128xf32>
    %250 = arith.addf %248, %249 : vector<2x128xf32>
    %251 = arith.negf %250 : vector<2x128xf32>
    %252 = math.exp %251 : vector<2x128xf32>
    %cst_66 = arith.constant 1.000000e+00 : f32
    %253 = vector.broadcast %cst_66 : f32 to vector<2x128xf32>
    %254 = arith.addf %253, %252 : vector<2x128xf32>
    %255 = arith.divf %253, %254 : vector<2x128xf32>
    %256 = vector.extract_strided_slice %223 {offsets = [0, 384], sizes = [2, 128], strides = [1, 1]} : vector<2x640xf32> to vector<2x128xf32>
    %257 = vector.extract_strided_slice %219 {offsets = [0, 384], sizes = [2, 128], strides = [1, 1]} : vector<2x512xf32> to vector<2x128xf32>
    %258 = arith.addf %256, %257 : vector<2x128xf32>
    %259 = math.tanh %258 : vector<2x128xf32>
    %260 = arith.mulf %247, %231 : vector<2x128xf32>
    %261 = arith.mulf %239, %259 : vector<2x128xf32>
    %262 = arith.addf %260, %261 : vector<2x128xf32>
    %263 = math.tanh %262 : vector<2x128xf32>
    %264 = arith.mulf %255, %263 : vector<2x128xf32>
    %c4 = arith.constant 4 : index
    %c0_67 = arith.constant 0 : index
    %c0_68 = arith.constant 0 : index
    %265 = vector.load %arg14[%c4, %c0_67, %c0_68] : memref<8x2x128xf32, #tpu.memory_space<vmem>>, vector<1x2x128xf32>
    %266 = vector.shape_cast %265 : vector<1x2x128xf32> to vector<2x128xf32>
    %267 = vector.shape_cast %264 : vector<2x128xf32> to vector<1x2x128xf32>
    tpu.vector_store %arg14[%c4, %c0_67, %c0_68], %267 {strides = array<i32>} : memref<8x2x128xf32, #tpu.memory_space<vmem>>, vector<1x2x128xf32>,
    %c0_69 = arith.constant 0 : index
    %c0_70 = arith.constant 0 : index
    %268 = vector.load %arg5[%c0_69, %c0_70] : memref<128x512xf32, #tpu.memory_space<vmem>>, vector<128x512xf32>
    %cst_71 = arith.constant dense<0.000000e+00> : vector<2x512xf32>
    %269 = tpu.matmul %264, %268, %cst_71 {dimension_numbers = #tpu.dot_dimension_numbers<[1], [0], [0], [1], [0, 0, 1, 1], [], []>} : vector<2x128xf32>, vector<128x512xf32>, vector<2x512xf32> -> vector<2x512xf32>
    %c0_72 = arith.constant 0 : index
    %c0_73 = arith.constant 0 : index
    %270 = vector.load %arg6[%c0_72, %c0_73] : memref<128x128xf32, #tpu.memory_space<vmem>>, vector<128x128xf32>
    %cst_74 = arith.constant dense<0.000000e+00> : vector<2x128xf32>
    %271 = tpu.matmul %262, %270, %cst_74 {dimension_numbers = #tpu.dot_dimension_numbers<[1], [0], [0], [1], [0, 0, 1, 1], [], []>} : vector<2x128xf32>, vector<128x128xf32>, vector<2x128xf32> -> vector<2x128xf32>
    %272 = vector.extract_strided_slice %13 {offsets = [5, 0, 0], sizes = [1, 2, 640], strides = [1, 1, 1]} : vector<8x2x640xf32> to vector<1x2x640xf32>
    %273 = vector.shape_cast %272 : vector<1x2x640xf32> to vector<2x640xf32>
    %274 = vector.extract_strided_slice %273 {offsets = [0, 512], sizes = [2, 128], strides = [1, 1]} : vector<2x640xf32> to vector<2x128xf32>
    %275 = arith.addf %274, %271 : vector<2x128xf32>
    %276 = math.tanh %275 : vector<2x128xf32>
    %277 = arith.subf %262, %276 : vector<2x128xf32>
    %278 = vector.extract_strided_slice %15 {offsets = [5, 0, 0], sizes = [1, 2, 128], strides = [1, 1, 1]} : vector<8x2x128xf32> to vector<1x2x128xf32>
    %279 = vector.shape_cast %278 : vector<1x2x128xf32> to vector<2x128xf32>
    %280 = arith.mulf %276, %279 : vector<2x128xf32>
    %281 = arith.addf %277, %280 : vector<2x128xf32>
    %282 = vector.extract_strided_slice %273 {offsets = [0, 0], sizes = [2, 128], strides = [1, 1]} : vector<2x640xf32> to vector<2x128xf32>
    %283 = vector.extract_strided_slice %269 {offsets = [0, 0], sizes = [2, 128], strides = [1, 1]} : vector<2x512xf32> to vector<2x128xf32>
    %284 = arith.addf %282, %283 : vector<2x128xf32>
    %285 = arith.negf %284 : vector<2x128xf32>
    %286 = math.exp %285 : vector<2x128xf32>
    %cst_75 = arith.constant 1.000000e+00 : f32
    %287 = vector.broadcast %cst_75 : f32 to vector<2x128xf32>
    %288 = arith.addf %287, %286 : vector<2x128xf32>
    %289 = arith.divf %287, %288 : vector<2x128xf32>
    %290 = vector.extract_strided_slice %273 {offsets = [0, 128], sizes = [2, 128], strides = [1, 1]} : vector<2x640xf32> to vector<2x128xf32>
    %291 = vector.extract_strided_slice %269 {offsets = [0, 128], sizes = [2, 128], strides = [1, 1]} : vector<2x512xf32> to vector<2x128xf32>
    %292 = arith.addf %290, %291 : vector<2x128xf32>
    %293 = arith.negf %292 : vector<2x128xf32>
    %294 = math.exp %293 : vector<2x128xf32>
    %cst_76 = arith.constant 1.000000e+00 : f32
    %295 = vector.broadcast %cst_76 : f32 to vector<2x128xf32>
    %296 = arith.addf %295, %294 : vector<2x128xf32>
    %297 = arith.divf %295, %296 : vector<2x128xf32>
    %298 = vector.extract_strided_slice %273 {offsets = [0, 256], sizes = [2, 128], strides = [1, 1]} : vector<2x640xf32> to vector<2x128xf32>
    %299 = vector.extract_strided_slice %269 {offsets = [0, 256], sizes = [2, 128], strides = [1, 1]} : vector<2x512xf32> to vector<2x128xf32>
    %300 = arith.addf %298, %299 : vector<2x128xf32>
    %301 = arith.negf %300 : vector<2x128xf32>
    %302 = math.exp %301 : vector<2x128xf32>
    %cst_77 = arith.constant 1.000000e+00 : f32
    %303 = vector.broadcast %cst_77 : f32 to vector<2x128xf32>
    %304 = arith.addf %303, %302 : vector<2x128xf32>
    %305 = arith.divf %303, %304 : vector<2x128xf32>
    %306 = vector.extract_strided_slice %273 {offsets = [0, 384], sizes = [2, 128], strides = [1, 1]} : vector<2x640xf32> to vector<2x128xf32>
    %307 = vector.extract_strided_slice %269 {offsets = [0, 384], sizes = [2, 128], strides = [1, 1]} : vector<2x512xf32> to vector<2x128xf32>
    %308 = arith.addf %306, %307 : vector<2x128xf32>
    %309 = math.tanh %308 : vector<2x128xf32>
    %310 = arith.mulf %297, %281 : vector<2x128xf32>
    %311 = arith.mulf %289, %309 : vector<2x128xf32>
    %312 = arith.addf %310, %311 : vector<2x128xf32>
    %313 = math.tanh %312 : vector<2x128xf32>
    %314 = arith.mulf %305, %313 : vector<2x128xf32>
    %c5 = arith.constant 5 : index
    %c0_78 = arith.constant 0 : index
    %c0_79 = arith.constant 0 : index
    %315 = vector.load %arg14[%c5, %c0_78, %c0_79] : memref<8x2x128xf32, #tpu.memory_space<vmem>>, vector<1x2x128xf32>
    %316 = vector.shape_cast %315 : vector<1x2x128xf32> to vector<2x128xf32>
    %317 = vector.shape_cast %314 : vector<2x128xf32> to vector<1x2x128xf32>
    tpu.vector_store %arg14[%c5, %c0_78, %c0_79], %317 {strides = array<i32>} : memref<8x2x128xf32, #tpu.memory_space<vmem>>, vector<1x2x128xf32>,
    %c0_80 = arith.constant 0 : index
    %c0_81 = arith.constant 0 : index
    %318 = vector.load %arg5[%c0_80, %c0_81] : memref<128x512xf32, #tpu.memory_space<vmem>>, vector<128x512xf32>
    %cst_82 = arith.constant dense<0.000000e+00> : vector<2x512xf32>
    %319 = tpu.matmul %314, %318, %cst_82 {dimension_numbers = #tpu.dot_dimension_numbers<[1], [0], [0], [1], [0, 0, 1, 1], [], []>} : vector<2x128xf32>, vector<128x512xf32>, vector<2x512xf32> -> vector<2x512xf32>
    %c0_83 = arith.constant 0 : index
    %c0_84 = arith.constant 0 : index
    %320 = vector.load %arg6[%c0_83, %c0_84] : memref<128x128xf32, #tpu.memory_space<vmem>>, vector<128x128xf32>
    %cst_85 = arith.constant dense<0.000000e+00> : vector<2x128xf32>
    %321 = tpu.matmul %312, %320, %cst_85 {dimension_numbers = #tpu.dot_dimension_numbers<[1], [0], [0], [1], [0, 0, 1, 1], [], []>} : vector<2x128xf32>, vector<128x128xf32>, vector<2x128xf32> -> vector<2x128xf32>
    %322 = vector.extract_strided_slice %13 {offsets = [6, 0, 0], sizes = [1, 2, 640], strides = [1, 1, 1]} : vector<8x2x640xf32> to vector<1x2x640xf32>
    %323 = vector.shape_cast %322 : vector<1x2x640xf32> to vector<2x640xf32>
    %324 = vector.extract_strided_slice %323 {offsets = [0, 512], sizes = [2, 128], strides = [1, 1]} : vector<2x640xf32> to vector<2x128xf32>
    %325 = arith.addf %324, %321 : vector<2x128xf32>
    %326 = math.tanh %325 : vector<2x128xf32>
    %327 = arith.subf %312, %326 : vector<2x128xf32>
    %328 = vector.extract_strided_slice %15 {offsets = [6, 0, 0], sizes = [1, 2, 128], strides = [1, 1, 1]} : vector<8x2x128xf32> to vector<1x2x128xf32>
    %329 = vector.shape_cast %328 : vector<1x2x128xf32> to vector<2x128xf32>
    %330 = arith.mulf %326, %329 : vector<2x128xf32>
    %331 = arith.addf %327, %330 : vector<2x128xf32>
    %332 = vector.extract_strided_slice %323 {offsets = [0, 0], sizes = [2, 128], strides = [1, 1]} : vector<2x640xf32> to vector<2x128xf32>
    %333 = vector.extract_strided_slice %319 {offsets = [0, 0], sizes = [2, 128], strides = [1, 1]} : vector<2x512xf32> to vector<2x128xf32>
    %334 = arith.addf %332, %333 : vector<2x128xf32>
    %335 = arith.negf %334 : vector<2x128xf32>
    %336 = math.exp %335 : vector<2x128xf32>
    %cst_86 = arith.constant 1.000000e+00 : f32
    %337 = vector.broadcast %cst_86 : f32 to vector<2x128xf32>
    %338 = arith.addf %337, %336 : vector<2x128xf32>
    %339 = arith.divf %337, %338 : vector<2x128xf32>
    %340 = vector.extract_strided_slice %323 {offsets = [0, 128], sizes = [2, 128], strides = [1, 1]} : vector<2x640xf32> to vector<2x128xf32>
    %341 = vector.extract_strided_slice %319 {offsets = [0, 128], sizes = [2, 128], strides = [1, 1]} : vector<2x512xf32> to vector<2x128xf32>
    %342 = arith.addf %340, %341 : vector<2x128xf32>
    %343 = arith.negf %342 : vector<2x128xf32>
    %344 = math.exp %343 : vector<2x128xf32>
    %cst_87 = arith.constant 1.000000e+00 : f32
    %345 = vector.broadcast %cst_87 : f32 to vector<2x128xf32>
    %346 = arith.addf %345, %344 : vector<2x128xf32>
    %347 = arith.divf %345, %346 : vector<2x128xf32>
    %348 = vector.extract_strided_slice %323 {offsets = [0, 256], sizes = [2, 128], strides = [1, 1]} : vector<2x640xf32> to vector<2x128xf32>
    %349 = vector.extract_strided_slice %319 {offsets = [0, 256], sizes = [2, 128], strides = [1, 1]} : vector<2x512xf32> to vector<2x128xf32>
    %350 = arith.addf %348, %349 : vector<2x128xf32>
    %351 = arith.negf %350 : vector<2x128xf32>
    %352 = math.exp %351 : vector<2x128xf32>
    %cst_88 = arith.constant 1.000000e+00 : f32
    %353 = vector.broadcast %cst_88 : f32 to vector<2x128xf32>
    %354 = arith.addf %353, %352 : vector<2x128xf32>
    %355 = arith.divf %353, %354 : vector<2x128xf32>
    %356 = vector.extract_strided_slice %323 {offsets = [0, 384], sizes = [2, 128], strides = [1, 1]} : vector<2x640xf32> to vector<2x128xf32>
    %357 = vector.extract_strided_slice %319 {offsets = [0, 384], sizes = [2, 128], strides = [1, 1]} : vector<2x512xf32> to vector<2x128xf32>
    %358 = arith.addf %356, %357 : vector<2x128xf32>
    %359 = math.tanh %358 : vector<2x128xf32>
    %360 = arith.mulf %347, %331 : vector<2x128xf32>
    %361 = arith.mulf %339, %359 : vector<2x128xf32>
    %362 = arith.addf %360, %361 : vector<2x128xf32>
    %363 = math.tanh %362 : vector<2x128xf32>
    %364 = arith.mulf %355, %363 : vector<2x128xf32>
    %c6 = arith.constant 6 : index
    %c0_89 = arith.constant 0 : index
    %c0_90 = arith.constant 0 : index
    %365 = vector.load %arg14[%c6, %c0_89, %c0_90] : memref<8x2x128xf32, #tpu.memory_space<vmem>>, vector<1x2x128xf32>
    %366 = vector.shape_cast %365 : vector<1x2x128xf32> to vector<2x128xf32>
    %367 = vector.shape_cast %364 : vector<2x128xf32> to vector<1x2x128xf32>
    tpu.vector_store %arg14[%c6, %c0_89, %c0_90], %367 {strides = array<i32>} : memref<8x2x128xf32, #tpu.memory_space<vmem>>, vector<1x2x128xf32>,
    %c0_91 = arith.constant 0 : index
    %c0_92 = arith.constant 0 : index
    %368 = vector.load %arg5[%c0_91, %c0_92] : memref<128x512xf32, #tpu.memory_space<vmem>>, vector<128x512xf32>
    %cst_93 = arith.constant dense<0.000000e+00> : vector<2x512xf32>
    %369 = tpu.matmul %364, %368, %cst_93 {dimension_numbers = #tpu.dot_dimension_numbers<[1], [0], [0], [1], [0, 0, 1, 1], [], []>} : vector<2x128xf32>, vector<128x512xf32>, vector<2x512xf32> -> vector<2x512xf32>
    %c0_94 = arith.constant 0 : index
    %c0_95 = arith.constant 0 : index
    %370 = vector.load %arg6[%c0_94, %c0_95] : memref<128x128xf32, #tpu.memory_space<vmem>>, vector<128x128xf32>
    %cst_96 = arith.constant dense<0.000000e+00> : vector<2x128xf32>
    %371 = tpu.matmul %362, %370, %cst_96 {dimension_numbers = #tpu.dot_dimension_numbers<[1], [0], [0], [1], [0, 0, 1, 1], [], []>} : vector<2x128xf32>, vector<128x128xf32>, vector<2x128xf32> -> vector<2x128xf32>
    %372 = vector.extract_strided_slice %13 {offsets = [7, 0, 0], sizes = [1, 2, 640], strides = [1, 1, 1]} : vector<8x2x640xf32> to vector<1x2x640xf32>
    %373 = vector.shape_cast %372 : vector<1x2x640xf32> to vector<2x640xf32>
    %374 = vector.extract_strided_slice %373 {offsets = [0, 512], sizes = [2, 128], strides = [1, 1]} : vector<2x640xf32> to vector<2x128xf32>
    %375 = arith.addf %374, %371 : vector<2x128xf32>
    %376 = math.tanh %375 : vector<2x128xf32>
    %377 = arith.subf %362, %376 : vector<2x128xf32>
    %378 = vector.extract_strided_slice %15 {offsets = [7, 0, 0], sizes = [1, 2, 128], strides = [1, 1, 1]} : vector<8x2x128xf32> to vector<1x2x128xf32>
    %379 = vector.shape_cast %378 : vector<1x2x128xf32> to vector<2x128xf32>
    %380 = arith.mulf %376, %379 : vector<2x128xf32>
    %381 = arith.addf %377, %380 : vector<2x128xf32>
    %382 = vector.extract_strided_slice %373 {offsets = [0, 0], sizes = [2, 128], strides = [1, 1]} : vector<2x640xf32> to vector<2x128xf32>
    %383 = vector.extract_strided_slice %369 {offsets = [0, 0], sizes = [2, 128], strides = [1, 1]} : vector<2x512xf32> to vector<2x128xf32>
    %384 = arith.addf %382, %383 : vector<2x128xf32>
    %385 = arith.negf %384 : vector<2x128xf32>
    %386 = math.exp %385 : vector<2x128xf32>
    %cst_97 = arith.constant 1.000000e+00 : f32
    %387 = vector.broadcast %cst_97 : f32 to vector<2x128xf32>
    %388 = arith.addf %387, %386 : vector<2x128xf32>
    %389 = arith.divf %387, %388 : vector<2x128xf32>
    %390 = vector.extract_strided_slice %373 {offsets = [0, 128], sizes = [2, 128], strides = [1, 1]} : vector<2x640xf32> to vector<2x128xf32>
    %391 = vector.extract_strided_slice %369 {offsets = [0, 128], sizes = [2, 128], strides = [1, 1]} : vector<2x512xf32> to vector<2x128xf32>
    %392 = arith.addf %390, %391 : vector<2x128xf32>
    %393 = arith.negf %392 : vector<2x128xf32>
    %394 = math.exp %393 : vector<2x128xf32>
    %cst_98 = arith.constant 1.000000e+00 : f32
    %395 = vector.broadcast %cst_98 : f32 to vector<2x128xf32>
    %396 = arith.addf %395, %394 : vector<2x128xf32>
    %397 = arith.divf %395, %396 : vector<2x128xf32>
    %398 = vector.extract_strided_slice %373 {offsets = [0, 256], sizes = [2, 128], strides = [1, 1]} : vector<2x640xf32> to vector<2x128xf32>
    %399 = vector.extract_strided_slice %369 {offsets = [0, 256], sizes = [2, 128], strides = [1, 1]} : vector<2x512xf32> to vector<2x128xf32>
    %400 = arith.addf %398, %399 : vector<2x128xf32>
    %401 = arith.negf %400 : vector<2x128xf32>
    %402 = math.exp %401 : vector<2x128xf32>
    %cst_99 = arith.constant 1.000000e+00 : f32
    %403 = vector.broadcast %cst_99 : f32 to vector<2x128xf32>
    %404 = arith.addf %403, %402 : vector<2x128xf32>
    %405 = arith.divf %403, %404 : vector<2x128xf32>
    %406 = vector.extract_strided_slice %373 {offsets = [0, 384], sizes = [2, 128], strides = [1, 1]} : vector<2x640xf32> to vector<2x128xf32>
    %407 = vector.extract_strided_slice %369 {offsets = [0, 384], sizes = [2, 128], strides = [1, 1]} : vector<2x512xf32> to vector<2x128xf32>
    %408 = arith.addf %406, %407 : vector<2x128xf32>
    %409 = math.tanh %408 : vector<2x128xf32>
    %410 = arith.mulf %397, %381 : vector<2x128xf32>
    %411 = arith.mulf %389, %409 : vector<2x128xf32>
    %412 = arith.addf %410, %411 : vector<2x128xf32>
    %413 = math.tanh %412 : vector<2x128xf32>
    %414 = arith.mulf %405, %413 : vector<2x128xf32>
    %c7 = arith.constant 7 : index
    %c0_100 = arith.constant 0 : index
    %c0_101 = arith.constant 0 : index
    %415 = vector.load %arg14[%c7, %c0_100, %c0_101] : memref<8x2x128xf32, #tpu.memory_space<vmem>>, vector<1x2x128xf32>
    %416 = vector.shape_cast %415 : vector<1x2x128xf32> to vector<2x128xf32>
    %417 = vector.shape_cast %414 : vector<2x128xf32> to vector<1x2x128xf32>
    tpu.vector_store %arg14[%c7, %c0_100, %c0_101], %417 {strides = array<i32>} : memref<8x2x128xf32, #tpu.memory_space<vmem>>, vector<1x2x128xf32>,
    %c0_102 = arith.constant 0 : index
    %c0_103 = arith.constant 0 : index
    %c0_104 = arith.constant 0 : index
    %418 = vector.load %arg14[%c0_102, %c0_103, %c0_104] : memref<8x2x128xf32, #tpu.memory_space<vmem>>, vector<8x2x128xf32>
    %419 = vector.shape_cast %418 : vector<8x2x128xf32> to vector<16x128xf32>
    %c0_105 = arith.constant 0 : index
    %c0_106 = arith.constant 0 : index
    %420 = vector.load %arg7[%c0_105, %c0_106] : memref<128x640xf32, #tpu.memory_space<vmem>>, vector<128x640xf32>
    %cst_107 = arith.constant dense<0.000000e+00> : vector<16x640xf32>
    %421 = tpu.matmul %419, %420, %cst_107 {dimension_numbers = #tpu.dot_dimension_numbers<[1], [0], [0], [1], [0, 0, 1, 1], [], []>} : vector<16x128xf32>, vector<128x640xf32>, vector<16x640xf32> -> vector<16x640xf32>
    %c0_108 = arith.constant 0 : index
    %c0_109 = arith.constant 0 : index
    %422 = vector.load %arg8[%c0_108, %c0_109] : memref<1x640xf32, #tpu.memory_space<vmem>>, vector<1x640xf32>
    %423 = vector.broadcast %422 : vector<1x640xf32> to vector<16x640xf32>
    %424 = arith.addf %421, %423 : vector<16x640xf32>
    %425 = vector.shape_cast %424 : vector<16x640xf32> to vector<8x2x640xf32>
    %426 = vector.shape_cast %5 : vector<8x2x1xf32> to vector<8x2x1xf32>
    %427 = vector.broadcast %426 : vector<8x2x1xf32> to vector<8x2x128xf32>
    %cst_110 = arith.constant 0.000000e+00 : f32
    %428 = vector.broadcast %cst_110 : f32 to vector<2x128xf32>
    %cst_111 = arith.constant 0.000000e+00 : f32
    %429 = vector.broadcast %cst_111 : f32 to vector<2x128xf32>
    %c0_112 = arith.constant 0 : index
    %c0_113 = arith.constant 0 : index
    %430 = vector.load %arg9[%c0_112, %c0_113] : memref<128x512xf32, #tpu.memory_space<vmem>>, vector<128x512xf32>
    %cst_114 = arith.constant dense<0.000000e+00> : vector<2x512xf32>
    %431 = tpu.matmul %428, %430, %cst_114 {dimension_numbers = #tpu.dot_dimension_numbers<[1], [0], [0], [1], [0, 0, 1, 1], [], []>} : vector<2x128xf32>, vector<128x512xf32>, vector<2x512xf32> -> vector<2x512xf32>
    %c0_115 = arith.constant 0 : index
    %c0_116 = arith.constant 0 : index
    %432 = vector.load %arg10[%c0_115, %c0_116] : memref<128x128xf32, #tpu.memory_space<vmem>>, vector<128x128xf32>
    %cst_117 = arith.constant dense<0.000000e+00> : vector<2x128xf32>
    %433 = tpu.matmul %429, %432, %cst_117 {dimension_numbers = #tpu.dot_dimension_numbers<[1], [0], [0], [1], [0, 0, 1, 1], [], []>} : vector<2x128xf32>, vector<128x128xf32>, vector<2x128xf32> -> vector<2x128xf32>
    %434 = vector.extract_strided_slice %425 {offsets = [0, 0, 0], sizes = [1, 2, 640], strides = [1, 1, 1]} : vector<8x2x640xf32> to vector<1x2x640xf32>
    %435 = vector.shape_cast %434 : vector<1x2x640xf32> to vector<2x640xf32>
    %436 = vector.extract_strided_slice %435 {offsets = [0, 512], sizes = [2, 128], strides = [1, 1]} : vector<2x640xf32> to vector<2x128xf32>
    %437 = arith.addf %436, %433 : vector<2x128xf32>
    %438 = math.tanh %437 : vector<2x128xf32>
    %439 = arith.subf %429, %438 : vector<2x128xf32>
    %440 = vector.extract_strided_slice %427 {offsets = [0, 0, 0], sizes = [1, 2, 128], strides = [1, 1, 1]} : vector<8x2x128xf32> to vector<1x2x128xf32>
    %441 = vector.shape_cast %440 : vector<1x2x128xf32> to vector<2x128xf32>
    %442 = arith.mulf %438, %441 : vector<2x128xf32>
    %443 = arith.addf %439, %442 : vector<2x128xf32>
    %444 = vector.extract_strided_slice %435 {offsets = [0, 0], sizes = [2, 128], strides = [1, 1]} : vector<2x640xf32> to vector<2x128xf32>
    %445 = vector.extract_strided_slice %431 {offsets = [0, 0], sizes = [2, 128], strides = [1, 1]} : vector<2x512xf32> to vector<2x128xf32>
    %446 = arith.addf %444, %445 : vector<2x128xf32>
    %447 = arith.negf %446 : vector<2x128xf32>
    %448 = math.exp %447 : vector<2x128xf32>
    %cst_118 = arith.constant 1.000000e+00 : f32
    %449 = vector.broadcast %cst_118 : f32 to vector<2x128xf32>
    %450 = arith.addf %449, %448 : vector<2x128xf32>
    %451 = arith.divf %449, %450 : vector<2x128xf32>
    %452 = vector.extract_strided_slice %435 {offsets = [0, 128], sizes = [2, 128], strides = [1, 1]} : vector<2x640xf32> to vector<2x128xf32>
    %453 = vector.extract_strided_slice %431 {offsets = [0, 128], sizes = [2, 128], strides = [1, 1]} : vector<2x512xf32> to vector<2x128xf32>
    %454 = arith.addf %452, %453 : vector<2x128xf32>
    %455 = arith.negf %454 : vector<2x128xf32>
    %456 = math.exp %455 : vector<2x128xf32>
    %cst_119 = arith.constant 1.000000e+00 : f32
    %457 = vector.broadcast %cst_119 : f32 to vector<2x128xf32>
    %458 = arith.addf %457, %456 : vector<2x128xf32>
    %459 = arith.divf %457, %458 : vector<2x128xf32>
    %460 = vector.extract_strided_slice %435 {offsets = [0, 256], sizes = [2, 128], strides = [1, 1]} : vector<2x640xf32> to vector<2x128xf32>
    %461 = vector.extract_strided_slice %431 {offsets = [0, 256], sizes = [2, 128], strides = [1, 1]} : vector<2x512xf32> to vector<2x128xf32>
    %462 = arith.addf %460, %461 : vector<2x128xf32>
    %463 = arith.negf %462 : vector<2x128xf32>
    %464 = math.exp %463 : vector<2x128xf32>
    %cst_120 = arith.constant 1.000000e+00 : f32
    %465 = vector.broadcast %cst_120 : f32 to vector<2x128xf32>
    %466 = arith.addf %465, %464 : vector<2x128xf32>
    %467 = arith.divf %465, %466 : vector<2x128xf32>
    %468 = vector.extract_strided_slice %435 {offsets = [0, 384], sizes = [2, 128], strides = [1, 1]} : vector<2x640xf32> to vector<2x128xf32>
    %469 = vector.extract_strided_slice %431 {offsets = [0, 384], sizes = [2, 128], strides = [1, 1]} : vector<2x512xf32> to vector<2x128xf32>
    %470 = arith.addf %468, %469 : vector<2x128xf32>
    %471 = math.tanh %470 : vector<2x128xf32>
    %472 = arith.mulf %459, %443 : vector<2x128xf32>
    %473 = arith.mulf %451, %471 : vector<2x128xf32>
    %474 = arith.addf %472, %473 : vector<2x128xf32>
    %475 = math.tanh %474 : vector<2x128xf32>
    %476 = arith.mulf %467, %475 : vector<2x128xf32>
    %c0_121 = arith.constant 0 : index
    %c0_122 = arith.constant 0 : index
    %c0_123 = arith.constant 0 : index
    %477 = vector.load %arg15[%c0_121, %c0_122, %c0_123] : memref<8x2x128xf32, #tpu.memory_space<vmem>>, vector<1x2x128xf32>
    %478 = vector.shape_cast %477 : vector<1x2x128xf32> to vector<2x128xf32>
    %479 = vector.shape_cast %476 : vector<2x128xf32> to vector<1x2x128xf32>
    tpu.vector_store %arg15[%c0_121, %c0_122, %c0_123], %479 {strides = array<i32>} : memref<8x2x128xf32, #tpu.memory_space<vmem>>, vector<1x2x128xf32>,
    %c0_124 = arith.constant 0 : index
    %c0_125 = arith.constant 0 : index
    %480 = vector.load %arg9[%c0_124, %c0_125] : memref<128x512xf32, #tpu.memory_space<vmem>>, vector<128x512xf32>
    %cst_126 = arith.constant dense<0.000000e+00> : vector<2x512xf32>
    %481 = tpu.matmul %476, %480, %cst_126 {dimension_numbers = #tpu.dot_dimension_numbers<[1], [0], [0], [1], [0, 0, 1, 1], [], []>} : vector<2x128xf32>, vector<128x512xf32>, vector<2x512xf32> -> vector<2x512xf32>
    %c0_127 = arith.constant 0 : index
    %c0_128 = arith.constant 0 : index
    %482 = vector.load %arg10[%c0_127, %c0_128] : memref<128x128xf32, #tpu.memory_space<vmem>>, vector<128x128xf32>
    %cst_129 = arith.constant dense<0.000000e+00> : vector<2x128xf32>
    %483 = tpu.matmul %474, %482, %cst_129 {dimension_numbers = #tpu.dot_dimension_numbers<[1], [0], [0], [1], [0, 0, 1, 1], [], []>} : vector<2x128xf32>, vector<128x128xf32>, vector<2x128xf32> -> vector<2x128xf32>
    %484 = vector.extract_strided_slice %425 {offsets = [1, 0, 0], sizes = [1, 2, 640], strides = [1, 1, 1]} : vector<8x2x640xf32> to vector<1x2x640xf32>
    %485 = vector.shape_cast %484 : vector<1x2x640xf32> to vector<2x640xf32>
    %486 = vector.extract_strided_slice %485 {offsets = [0, 512], sizes = [2, 128], strides = [1, 1]} : vector<2x640xf32> to vector<2x128xf32>
    %487 = arith.addf %486, %483 : vector<2x128xf32>
    %488 = math.tanh %487 : vector<2x128xf32>
    %489 = arith.subf %474, %488 : vector<2x128xf32>
    %490 = vector.extract_strided_slice %427 {offsets = [1, 0, 0], sizes = [1, 2, 128], strides = [1, 1, 1]} : vector<8x2x128xf32> to vector<1x2x128xf32>
    %491 = vector.shape_cast %490 : vector<1x2x128xf32> to vector<2x128xf32>
    %492 = arith.mulf %488, %491 : vector<2x128xf32>
    %493 = arith.addf %489, %492 : vector<2x128xf32>
    %494 = vector.extract_strided_slice %485 {offsets = [0, 0], sizes = [2, 128], strides = [1, 1]} : vector<2x640xf32> to vector<2x128xf32>
    %495 = vector.extract_strided_slice %481 {offsets = [0, 0], sizes = [2, 128], strides = [1, 1]} : vector<2x512xf32> to vector<2x128xf32>
    %496 = arith.addf %494, %495 : vector<2x128xf32>
    %497 = arith.negf %496 : vector<2x128xf32>
    %498 = math.exp %497 : vector<2x128xf32>
    %cst_130 = arith.constant 1.000000e+00 : f32
    %499 = vector.broadcast %cst_130 : f32 to vector<2x128xf32>
    %500 = arith.addf %499, %498 : vector<2x128xf32>
    %501 = arith.divf %499, %500 : vector<2x128xf32>
    %502 = vector.extract_strided_slice %485 {offsets = [0, 128], sizes = [2, 128], strides = [1, 1]} : vector<2x640xf32> to vector<2x128xf32>
    %503 = vector.extract_strided_slice %481 {offsets = [0, 128], sizes = [2, 128], strides = [1, 1]} : vector<2x512xf32> to vector<2x128xf32>
    %504 = arith.addf %502, %503 : vector<2x128xf32>
    %505 = arith.negf %504 : vector<2x128xf32>
    %506 = math.exp %505 : vector<2x128xf32>
    %cst_131 = arith.constant 1.000000e+00 : f32
    %507 = vector.broadcast %cst_131 : f32 to vector<2x128xf32>
    %508 = arith.addf %507, %506 : vector<2x128xf32>
    %509 = arith.divf %507, %508 : vector<2x128xf32>
    %510 = vector.extract_strided_slice %485 {offsets = [0, 256], sizes = [2, 128], strides = [1, 1]} : vector<2x640xf32> to vector<2x128xf32>
    %511 = vector.extract_strided_slice %481 {offsets = [0, 256], sizes = [2, 128], strides = [1, 1]} : vector<2x512xf32> to vector<2x128xf32>
    %512 = arith.addf %510, %511 : vector<2x128xf32>
    %513 = arith.negf %512 : vector<2x128xf32>
    %514 = math.exp %513 : vector<2x128xf32>
    %cst_132 = arith.constant 1.000000e+00 : f32
    %515 = vector.broadcast %cst_132 : f32 to vector<2x128xf32>
    %516 = arith.addf %515, %514 : vector<2x128xf32>
    %517 = arith.divf %515, %516 : vector<2x128xf32>
    %518 = vector.extract_strided_slice %485 {offsets = [0, 384], sizes = [2, 128], strides = [1, 1]} : vector<2x640xf32> to vector<2x128xf32>
    %519 = vector.extract_strided_slice %481 {offsets = [0, 384], sizes = [2, 128], strides = [1, 1]} : vector<2x512xf32> to vector<2x128xf32>
    %520 = arith.addf %518, %519 : vector<2x128xf32>
    %521 = math.tanh %520 : vector<2x128xf32>
    %522 = arith.mulf %509, %493 : vector<2x128xf32>
    %523 = arith.mulf %501, %521 : vector<2x128xf32>
    %524 = arith.addf %522, %523 : vector<2x128xf32>
    %525 = math.tanh %524 : vector<2x128xf32>
    %526 = arith.mulf %517, %525 : vector<2x128xf32>
    %c1_133 = arith.constant 1 : index
    %c0_134 = arith.constant 0 : index
    %c0_135 = arith.constant 0 : index
    %527 = vector.load %arg15[%c1_133, %c0_134, %c0_135] : memref<8x2x128xf32, #tpu.memory_space<vmem>>, vector<1x2x128xf32>
    %528 = vector.shape_cast %527 : vector<1x2x128xf32> to vector<2x128xf32>
    %529 = vector.shape_cast %526 : vector<2x128xf32> to vector<1x2x128xf32>
    tpu.vector_store %arg15[%c1_133, %c0_134, %c0_135], %529 {strides = array<i32>} : memref<8x2x128xf32, #tpu.memory_space<vmem>>, vector<1x2x128xf32>,
    %c0_136 = arith.constant 0 : index
    %c0_137 = arith.constant 0 : index
    %530 = vector.load %arg9[%c0_136, %c0_137] : memref<128x512xf32, #tpu.memory_space<vmem>>, vector<128x512xf32>
    %cst_138 = arith.constant dense<0.000000e+00> : vector<2x512xf32>
    %531 = tpu.matmul %526, %530, %cst_138 {dimension_numbers = #tpu.dot_dimension_numbers<[1], [0], [0], [1], [0, 0, 1, 1], [], []>} : vector<2x128xf32>, vector<128x512xf32>, vector<2x512xf32> -> vector<2x512xf32>
    %c0_139 = arith.constant 0 : index
    %c0_140 = arith.constant 0 : index
    %532 = vector.load %arg10[%c0_139, %c0_140] : memref<128x128xf32, #tpu.memory_space<vmem>>, vector<128x128xf32>
    %cst_141 = arith.constant dense<0.000000e+00> : vector<2x128xf32>
    %533 = tpu.matmul %524, %532, %cst_141 {dimension_numbers = #tpu.dot_dimension_numbers<[1], [0], [0], [1], [0, 0, 1, 1], [], []>} : vector<2x128xf32>, vector<128x128xf32>, vector<2x128xf32> -> vector<2x128xf32>
    %534 = vector.extract_strided_slice %425 {offsets = [2, 0, 0], sizes = [1, 2, 640], strides = [1, 1, 1]} : vector<8x2x640xf32> to vector<1x2x640xf32>
    %535 = vector.shape_cast %534 : vector<1x2x640xf32> to vector<2x640xf32>
    %536 = vector.extract_strided_slice %535 {offsets = [0, 512], sizes = [2, 128], strides = [1, 1]} : vector<2x640xf32> to vector<2x128xf32>
    %537 = arith.addf %536, %533 : vector<2x128xf32>
    %538 = math.tanh %537 : vector<2x128xf32>
    %539 = arith.subf %524, %538 : vector<2x128xf32>
    %540 = vector.extract_strided_slice %427 {offsets = [2, 0, 0], sizes = [1, 2, 128], strides = [1, 1, 1]} : vector<8x2x128xf32> to vector<1x2x128xf32>
    %541 = vector.shape_cast %540 : vector<1x2x128xf32> to vector<2x128xf32>
    %542 = arith.mulf %538, %541 : vector<2x128xf32>
    %543 = arith.addf %539, %542 : vector<2x128xf32>
    %544 = vector.extract_strided_slice %535 {offsets = [0, 0], sizes = [2, 128], strides = [1, 1]} : vector<2x640xf32> to vector<2x128xf32>
    %545 = vector.extract_strided_slice %531 {offsets = [0, 0], sizes = [2, 128], strides = [1, 1]} : vector<2x512xf32> to vector<2x128xf32>
    %546 = arith.addf %544, %545 : vector<2x128xf32>
    %547 = arith.negf %546 : vector<2x128xf32>
    %548 = math.exp %547 : vector<2x128xf32>
    %cst_142 = arith.constant 1.000000e+00 : f32
    %549 = vector.broadcast %cst_142 : f32 to vector<2x128xf32>
    %550 = arith.addf %549, %548 : vector<2x128xf32>
    %551 = arith.divf %549, %550 : vector<2x128xf32>
    %552 = vector.extract_strided_slice %535 {offsets = [0, 128], sizes = [2, 128], strides = [1, 1]} : vector<2x640xf32> to vector<2x128xf32>
    %553 = vector.extract_strided_slice %531 {offsets = [0, 128], sizes = [2, 128], strides = [1, 1]} : vector<2x512xf32> to vector<2x128xf32>
    %554 = arith.addf %552, %553 : vector<2x128xf32>
    %555 = arith.negf %554 : vector<2x128xf32>
    %556 = math.exp %555 : vector<2x128xf32>
    %cst_143 = arith.constant 1.000000e+00 : f32
    %557 = vector.broadcast %cst_143 : f32 to vector<2x128xf32>
    %558 = arith.addf %557, %556 : vector<2x128xf32>
    %559 = arith.divf %557, %558 : vector<2x128xf32>
    %560 = vector.extract_strided_slice %535 {offsets = [0, 256], sizes = [2, 128], strides = [1, 1]} : vector<2x640xf32> to vector<2x128xf32>
    %561 = vector.extract_strided_slice %531 {offsets = [0, 256], sizes = [2, 128], strides = [1, 1]} : vector<2x512xf32> to vector<2x128xf32>
    %562 = arith.addf %560, %561 : vector<2x128xf32>
    %563 = arith.negf %562 : vector<2x128xf32>
    %564 = math.exp %563 : vector<2x128xf32>
    %cst_144 = arith.constant 1.000000e+00 : f32
    %565 = vector.broadcast %cst_144 : f32 to vector<2x128xf32>
    %566 = arith.addf %565, %564 : vector<2x128xf32>
    %567 = arith.divf %565, %566 : vector<2x128xf32>
    %568 = vector.extract_strided_slice %535 {offsets = [0, 384], sizes = [2, 128], strides = [1, 1]} : vector<2x640xf32> to vector<2x128xf32>
    %569 = vector.extract_strided_slice %531 {offsets = [0, 384], sizes = [2, 128], strides = [1, 1]} : vector<2x512xf32> to vector<2x128xf32>
    %570 = arith.addf %568, %569 : vector<2x128xf32>
    %571 = math.tanh %570 : vector<2x128xf32>
    %572 = arith.mulf %559, %543 : vector<2x128xf32>
    %573 = arith.mulf %551, %571 : vector<2x128xf32>
    %574 = arith.addf %572, %573 : vector<2x128xf32>
    %575 = math.tanh %574 : vector<2x128xf32>
    %576 = arith.mulf %567, %575 : vector<2x128xf32>
    %c2_145 = arith.constant 2 : index
    %c0_146 = arith.constant 0 : index
    %c0_147 = arith.constant 0 : index
    %577 = vector.load %arg15[%c2_145, %c0_146, %c0_147] : memref<8x2x128xf32, #tpu.memory_space<vmem>>, vector<1x2x128xf32>
    %578 = vector.shape_cast %577 : vector<1x2x128xf32> to vector<2x128xf32>
    %579 = vector.shape_cast %576 : vector<2x128xf32> to vector<1x2x128xf32>
    tpu.vector_store %arg15[%c2_145, %c0_146, %c0_147], %579 {strides = array<i32>} : memref<8x2x128xf32, #tpu.memory_space<vmem>>, vector<1x2x128xf32>,
    %c0_148 = arith.constant 0 : index
    %c0_149 = arith.constant 0 : index
    %580 = vector.load %arg9[%c0_148, %c0_149] : memref<128x512xf32, #tpu.memory_space<vmem>>, vector<128x512xf32>
    %cst_150 = arith.constant dense<0.000000e+00> : vector<2x512xf32>
    %581 = tpu.matmul %576, %580, %cst_150 {dimension_numbers = #tpu.dot_dimension_numbers<[1], [0], [0], [1], [0, 0, 1, 1], [], []>} : vector<2x128xf32>, vector<128x512xf32>, vector<2x512xf32> -> vector<2x512xf32>
    %c0_151 = arith.constant 0 : index
    %c0_152 = arith.constant 0 : index
    %582 = vector.load %arg10[%c0_151, %c0_152] : memref<128x128xf32, #tpu.memory_space<vmem>>, vector<128x128xf32>
    %cst_153 = arith.constant dense<0.000000e+00> : vector<2x128xf32>
    %583 = tpu.matmul %574, %582, %cst_153 {dimension_numbers = #tpu.dot_dimension_numbers<[1], [0], [0], [1], [0, 0, 1, 1], [], []>} : vector<2x128xf32>, vector<128x128xf32>, vector<2x128xf32> -> vector<2x128xf32>
    %584 = vector.extract_strided_slice %425 {offsets = [3, 0, 0], sizes = [1, 2, 640], strides = [1, 1, 1]} : vector<8x2x640xf32> to vector<1x2x640xf32>
    %585 = vector.shape_cast %584 : vector<1x2x640xf32> to vector<2x640xf32>
    %586 = vector.extract_strided_slice %585 {offsets = [0, 512], sizes = [2, 128], strides = [1, 1]} : vector<2x640xf32> to vector<2x128xf32>
    %587 = arith.addf %586, %583 : vector<2x128xf32>
    %588 = math.tanh %587 : vector<2x128xf32>
    %589 = arith.subf %574, %588 : vector<2x128xf32>
    %590 = vector.extract_strided_slice %427 {offsets = [3, 0, 0], sizes = [1, 2, 128], strides = [1, 1, 1]} : vector<8x2x128xf32> to vector<1x2x128xf32>
    %591 = vector.shape_cast %590 : vector<1x2x128xf32> to vector<2x128xf32>
    %592 = arith.mulf %588, %591 : vector<2x128xf32>
    %593 = arith.addf %589, %592 : vector<2x128xf32>
    %594 = vector.extract_strided_slice %585 {offsets = [0, 0], sizes = [2, 128], strides = [1, 1]} : vector<2x640xf32> to vector<2x128xf32>
    %595 = vector.extract_strided_slice %581 {offsets = [0, 0], sizes = [2, 128], strides = [1, 1]} : vector<2x512xf32> to vector<2x128xf32>
    %596 = arith.addf %594, %595 : vector<2x128xf32>
    %597 = arith.negf %596 : vector<2x128xf32>
    %598 = math.exp %597 : vector<2x128xf32>
    %cst_154 = arith.constant 1.000000e+00 : f32
    %599 = vector.broadcast %cst_154 : f32 to vector<2x128xf32>
    %600 = arith.addf %599, %598 : vector<2x128xf32>
    %601 = arith.divf %599, %600 : vector<2x128xf32>
    %602 = vector.extract_strided_slice %585 {offsets = [0, 128], sizes = [2, 128], strides = [1, 1]} : vector<2x640xf32> to vector<2x128xf32>
    %603 = vector.extract_strided_slice %581 {offsets = [0, 128], sizes = [2, 128], strides = [1, 1]} : vector<2x512xf32> to vector<2x128xf32>
    %604 = arith.addf %602, %603 : vector<2x128xf32>
    %605 = arith.negf %604 : vector<2x128xf32>
    %606 = math.exp %605 : vector<2x128xf32>
    %cst_155 = arith.constant 1.000000e+00 : f32
    %607 = vector.broadcast %cst_155 : f32 to vector<2x128xf32>
    %608 = arith.addf %607, %606 : vector<2x128xf32>
    %609 = arith.divf %607, %608 : vector<2x128xf32>
    %610 = vector.extract_strided_slice %585 {offsets = [0, 256], sizes = [2, 128], strides = [1, 1]} : vector<2x640xf32> to vector<2x128xf32>
    %611 = vector.extract_strided_slice %581 {offsets = [0, 256], sizes = [2, 128], strides = [1, 1]} : vector<2x512xf32> to vector<2x128xf32>
    %612 = arith.addf %610, %611 : vector<2x128xf32>
    %613 = arith.negf %612 : vector<2x128xf32>
    %614 = math.exp %613 : vector<2x128xf32>
    %cst_156 = arith.constant 1.000000e+00 : f32
    %615 = vector.broadcast %cst_156 : f32 to vector<2x128xf32>
    %616 = arith.addf %615, %614 : vector<2x128xf32>
    %617 = arith.divf %615, %616 : vector<2x128xf32>
    %618 = vector.extract_strided_slice %585 {offsets = [0, 384], sizes = [2, 128], strides = [1, 1]} : vector<2x640xf32> to vector<2x128xf32>
    %619 = vector.extract_strided_slice %581 {offsets = [0, 384], sizes = [2, 128], strides = [1, 1]} : vector<2x512xf32> to vector<2x128xf32>
    %620 = arith.addf %618, %619 : vector<2x128xf32>
    %621 = math.tanh %620 : vector<2x128xf32>
    %622 = arith.mulf %609, %593 : vector<2x128xf32>
    %623 = arith.mulf %601, %621 : vector<2x128xf32>
    %624 = arith.addf %622, %623 : vector<2x128xf32>
    %625 = math.tanh %624 : vector<2x128xf32>
    %626 = arith.mulf %617, %625 : vector<2x128xf32>
    %c3_157 = arith.constant 3 : index
    %c0_158 = arith.constant 0 : index
    %c0_159 = arith.constant 0 : index
    %627 = vector.load %arg15[%c3_157, %c0_158, %c0_159] : memref<8x2x128xf32, #tpu.memory_space<vmem>>, vector<1x2x128xf32>
    %628 = vector.shape_cast %627 : vector<1x2x128xf32> to vector<2x128xf32>
    %629 = vector.shape_cast %626 : vector<2x128xf32> to vector<1x2x128xf32>
    tpu.vector_store %arg15[%c3_157, %c0_158, %c0_159], %629 {strides = array<i32>} : memref<8x2x128xf32, #tpu.memory_space<vmem>>, vector<1x2x128xf32>,
    %c0_160 = arith.constant 0 : index
    %c0_161 = arith.constant 0 : index
    %630 = vector.load %arg9[%c0_160, %c0_161] : memref<128x512xf32, #tpu.memory_space<vmem>>, vector<128x512xf32>
    %cst_162 = arith.constant dense<0.000000e+00> : vector<2x512xf32>
    %631 = tpu.matmul %626, %630, %cst_162 {dimension_numbers = #tpu.dot_dimension_numbers<[1], [0], [0], [1], [0, 0, 1, 1], [], []>} : vector<2x128xf32>, vector<128x512xf32>, vector<2x512xf32> -> vector<2x512xf32>
    %c0_163 = arith.constant 0 : index
    %c0_164 = arith.constant 0 : index
    %632 = vector.load %arg10[%c0_163, %c0_164] : memref<128x128xf32, #tpu.memory_space<vmem>>, vector<128x128xf32>
    %cst_165 = arith.constant dense<0.000000e+00> : vector<2x128xf32>
    %633 = tpu.matmul %624, %632, %cst_165 {dimension_numbers = #tpu.dot_dimension_numbers<[1], [0], [0], [1], [0, 0, 1, 1], [], []>} : vector<2x128xf32>, vector<128x128xf32>, vector<2x128xf32> -> vector<2x128xf32>
    %634 = vector.extract_strided_slice %425 {offsets = [4, 0, 0], sizes = [1, 2, 640], strides = [1, 1, 1]} : vector<8x2x640xf32> to vector<1x2x640xf32>
    %635 = vector.shape_cast %634 : vector<1x2x640xf32> to vector<2x640xf32>
    %636 = vector.extract_strided_slice %635 {offsets = [0, 512], sizes = [2, 128], strides = [1, 1]} : vector<2x640xf32> to vector<2x128xf32>
    %637 = arith.addf %636, %633 : vector<2x128xf32>
    %638 = math.tanh %637 : vector<2x128xf32>
    %639 = arith.subf %624, %638 : vector<2x128xf32>
    %640 = vector.extract_strided_slice %427 {offsets = [4, 0, 0], sizes = [1, 2, 128], strides = [1, 1, 1]} : vector<8x2x128xf32> to vector<1x2x128xf32>
    %641 = vector.shape_cast %640 : vector<1x2x128xf32> to vector<2x128xf32>
    %642 = arith.mulf %638, %641 : vector<2x128xf32>
    %643 = arith.addf %639, %642 : vector<2x128xf32>
    %644 = vector.extract_strided_slice %635 {offsets = [0, 0], sizes = [2, 128], strides = [1, 1]} : vector<2x640xf32> to vector<2x128xf32>
    %645 = vector.extract_strided_slice %631 {offsets = [0, 0], sizes = [2, 128], strides = [1, 1]} : vector<2x512xf32> to vector<2x128xf32>
    %646 = arith.addf %644, %645 : vector<2x128xf32>
    %647 = arith.negf %646 : vector<2x128xf32>
    %648 = math.exp %647 : vector<2x128xf32>
    %cst_166 = arith.constant 1.000000e+00 : f32
    %649 = vector.broadcast %cst_166 : f32 to vector<2x128xf32>
    %650 = arith.addf %649, %648 : vector<2x128xf32>
    %651 = arith.divf %649, %650 : vector<2x128xf32>
    %652 = vector.extract_strided_slice %635 {offsets = [0, 128], sizes = [2, 128], strides = [1, 1]} : vector<2x640xf32> to vector<2x128xf32>
    %653 = vector.extract_strided_slice %631 {offsets = [0, 128], sizes = [2, 128], strides = [1, 1]} : vector<2x512xf32> to vector<2x128xf32>
    %654 = arith.addf %652, %653 : vector<2x128xf32>
    %655 = arith.negf %654 : vector<2x128xf32>
    %656 = math.exp %655 : vector<2x128xf32>
    %cst_167 = arith.constant 1.000000e+00 : f32
    %657 = vector.broadcast %cst_167 : f32 to vector<2x128xf32>
    %658 = arith.addf %657, %656 : vector<2x128xf32>
    %659 = arith.divf %657, %658 : vector<2x128xf32>
    %660 = vector.extract_strided_slice %635 {offsets = [0, 256], sizes = [2, 128], strides = [1, 1]} : vector<2x640xf32> to vector<2x128xf32>
    %661 = vector.extract_strided_slice %631 {offsets = [0, 256], sizes = [2, 128], strides = [1, 1]} : vector<2x512xf32> to vector<2x128xf32>
    %662 = arith.addf %660, %661 : vector<2x128xf32>
    %663 = arith.negf %662 : vector<2x128xf32>
    %664 = math.exp %663 : vector<2x128xf32>
    %cst_168 = arith.constant 1.000000e+00 : f32
    %665 = vector.broadcast %cst_168 : f32 to vector<2x128xf32>
    %666 = arith.addf %665, %664 : vector<2x128xf32>
    %667 = arith.divf %665, %666 : vector<2x128xf32>
    %668 = vector.extract_strided_slice %635 {offsets = [0, 384], sizes = [2, 128], strides = [1, 1]} : vector<2x640xf32> to vector<2x128xf32>
    %669 = vector.extract_strided_slice %631 {offsets = [0, 384], sizes = [2, 128], strides = [1, 1]} : vector<2x512xf32> to vector<2x128xf32>
    %670 = arith.addf %668, %669 : vector<2x128xf32>
    %671 = math.tanh %670 : vector<2x128xf32>
    %672 = arith.mulf %659, %643 : vector<2x128xf32>
    %673 = arith.mulf %651, %671 : vector<2x128xf32>
    %674 = arith.addf %672, %673 : vector<2x128xf32>
    %675 = math.tanh %674 : vector<2x128xf32>
    %676 = arith.mulf %667, %675 : vector<2x128xf32>
    %c4_169 = arith.constant 4 : index
    %c0_170 = arith.constant 0 : index
    %c0_171 = arith.constant 0 : index
    %677 = vector.load %arg15[%c4_169, %c0_170, %c0_171] : memref<8x2x128xf32, #tpu.memory_space<vmem>>, vector<1x2x128xf32>
    %678 = vector.shape_cast %677 : vector<1x2x128xf32> to vector<2x128xf32>
    %679 = vector.shape_cast %676 : vector<2x128xf32> to vector<1x2x128xf32>
    tpu.vector_store %arg15[%c4_169, %c0_170, %c0_171], %679 {strides = array<i32>} : memref<8x2x128xf32, #tpu.memory_space<vmem>>, vector<1x2x128xf32>,
    %c0_172 = arith.constant 0 : index
    %c0_173 = arith.constant 0 : index
    %680 = vector.load %arg9[%c0_172, %c0_173] : memref<128x512xf32, #tpu.memory_space<vmem>>, vector<128x512xf32>
    %cst_174 = arith.constant dense<0.000000e+00> : vector<2x512xf32>
    %681 = tpu.matmul %676, %680, %cst_174 {dimension_numbers = #tpu.dot_dimension_numbers<[1], [0], [0], [1], [0, 0, 1, 1], [], []>} : vector<2x128xf32>, vector<128x512xf32>, vector<2x512xf32> -> vector<2x512xf32>
    %c0_175 = arith.constant 0 : index
    %c0_176 = arith.constant 0 : index
    %682 = vector.load %arg10[%c0_175, %c0_176] : memref<128x128xf32, #tpu.memory_space<vmem>>, vector<128x128xf32>
    %cst_177 = arith.constant dense<0.000000e+00> : vector<2x128xf32>
    %683 = tpu.matmul %674, %682, %cst_177 {dimension_numbers = #tpu.dot_dimension_numbers<[1], [0], [0], [1], [0, 0, 1, 1], [], []>} : vector<2x128xf32>, vector<128x128xf32>, vector<2x128xf32> -> vector<2x128xf32>
    %684 = vector.extract_strided_slice %425 {offsets = [5, 0, 0], sizes = [1, 2, 640], strides = [1, 1, 1]} : vector<8x2x640xf32> to vector<1x2x640xf32>
    %685 = vector.shape_cast %684 : vector<1x2x640xf32> to vector<2x640xf32>
    %686 = vector.extract_strided_slice %685 {offsets = [0, 512], sizes = [2, 128], strides = [1, 1]} : vector<2x640xf32> to vector<2x128xf32>
    %687 = arith.addf %686, %683 : vector<2x128xf32>
    %688 = math.tanh %687 : vector<2x128xf32>
    %689 = arith.subf %674, %688 : vector<2x128xf32>
    %690 = vector.extract_strided_slice %427 {offsets = [5, 0, 0], sizes = [1, 2, 128], strides = [1, 1, 1]} : vector<8x2x128xf32> to vector<1x2x128xf32>
    %691 = vector.shape_cast %690 : vector<1x2x128xf32> to vector<2x128xf32>
    %692 = arith.mulf %688, %691 : vector<2x128xf32>
    %693 = arith.addf %689, %692 : vector<2x128xf32>
    %694 = vector.extract_strided_slice %685 {offsets = [0, 0], sizes = [2, 128], strides = [1, 1]} : vector<2x640xf32> to vector<2x128xf32>
    %695 = vector.extract_strided_slice %681 {offsets = [0, 0], sizes = [2, 128], strides = [1, 1]} : vector<2x512xf32> to vector<2x128xf32>
    %696 = arith.addf %694, %695 : vector<2x128xf32>
    %697 = arith.negf %696 : vector<2x128xf32>
    %698 = math.exp %697 : vector<2x128xf32>
    %cst_178 = arith.constant 1.000000e+00 : f32
    %699 = vector.broadcast %cst_178 : f32 to vector<2x128xf32>
    %700 = arith.addf %699, %698 : vector<2x128xf32>
    %701 = arith.divf %699, %700 : vector<2x128xf32>
    %702 = vector.extract_strided_slice %685 {offsets = [0, 128], sizes = [2, 128], strides = [1, 1]} : vector<2x640xf32> to vector<2x128xf32>
    %703 = vector.extract_strided_slice %681 {offsets = [0, 128], sizes = [2, 128], strides = [1, 1]} : vector<2x512xf32> to vector<2x128xf32>
    %704 = arith.addf %702, %703 : vector<2x128xf32>
    %705 = arith.negf %704 : vector<2x128xf32>
    %706 = math.exp %705 : vector<2x128xf32>
    %cst_179 = arith.constant 1.000000e+00 : f32
    %707 = vector.broadcast %cst_179 : f32 to vector<2x128xf32>
    %708 = arith.addf %707, %706 : vector<2x128xf32>
    %709 = arith.divf %707, %708 : vector<2x128xf32>
    %710 = vector.extract_strided_slice %685 {offsets = [0, 256], sizes = [2, 128], strides = [1, 1]} : vector<2x640xf32> to vector<2x128xf32>
    %711 = vector.extract_strided_slice %681 {offsets = [0, 256], sizes = [2, 128], strides = [1, 1]} : vector<2x512xf32> to vector<2x128xf32>
    %712 = arith.addf %710, %711 : vector<2x128xf32>
    %713 = arith.negf %712 : vector<2x128xf32>
    %714 = math.exp %713 : vector<2x128xf32>
    %cst_180 = arith.constant 1.000000e+00 : f32
    %715 = vector.broadcast %cst_180 : f32 to vector<2x128xf32>
    %716 = arith.addf %715, %714 : vector<2x128xf32>
    %717 = arith.divf %715, %716 : vector<2x128xf32>
    %718 = vector.extract_strided_slice %685 {offsets = [0, 384], sizes = [2, 128], strides = [1, 1]} : vector<2x640xf32> to vector<2x128xf32>
    %719 = vector.extract_strided_slice %681 {offsets = [0, 384], sizes = [2, 128], strides = [1, 1]} : vector<2x512xf32> to vector<2x128xf32>
    %720 = arith.addf %718, %719 : vector<2x128xf32>
    %721 = math.tanh %720 : vector<2x128xf32>
    %722 = arith.mulf %709, %693 : vector<2x128xf32>
    %723 = arith.mulf %701, %721 : vector<2x128xf32>
    %724 = arith.addf %722, %723 : vector<2x128xf32>
    %725 = math.tanh %724 : vector<2x128xf32>
    %726 = arith.mulf %717, %725 : vector<2x128xf32>
    %c5_181 = arith.constant 5 : index
    %c0_182 = arith.constant 0 : index
    %c0_183 = arith.constant 0 : index
    %727 = vector.load %arg15[%c5_181, %c0_182, %c0_183] : memref<8x2x128xf32, #tpu.memory_space<vmem>>, vector<1x2x128xf32>
    %728 = vector.shape_cast %727 : vector<1x2x128xf32> to vector<2x128xf32>
    %729 = vector.shape_cast %726 : vector<2x128xf32> to vector<1x2x128xf32>
    tpu.vector_store %arg15[%c5_181, %c0_182, %c0_183], %729 {strides = array<i32>} : memref<8x2x128xf32, #tpu.memory_space<vmem>>, vector<1x2x128xf32>,
    %c0_184 = arith.constant 0 : index
    %c0_185 = arith.constant 0 : index
    %730 = vector.load %arg9[%c0_184, %c0_185] : memref<128x512xf32, #tpu.memory_space<vmem>>, vector<128x512xf32>
    %cst_186 = arith.constant dense<0.000000e+00> : vector<2x512xf32>
    %731 = tpu.matmul %726, %730, %cst_186 {dimension_numbers = #tpu.dot_dimension_numbers<[1], [0], [0], [1], [0, 0, 1, 1], [], []>} : vector<2x128xf32>, vector<128x512xf32>, vector<2x512xf32> -> vector<2x512xf32>
    %c0_187 = arith.constant 0 : index
    %c0_188 = arith.constant 0 : index
    %732 = vector.load %arg10[%c0_187, %c0_188] : memref<128x128xf32, #tpu.memory_space<vmem>>, vector<128x128xf32>
    %cst_189 = arith.constant dense<0.000000e+00> : vector<2x128xf32>
    %733 = tpu.matmul %724, %732, %cst_189 {dimension_numbers = #tpu.dot_dimension_numbers<[1], [0], [0], [1], [0, 0, 1, 1], [], []>} : vector<2x128xf32>, vector<128x128xf32>, vector<2x128xf32> -> vector<2x128xf32>
    %734 = vector.extract_strided_slice %425 {offsets = [6, 0, 0], sizes = [1, 2, 640], strides = [1, 1, 1]} : vector<8x2x640xf32> to vector<1x2x640xf32>
    %735 = vector.shape_cast %734 : vector<1x2x640xf32> to vector<2x640xf32>
    %736 = vector.extract_strided_slice %735 {offsets = [0, 512], sizes = [2, 128], strides = [1, 1]} : vector<2x640xf32> to vector<2x128xf32>
    %737 = arith.addf %736, %733 : vector<2x128xf32>
    %738 = math.tanh %737 : vector<2x128xf32>
    %739 = arith.subf %724, %738 : vector<2x128xf32>
    %740 = vector.extract_strided_slice %427 {offsets = [6, 0, 0], sizes = [1, 2, 128], strides = [1, 1, 1]} : vector<8x2x128xf32> to vector<1x2x128xf32>
    %741 = vector.shape_cast %740 : vector<1x2x128xf32> to vector<2x128xf32>
    %742 = arith.mulf %738, %741 : vector<2x128xf32>
    %743 = arith.addf %739, %742 : vector<2x128xf32>
    %744 = vector.extract_strided_slice %735 {offsets = [0, 0], sizes = [2, 128], strides = [1, 1]} : vector<2x640xf32> to vector<2x128xf32>
    %745 = vector.extract_strided_slice %731 {offsets = [0, 0], sizes = [2, 128], strides = [1, 1]} : vector<2x512xf32> to vector<2x128xf32>
    %746 = arith.addf %744, %745 : vector<2x128xf32>
    %747 = arith.negf %746 : vector<2x128xf32>
    %748 = math.exp %747 : vector<2x128xf32>
    %cst_190 = arith.constant 1.000000e+00 : f32
    %749 = vector.broadcast %cst_190 : f32 to vector<2x128xf32>
    %750 = arith.addf %749, %748 : vector<2x128xf32>
    %751 = arith.divf %749, %750 : vector<2x128xf32>
    %752 = vector.extract_strided_slice %735 {offsets = [0, 128], sizes = [2, 128], strides = [1, 1]} : vector<2x640xf32> to vector<2x128xf32>
    %753 = vector.extract_strided_slice %731 {offsets = [0, 128], sizes = [2, 128], strides = [1, 1]} : vector<2x512xf32> to vector<2x128xf32>
    %754 = arith.addf %752, %753 : vector<2x128xf32>
    %755 = arith.negf %754 : vector<2x128xf32>
    %756 = math.exp %755 : vector<2x128xf32>
    %cst_191 = arith.constant 1.000000e+00 : f32
    %757 = vector.broadcast %cst_191 : f32 to vector<2x128xf32>
    %758 = arith.addf %757, %756 : vector<2x128xf32>
    %759 = arith.divf %757, %758 : vector<2x128xf32>
    %760 = vector.extract_strided_slice %735 {offsets = [0, 256], sizes = [2, 128], strides = [1, 1]} : vector<2x640xf32> to vector<2x128xf32>
    %761 = vector.extract_strided_slice %731 {offsets = [0, 256], sizes = [2, 128], strides = [1, 1]} : vector<2x512xf32> to vector<2x128xf32>
    %762 = arith.addf %760, %761 : vector<2x128xf32>
    %763 = arith.negf %762 : vector<2x128xf32>
    %764 = math.exp %763 : vector<2x128xf32>
    %cst_192 = arith.constant 1.000000e+00 : f32
    %765 = vector.broadcast %cst_192 : f32 to vector<2x128xf32>
    %766 = arith.addf %765, %764 : vector<2x128xf32>
    %767 = arith.divf %765, %766 : vector<2x128xf32>
    %768 = vector.extract_strided_slice %735 {offsets = [0, 384], sizes = [2, 128], strides = [1, 1]} : vector<2x640xf32> to vector<2x128xf32>
    %769 = vector.extract_strided_slice %731 {offsets = [0, 384], sizes = [2, 128], strides = [1, 1]} : vector<2x512xf32> to vector<2x128xf32>
    %770 = arith.addf %768, %769 : vector<2x128xf32>
    %771 = math.tanh %770 : vector<2x128xf32>
    %772 = arith.mulf %759, %743 : vector<2x128xf32>
    %773 = arith.mulf %751, %771 : vector<2x128xf32>
    %774 = arith.addf %772, %773 : vector<2x128xf32>
    %775 = math.tanh %774 : vector<2x128xf32>
    %776 = arith.mulf %767, %775 : vector<2x128xf32>
    %c6_193 = arith.constant 6 : index
    %c0_194 = arith.constant 0 : index
    %c0_195 = arith.constant 0 : index
    %777 = vector.load %arg15[%c6_193, %c0_194, %c0_195] : memref<8x2x128xf32, #tpu.memory_space<vmem>>, vector<1x2x128xf32>
    %778 = vector.shape_cast %777 : vector<1x2x128xf32> to vector<2x128xf32>
    %779 = vector.shape_cast %776 : vector<2x128xf32> to vector<1x2x128xf32>
    tpu.vector_store %arg15[%c6_193, %c0_194, %c0_195], %779 {strides = array<i32>} : memref<8x2x128xf32, #tpu.memory_space<vmem>>, vector<1x2x128xf32>,
    %c0_196 = arith.constant 0 : index
    %c0_197 = arith.constant 0 : index
    %780 = vector.load %arg9[%c0_196, %c0_197] : memref<128x512xf32, #tpu.memory_space<vmem>>, vector<128x512xf32>
    %cst_198 = arith.constant dense<0.000000e+00> : vector<2x512xf32>
    %781 = tpu.matmul %776, %780, %cst_198 {dimension_numbers = #tpu.dot_dimension_numbers<[1], [0], [0], [1], [0, 0, 1, 1], [], []>} : vector<2x128xf32>, vector<128x512xf32>, vector<2x512xf32> -> vector<2x512xf32>
    %c0_199 = arith.constant 0 : index
    %c0_200 = arith.constant 0 : index
    %782 = vector.load %arg10[%c0_199, %c0_200] : memref<128x128xf32, #tpu.memory_space<vmem>>, vector<128x128xf32>
    %cst_201 = arith.constant dense<0.000000e+00> : vector<2x128xf32>
    %783 = tpu.matmul %774, %782, %cst_201 {dimension_numbers = #tpu.dot_dimension_numbers<[1], [0], [0], [1], [0, 0, 1, 1], [], []>} : vector<2x128xf32>, vector<128x128xf32>, vector<2x128xf32> -> vector<2x128xf32>
    %784 = vector.extract_strided_slice %425 {offsets = [7, 0, 0], sizes = [1, 2, 640], strides = [1, 1, 1]} : vector<8x2x640xf32> to vector<1x2x640xf32>
    %785 = vector.shape_cast %784 : vector<1x2x640xf32> to vector<2x640xf32>
    %786 = vector.extract_strided_slice %785 {offsets = [0, 512], sizes = [2, 128], strides = [1, 1]} : vector<2x640xf32> to vector<2x128xf32>
    %787 = arith.addf %786, %783 : vector<2x128xf32>
    %788 = math.tanh %787 : vector<2x128xf32>
    %789 = arith.subf %774, %788 : vector<2x128xf32>
    %790 = vector.extract_strided_slice %427 {offsets = [7, 0, 0], sizes = [1, 2, 128], strides = [1, 1, 1]} : vector<8x2x128xf32> to vector<1x2x128xf32>
    %791 = vector.shape_cast %790 : vector<1x2x128xf32> to vector<2x128xf32>
    %792 = arith.mulf %788, %791 : vector<2x128xf32>
    %793 = arith.addf %789, %792 : vector<2x128xf32>
    %794 = vector.extract_strided_slice %785 {offsets = [0, 0], sizes = [2, 128], strides = [1, 1]} : vector<2x640xf32> to vector<2x128xf32>
    %795 = vector.extract_strided_slice %781 {offsets = [0, 0], sizes = [2, 128], strides = [1, 1]} : vector<2x512xf32> to vector<2x128xf32>
    %796 = arith.addf %794, %795 : vector<2x128xf32>
    %797 = arith.negf %796 : vector<2x128xf32>
    %798 = math.exp %797 : vector<2x128xf32>
    %cst_202 = arith.constant 1.000000e+00 : f32
    %799 = vector.broadcast %cst_202 : f32 to vector<2x128xf32>
    %800 = arith.addf %799, %798 : vector<2x128xf32>
    %801 = arith.divf %799, %800 : vector<2x128xf32>
    %802 = vector.extract_strided_slice %785 {offsets = [0, 128], sizes = [2, 128], strides = [1, 1]} : vector<2x640xf32> to vector<2x128xf32>
    %803 = vector.extract_strided_slice %781 {offsets = [0, 128], sizes = [2, 128], strides = [1, 1]} : vector<2x512xf32> to vector<2x128xf32>
    %804 = arith.addf %802, %803 : vector<2x128xf32>
    %805 = arith.negf %804 : vector<2x128xf32>
    %806 = math.exp %805 : vector<2x128xf32>
    %cst_203 = arith.constant 1.000000e+00 : f32
    %807 = vector.broadcast %cst_203 : f32 to vector<2x128xf32>
    %808 = arith.addf %807, %806 : vector<2x128xf32>
    %809 = arith.divf %807, %808 : vector<2x128xf32>
    %810 = vector.extract_strided_slice %785 {offsets = [0, 256], sizes = [2, 128], strides = [1, 1]} : vector<2x640xf32> to vector<2x128xf32>
    %811 = vector.extract_strided_slice %781 {offsets = [0, 256], sizes = [2, 128], strides = [1, 1]} : vector<2x512xf32> to vector<2x128xf32>
    %812 = arith.addf %810, %811 : vector<2x128xf32>
    %813 = arith.negf %812 : vector<2x128xf32>
    %814 = math.exp %813 : vector<2x128xf32>
    %cst_204 = arith.constant 1.000000e+00 : f32
    %815 = vector.broadcast %cst_204 : f32 to vector<2x128xf32>
    %816 = arith.addf %815, %814 : vector<2x128xf32>
    %817 = arith.divf %815, %816 : vector<2x128xf32>
    %818 = vector.extract_strided_slice %785 {offsets = [0, 384], sizes = [2, 128], strides = [1, 1]} : vector<2x640xf32> to vector<2x128xf32>
    %819 = vector.extract_strided_slice %781 {offsets = [0, 384], sizes = [2, 128], strides = [1, 1]} : vector<2x512xf32> to vector<2x128xf32>
    %820 = arith.addf %818, %819 : vector<2x128xf32>
    %821 = math.tanh %820 : vector<2x128xf32>
    %822 = arith.mulf %809, %793 : vector<2x128xf32>
    %823 = arith.mulf %801, %821 : vector<2x128xf32>
    %824 = arith.addf %822, %823 : vector<2x128xf32>
    %825 = math.tanh %824 : vector<2x128xf32>
    %826 = arith.mulf %817, %825 : vector<2x128xf32>
    %c7_205 = arith.constant 7 : index
    %c0_206 = arith.constant 0 : index
    %c0_207 = arith.constant 0 : index
    %827 = vector.load %arg15[%c7_205, %c0_206, %c0_207] : memref<8x2x128xf32, #tpu.memory_space<vmem>>, vector<1x2x128xf32>
    %828 = vector.shape_cast %827 : vector<1x2x128xf32> to vector<2x128xf32>
    %829 = vector.shape_cast %826 : vector<2x128xf32> to vector<1x2x128xf32>
    tpu.vector_store %arg15[%c7_205, %c0_206, %c0_207], %829 {strides = array<i32>} : memref<8x2x128xf32, #tpu.memory_space<vmem>>, vector<1x2x128xf32>,
    %c0_208 = arith.constant 0 : index
    %c0_209 = arith.constant 0 : index
    %c0_210 = arith.constant 0 : index
    %830 = vector.load %arg15[%c0_208, %c0_209, %c0_210] : memref<8x2x128xf32, #tpu.memory_space<vmem>>, vector<8x2x128xf32>
    %831 = vector.shape_cast %830 : vector<8x2x128xf32> to vector<16x128xf32>
    %c0_211 = arith.constant 0 : index
    %c0_212 = arith.constant 0 : index
    %832 = vector.load %arg16[%c0_211, %c0_212] : memref<2x128xf32, #tpu.memory_space<vmem>>, vector<2x128xf32>
    tpu.vector_store %arg16[%c0_211, %c0_212], %826 {strides = array<i32>} : memref<2x128xf32, #tpu.memory_space<vmem>>, vector<2x128xf32>,
    %c0_213 = arith.constant 0 : index
    %c0_214 = arith.constant 0 : index
    %833 = vector.load %arg17[%c0_213, %c0_214] : memref<2x128xf32, #tpu.memory_space<vmem>>, vector<2x128xf32>
    tpu.vector_store %arg17[%c0_213, %c0_214], %824 {strides = array<i32>} : memref<2x128xf32, #tpu.memory_space<vmem>>, vector<2x128xf32>,
    %c0_215 = arith.constant 0 : index
    %c0_216 = arith.constant 0 : index
    %834 = vector.load %arg11[%c0_215, %c0_216] : memref<128x128xf32, #tpu.memory_space<vmem>>, vector<128x128xf32>
    %cst_217 = arith.constant dense<0.000000e+00> : vector<16x128xf32>
    %835 = tpu.matmul %831, %834, %cst_217 {dimension_numbers = #tpu.dot_dimension_numbers<[1], [0], [0], [1], [0, 0, 1, 1], [], []>} : vector<16x128xf32>, vector<128x128xf32>, vector<16x128xf32> -> vector<16x128xf32>
    %c0_218 = arith.constant 0 : index
    %c0_219 = arith.constant 0 : index
    %836 = vector.load %arg12[%c0_218, %c0_219] : memref<1x128xf32, #tpu.memory_space<vmem>>, vector<1x128xf32>
    %837 = vector.broadcast %836 : vector<1x128xf32> to vector<16x128xf32>
    %838 = arith.addf %835, %837 : vector<16x128xf32>
    %839 = vector.shape_cast %838 : vector<16x128xf32> to vector<8x2x128xf32>
    %c0_220 = arith.constant 0 : index
    %c0_221 = arith.constant 0 : index
    %c0_222 = arith.constant 0 : index
    %840 = vector.load %arg13[%c0_220, %c0_221, %c0_222] : memref<8x2x128xf32, #tpu.memory_space<vmem>>, vector<8x2x128xf32>
    tpu.vector_store %arg13[%c0_220, %c0_221, %c0_222], %839 {strides = array<i32>} : memref<8x2x128xf32, #tpu.memory_space<vmem>>, vector<8x2x128xf32>,
    return
  }
  func.func @transform_0(%arg0: i32) -> (i32, i32, i32) {
    %c0_i32 = arith.constant 0 : i32
    %c0_i32_0 = arith.constant 0 : i32
    %c0_i32_1 = arith.constant 0 : i32
    return %c0_i32, %arg0, %c0_i32_0 : i32, i32, i32
  }
  func.func @transform_1(%arg0: i32) -> (i32, i32, i32) {
    %c0_i32 = arith.constant 0 : i32
    %c0_i32_0 = arith.constant 0 : i32
    %c0_i32_1 = arith.constant 0 : i32
    return %c0_i32, %arg0, %c0_i32_0 : i32, i32, i32
  }
  func.func @transform_2(%arg0: i32) -> (i32, i32) {
    %c0_i32 = arith.constant 0 : i32
    %c0_i32_0 = arith.constant 0 : i32
    %c0_i32_1 = arith.constant 0 : i32
    return %c0_i32, %c0_i32_0 : i32, i32
  }
  func.func @transform_3(%arg0: i32) -> (i32, i32) {
    %c0_i32 = arith.constant 0 : i32
    %c0_i32_0 = arith.constant 0 : i32
    %c0_i32_1 = arith.constant 0 : i32
    return %c0_i32, %c0_i32_0 : i32, i32
  }
  func.func @transform_4(%arg0: i32) -> (i32, i32) {
    %c0_i32 = arith.constant 0 : i32
    %c0_i32_0 = arith.constant 0 : i32
    %c0_i32_1 = arith.constant 0 : i32
    return %c0_i32, %c0_i32_0 : i32, i32
  }
  func.func @transform_5(%arg0: i32) -> (i32, i32) {
    %c0_i32 = arith.constant 0 : i32
    %c0_i32_0 = arith.constant 0 : i32
    %c0_i32_1 = arith.constant 0 : i32
    return %c0_i32, %c0_i32_0 : i32, i32
  }
  func.func @transform_6(%arg0: i32) -> (i32, i32) {
    %c0_i32 = arith.constant 0 : i32
    %c0_i32_0 = arith.constant 0 : i32
    %c0_i32_1 = arith.constant 0 : i32
    return %c0_i32, %c0_i32_0 : i32, i32
  }
  func.func @transform_7(%arg0: i32) -> (i32, i32) {
    %c0_i32 = arith.constant 0 : i32
    %c0_i32_0 = arith.constant 0 : i32
    %c0_i32_1 = arith.constant 0 : i32
    return %c0_i32, %c0_i32_0 : i32, i32
  }
  func.func @transform_8(%arg0: i32) -> (i32, i32) {
    %c0_i32 = arith.constant 0 : i32
    %c0_i32_0 = arith.constant 0 : i32
    %c0_i32_1 = arith.constant 0 : i32
    return %c0_i32, %c0_i32_0 : i32, i32
  }
  func.func @transform_9(%arg0: i32) -> (i32, i32) {
    %c0_i32 = arith.constant 0 : i32
    %c0_i32_0 = arith.constant 0 : i32
    %c0_i32_1 = arith.constant 0 : i32
    return %c0_i32, %c0_i32_0 : i32, i32
  }
  func.func @transform_10(%arg0: i32) -> (i32, i32) {
    %c0_i32 = arith.constant 0 : i32
    %c0_i32_0 = arith.constant 0 : i32
    %c0_i32_1 = arith.constant 0 : i32
    return %c0_i32, %c0_i32_0 : i32, i32
  }
  func.func @transform_11(%arg0: i32) -> (i32, i32) {
    %c0_i32 = arith.constant 0 : i32
    %c0_i32_0 = arith.constant 0 : i32
    %c0_i32_1 = arith.constant 0 : i32
    return %c0_i32, %c0_i32_0 : i32, i32
  }
  func.func @transform_12(%arg0: i32) -> (i32, i32, i32) {
    %c0_i32 = arith.constant 0 : i32
    %c0_i32_0 = arith.constant 0 : i32
    %c0_i32_1 = arith.constant 0 : i32
    return %c0_i32, %arg0, %c0_i32_0 : i32, i32, i32
  }
  func.func @transform_13(%arg0: i32) -> (i32, i32, i32) {
    %c0_i32 = arith.constant 0 : i32
    %c0_i32_0 = arith.constant 0 : i32
    %c0_i32_1 = arith.constant 0 : i32
    return %c0_i32, %arg0, %c0_i32_0 : i32, i32, i32
  }
  func.func @transform_14(%arg0: i32) -> (i32, i32, i32) {
    %c0_i32 = arith.constant 0 : i32
    %c0_i32_0 = arith.constant 0 : i32
    %c0_i32_1 = arith.constant 0 : i32
    return %c0_i32, %arg0, %c0_i32_0 : i32, i32, i32
  }
  func.func @transform_15(%arg0: i32) -> (i32, i32) {
    %c0_i32 = arith.constant 0 : i32
    %c0_i32_0 = arith.constant 0 : i32
    return %arg0, %c0_i32 : i32, i32
  }
  func.func @transform_16(%arg0: i32) -> (i32, i32) {
    %c0_i32 = arith.constant 0 : i32
    %c0_i32_0 = arith.constant 0 : i32
    return %arg0, %c0_i32 : i32, i32
  }
}

</mosaic_0001>

<llo_original>
// kernel: tlstm_model.1
$region0: #{tlstm_model.1}
  #allocation0 [shape = 'u32[]', space=smem, size = 0x4, offset = 0x4, fixed_abs, tag = 'smem constant byte address 0x4 - core index']
  #allocation1 [shape = 'u32[144,128]{1,0:T(1,128)}', space=vmem, size = 0x12000, scoped, tag = 'internal scratch']
  %s0 = inlined_call_operand.vmem [shape: f32[8,2,16], index: 0, kind: input, shape index: {}]
  %s1 = inlined_call_operand.vmem [shape: f32[8,2,1], index: 1, kind: input, shape index: {}]
  %s2 = inlined_call_operand.vmem [shape: f32[16,640], index: 2, kind: input, shape index: {}]
  %s3 = inlined_call_operand.vmem [shape: f32[1,640], index: 3, kind: input, shape index: {}]
  %s4 = inlined_call_operand.vmem [shape: f32[128,512], index: 4, kind: input, shape index: {}]
  %s5 = inlined_call_operand.vmem [shape: f32[128,128], index: 5, kind: input, shape index: {}]
  %s6 = inlined_call_operand.vmem [shape: f32[128,640], index: 6, kind: input, shape index: {}]
  %s7 = inlined_call_operand.vmem [shape: f32[1,640], index: 7, kind: input, shape index: {}]
  %s8 = inlined_call_operand.vmem [shape: f32[128,512], index: 8, kind: input, shape index: {}]
  %s9 = inlined_call_operand.vmem [shape: f32[128,128], index: 9, kind: input, shape index: {}]
  %s10 = inlined_call_operand.vmem [shape: f32[128,128], index: 10, kind: input, shape index: {}]
  %s11 = inlined_call_operand.vmem [shape: f32[1,128], index: 11, kind: input, shape index: {}]
  %s12 = inlined_call_operand.vmem [shape: f32[8,2,128], index: 12, kind: output, shape index: {0}]
  %s13 = inlined_call_operand.vmem [shape: f32[8,2,128], index: 13, kind: output, shape index: {1}]
  %s14 = inlined_call_operand.vmem [shape: f32[8,2,128], index: 14, kind: output, shape index: {2}]
  %s15 = inlined_call_operand.hbm [shape: f32[2,128], index: 15, kind: output, shape index: {3}]
  %s16 = inlined_call_operand.hbm [shape: f32[2,128], index: 16, kind: output, shape index: {4}]
  %17 = xla_tuple %s12, %s13, %s14, %s15, %s16
  %s18 = sld [smem:[#allocation0]]
  $region90: #{tlstm_model.1} parent=0
    _
  %s20 = ssub.s32 1, %s18
  %s21 = scalar_select 0, %s20, %s18
  $region1: #{tlstm_model.1} parent=0
    #allocation2 [shape = 'u8[1024]{0}', space=vmem, size = 0x400, scoped, tag = 'output window, operand 3, single buffered']
    #allocation3 [shape = 's32[1]{0}', space=sflag, size = 0x4, scoped, tag = 'scoped memory for tlstm_model.1']
    #allocation4 [shape = 'u8[1024]{0}', space=vmem, size = 0x400, scoped, tag = 'output window, operand 4, single buffered']
    #allocation5 [shape = 's32[1]{0}', space=sflag, size = 0x4, scoped, tag = 'scoped memory for tlstm_model.1']
    %22 = vsyncpa [#allocation3], 0
    %23 = vsyncpa [#allocation5], 0
    // Predicated region
    $region2: #{tlstm_model.1} parent=1 // pred_check
      _
    $region3: #{tlstm_model.1} parent=1 // pred_check_branch
      %25 = sbr.rel (0) target = $region5
    $region4: #{tlstm_model.1} parent=1 // pred_region
      _
    $region5: #{tlstm_model.1} parent=1 // pred_fallthru
      _
    // Predicated region
    $region6: #{tlstm_model.1} parent=1 // pred_check
      _
    $region7: #{tlstm_model.1} parent=1 // pred_check_branch
      %27 = sbr.rel (0) target = $region9
    $region8: #{tlstm_model.1} parent=1 // pred_region
      _
    $region9: #{tlstm_model.1} parent=1 // pred_fallthru
      _
    // Predicated region
    $region10: #{tlstm_model.1} parent=1 // pred_check
      _
    $region11: #{tlstm_model.1} parent=1 // pred_check_branch
      %29 = sbr.rel (0) target = $region13
    $region12: #{tlstm_model.1} parent=1 // pred_region
      _
    $region13: #{tlstm_model.1} parent=1 // pred_fallthru
      _
    // Predicated region
    $region14: #{tlstm_model.1} parent=1 // pred_check
      _
    $region15: #{tlstm_model.1} parent=1 // pred_check_branch
      %31 = sbr.rel (0) target = $region17
    $region16: #{tlstm_model.1} parent=1 // pred_region
      _
    $region17: #{tlstm_model.1} parent=1 // pred_fallthru
      _
    // Predicated region
    $region18: #{tlstm_model.1} parent=1 // pred_check
      _
    $region19: #{tlstm_model.1} parent=1 // pred_check_branch
      %33 = sbr.rel (0) target = $region21
    $region20: #{tlstm_model.1} parent=1 // pred_region
      _
    $region21: #{tlstm_model.1} parent=1 // pred_fallthru
      _
    // Predicated region
    $region22: #{tlstm_model.1} parent=1 // pred_check
      _
    $region23: #{tlstm_model.1} parent=1 // pred_check_branch
      %35 = sbr.rel (0) target = $region25
    $region24: #{tlstm_model.1} parent=1 // pred_region
      _
    $region25: #{tlstm_model.1} parent=1 // pred_fallthru
      _
    // Predicated region
    $region26: #{tlstm_model.1} parent=1 // pred_check
      _
    $region27: #{tlstm_model.1} parent=1 // pred_check_branch
      %37 = sbr.rel (0) target = $region29
    $region28: #{tlstm_model.1} parent=1 // pred_region
      _
    $region29: #{tlstm_model.1} parent=1 // pred_fallthru
      _
    // Predicated region
    $region30: #{tlstm_model.1} parent=1 // pred_check
      _
    $region31: #{tlstm_model.1} parent=1 // pred_check_branch
      %39 = sbr.rel (0) target = $region33
    $region32: #{tlstm_model.1} parent=1 // pred_region
      _
    $region33: #{tlstm_model.1} parent=1 // pred_fallthru
      _
    // Predicated region
    $region34: #{tlstm_model.1} parent=1 // pred_check
      _
    $region35: #{tlstm_model.1} parent=1 // pred_check_branch
      %41 = sbr.rel (0) target = $region37
    $region36: #{tlstm_model.1} parent=1 // pred_region
      _
    $region37: #{tlstm_model.1} parent=1 // pred_fallthru
      _
    // Predicated region
    $region38: #{tlstm_model.1} parent=1 // pred_check
      _
    $region39: #{tlstm_model.1} parent=1 // pred_check_branch
      %43 = sbr.rel (0) target = $region41
    $region40: #{tlstm_model.1} parent=1 // pred_region
      _
    $region41: #{tlstm_model.1} parent=1 // pred_fallthru
      _
    // Predicated region
    $region42: #{tlstm_model.1} parent=1 // pred_check
      _
    $region43: #{tlstm_model.1} parent=1 // pred_check_branch
      %45 = sbr.rel (0) target = $region45
    $region44: #{tlstm_model.1} parent=1 // pred_region
      _
    $region45: #{tlstm_model.1} parent=1 // pred_fallthru
      _
    // Predicated region
    $region46: #{tlstm_model.1} parent=1 // pred_check
      _
    $region47: #{tlstm_model.1} parent=1 // pred_check_branch
      %47 = sbr.rel (0) target = $region49
    $region48: #{tlstm_model.1} parent=1 // pred_region
      _
    $region49: #{tlstm_model.1} parent=1 // pred_fallthru
      _
    %v48 = vld [vmem:[%s1] sm:$0x3]
    %v49 = vld [vmem:[%s1 + $0x2] sm:$0x3]
    %v50 = vld [vmem:[%s1 + $0x4] sm:$0x3]
    %v51 = vld [vmem:[%s1 + $0x6] sm:$0x3]
    %v52 = vld [vmem:[%s1 + $0x8] sm:$0x3]
    %v53 = vld [vmem:[%s1 + $0xa] sm:$0x3]
    %v54 = vld [vmem:[%s1 + $0xc] sm:$0x3]
    %v55 = vld [vmem:[%s1 + $0xe] sm:$0x3]
    %v56 = vadd.f32 %v48, 2.7182817
    %v57 = vadd.f32 %v49, 2.7182817
    %v58 = vadd.f32 %v50, 2.7182817
    %v59 = vadd.f32 %v51, 2.7182817
    %v60 = vadd.f32 %v52, 2.7182817
    %v61 = vadd.f32 %v53, 2.7182817
    %v62 = vadd.f32 %v54, 2.7182817
    %v63 = vadd.f32 %v55, 2.7182817
    %v64 = vlog2.pop %v56
    %v65 = vmul.f32 %v64, 0.6931472
    %v66 = vlog2.pop %v57
    %v67 = vmul.f32 %v66, 0.6931472
    %v68 = vlog2.pop %v58
    %v69 = vmul.f32 %v68, 0.6931472
    %v70 = vlog2.pop %v59
    %v71 = vmul.f32 %v70, 0.6931472
    %v72 = vlog2.pop %v60
    %v73 = vmul.f32 %v72, 0.6931472
    %v74 = vlog2.pop %v61
    %v75 = vmul.f32 %v74, 0.6931472
    %v76 = vlog2.pop %v62
    %v77 = vmul.f32 %v76, 0.6931472
    %v78 = vlog2.pop %v63
    %v79 = vmul.f32 %v78, 0.6931472
    %v80 = vrcp.pop %v65
    %v81 = vmul.f32 1.0, %v80
    %v82 = vrcp.pop %v67
    %v83 = vmul.f32 1.0, %v82
    %v84 = vrcp.pop %v69
    %v85 = vmul.f32 1.0, %v84
    %v86 = vrcp.pop %v71
    %v87 = vmul.f32 1.0, %v86
    %v88 = vrcp.pop %v73
    %v89 = vmul.f32 1.0, %v88
    %v90 = vrcp.pop %v75
    %v91 = vmul.f32 1.0, %v90
    %v92 = vrcp.pop %v77
    %v93 = vmul.f32 1.0, %v92
    %v94 = vrcp.pop %v79
    %v95 = vmul.f32 1.0, %v94
    %v96 = vld [vmem:[%s0] sm:$0x3]
    %v97 = vld [vmem:[%s0 + $0x2] sm:$0x3]
    %v98 = vld [vmem:[%s0 + $0x4] sm:$0x3]
    %v99 = vld [vmem:[%s0 + $0x6] sm:$0x3]
    %v100 = vld [vmem:[%s0 + $0x8] sm:$0x3]
    %v101 = vld [vmem:[%s0 + $0xa] sm:$0x3]
    %v102 = vld [vmem:[%s0 + $0xc] sm:$0x3]
    %v103 = vld [vmem:[%s0 + $0xe] sm:$0x3]
    %v104 = vld [vmem:[%s2] sm:$0xff]
    %v105 = vld [vmem:[%s2 + $0x8] sm:$0xff]
    %v106 = vld [vmem:[%s2 + $0x10] sm:$0xff]
    %v107 = vld [vmem:[%s2 + $0x18] sm:$0xff]
    %v108 = vld [vmem:[%s2 + $0x20] sm:$0xff]
    %v109 = vld [vmem:[%s2 + $0x28] sm:$0xff]
    %v110 = vld [vmem:[%s2 + $0x30] sm:$0xff]
    %v111 = vld [vmem:[%s2 + $0x38] sm:$0xff]
    %v112 = vld [vmem:[%s2 + $0x40] sm:$0xff]
    %v113 = vld [vmem:[%s2 + $0x48] sm:$0xff]
    %v114 = vld [vmem:[%s3] sm:$0x1f]
    %v116 = vlaneseq
    %v117 = vshrl.u32 %v116, 7
    %v118 = vsub.s32 0, %v117
    %v119 = vrot.slane %v114, %v118
    %v120 = vlaneseq
    %v121 = vshrl.u32 %v120, 7
    %v122 = vsub.s32 1, %v121
    %v123 = vrot.slane %v114, %v122
    %v124 = vlaneseq
    %v125 = vshrl.u32 %v124, 7
    %v126 = vsub.s32 2, %v125
    %v127 = vrot.slane %v114, %v126
    %v128 = vlaneseq
    %v129 = vshrl.u32 %v128, 7
    %v130 = vsub.s32 3, %v129
    %v131 = vrot.slane %v114, %v130
    %v132 = vlaneseq
    %v133 = vshrl.u32 %v132, 7
    %v134 = vsub.s32 4, %v133
    %v135 = vrot.slane %v114, %v134
    %v149 = vcombine.low %v96, %v97
    %v150 = vcombine.low %v98, %v99
    %v152 = vunpack.c.l.s4 1983009808
    %v153 = vunpack.c.0.s8 %v152
    %v154 = vlaneseq
    %v155 = vshrl.u32 %v154, 7
    %v156 = vsub.s32 %v153, %v155
    %v157 = vrot.slane %v149, %v156
    %v159 = vunpack.c.l.s4 1983009808
    %v160 = vunpack.c.0.s8 %v159
    %v161 = vlaneseq
    %v162 = vshrl.u32 %v161, 7
    %v163 = vsub.s32 %v160, %v162
    %v164 = vrot.slane %v150, %v163
    %v165 = vcombine.low %v157, %v164
    %v166 = vcombine.low %v100, %v101
    %v167 = vcombine.low %v102, %v103
    %v169 = vunpack.c.l.s4 1983009808
    %v170 = vunpack.c.0.s8 %v169
    %v171 = vlaneseq
    %v172 = vshrl.u32 %v171, 7
    %v173 = vsub.s32 %v170, %v172
    %v174 = vrot.slane %v166, %v173
    %v176 = vunpack.c.l.s4 1983009808
    %v177 = vunpack.c.0.s8 %v176
    %v178 = vlaneseq
    %v179 = vshrl.u32 %v178, 7
    %v180 = vsub.s32 %v177, %v179
    %v181 = vrot.slane %v167, %v180
    %v182 = vcombine.low %v174, %v181
    %vm183 = vcmask 130048
    %v184 = vsel %vm183, %v165, 0
    %v186 = vsel %vm183, %v182, 0
    %188 = vmatprep.subr.mxu0 %v105
    %189 = vmatpush1.msra.mxu0 %v104
    %190 = vmatprep.subr.mxu0 %v110
    %191 = vmatpush1.msra.mxu0 %v109
    %192 = vmatprep.subr.mxu0 0.0
    %193 = vmatpush1.msra.mxu0 0.0
    %194 = vmatprep.subr.mxu0 0.0
    %195 = vmatpush1.msra.mxu0 0.0
    %196 = vmatprep.subr.mxu0 0.0
    %197 = vmatpush1.msra.mxu0 0.0
    %198 = vmatprep.subr.mxu0 0.0
    %199 = vmatpush1.msra.mxu0 0.0
    %200 = vmatprep.subr.mxu0 0.0
    %201 = vmatpush1.msra.mxu0 0.0
    %202 = vmatprep.subr.mxu0 0.0
    %203 = vmatpush1.msra.mxu0 0.0
    %204 = vmatprep.subr.mxu0 0.0
    %205 = vmatpush1.msra.mxu0 0.0
    %206 = vmatprep.subr.mxu0 0.0
    %207 = vmatpush1.msra.mxu0 0.0
    %208 = vmatprep.subr.mxu0 0.0
    %209 = vmatpush1.msra.mxu0 0.0
    %210 = vmatprep.subr.mxu0 0.0
    %211 = vmatpush1.msra.mxu0 0.0
    %212 = vmatprep.subr.mxu0 0.0
    %213 = vmatpush1.msra.mxu0 0.0
    %214 = vmatprep.subr.mxu0 0.0
    %215 = vmatpush1.msra.mxu0 0.0
    %216 = vmatprep.subr.mxu0 0.0
    %217 = vmatpush1.msra.mxu0 0.0
    %218 = vmatprep.subr.mxu0 0.0
    %219 = vmatpush1.msra.mxu0 0.0
    %220 = vmatprep.subr.mxu0 0.0
    %221 = vmatpush1.msra.mxu0 0.0
    %222 = vmatprep.subr.mxu0 0.0
    %223 = vmatpush1.msra.mxu0 0.0
    %224 = vmatprep.subr.mxu0 0.0
    %225 = vmatpush1.msra.mxu0 0.0
    %226 = vmatprep.subr.mxu0 0.0
    %227 = vmatpush1.msra.mxu0 0.0
    %228 = vmatprep.subr.mxu0 0.0
    %229 = vmatpush1.msra.mxu0 0.0
    %230 = vmatprep.subr.mxu0 0.0
    %231 = vmatpush1.msra.mxu0 0.0
    %232 = vmatprep.subr.mxu0 0.0
    %233 = vmatpush1.msra.mxu0 0.0
    %234 = vmatprep.subr.mxu0 0.0
    %235 = vmatpush1.msra.mxu0 0.0
    %236 = vmatprep.subr.mxu0 0.0
    %237 = vmatpush1.msra.mxu0 0.0
    %238 = vmatprep.subr.mxu0 0.0
    %239 = vmatpush1.msra.mxu0 0.0
    %240 = vmatprep.subr.mxu0 0.0
    %241 = vmatpush1.msra.mxu0 0.0
    %242 = vmatprep.subr.mxu0 0.0
    %243 = vmatpush1.msra.mxu0 0.0
    %244 = vmatprep.subr.mxu0 0.0
    %245 = vmatpush1.msra.mxu0 0.0
    %246 = vmatprep.subr.mxu0 0.0
    %247 = vmatpush1.msra.mxu0 0.0
    %248 = vmatprep.subr.mxu0 0.0
    %249 = vmatpush1.msra.mxu0 0.0
    %250 = vmatprep.subr.mxu0 0.0
    %251 = vmatpush1.msra.mxu0 0.0
    %252 = vmatprep.mubr.f32.mxu0 0.0
    %253 = vmatmul.mubr.f32.gmra.mrb[0].mxu0 %v184
    %v254 = vpop.f32.mrb[0].mxu0
    %v255 = vadd.f32 %v119, %v254
    %v256 = vpop.f32.mrb[0].mxu0
    %v257 = vadd.f32 %v123, %v256
    %258 = vmatprep.mubr.f32.mxu0 0.0
    %259 = vmatmul.mubr.f32.gmra.mrb[0].mxu0 %v186
    %v260 = vpop.f32.mrb[0].mxu0
    %v261 = vadd.f32 %v119, %v260
    %v262 = vpop.f32.mrb[0].mxu0
    %v263 = vadd.f32 %v123, %v262
    %264 = vdwg.mxu0
    %265 = vmatprep.subr.mxu0 %v107
    %266 = vmatpush1.msra.mxu0 %v106
    %267 = vmatprep.subr.mxu0 %v112
    %268 = vmatpush1.msra.mxu0 %v111
    %269 = vmatprep.subr.mxu0 0.0
    %270 = vmatpush1.msra.mxu0 0.0
    %271 = vmatprep.subr.mxu0 0.0
    %272 = vmatpush1.msra.mxu0 0.0
    %273 = vmatprep.subr.mxu0 0.0
    %274 = vmatpush1.msra.mxu0 0.0
    %275 = vmatprep.subr.mxu0 0.0
    %276 = vmatpush1.msra.mxu0 0.0
    %277 = vmatprep.subr.mxu0 0.0
    %278 = vmatpush1.msra.mxu0 0.0
    %279 = vmatprep.subr.mxu0 0.0
    %280 = vmatpush1.msra.mxu0 0.0
    %281 = vmatprep.subr.mxu0 0.0
    %282 = vmatpush1.msra.mxu0 0.0
    %283 = vmatprep.subr.mxu0 0.0
    %284 = vmatpush1.msra.mxu0 0.0
    %285 = vmatprep.subr.mxu0 0.0
    %286 = vmatpush1.msra.mxu0 0.0
    %287 = vmatprep.subr.mxu0 0.0
    %288 = vmatpush1.msra.mxu0 0.0
    %289 = vmatprep.subr.mxu0 0.0
    %290 = vmatpush1.msra.mxu0 0.0
    %291 = vmatprep.subr.mxu0 0.0
    %292 = vmatpush1.msra.mxu0 0.0
    %293 = vmatprep.subr.mxu0 0.0
    %294 = vmatpush1.msra.mxu0 0.0
    %295 = vmatprep.subr.mxu0 0.0
    %296 = vmatpush1.msra.mxu0 0.0
    %297 = vmatprep.subr.mxu0 0.0
    %298 = vmatpush1.msra.mxu0 0.0
    %299 = vmatprep.subr.mxu0 0.0
    %300 = vmatpush1.msra.mxu0 0.0
    %301 = vmatprep.subr.mxu0 0.0
    %302 = vmatpush1.msra.mxu0 0.0
    %303 = vmatprep.subr.mxu0 0.0
    %304 = vmatpush1.msra.mxu0 0.0
    %305 = vmatprep.subr.mxu0 0.0
    %306 = vmatpush1.msra.mxu0 0.0
    %307 = vmatprep.subr.mxu0 0.0
    %308 = vmatpush1.msra.mxu0 0.0
    %309 = vmatprep.subr.mxu0 0.0
    %310 = vmatpush1.msra.mxu0 0.0
    %311 = vmatprep.subr.mxu0 0.0
    %312 = vmatpush1.msra.mxu0 0.0
    %313 = vmatprep.subr.mxu0 0.0
    %314 = vmatpush1.msra.mxu0 0.0
    %315 = vmatprep.subr.mxu0 0.0
    %316 = vmatpush1.msra.mxu0 0.0
    %317 = vmatprep.subr.mxu0 0.0
    %318 = vmatpush1.msra.mxu0 0.0
    %319 = vmatprep.subr.mxu0 0.0
    %320 = vmatpush1.msra.mxu0 0.0
    %321 = vmatprep.subr.mxu0 0.0
    %322 = vmatpush1.msra.mxu0 0.0
    %323 = vmatprep.subr.mxu0 0.0
    %324 = vmatpush1.msra.mxu0 0.0
    %325 = vmatprep.subr.mxu0 0.0
    %326 = vmatpush1.msra.mxu0 0.0
    %327 = vmatprep.subr.mxu0 0.0
    %328 = vmatpush1.msra.mxu0 0.0
    %329 = vmatprep.mubr.f32.mxu0 0.0
    %330 = vmatmul.mubr.f32.gmra.mrb[0].mxu0 %v184
    %v331 = vpop.f32.mrb[0].mxu0
    %v332 = vadd.f32 %v127, %v331
    %v333 = vpop.f32.mrb[0].mxu0
    %v334 = vadd.f32 %v131, %v333
    %335 = vmatprep.mubr.f32.mxu0 0.0
    %336 = vmatmul.mubr.f32.gmra.mrb[0].mxu0 %v186
    %v337 = vpop.f32.mrb[0].mxu0
    %v338 = vadd.f32 %v127, %v337
    %v339 = vpop.f32.mrb[0].mxu0
    %v340 = vadd.f32 %v131, %v339
    %341 = vdwg.mxu0
    %342 = vmatprep.subr.mxu0 0.0
    %343 = vmatpush1.msra.mxu0 %v108
    %344 = vmatprep.subr.mxu0 0.0
    %345 = vmatpush1.msra.mxu0 %v113
    %346 = vmatprep.subr.mxu0 0.0
    %347 = vmatpush1.msra.mxu0 0.0
    %348 = vmatprep.subr.mxu0 0.0
    %349 = vmatpush1.msra.mxu0 0.0
    %350 = vmatprep.subr.mxu0 0.0
    %351 = vmatpush1.msra.mxu0 0.0
    %352 = vmatprep.subr.mxu0 0.0
    %353 = vmatpush1.msra.mxu0 0.0
    %354 = vmatprep.subr.mxu0 0.0
    %355 = vmatpush1.msra.mxu0 0.0
    %356 = vmatprep.subr.mxu0 0.0
    %357 = vmatpush1.msra.mxu0 0.0
    %358 = vmatprep.subr.mxu0 0.0
    %359 = vmatpush1.msra.mxu0 0.0
    %360 = vmatprep.subr.mxu0 0.0
    %361 = vmatpush1.msra.mxu0 0.0
    %362 = vmatprep.subr.mxu0 0.0
    %363 = vmatpush1.msra.mxu0 0.0
    %364 = vmatprep.subr.mxu0 0.0
    %365 = vmatpush1.msra.mxu0 0.0
    %366 = vmatprep.subr.mxu0 0.0
    %367 = vmatpush1.msra.mxu0 0.0
    %368 = vmatprep.subr.mxu0 0.0
    %369 = vmatpush1.msra.mxu0 0.0
    %370 = vmatprep.subr.mxu0 0.0
    %371 = vmatpush1.msra.mxu0 0.0
    %372 = vmatprep.subr.mxu0 0.0
    %373 = vmatpush1.msra.mxu0 0.0
    %374 = vmatprep.subr.mxu0 0.0
    %375 = vmatpush1.msra.mxu0 0.0
    %376 = vmatprep.subr.mxu0 0.0
    %377 = vmatpush1.msra.mxu0 0.0
    %378 = vmatprep.subr.mxu0 0.0
    %379 = vmatpush1.msra.mxu0 0.0
    %380 = vmatprep.subr.mxu0 0.0
    %381 = vmatpush1.msra.mxu0 0.0
    %382 = vmatprep.subr.mxu0 0.0
    %383 = vmatpush1.msra.mxu0 0.0
    %384 = vmatprep.subr.mxu0 0.0
    %385 = vmatpush1.msra.mxu0 0.0
    %386 = vmatprep.subr.mxu0 0.0
    %387 = vmatpush1.msra.mxu0 0.0
    %388 = vmatprep.subr.mxu0 0.0
    %389 = vmatpush1.msra.mxu0 0.0
    %390 = vmatprep.subr.mxu0 0.0
    %391 = vmatpush1.msra.mxu0 0.0
    %392 = vmatprep.subr.mxu0 0.0
    %393 = vmatpush1.msra.mxu0 0.0
    %394 = vmatprep.subr.mxu0 0.0
    %395 = vmatpush1.msra.mxu0 0.0
    %396 = vmatprep.subr.mxu0 0.0
    %397 = vmatpush1.msra.mxu0 0.0
    %398 = vmatprep.subr.mxu0 0.0
    %399 = vmatpush1.msra.mxu0 0.0
    %400 = vmatprep.subr.mxu0 0.0
    %401 = vmatpush1.msra.mxu0 0.0
    %402 = vmatprep.subr.mxu0 0.0
    %403 = vmatpush1.msra.mxu0 0.0
    %404 = vmatprep.subr.mxu0 0.0
    %405 = vmatpush1.msra.mxu0 0.0
    %406 = vmatprep.mubr.f32.mxu0 0.0
    %407 = vmatmul.mubr.f32.gmra.mrb[0].mxu0 %v184
    %v408 = vpop.f32.mrb[0].mxu0
    %v409 = vadd.f32 %v135, %v408
    %v410 = vpop.f32.mrb[0].mxu0
    %411 = vmatprep.mubr.f32.mxu0 0.0
    %412 = vmatmul.mubr.f32.gmra.mrb[0].mxu0 %v186
    %v413 = vpop.f32.mrb[0].mxu0
    %v414 = vadd.f32 %v135, %v413
    %v415 = vpop.f32.mrb[0].mxu0
    %416 = vdwg.mxu0
    %v427 = vcombine.low %v255, %v257
    %v428 = vcombine.high %v255, %v257
    %v429 = vcombine.low %v332, %v334
    %v430 = vcombine.high %v332, %v334
    %v432 = vunpack.c.l.s4 1983009808
    %v433 = vunpack.c.0.s8 %v432
    %v434 = vlaneseq
    %v435 = vshrl.u32 %v434, 7
    %v436 = vsub.s32 %v433, %v435
    %v437 = vrot.slane %v427, %v436
    %v439 = vunpack.c.l.s4 1983009808
    %v440 = vunpack.c.0.s8 %v439
    %v441 = vlaneseq
    %v442 = vshrl.u32 %v441, 7
    %v443 = vsub.s32 %v440, %v442
    %v444 = vrot.slane %v428, %v443
    %v446 = vunpack.c.l.s4 1983009808
    %v447 = vunpack.c.0.s8 %v446
    %v448 = vlaneseq
    %v449 = vshrl.u32 %v448, 7
    %v450 = vsub.s32 %v447, %v449
    %v451 = vrot.slane %v429, %v450
    %v453 = vunpack.c.l.s4 1983009808
    %v454 = vunpack.c.0.s8 %v453
    %v455 = vlaneseq
    %v456 = vshrl.u32 %v455, 7
    %v457 = vsub.s32 %v454, %v456
    %v458 = vrot.slane %v430, %v457
    %v459 = vcombine.low %v437, %v451
    %v460 = vcombine.high %v437, %v451
    %v461 = vcombine.low %v444, %v458
    %v462 = vcombine.high %v444, %v458
    %v463 = vcombine.high %v409, %v409
    %v465 = vunpack.c.l.s4 1983009808
    %v466 = vunpack.c.0.s8 %v465
    %v467 = vlaneseq
    %v468 = vshrl.u32 %v467, 7
    %v469 = vsub.s32 %v466, %v468
    %v470 = vrot.slane %v409, %v469
    %v472 = vunpack.c.l.s4 1983009808
    %v473 = vunpack.c.0.s8 %v472
    %v474 = vlaneseq
    %v475 = vshrl.u32 %v474, 7
    %v476 = vsub.s32 %v473, %v475
    %v477 = vrot.slane %v463, %v476
    %v478 = vcombine.high %v470, %v470
    %v479 = vcombine.high %v477, %v477
    %v480 = vcombine.low %v261, %v263
    %v481 = vcombine.high %v261, %v263
    %v482 = vcombine.low %v338, %v340
    %v483 = vcombine.high %v338, %v340
    %v485 = vunpack.c.l.s4 1983009808
    %v486 = vunpack.c.0.s8 %v485
    %v487 = vlaneseq
    %v488 = vshrl.u32 %v487, 7
    %v489 = vsub.s32 %v486, %v488
    %v490 = vrot.slane %v480, %v489
    %v492 = vunpack.c.l.s4 1983009808
    %v493 = vunpack.c.0.s8 %v492
    %v494 = vlaneseq
    %v495 = vshrl.u32 %v494, 7
    %v496 = vsub.s32 %v493, %v495
    %v497 = vrot.slane %v481, %v496
    %v499 = vunpack.c.l.s4 1983009808
    %v500 = vunpack.c.0.s8 %v499
    %v501 = vlaneseq
    %v502 = vshrl.u32 %v501, 7
    %v503 = vsub.s32 %v500, %v502
    %v504 = vrot.slane %v482, %v503
    %v506 = vunpack.c.l.s4 1983009808
    %v507 = vunpack.c.0.s8 %v506
    %v508 = vlaneseq
    %v509 = vshrl.u32 %v508, 7
    %v510 = vsub.s32 %v507, %v509
    %v511 = vrot.slane %v483, %v510
    %v512 = vcombine.low %v490, %v504
    %v513 = vcombine.high %v490, %v504
    %v514 = vcombine.low %v497, %v511
    %v515 = vcombine.high %v497, %v511
    %v516 = vcombine.high %v414, %v414
    %v518 = vunpack.c.l.s4 1983009808
    %v519 = vunpack.c.0.s8 %v518
    %v520 = vlaneseq
    %v521 = vshrl.u32 %v520, 7
    %v522 = vsub.s32 %v519, %v521
    %v523 = vrot.slane %v414, %v522
    %v525 = vunpack.c.l.s4 1983009808
    %v526 = vunpack.c.0.s8 %v525
    %v527 = vlaneseq
    %v528 = vshrl.u32 %v527, 7
    %v529 = vsub.s32 %v526, %v528
    %v530 = vrot.slane %v516, %v529
    %v531 = vcombine.high %v523, %v523
    %v532 = vcombine.high %v530, %v530
    %v549 = vld [vmem:[%s4] sm:$0xff]
    %v550 = vld [vmem:[%s4 + $0x8] sm:$0xff]
    %v551 = vld [vmem:[%s4 + $0x10] sm:$0xff]
    %v552 = vld [vmem:[%s4 + $0x18] sm:$0xff]
    %v553 = vld [vmem:[%s4 + $0x20] sm:$0xff]
    %v554 = vld [vmem:[%s4 + $0x28] sm:$0xff]
    %v555 = vld [vmem:[%s4 + $0x30] sm:$0xff]
    %v556 = vld [vmem:[%s4 + $0x38] sm:$0xff]
    %v557 = vld [vmem:[%s4 + $0x40] sm:$0xff]
    %v558 = vld [vmem:[%s4 + $0x48] sm:$0xff]
    %v559 = vld [vmem:[%s4 + $0x50] sm:$0xff]
    %v560 = vld [vmem:[%s4 + $0x58] sm:$0xff]
    %v561 = vld [vmem:[%s4 + $0x60] sm:$0xff]
    %v562 = vld [vmem:[%s4 + $0x68] sm:$0xff]
    %v563 = vld [vmem:[%s4 + $0x70] sm:$0xff]
    %v564 = vld [vmem:[%s4 + $0x78] sm:$0xff]
    %v565 = vld [vmem:[%s4 + $0x80] sm:$0xff]
    %v566 = vld [vmem:[%s4 + $0x88] sm:$0xff]
    %v567 = vld [vmem:[%s4 + $0x90] sm:$0xff]
    %v568 = vld [vmem:[%s4 + $0x98] sm:$0xff]
    %v569 = vld [vmem:[%s4 + $0xa0] sm:$0xff]
    %v570 = vld [vmem:[%s4 + $0xa8] sm:$0xff]
    %v571 = vld [vmem:[%s4 + $0xb0] sm:$0xff]
    %v572 = vld [vmem:[%s4 + $0xb8] sm:$0xff]
    %v573 = vld [vmem:[%s4 + $0xc0] sm:$0xff]
    %v574 = vld [vmem:[%s4 + $0xc8] sm:$0xff]
    %v575 = vld [vmem:[%s4 + $0xd0] sm:$0xff]
    %v576 = vld [vmem:[%s4 + $0xd8] sm:$0xff]
    %v577 = vld [vmem:[%s4 + $0xe0] sm:$0xff]
    %v578 = vld [vmem:[%s4 + $0xe8] sm:$0xff]
    %v579 = vld [vmem:[%s4 + $0xf0] sm:$0xff]
    %v580 = vld [vmem:[%s4 + $0xf8] sm:$0xff]
    %v581 = vld [vmem:[%s4 + $0x100] sm:$0xff]
    %v582 = vld [vmem:[%s4 + $0x108] sm:$0xff]
    %v583 = vld [vmem:[%s4 + $0x110] sm:$0xff]
    %v584 = vld [vmem:[%s4 + $0x118] sm:$0xff]
    %v585 = vld [vmem:[%s4 + $0x120] sm:$0xff]
    %v586 = vld [vmem:[%s4 + $0x128] sm:$0xff]
    %v587 = vld [vmem:[%s4 + $0x130] sm:$0xff]
    %v588 = vld [vmem:[%s4 + $0x138] sm:$0xff]
    %v589 = vld [vmem:[%s4 + $0x140] sm:$0xff]
    %v590 = vld [vmem:[%s4 + $0x148] sm:$0xff]
    %v591 = vld [vmem:[%s4 + $0x150] sm:$0xff]
    %v592 = vld [vmem:[%s4 + $0x158] sm:$0xff]
    %v593 = vld [vmem:[%s4 + $0x160] sm:$0xff]
    %v594 = vld [vmem:[%s4 + $0x168] sm:$0xff]
    %v595 = vld [vmem:[%s4 + $0x170] sm:$0xff]
    %v596 = vld [vmem:[%s4 + $0x178] sm:$0xff]
    %v597 = vld [vmem:[%s4 + $0x180] sm:$0xff]
    %v598 = vld [vmem:[%s4 + $0x188] sm:$0xff]
    %v599 = vld [vmem:[%s4 + $0x190] sm:$0xff]
    %v600 = vld [vmem:[%s4 + $0x198] sm:$0xff]
    %v601 = vld [vmem:[%s4 + $0x1a0] sm:$0xff]
    %v602 = vld [vmem:[%s4 + $0x1a8] sm:$0xff]
    %v603 = vld [vmem:[%s4 + $0x1b0] sm:$0xff]
    %v604 = vld [vmem:[%s4 + $0x1b8] sm:$0xff]
    %v605 = vld [vmem:[%s4 + $0x1c0] sm:$0xff]
    %v606 = vld [vmem:[%s4 + $0x1c8] sm:$0xff]
    %v607 = vld [vmem:[%s4 + $0x1d0] sm:$0xff]
    %v608 = vld [vmem:[%s4 + $0x1d8] sm:$0xff]
    %v609 = vld [vmem:[%s4 + $0x1e0] sm:$0xff]
    %v610 = vld [vmem:[%s4 + $0x1e8] sm:$0xff]
    %v611 = vld [vmem:[%s4 + $0x1f0] sm:$0xff]
    %v612 = vld [vmem:[%s4 + $0x1f8] sm:$0xff]
    %613 = vmatprep.subr.mxu0 %v550
    %614 = vmatpush1.msra.mxu0 %v549
    %615 = vmatprep.subr.mxu0 %v554
    %616 = vmatpush1.msra.mxu0 %v553
    %617 = vmatprep.subr.mxu0 %v558
    %618 = vmatpush1.msra.mxu0 %v557
    %619 = vmatprep.subr.mxu0 %v562
    %620 = vmatpush1.msra.mxu0 %v561
    %621 = vmatprep.subr.mxu0 %v566
    %622 = vmatpush1.msra.mxu0 %v565
    %623 = vmatprep.subr.mxu0 %v570
    %624 = vmatpush1.msra.mxu0 %v569
    %625 = vmatprep.subr.mxu0 %v574
    %626 = vmatpush1.msra.mxu0 %v573
    %627 = vmatprep.subr.mxu0 %v578
    %628 = vmatpush1.msra.mxu0 %v577
    %629 = vmatprep.subr.mxu0 %v582
    %630 = vmatpush1.msra.mxu0 %v581
    %631 = vmatprep.subr.mxu0 %v586
    %632 = vmatpush1.msra.mxu0 %v585
    %633 = vmatprep.subr.mxu0 %v590
    %634 = vmatpush1.msra.mxu0 %v589
    %635 = vmatprep.subr.mxu0 %v594
    %636 = vmatpush1.msra.mxu0 %v593
    %637 = vmatprep.subr.mxu0 %v598
    %638 = vmatpush1.msra.mxu0 %v597
    %639 = vmatprep.subr.mxu0 %v602
    %640 = vmatpush1.msra.mxu0 %v601
    %641 = vmatprep.subr.mxu0 %v606
    %642 = vmatpush1.msra.mxu0 %v605
    %643 = vmatprep.subr.mxu0 %v610
    %644 = vmatpush1.msra.mxu0 %v609
    %645 = vmatprep.subr.mxu0 0.0
    %646 = vmatpush1.msra.mxu0 0.0
    %647 = vmatprep.subr.mxu0 0.0
    %648 = vmatpush1.msra.mxu0 0.0
    %649 = vmatprep.subr.mxu0 0.0
    %650 = vmatpush1.msra.mxu0 0.0
    %651 = vmatprep.subr.mxu0 0.0
    %652 = vmatpush1.msra.mxu0 0.0
    %653 = vmatprep.subr.mxu0 0.0
    %654 = vmatpush1.msra.mxu0 0.0
    %655 = vmatprep.subr.mxu0 0.0
    %656 = vmatpush1.msra.mxu0 0.0
    %657 = vmatprep.subr.mxu0 0.0
    %658 = vmatpush1.msra.mxu0 0.0
    %659 = vmatprep.subr.mxu0 0.0
    %660 = vmatpush1.msra.mxu0 0.0
    %661 = vmatprep.subr.mxu0 0.0
    %662 = vmatpush1.msra.mxu0 0.0
    %663 = vmatprep.subr.mxu0 0.0
    %664 = vmatpush1.msra.mxu0 0.0
    %665 = vmatprep.subr.mxu0 0.0
    %666 = vmatpush1.msra.mxu0 0.0
    %667 = vmatprep.subr.mxu0 0.0
    %668 = vmatpush1.msra.mxu0 0.0
    %669 = vmatprep.subr.mxu0 0.0
    %670 = vmatpush1.msra.mxu0 0.0
    %671 = vmatprep.subr.mxu0 0.0
    %672 = vmatpush1.msra.mxu0 0.0
    %673 = vmatprep.subr.mxu0 0.0
    %674 = vmatpush1.msra.mxu0 0.0
    %675 = vmatprep.subr.mxu0 0.0
    %676 = vmatpush1.msra.mxu0 0.0
    %677 = vmatprep.mubr.f32.mxu0 0.0
    %678 = vmatmul.mubr.f32.gmra.mrb[0].mxu0 0.0
    %v679 = vpop.f32.mrb[0].mxu0
    %v680 = vadd.f32 0.0, %v679
    %v681 = vpop.f32.mrb[0].mxu0
    %v682 = vadd.f32 0.0, %v681
    %683 = vdwg.mxu0
    %684 = vmatprep.subr.mxu0 %v552
    %685 = vmatpush1.msra.mxu0 %v551
    %686 = vmatprep.subr.mxu0 %v556
    %687 = vmatpush1.msra.mxu0 %v555
    %688 = vmatprep.subr.mxu0 %v560
    %689 = vmatpush1.msra.mxu0 %v559
    %690 = vmatprep.subr.mxu0 %v564
    %691 = vmatpush1.msra.mxu0 %v563
    %692 = vmatprep.subr.mxu0 %v568
    %693 = vmatpush1.msra.mxu0 %v567
    %694 = vmatprep.subr.mxu0 %v572
    %695 = vmatpush1.msra.mxu0 %v571
    %696 = vmatprep.subr.mxu0 %v576
    %697 = vmatpush1.msra.mxu0 %v575
    %698 = vmatprep.subr.mxu0 %v580
    %699 = vmatpush1.msra.mxu0 %v579
    %700 = vmatprep.subr.mxu0 %v584
    %701 = vmatpush1.msra.mxu0 %v583
    %702 = vmatprep.subr.mxu0 %v588
    %703 = vmatpush1.msra.mxu0 %v587
    %704 = vmatprep.subr.mxu0 %v592
    %705 = vmatpush1.msra.mxu0 %v591
    %706 = vmatprep.subr.mxu0 %v596
    %707 = vmatpush1.msra.mxu0 %v595
    %708 = vmatprep.subr.mxu0 %v600
    %709 = vmatpush1.msra.mxu0 %v599
    %710 = vmatprep.subr.mxu0 %v604
    %711 = vmatpush1.msra.mxu0 %v603
    %712 = vmatprep.subr.mxu0 %v608
    %713 = vmatpush1.msra.mxu0 %v607
    %714 = vmatprep.subr.mxu0 %v612
    %715 = vmatpush1.msra.mxu0 %v611
    %716 = vmatprep.subr.mxu0 0.0
    %717 = vmatpush1.msra.mxu0 0.0
    %718 = vmatprep.subr.mxu0 0.0
    %719 = vmatpush1.msra.mxu0 0.0
    %720 = vmatprep.subr.mxu0 0.0
    %721 = vmatpush1.msra.mxu0 0.0
    %722 = vmatprep.subr.mxu0 0.0
    %723 = vmatpush1.msra.mxu0 0.0
    %724 = vmatprep.subr.mxu0 0.0
    %725 = vmatpush1.msra.mxu0 0.0
    %726 = vmatprep.subr.mxu0 0.0
    %727 = vmatpush1.msra.mxu0 0.0
    %728 = vmatprep.subr.mxu0 0.0
    %729 = vmatpush1.msra.mxu0 0.0
    %730 = vmatprep.subr.mxu0 0.0
    %731 = vmatpush1.msra.mxu0 0.0
    %732 = vmatprep.subr.mxu0 0.0
    %733 = vmatpush1.msra.mxu0 0.0
    %734 = vmatprep.subr.mxu0 0.0
    %735 = vmatpush1.msra.mxu0 0.0
    %736 = vmatprep.subr.mxu0 0.0
    %737 = vmatpush1.msra.mxu0 0.0
    %738 = vmatprep.subr.mxu0 0.0
    %739 = vmatpush1.msra.mxu0 0.0
    %740 = vmatprep.subr.mxu0 0.0
    %741 = vmatpush1.msra.mxu0 0.0
    %742 = vmatprep.subr.mxu0 0.0
    %743 = vmatpush1.msra.mxu0 0.0
    %744 = vmatprep.subr.mxu0 0.0
    %745 = vmatpush1.msra.mxu0 0.0
    %746 = vmatprep.subr.mxu0 0.0
    %747 = vmatpush1.msra.mxu0 0.0
    %748 = vmatprep.mubr.f32.mxu0 0.0
    %749 = vmatmul.mubr.f32.gmra.mrb[0].mxu0 0.0
    %v750 = vpop.f32.mrb[0].mxu0
    %v751 = vadd.f32 0.0, %v750
    %v752 = vpop.f32.mrb[0].mxu0
    %v753 = vadd.f32 0.0, %v752
    %754 = vdwg.mxu0
    %v755 = vld [vmem:[%s5] sm:$0xff]
    %v756 = vld [vmem:[%s5 + $0x8] sm:$0xff]
    %v757 = vld [vmem:[%s5 + $0x10] sm:$0xff]
    %v758 = vld [vmem:[%s5 + $0x18] sm:$0xff]
    %v759 = vld [vmem:[%s5 + $0x20] sm:$0xff]
    %v760 = vld [vmem:[%s5 + $0x28] sm:$0xff]
    %v761 = vld [vmem:[%s5 + $0x30] sm:$0xff]
    %v762 = vld [vmem:[%s5 + $0x38] sm:$0xff]
    %v763 = vld [vmem:[%s5 + $0x40] sm:$0xff]
    %v764 = vld [vmem:[%s5 + $0x48] sm:$0xff]
    %v765 = vld [vmem:[%s5 + $0x50] sm:$0xff]
    %v766 = vld [vmem:[%s5 + $0x58] sm:$0xff]
    %v767 = vld [vmem:[%s5 + $0x60] sm:$0xff]
    %v768 = vld [vmem:[%s5 + $0x68] sm:$0xff]
    %v769 = vld [vmem:[%s5 + $0x70] sm:$0xff]
    %v770 = vld [vmem:[%s5 + $0x78] sm:$0xff]
    %771 = vmatprep.subr.mxu0 0.0
    %772 = vmatpush1.msra.mxu0 %v755
    %773 = vmatprep.subr.mxu0 0.0
    %774 = vmatpush1.msra.mxu0 %v756
    %775 = vmatprep.subr.mxu0 0.0
    %776 = vmatpush1.msra.mxu0 %v757
    %777 = vmatprep.subr.mxu0 0.0
    %778 = vmatpush1.msra.mxu0 %v758
    %779 = vmatprep.subr.mxu0 0.0
    %780 = vmatpush1.msra.mxu0 %v759
    %781 = vmatprep.subr.mxu0 0.0
    %782 = vmatpush1.msra.mxu0 %v760
    %783 = vmatprep.subr.mxu0 0.0
    %784 = vmatpush1.msra.mxu0 %v761
    %785 = vmatprep.subr.mxu0 0.0
    %786 = vmatpush1.msra.mxu0 %v762
    %787 = vmatprep.subr.mxu0 0.0
    %788 = vmatpush1.msra.mxu0 %v763
    %789 = vmatprep.subr.mxu0 0.0
    %790 = vmatpush1.msra.mxu0 %v764
    %791 = vmatprep.subr.mxu0 0.0
    %792 = vmatpush1.msra.mxu0 %v765
    %793 = vmatprep.subr.mxu0 0.0
    %794 = vmatpush1.msra.mxu0 %v766
    %795 = vmatprep.subr.mxu0 0.0
    %796 = vmatpush1.msra.mxu0 %v767
    %797 = vmatprep.subr.mxu0 0.0
    %798 = vmatpush1.msra.mxu0 %v768
    %799 = vmatprep.subr.mxu0 0.0
    %800 = vmatpush1.msra.mxu0 %v769
    %801 = vmatprep.subr.mxu0 0.0
    %802 = vmatpush1.msra.mxu0 %v770
    %803 = vmatprep.subr.mxu0 0.0
    %804 = vmatpush1.msra.mxu0 0.0
    %805 = vmatprep.subr.mxu0 0.0
    %806 = vmatpush1.msra.mxu0 0.0
    %807 = vmatprep.subr.mxu0 0.0
    %808 = vmatpush1.msra.mxu0 0.0
    %809 = vmatprep.subr.mxu0 0.0
    %810 = vmatpush1.msra.mxu0 0.0
    %811 = vmatprep.subr.mxu0 0.0
    %812 = vmatpush1.msra.mxu0 0.0
    %813 = vmatprep.subr.mxu0 0.0
    %814 = vmatpush1.msra.mxu0 0.0
    %815 = vmatprep.subr.mxu0 0.0
    %816 = vmatpush1.msra.mxu0 0.0
    %817 = vmatprep.subr.mxu0 0.0
    %818 = vmatpush1.msra.mxu0 0.0
    %819 = vmatprep.subr.mxu0 0.0
    %820 = vmatpush1.msra.mxu0 0.0
    %821 = vmatprep.subr.mxu0 0.0
    %822 = vmatpush1.msra.mxu0 0.0
    %823 = vmatprep.subr.mxu0 0.0
    %824 = vmatpush1.msra.mxu0 0.0
    %825 = vmatprep.subr.mxu0 0.0
    %826 = vmatpush1.msra.mxu0 0.0
    %827 = vmatprep.subr.mxu0 0.0
    %828 = vmatpush1.msra.mxu0 0.0
    %829 = vmatprep.subr.mxu0 0.0
    %830 = vmatpush1.msra.mxu0 0.0
    %831 = vmatprep.subr.mxu0 0.0
    %832 = vmatpush1.msra.mxu0 0.0
    %833 = vmatprep.subr.mxu0 0.0
    %834 = vmatpush1.msra.mxu0 0.0
    %835 = vmatprep.mubr.f32.mxu0 0.0
    %836 = vmatmul.mubr.f32.gmra.mrb[0].mxu0 0.0
    %v837 = vpop.f32.mrb[0].mxu0
    %v838 = vadd.f32 0.0, %v837
    %v839 = vpop.f32.mrb[0].mxu0
    %840 = vdwg.mxu0
    %v841 = vadd.f32 %v470, %v838
    %v842 = vtanh.pop %v841
    %v843 = vsub.f32 0.0, %v842
    %845 = vset.pattern.permute.xlu0 0
    %846 = vperm.xlu0 %845, %v81
    %v847 = vpop.permute.xlu0 %846
    %v849 = vmul.f32 %v842, %v847
    %v850 = vadd.f32 %v843, %v849
    %v851 = vadd.f32 %v459, %v680
    %v852 = vxor.u32 %v851, 2147483648
    %v853 = vmul.f32 %v852, 1.442695
    %v854 = vpow.pop %v853
    %v855 = vadd.f32 %v854, 1.0
    %v856 = vrcp.pop %v855
    %v857 = vmul.f32 1.0, %v856
    %v858 = vrot.slane %v459, 2
    %v860 = vadd.f32 %v858, %v682
    %v861 = vxor.u32 %v860, 2147483648
    %v862 = vmul.f32 %v861, 1.442695
    %v863 = vpow.pop %v862
    %v864 = vadd.f32 %v863, 1.0
    %v865 = vrcp.pop %v864
    %v866 = vmul.f32 1.0, %v865
    %v867 = vrot.slane %v459, 4
    %v869 = vadd.f32 %v867, %v751
    %v870 = vxor.u32 %v869, 2147483648
    %v871 = vmul.f32 %v870, 1.442695
    %v872 = vpow.pop %v871
    %v873 = vadd.f32 %v872, 1.0
    %v874 = vrcp.pop %v873
    %v875 = vmul.f32 1.0, %v874
    %v876 = vrot.slane %v459, 6
    %v878 = vadd.f32 %v876, %v753
    %v879 = vtanh.pop %v878
    %v880 = vmul.f32 %v866, %v850
    %v881 = vmul.f32 %v857, %v879
    %v882 = vadd.f32 %v880, %v881
    %v883 = vtanh.pop %v882
    %v884 = vmul.f32 %v875, %v883
    %885 = vst [vmem:[%s13] sm:$0x3] %v884
    %v886 = vld [vmem:[%s4] sm:$0xff]
    %v887 = vld [vmem:[%s4 + $0x8] sm:$0xff]
    %v888 = vld [vmem:[%s4 + $0x10] sm:$0xff]
    %v889 = vld [vmem:[%s4 + $0x18] sm:$0xff]
    %v890 = vld [vmem:[%s4 + $0x20] sm:$0xff]
    %v891 = vld [vmem:[%s4 + $0x28] sm:$0xff]
    %v892 = vld [vmem:[%s4 + $0x30] sm:$0xff]
    %v893 = vld [vmem:[%s4 + $0x38] sm:$0xff]
    %v894 = vld [vmem:[%s4 + $0x40] sm:$0xff]
    %v895 = vld [vmem:[%s4 + $0x48] sm:$0xff]
    %v896 = vld [vmem:[%s4 + $0x50] sm:$0xff]
    %v897 = vld [vmem:[%s4 + $0x58] sm:$0xff]
    %v898 = vld [vmem:[%s4 + $0x60] sm:$0xff]
    %v899 = vld [vmem:[%s4 + $0x68] sm:$0xff]
    %v900 = vld [vmem:[%s4 + $0x70] sm:$0xff]
    %v901 = vld [vmem:[%s4 + $0x78] sm:$0xff]
    %v902 = vld [vmem:[%s4 + $0x80] sm:$0xff]
    %v903 = vld [vmem:[%s4 + $0x88] sm:$0xff]
    %v904 = vld [vmem:[%s4 + $0x90] sm:$0xff]
    %v905 = vld [vmem:[%s4 + $0x98] sm:$0xff]
    %v906 = vld [vmem:[%s4 + $0xa0] sm:$0xff]
    %v907 = vld [vmem:[%s4 + $0xa8] sm:$0xff]
    %v908 = vld [vmem:[%s4 + $0xb0] sm:$0xff]
    %v909 = vld [vmem:[%s4 + $0xb8] sm:$0xff]
    %v910 = vld [vmem:[%s4 + $0xc0] sm:$0xff]
    %v911 = vld [vmem:[%s4 + $0xc8] sm:$0xff]
    %v912 = vld [vmem:[%s4 + $0xd0] sm:$0xff]
    %v913 = vld [vmem:[%s4 + $0xd8] sm:$0xff]
    %v914 = vld [vmem:[%s4 + $0xe0] sm:$0xff]
    %v915 = vld [vmem:[%s4 + $0xe8] sm:$0xff]
    %v916 = vld [vmem:[%s4 + $0xf0] sm:$0xff]
    %v917 = vld [vmem:[%s4 + $0xf8] sm:$0xff]
    %v918 = vld [vmem:[%s4 + $0x100] sm:$0xff]
    %v919 = vld [vmem:[%s4 + $0x108] sm:$0xff]
    %v920 = vld [vmem:[%s4 + $0x110] sm:$0xff]
    %v921 = vld [vmem:[%s4 + $0x118] sm:$0xff]
    %v922 = vld [vmem:[%s4 + $0x120] sm:$0xff]
    %v923 = vld [vmem:[%s4 + $0x128] sm:$0xff]
    %v924 = vld [vmem:[%s4 + $0x130] sm:$0xff]
    %v925 = vld [vmem:[%s4 + $0x138] sm:$0xff]
    %v926 = vld [vmem:[%s4 + $0x140] sm:$0xff]
    %v927 = vld [vmem:[%s4 + $0x148] sm:$0xff]
    %v928 = vld [vmem:[%s4 + $0x150] sm:$0xff]
    %v929 = vld [vmem:[%s4 + $0x158] sm:$0xff]
    %v930 = vld [vmem:[%s4 + $0x160] sm:$0xff]
    %v931 = vld [vmem:[%s4 + $0x168] sm:$0xff]
    %v932 = vld [vmem:[%s4 + $0x170] sm:$0xff]
    %v933 = vld [vmem:[%s4 + $0x178] sm:$0xff]
    %v934 = vld [vmem:[%s4 + $0x180] sm:$0xff]
    %v935 = vld [vmem:[%s4 + $0x188] sm:$0xff]
    %v936 = vld [vmem:[%s4 + $0x190] sm:$0xff]
    %v937 = vld [vmem:[%s4 + $0x198] sm:$0xff]
    %v938 = vld [vmem:[%s4 + $0x1a0] sm:$0xff]
    %v939 = vld [vmem:[%s4 + $0x1a8] sm:$0xff]
    %v940 = vld [vmem:[%s4 + $0x1b0] sm:$0xff]
    %v941 = vld [vmem:[%s4 + $0x1b8] sm:$0xff]
    %v942 = vld [vmem:[%s4 + $0x1c0] sm:$0xff]
    %v943 = vld [vmem:[%s4 + $0x1c8] sm:$0xff]
    %v944 = vld [vmem:[%s4 + $0x1d0] sm:$0xff]
    %v945 = vld [vmem:[%s4 + $0x1d8] sm:$0xff]
    %v946 = vld [vmem:[%s4 + $0x1e0] sm:$0xff]
    %v947 = vld [vmem:[%s4 + $0x1e8] sm:$0xff]
    %v948 = vld [vmem:[%s4 + $0x1f0] sm:$0xff]
    %v949 = vld [vmem:[%s4 + $0x1f8] sm:$0xff]
    %950 = vmatprep.subr.mxu0 %v887
    %951 = vmatpush1.msra.mxu0 %v886
    %952 = vmatprep.subr.mxu0 %v891
    %953 = vmatpush1.msra.mxu0 %v890
    %954 = vmatprep.subr.mxu0 %v895
    %955 = vmatpush1.msra.mxu0 %v894
    %956 = vmatprep.subr.mxu0 %v899
    %957 = vmatpush1.msra.mxu0 %v898
    %958 = vmatprep.subr.mxu0 %v903
    %959 = vmatpush1.msra.mxu0 %v902
    %960 = vmatprep.subr.mxu0 %v907
    %961 = vmatpush1.msra.mxu0 %v906
    %962 = vmatprep.subr.mxu0 %v911
    %963 = vmatpush1.msra.mxu0 %v910
    %964 = vmatprep.subr.mxu0 %v915
    %965 = vmatpush1.msra.mxu0 %v914
    %966 = vmatprep.subr.mxu0 %v919
    %967 = vmatpush1.msra.mxu0 %v918
    %968 = vmatprep.subr.mxu0 %v923
    %969 = vmatpush1.msra.mxu0 %v922
    %970 = vmatprep.subr.mxu0 %v927
    %971 = vmatpush1.msra.mxu0 %v926
    %972 = vmatprep.subr.mxu0 %v931
    %973 = vmatpush1.msra.mxu0 %v930
    %974 = vmatprep.subr.mxu0 %v935
    %975 = vmatpush1.msra.mxu0 %v934
    %976 = vmatprep.subr.mxu0 %v939
    %977 = vmatpush1.msra.mxu0 %v938
    %978 = vmatprep.subr.mxu0 %v943
    %979 = vmatpush1.msra.mxu0 %v942
    %980 = vmatprep.subr.mxu0 %v947
    %981 = vmatpush1.msra.mxu0 %v946
    %982 = vmatprep.subr.mxu0 0.0
    %983 = vmatpush1.msra.mxu0 0.0
    %984 = vmatprep.subr.mxu0 0.0
    %985 = vmatpush1.msra.mxu0 0.0
    %986 = vmatprep.subr.mxu0 0.0
    %987 = vmatpush1.msra.mxu0 0.0
    %988 = vmatprep.subr.mxu0 0.0
    %989 = vmatpush1.msra.mxu0 0.0
    %990 = vmatprep.subr.mxu0 0.0
    %991 = vmatpush1.msra.mxu0 0.0
    %992 = vmatprep.subr.mxu0 0.0
    %993 = vmatpush1.msra.mxu0 0.0
    %994 = vmatprep.subr.mxu0 0.0
    %995 = vmatpush1.msra.mxu0 0.0
    %996 = vmatprep.subr.mxu0 0.0
    %997 = vmatpush1.msra.mxu0 0.0
    %998 = vmatprep.subr.mxu0 0.0
    %999 = vmatpush1.msra.mxu0 0.0
    %1000 = vmatprep.subr.mxu0 0.0
    %1001 = vmatpush1.msra.mxu0 0.0
    %1002 = vmatprep.subr.mxu0 0.0
    %1003 = vmatpush1.msra.mxu0 0.0
    %1004 = vmatprep.subr.mxu0 0.0
    %1005 = vmatpush1.msra.mxu0 0.0
    %1006 = vmatprep.subr.mxu0 0.0
    %1007 = vmatpush1.msra.mxu0 0.0
    %1008 = vmatprep.subr.mxu0 0.0
    %1009 = vmatpush1.msra.mxu0 0.0
    %1010 = vmatprep.subr.mxu0 0.0
    %1011 = vmatpush1.msra.mxu0 0.0
    %1012 = vmatprep.subr.mxu0 0.0
    %1013 = vmatpush1.msra.mxu0 0.0
    %1014 = vmatprep.mubr.f32.mxu0 0.0
    %1015 = vmatmul.mubr.f32.gmra.mrb[0].mxu0 %v884
    %v1016 = vpop.f32.mrb[0].mxu0
    %v1017 = vadd.f32 0.0, %v1016
    %v1018 = vpop.f32.mrb[0].mxu0
    %v1019 = vadd.f32 0.0, %v1018
    %1020 = vdwg.mxu0
    %1021 = vmatprep.subr.mxu0 %v889
    %1022 = vmatpush1.msra.mxu0 %v888
    %1023 = vmatprep.subr.mxu0 %v893
    %1024 = vmatpush1.msra.mxu0 %v892
    %1025 = vmatprep.subr.mxu0 %v897
    %1026 = vmatpush1.msra.mxu0 %v896
    %1027 = vmatprep.subr.mxu0 %v901
    %1028 = vmatpush1.msra.mxu0 %v900
    %1029 = vmatprep.subr.mxu0 %v905
    %1030 = vmatpush1.msra.mxu0 %v904
    %1031 = vmatprep.subr.mxu0 %v909
    %1032 = vmatpush1.msra.mxu0 %v908
    %1033 = vmatprep.subr.mxu0 %v913
    %1034 = vmatpush1.msra.mxu0 %v912
    %1035 = vmatprep.subr.mxu0 %v917
    %1036 = vmatpush1.msra.mxu0 %v916
    %1037 = vmatprep.subr.mxu0 %v921
    %1038 = vmatpush1.msra.mxu0 %v920
    %1039 = vmatprep.subr.mxu0 %v925
    %1040 = vmatpush1.msra.mxu0 %v924
    %1041 = vmatprep.subr.mxu0 %v929
    %1042 = vmatpush1.msra.mxu0 %v928
    %1043 = vmatprep.subr.mxu0 %v933
    %1044 = vmatpush1.msra.mxu0 %v932
    %1045 = vmatprep.subr.mxu0 %v937
    %1046 = vmatpush1.msra.mxu0 %v936
    %1047 = vmatprep.subr.mxu0 %v941
    %1048 = vmatpush1.msra.mxu0 %v940
    %1049 = vmatprep.subr.mxu0 %v945
    %1050 = vmatpush1.msra.mxu0 %v944
    %1051 = vmatprep.subr.mxu0 %v949
    %1052 = vmatpush1.msra.mxu0 %v948
    %1053 = vmatprep.subr.mxu0 0.0
    %1054 = vmatpush1.msra.mxu0 0.0
    %1055 = vmatprep.subr.mxu0 0.0
    %1056 = vmatpush1.msra.mxu0 0.0
    %1057 = vmatprep.subr.mxu0 0.0
    %1058 = vmatpush1.msra.mxu0 0.0
    %1059 = vmatprep.subr.mxu0 0.0
    %1060 = vmatpush1.msra.mxu0 0.0
    %1061 = vmatprep.subr.mxu0 0.0
    %1062 = vmatpush1.msra.mxu0 0.0
    %1063 = vmatprep.subr.mxu0 0.0
    %1064 = vmatpush1.msra.mxu0 0.0
    %1065 = vmatprep.subr.mxu0 0.0
    %1066 = vmatpush1.msra.mxu0 0.0
    %1067 = vmatprep.subr.mxu0 0.0
    %1068 = vmatpush1.msra.mxu0 0.0
    %1069 = vmatprep.subr.mxu0 0.0
    %1070 = vmatpush1.msra.mxu0 0.0
    %1071 = vmatprep.subr.mxu0 0.0
    %1072 = vmatpush1.msra.mxu0 0.0
    %1073 = vmatprep.subr.mxu0 0.0
    %1074 = vmatpush1.msra.mxu0 0.0
    %1075 = vmatprep.subr.mxu0 0.0
    %1076 = vmatpush1.msra.mxu0 0.0
    %1077 = vmatprep.subr.mxu0 0.0
    %1078 = vmatpush1.msra.mxu0 0.0
    %1079 = vmatprep.subr.mxu0 0.0
    %1080 = vmatpush1.msra.mxu0 0.0
    %1081 = vmatprep.subr.mxu0 0.0
    %1082 = vmatpush1.msra.mxu0 0.0
    %1083 = vmatprep.subr.mxu0 0.0
    %1084 = vmatpush1.msra.mxu0 0.0
    %1085 = vmatprep.mubr.f32.mxu0 0.0
    %1086 = vmatmul.mubr.f32.gmra.mrb[0].mxu0 %v884
    %v1087 = vpop.f32.mrb[0].mxu0
    %v1088 = vadd.f32 0.0, %v1087
    %v1089 = vpop.f32.mrb[0].mxu0
    %v1090 = vadd.f32 0.0, %v1089
    %1091 = vdwg.mxu0
    %v1092 = vld [vmem:[%s5] sm:$0xff]
    %v1093 = vld [vmem:[%s5 + $0x8] sm:$0xff]
    %v1094 = vld [vmem:[%s5 + $0x10] sm:$0xff]
    %v1095 = vld [vmem:[%s5 + $0x18] sm:$0xff]
    %v1096 = vld [vmem:[%s5 + $0x20] sm:$0xff]
    %v1097 = vld [vmem:[%s5 + $0x28] sm:$0xff]
    %v1098 = vld [vmem:[%s5 + $0x30] sm:$0xff]
    %v1099 = vld [vmem:[%s5 + $0x38] sm:$0xff]
    %v1100 = vld [vmem:[%s5 + $0x40] sm:$0xff]
    %v1101 = vld [vmem:[%s5 + $0x48] sm:$0xff]
    %v1102 = vld [vmem:[%s5 + $0x50] sm:$0xff]
    %v1103 = vld [vmem:[%s5 + $0x58] sm:$0xff]
    %v1104 = vld [vmem:[%s5 + $0x60] sm:$0xff]
    %v1105 = vld [vmem:[%s5 + $0x68] sm:$0xff]
    %v1106 = vld [vmem:[%s5 + $0x70] sm:$0xff]
    %v1107 = vld [vmem:[%s5 + $0x78] sm:$0xff]
    %1108 = vmatprep.subr.mxu0 0.0
    %1109 = vmatpush1.msra.mxu0 %v1092
    %1110 = vmatprep.subr.mxu0 0.0
    %1111 = vmatpush1.msra.mxu0 %v1093
    %1112 = vmatprep.subr.mxu0 0.0
    %1113 = vmatpush1.msra.mxu0 %v1094
    %1114 = vmatprep.subr.mxu0 0.0
    %1115 = vmatpush1.msra.mxu0 %v1095
    %1116 = vmatprep.subr.mxu0 0.0
    %1117 = vmatpush1.msra.mxu0 %v1096
    %1118 = vmatprep.subr.mxu0 0.0
    %1119 = vmatpush1.msra.mxu0 %v1097
    %1120 = vmatprep.subr.mxu0 0.0
    %1121 = vmatpush1.msra.mxu0 %v1098
    %1122 = vmatprep.subr.mxu0 0.0
    %1123 = vmatpush1.msra.mxu0 %v1099
    %1124 = vmatprep.subr.mxu0 0.0
    %1125 = vmatpush1.msra.mxu0 %v1100
    %1126 = vmatprep.subr.mxu0 0.0
    %1127 = vmatpush1.msra.mxu0 %v1101
    %1128 = vmatprep.subr.mxu0 0.0
    %1129 = vmatpush1.msra.mxu0 %v1102
    %1130 = vmatprep.subr.mxu0 0.0
    %1131 = vmatpush1.msra.mxu0 %v1103
    %1132 = vmatprep.subr.mxu0 0.0
    %1133 = vmatpush1.msra.mxu0 %v1104
    %1134 = vmatprep.subr.mxu0 0.0
    %1135 = vmatpush1.msra.mxu0 %v1105
    %1136 = vmatprep.subr.mxu0 0.0
    %1137 = vmatpush1.msra.mxu0 %v1106
    %1138 = vmatprep.subr.mxu0 0.0
    %1139 = vmatpush1.msra.mxu0 %v1107
    %1140 = vmatprep.subr.mxu0 0.0
    %1141 = vmatpush1.msra.mxu0 0.0
    %1142 = vmatprep.subr.mxu0 0.0
    %1143 = vmatpush1.msra.mxu0 0.0
    %1144 = vmatprep.subr.mxu0 0.0
    %1145 = vmatpush1.msra.mxu0 0.0
    %1146 = vmatprep.subr.mxu0 0.0
    %1147 = vmatpush1.msra.mxu0 0.0
    %1148 = vmatprep.subr.mxu0 0.0
    %1149 = vmatpush1.msra.mxu0 0.0
    %1150 = vmatprep.subr.mxu0 0.0
    %1151 = vmatpush1.msra.mxu0 0.0
    %1152 = vmatprep.subr.mxu0 0.0
    %1153 = vmatpush1.msra.mxu0 0.0
    %1154 = vmatprep.subr.mxu0 0.0
    %1155 = vmatpush1.msra.mxu0 0.0
    %1156 = vmatprep.subr.mxu0 0.0
    %1157 = vmatpush1.msra.mxu0 0.0
    %1158 = vmatprep.subr.mxu0 0.0
    %1159 = vmatpush1.msra.mxu0 0.0
    %1160 = vmatprep.subr.mxu0 0.0
    %1161 = vmatpush1.msra.mxu0 0.0
    %1162 = vmatprep.subr.mxu0 0.0
    %1163 = vmatpush1.msra.mxu0 0.0
    %1164 = vmatprep.subr.mxu0 0.0
    %1165 = vmatpush1.msra.mxu0 0.0
    %1166 = vmatprep.subr.mxu0 0.0
    %1167 = vmatpush1.msra.mxu0 0.0
    %1168 = vmatprep.subr.mxu0 0.0
    %1169 = vmatpush1.msra.mxu0 0.0
    %1170 = vmatprep.subr.mxu0 0.0
    %1171 = vmatpush1.msra.mxu0 0.0
    %1172 = vmatprep.mubr.f32.mxu0 0.0
    %1173 = vmatmul.mubr.f32.gmra.mrb[0].mxu0 %v882
    %v1174 = vpop.f32.mrb[0].mxu0
    %v1175 = vadd.f32 0.0, %v1174
    %v1176 = vpop.f32.mrb[0].mxu0
    %1177 = vdwg.mxu0
    %v1178 = vadd.f32 %v478, %v1175
    %v1179 = vtanh.pop %v1178
    %v1180 = vsub.f32 %v882, %v1179
    %1182 = vset.pattern.permute.xlu0 0
    %1183 = vperm.xlu0 %1182, %v83
    %v1184 = vpop.permute.xlu0 %1183
    %v1186 = vmul.f32 %v1179, %v1184
    %v1187 = vadd.f32 %v1180, %v1186
    %v1188 = vadd.f32 %v460, %v1017
    %v1189 = vxor.u32 %v1188, 2147483648
    %v1190 = vmul.f32 %v1189, 1.442695
    %v1191 = vpow.pop %v1190
    %v1192 = vadd.f32 %v1191, 1.0
    %v1193 = vrcp.pop %v1192
    %v1194 = vmul.f32 1.0, %v1193
    %v1195 = vrot.slane %v460, 2
    %v1197 = vadd.f32 %v1195, %v1019
    %v1198 = vxor.u32 %v1197, 2147483648
    %v1199 = vmul.f32 %v1198, 1.442695
    %v1200 = vpow.pop %v1199
    %v1201 = vadd.f32 %v1200, 1.0
    %v1202 = vrcp.pop %v1201
    %v1203 = vmul.f32 1.0, %v1202
    %v1204 = vrot.slane %v460, 4
    %v1206 = vadd.f32 %v1204, %v1088
    %v1207 = vxor.u32 %v1206, 2147483648
    %v1208 = vmul.f32 %v1207, 1.442695
    %v1209 = vpow.pop %v1208
    %v1210 = vadd.f32 %v1209, 1.0
    %v1211 = vrcp.pop %v1210
    %v1212 = vmul.f32 1.0, %v1211
    %v1213 = vrot.slane %v460, 6
    %v1215 = vadd.f32 %v1213, %v1090
    %v1216 = vtanh.pop %v1215
    %v1217 = vmul.f32 %v1203, %v1187
    %v1218 = vmul.f32 %v1194, %v1216
    %v1219 = vadd.f32 %v1217, %v1218
    %v1220 = vtanh.pop %v1219
    %v1221 = vmul.f32 %v1212, %v1220
    %s1222 = scalar_lea.vmem %s13, 2
    %1223 = vst [vmem:[%s1222] sm:$0x3] %v1221
    %v1224 = vld [vmem:[%s4] sm:$0xff]
    %v1225 = vld [vmem:[%s4 + $0x8] sm:$0xff]
    %v1226 = vld [vmem:[%s4 + $0x10] sm:$0xff]
    %v1227 = vld [vmem:[%s4 + $0x18] sm:$0xff]
    %v1228 = vld [vmem:[%s4 + $0x20] sm:$0xff]
    %v1229 = vld [vmem:[%s4 + $0x28] sm:$0xff]
    %v1230 = vld [vmem:[%s4 + $0x30] sm:$0xff]
    %v1231 = vld [vmem:[%s4 + $0x38] sm:$0xff]
    %v1232 = vld [vmem:[%s4 + $0x40] sm:$0xff]
    %v1233 = vld [vmem:[%s4 + $0x48] sm:$0xff]
    %v1234 = vld [vmem:[%s4 + $0x50] sm:$0xff]
    %v1235 = vld [vmem:[%s4 + $0x58] sm:$0xff]
    %v1236 = vld [vmem:[%s4 + $0x60] sm:$0xff]
    %v1237 = vld [vmem:[%s4 + $0x68] sm:$0xff]
    %v1238 = vld [vmem:[%s4 + $0x70] sm:$0xff]
    %v1239 = vld [vmem:[%s4 + $0x78] sm:$0xff]
    %v1240 = vld [vmem:[%s4 + $0x80] sm:$0xff]
    %v1241 = vld [vmem:[%s4 + $0x88] sm:$0xff]
    %v1242 = vld [vmem:[%s4 + $0x90] sm:$0xff]
    %v1243 = vld [vmem:[%s4 + $0x98] sm:$0xff]
    %v1244 = vld [vmem:[%s4 + $0xa0] sm:$0xff]
    %v1245 = vld [vmem:[%s4 + $0xa8] sm:$0xff]
    %v1246 = vld [vmem:[%s4 + $0xb0] sm:$0xff]
    %v1247 = vld [vmem:[%s4 + $0xb8] sm:$0xff]
    %v1248 = vld [vmem:[%s4 + $0xc0] sm:$0xff]
    %v1249 = vld [vmem:[%s4 + $0xc8] sm:$0xff]
    %v1250 = vld [vmem:[%s4 + $0xd0] sm:$0xff]
    %v1251 = vld [vmem:[%s4 + $0xd8] sm:$0xff]
    %v1252 = vld [vmem:[%s4 + $0xe0] sm:$0xff]
    %v1253 = vld [vmem:[%s4 + $0xe8] sm:$0xff]
    %v1254 = vld [vmem:[%s4 + $0xf0] sm:$0xff]
    %v1255 = vld [vmem:[%s4 + $0xf8] sm:$0xff]
    %v1256 = vld [vmem:[%s4 + $0x100] sm:$0xff]
    %v1257 = vld [vmem:[%s4 + $0x108] sm:$0xff]
    %v1258 = vld [vmem:[%s4 + $0x110] sm:$0xff]
    %v1259 = vld [vmem:[%s4 + $0x118] sm:$0xff]
    %v1260 = vld [vmem:[%s4 + $0x120] sm:$0xff]
    %v1261 = vld [vmem:[%s4 + $0x128] sm:$0xff]
    %v1262 = vld [vmem:[%s4 + $0x130] sm:$0xff]
    %v1263 = vld [vmem:[%s4 + $0x138] sm:$0xff]
    %v1264 = vld [vmem:[%s4 + $0x140] sm:$0xff]
    %v1265 = vld [vmem:[%s4 + $0x148] sm:$0xff]
    %v1266 = vld [vmem:[%s4 + $0x150] sm:$0xff]
    %v1267 = vld [vmem:[%s4 + $0x158] sm:$0xff]
    %v1268 = vld [vmem:[%s4 + $0x160] sm:$0xff]
    %v1269 = vld [vmem:[%s4 + $0x168] sm:$0xff]
    %v1270 = vld [vmem:[%s4 + $0x170] sm:$0xff]
    %v1271 = vld [vmem:[%s4 + $0x178] sm:$0xff]
    %v1272 = vld [vmem:[%s4 + $0x180] sm:$0xff]
    %v1273 = vld [vmem:[%s4 + $0x188] sm:$0xff]
    %v1274 = vld [vmem:[%s4 + $0x190] sm:$0xff]
    %v1275 = vld [vmem:[%s4 + $0x198] sm:$0xff]
    %v1276 = vld [vmem:[%s4 + $0x1a0] sm:$0xff]
    %v1277 = vld [vmem:[%s4 + $0x1a8] sm:$0xff]
    %v1278 = vld [vmem:[%s4 + $0x1b0] sm:$0xff]
    %v1279 = vld [vmem:[%s4 + $0x1b8] sm:$0xff]
    %v1280 = vld [vmem:[%s4 + $0x1c0] sm:$0xff]
    %v1281 = vld [vmem:[%s4 + $0x1c8] sm:$0xff]
    %v1282 = vld [vmem:[%s4 + $0x1d0] sm:$0xff]
    %v1283 = vld [vmem:[%s4 + $0x1d8] sm:$0xff]
    %v1284 = vld [vmem:[%s4 + $0x1e0] sm:$0xff]
    %v1285 = vld [vmem:[%s4 + $0x1e8] sm:$0xff]
    %v1286 = vld [vmem:[%s4 + $0x1f0] sm:$0xff]
    %v1287 = vld [vmem:[%s4 + $0x1f8] sm:$0xff]
    %1288 = vmatprep.subr.mxu0 %v1225
    %1289 = vmatpush1.msra.mxu0 %v1224
    %1290 = vmatprep.subr.mxu0 %v1229
    %1291 = vmatpush1.msra.mxu0 %v1228
    %1292 = vmatprep.subr.mxu0 %v1233
    %1293 = vmatpush1.msra.mxu0 %v1232
    %1294 = vmatprep.subr.mxu0 %v1237
    %1295 = vmatpush1.msra.mxu0 %v1236
    %1296 = vmatprep.subr.mxu0 %v1241
    %1297 = vmatpush1.msra.mxu0 %v1240
    %1298 = vmatprep.subr.mxu0 %v1245
    %1299 = vmatpush1.msra.mxu0 %v1244
    %1300 = vmatprep.subr.mxu0 %v1249
    %1301 = vmatpush1.msra.mxu0 %v1248
    %1302 = vmatprep.subr.mxu0 %v1253
    %1303 = vmatpush1.msra.mxu0 %v1252
    %1304 = vmatprep.subr.mxu0 %v1257
    %1305 = vmatpush1.msra.mxu0 %v1256
    %1306 = vmatprep.subr.mxu0 %v1261
    %1307 = vmatpush1.msra.mxu0 %v1260
    %1308 = vmatprep.subr.mxu0 %v1265
    %1309 = vmatpush1.msra.mxu0 %v1264
    %1310 = vmatprep.subr.mxu0 %v1269
    %1311 = vmatpush1.msra.mxu0 %v1268
    %1312 = vmatprep.subr.mxu0 %v1273
    %1313 = vmatpush1.msra.mxu0 %v1272
    %1314 = vmatprep.subr.mxu0 %v1277
    %1315 = vmatpush1.msra.mxu0 %v1276
    %1316 = vmatprep.subr.mxu0 %v1281
    %1317 = vmatpush1.msra.mxu0 %v1280
    %1318 = vmatprep.subr.mxu0 %v1285
    %1319 = vmatpush1.msra.mxu0 %v1284
    %1320 = vmatprep.subr.mxu0 0.0
    %1321 = vmatpush1.msra.mxu0 0.0
    %1322 = vmatprep.subr.mxu0 0.0
    %1323 = vmatpush1.msra.mxu0 0.0
    %1324 = vmatprep.subr.mxu0 0.0
    %1325 = vmatpush1.msra.mxu0 0.0
    %1326 = vmatprep.subr.mxu0 0.0
    %1327 = vmatpush1.msra.mxu0 0.0
    %1328 = vmatprep.subr.mxu0 0.0
    %1329 = vmatpush1.msra.mxu0 0.0
    %1330 = vmatprep.subr.mxu0 0.0
    %1331 = vmatpush1.msra.mxu0 0.0
    %1332 = vmatprep.subr.mxu0 0.0
    %1333 = vmatpush1.msra.mxu0 0.0
    %1334 = vmatprep.subr.mxu0 0.0
    %1335 = vmatpush1.msra.mxu0 0.0
    %1336 = vmatprep.subr.mxu0 0.0
    %1337 = vmatpush1.msra.mxu0 0.0
    %1338 = vmatprep.subr.mxu0 0.0
    %1339 = vmatpush1.msra.mxu0 0.0
    %1340 = vmatprep.subr.mxu0 0.0
    %1341 = vmatpush1.msra.mxu0 0.0
    %1342 = vmatprep.subr.mxu0 0.0
    %1343 = vmatpush1.msra.mxu0 0.0
    %1344 = vmatprep.subr.mxu0 0.0
    %1345 = vmatpush1.msra.mxu0 0.0
    %1346 = vmatprep.subr.mxu0 0.0
    %1347 = vmatpush1.msra.mxu0 0.0
    %1348 = vmatprep.subr.mxu0 0.0
    %1349 = vmatpush1.msra.mxu0 0.0
    %1350 = vmatprep.subr.mxu0 0.0
    %1351 = vmatpush1.msra.mxu0 0.0
    %1352 = vmatprep.mubr.f32.mxu0 0.0
    %1353 = vmatmul.mubr.f32.gmra.mrb[0].mxu0 %v1221
    %v1354 = vpop.f32.mrb[0].mxu0
    %v1355 = vadd.f32 0.0, %v1354
    %v1356 = vpop.f32.mrb[0].mxu0
    %v1357 = vadd.f32 0.0, %v1356
    %1358 = vdwg.mxu0
    %1359 = vmatprep.subr.mxu0 %v1227
    %1360 = vmatpush1.msra.mxu0 %v1226
    %1361 = vmatprep.subr.mxu0 %v1231
    %1362 = vmatpush1.msra.mxu0 %v1230
    %1363 = vmatprep.subr.mxu0 %v1235
    %1364 = vmatpush1.msra.mxu0 %v1234
    %1365 = vmatprep.subr.mxu0 %v1239
    %1366 = vmatpush1.msra.mxu0 %v1238
    %1367 = vmatprep.subr.mxu0 %v1243
    %1368 = vmatpush1.msra.mxu0 %v1242
    %1369 = vmatprep.subr.mxu0 %v1247
    %1370 = vmatpush1.msra.mxu0 %v1246
    %1371 = vmatprep.subr.mxu0 %v1251
    %1372 = vmatpush1.msra.mxu0 %v1250
    %1373 = vmatprep.subr.mxu0 %v1255
    %1374 = vmatpush1.msra.mxu0 %v1254
    %1375 = vmatprep.subr.mxu0 %v1259
    %1376 = vmatpush1.msra.mxu0 %v1258
    %1377 = vmatprep.subr.mxu0 %v1263
    %1378 = vmatpush1.msra.mxu0 %v1262
    %1379 = vmatprep.subr.mxu0 %v1267
    %1380 = vmatpush1.msra.mxu0 %v1266
    %1381 = vmatprep.subr.mxu0 %v1271
    %1382 = vmatpush1.msra.mxu0 %v1270
    %1383 = vmatprep.subr.mxu0 %v1275
    %1384 = vmatpush1.msra.mxu0 %v1274
    %1385 = vmatprep.subr.mxu0 %v1279
    %1386 = vmatpush1.msra.mxu0 %v1278
    %1387 = vmatprep.subr.mxu0 %v1283
    %1388 = vmatpush1.msra.mxu0 %v1282
    %1389 = vmatprep.subr.mxu0 %v1287
    %1390 = vmatpush1.msra.mxu0 %v1286
    %1391 = vmatprep.subr.mxu0 0.0
    %1392 = vmatpush1.msra.mxu0 0.0
    %1393 = vmatprep.subr.mxu0 0.0
    %1394 = vmatpush1.msra.mxu0 0.0
    %1395 = vmatprep.subr.mxu0 0.0
    %1396 = vmatpush1.msra.mxu0 0.0
    %1397 = vmatprep.subr.mxu0 0.0
    %1398 = vmatpush1.msra.mxu0 0.0
    %1399 = vmatprep.subr.mxu0 0.0
    %1400 = vmatpush1.msra.mxu0 0.0
    %1401 = vmatprep.subr.mxu0 0.0
    %1402 = vmatpush1.msra.mxu0 0.0
    %1403 = vmatprep.subr.mxu0 0.0
    %1404 = vmatpush1.msra.mxu0 0.0
    %1405 = vmatprep.subr.mxu0 0.0
    %1406 = vmatpush1.msra.mxu0 0.0
    %1407 = vmatprep.subr.mxu0 0.0
    %1408 = vmatpush1.msra.mxu0 0.0
    %1409 = vmatprep.subr.mxu0 0.0
    %1410 = vmatpush1.msra.mxu0 0.0
    %1411 = vmatprep.subr.mxu0 0.0
    %1412 = vmatpush1.msra.mxu0 0.0
    %1413 = vmatprep.subr.mxu0 0.0
    %1414 = vmatpush1.msra.mxu0 0.0
    %1415 = vmatprep.subr.mxu0 0.0
    %1416 = vmatpush1.msra.mxu0 0.0
    %1417 = vmatprep.subr.mxu0 0.0
    %1418 = vmatpush1.msra.mxu0 0.0
    %1419 = vmatprep.subr.mxu0 0.0
    %1420 = vmatpush1.msra.mxu0 0.0
    %1421 = vmatprep.subr.mxu0 0.0
    %1422 = vmatpush1.msra.mxu0 0.0
    %1423 = vmatprep.mubr.f32.mxu0 0.0
    %1424 = vmatmul.mubr.f32.gmra.mrb[0].mxu0 %v1221
    %v1425 = vpop.f32.mrb[0].mxu0
    %v1426 = vadd.f32 0.0, %v1425
    %v1427 = vpop.f32.mrb[0].mxu0
    %v1428 = vadd.f32 0.0, %v1427
    %1429 = vdwg.mxu0
    %v1430 = vld [vmem:[%s5] sm:$0xff]
    %v1431 = vld [vmem:[%s5 + $0x8] sm:$0xff]
    %v1432 = vld [vmem:[%s5 + $0x10] sm:$0xff]
    %v1433 = vld [vmem:[%s5 + $0x18] sm:$0xff]
    %v1434 = vld [vmem:[%s5 + $0x20] sm:$0xff]
    %v1435 = vld [vmem:[%s5 + $0x28] sm:$0xff]
    %v1436 = vld [vmem:[%s5 + $0x30] sm:$0xff]
    %v1437 = vld [vmem:[%s5 + $0x38] sm:$0xff]
    %v1438 = vld [vmem:[%s5 + $0x40] sm:$0xff]
    %v1439 = vld [vmem:[%s5 + $0x48] sm:$0xff]
    %v1440 = vld [vmem:[%s5 + $0x50] sm:$0xff]
    %v1441 = vld [vmem:[%s5 + $0x58] sm:$0xff]
    %v1442 = vld [vmem:[%s5 + $0x60] sm:$0xff]
    %v1443 = vld [vmem:[%s5 + $0x68] sm:$0xff]
    %v1444 = vld [vmem:[%s5 + $0x70] sm:$0xff]
    %v1445 = vld [vmem:[%s5 + $0x78] sm:$0xff]
    %1446 = vmatprep.subr.mxu0 0.0
    %1447 = vmatpush1.msra.mxu0 %v1430
    %1448 = vmatprep.subr.mxu0 0.0
    %1449 = vmatpush1.msra.mxu0 %v1431
    %1450 = vmatprep.subr.mxu0 0.0
    %1451 = vmatpush1.msra.mxu0 %v1432
    %1452 = vmatprep.subr.mxu0 0.0
    %1453 = vmatpush1.msra.mxu0 %v1433
    %1454 = vmatprep.subr.mxu0 0.0
    %1455 = vmatpush1.msra.mxu0 %v1434
    %1456 = vmatprep.subr.mxu0 0.0
    %1457 = vmatpush1.msra.mxu0 %v1435
    %1458 = vmatprep.subr.mxu0 0.0
    %1459 = vmatpush1.msra.mxu0 %v1436
    %1460 = vmatprep.subr.mxu0 0.0
    %1461 = vmatpush1.msra.mxu0 %v1437
    %1462 = vmatprep.subr.mxu0 0.0
    %1463 = vmatpush1.msra.mxu0 %v1438
    %1464 = vmatprep.subr.mxu0 0.0
    %1465 = vmatpush1.msra.mxu0 %v1439
    %1466 = vmatprep.subr.mxu0 0.0
    %1467 = vmatpush1.msra.mxu0 %v1440
    %1468 = vmatprep.subr.mxu0 0.0
    %1469 = vmatpush1.msra.mxu0 %v1441
    %1470 = vmatprep.subr.mxu0 0.0
    %1471 = vmatpush1.msra.mxu0 %v1442
    %1472 = vmatprep.subr.mxu0 0.0
    %1473 = vmatpush1.msra.mxu0 %v1443
    %1474 = vmatprep.subr.mxu0 0.0
    %1475 = vmatpush1.msra.mxu0 %v1444
    %1476 = vmatprep.subr.mxu0 0.0
    %1477 = vmatpush1.msra.mxu0 %v1445
    %1478 = vmatprep.subr.mxu0 0.0
    %1479 = vmatpush1.msra.mxu0 0.0
    %1480 = vmatprep.subr.mxu0 0.0
    %1481 = vmatpush1.msra.mxu0 0.0
    %1482 = vmatprep.subr.mxu0 0.0
    %1483 = vmatpush1.msra.mxu0 0.0
    %1484 = vmatprep.subr.mxu0 0.0
    %1485 = vmatpush1.msra.mxu0 0.0
    %1486 = vmatprep.subr.mxu0 0.0
    %1487 = vmatpush1.msra.mxu0 0.0
    %1488 = vmatprep.subr.mxu0 0.0
    %1489 = vmatpush1.msra.mxu0 0.0
    %1490 = vmatprep.subr.mxu0 0.0
    %1491 = vmatpush1.msra.mxu0 0.0
    %1492 = vmatprep.subr.mxu0 0.0
    %1493 = vmatpush1.msra.mxu0 0.0
    %1494 = vmatprep.subr.mxu0 0.0
    %1495 = vmatpush1.msra.mxu0 0.0
    %1496 = vmatprep.subr.mxu0 0.0
    %1497 = vmatpush1.msra.mxu0 0.0
    %1498 = vmatprep.subr.mxu0 0.0
    %1499 = vmatpush1.msra.mxu0 0.0
    %1500 = vmatprep.subr.mxu0 0.0
    %1501 = vmatpush1.msra.mxu0 0.0
    %1502 = vmatprep.subr.mxu0 0.0
    %1503 = vmatpush1.msra.mxu0 0.0
    %1504 = vmatprep.subr.mxu0 0.0
    %1505 = vmatpush1.msra.mxu0 0.0
    %1506 = vmatprep.subr.mxu0 0.0
    %1507 = vmatpush1.msra.mxu0 0.0
    %1508 = vmatprep.subr.mxu0 0.0
    %1509 = vmatpush1.msra.mxu0 0.0
    %1510 = vmatprep.mubr.f32.mxu0 0.0
    %1511 = vmatmul.mubr.f32.gmra.mrb[0].mxu0 %v1219
    %v1512 = vpop.f32.mrb[0].mxu0
    %v1513 = vadd.f32 0.0, %v1512
    %v1514 = vpop.f32.mrb[0].mxu0
    %1515 = vdwg.mxu0
    %v1516 = vadd.f32 %v477, %v1513
    %v1517 = vtanh.pop %v1516
    %v1518 = vsub.f32 %v1219, %v1517
    %1520 = vset.pattern.permute.xlu0 0
    %1521 = vperm.xlu0 %1520, %v85
    %v1522 = vpop.permute.xlu0 %1521
    %v1524 = vmul.f32 %v1517, %v1522
    %v1525 = vadd.f32 %v1518, %v1524
    %v1526 = vadd.f32 %v461, %v1355
    %v1527 = vxor.u32 %v1526, 2147483648
    %v1528 = vmul.f32 %v1527, 1.442695
    %v1529 = vpow.pop %v1528
    %v1530 = vadd.f32 %v1529, 1.0
    %v1531 = vrcp.pop %v1530
    %v1532 = vmul.f32 1.0, %v1531
    %v1533 = vrot.slane %v461, 2
    %v1535 = vadd.f32 %v1533, %v1357
    %v1536 = vxor.u32 %v1535, 2147483648
    %v1537 = vmul.f32 %v1536, 1.442695
    %v1538 = vpow.pop %v1537
    %v1539 = vadd.f32 %v1538, 1.0
    %v1540 = vrcp.pop %v1539
    %v1541 = vmul.f32 1.0, %v1540
    %v1542 = vrot.slane %v461, 4
    %v1544 = vadd.f32 %v1542, %v1426
    %v1545 = vxor.u32 %v1544, 2147483648
    %v1546 = vmul.f32 %v1545, 1.442695
    %v1547 = vpow.pop %v1546
    %v1548 = vadd.f32 %v1547, 1.0
    %v1549 = vrcp.pop %v1548
    %v1550 = vmul.f32 1.0, %v1549
    %v1551 = vrot.slane %v461, 6
    %v1553 = vadd.f32 %v1551, %v1428
    %v1554 = vtanh.pop %v1553
    %v1555 = vmul.f32 %v1541, %v1525
    %v1556 = vmul.f32 %v1532, %v1554
    %v1557 = vadd.f32 %v1555, %v1556
    %v1558 = vtanh.pop %v1557
    %v1559 = vmul.f32 %v1550, %v1558
    %s1560 = scalar_lea.vmem %s13, 4
    %1561 = vst [vmem:[%s1560] sm:$0x3] %v1559
    %v1562 = vld [vmem:[%s4] sm:$0xff]
    %v1563 = vld [vmem:[%s4 + $0x8] sm:$0xff]
    %v1564 = vld [vmem:[%s4 + $0x10] sm:$0xff]
    %v1565 = vld [vmem:[%s4 + $0x18] sm:$0xff]
    %v1566 = vld [vmem:[%s4 + $0x20] sm:$0xff]
    %v1567 = vld [vmem:[%s4 + $0x28] sm:$0xff]
    %v1568 = vld [vmem:[%s4 + $0x30] sm:$0xff]
    %v1569 = vld [vmem:[%s4 + $0x38] sm:$0xff]
    %v1570 = vld [vmem:[%s4 + $0x40] sm:$0xff]
    %v1571 = vld [vmem:[%s4 + $0x48] sm:$0xff]
    %v1572 = vld [vmem:[%s4 + $0x50] sm:$0xff]
    %v1573 = vld [vmem:[%s4 + $0x58] sm:$0xff]
    %v1574 = vld [vmem:[%s4 + $0x60] sm:$0xff]
    %v1575 = vld [vmem:[%s4 + $0x68] sm:$0xff]
    %v1576 = vld [vmem:[%s4 + $0x70] sm:$0xff]
    %v1577 = vld [vmem:[%s4 + $0x78] sm:$0xff]
    %v1578 = vld [vmem:[%s4 + $0x80] sm:$0xff]
    %v1579 = vld [vmem:[%s4 + $0x88] sm:$0xff]
    %v1580 = vld [vmem:[%s4 + $0x90] sm:$0xff]
    %v1581 = vld [vmem:[%s4 + $0x98] sm:$0xff]
    %v1582 = vld [vmem:[%s4 + $0xa0] sm:$0xff]
    %v1583 = vld [vmem:[%s4 + $0xa8] sm:$0xff]
    %v1584 = vld [vmem:[%s4 + $0xb0] sm:$0xff]
    %v1585 = vld [vmem:[%s4 + $0xb8] sm:$0xff]
    %v1586 = vld [vmem:[%s4 + $0xc0] sm:$0xff]
    %v1587 = vld [vmem:[%s4 + $0xc8] sm:$0xff]
    %v1588 = vld [vmem:[%s4 + $0xd0] sm:$0xff]
    %v1589 = vld [vmem:[%s4 + $0xd8] sm:$0xff]
    %v1590 = vld [vmem:[%s4 + $0xe0] sm:$0xff]
    %v1591 = vld [vmem:[%s4 + $0xe8] sm:$0xff]
    %v1592 = vld [vmem:[%s4 + $0xf0] sm:$0xff]
    %v1593 = vld [vmem:[%s4 + $0xf8] sm:$0xff]
    %v1594 = vld [vmem:[%s4 + $0x100] sm:$0xff]
    %v1595 = vld [vmem:[%s4 + $0x108] sm:$0xff]
    %v1596 = vld [vmem:[%s4 + $0x110] sm:$0xff]
    %v1597 = vld [vmem:[%s4 + $0x118] sm:$0xff]
    %v1598 = vld [vmem:[%s4 + $0x120] sm:$0xff]
    %v1599 = vld [vmem:[%s4 + $0x128] sm:$0xff]
    %v1600 = vld [vmem:[%s4 + $0x130] sm:$0xff]
    %v1601 = vld [vmem:[%s4 + $0x138] sm:$0xff]
    %v1602 = vld [vmem:[%s4 + $0x140] sm:$0xff]
    %v1603 = vld [vmem:[%s4 + $0x148] sm:$0xff]
    %v1604 = vld [vmem:[%s4 + $0x150] sm:$0xff]
    %v1605 = vld [vmem:[%s4 + $0x158] sm:$0xff]
    %v1606 = vld [vmem:[%s4 + $0x160] sm:$0xff]
    %v1607 = vld [vmem:[%s4 + $0x168] sm:$0xff]
    %v1608 = vld [vmem:[%s4 + $0x170] sm:$0xff]
    %v1609 = vld [vmem:[%s4 + $0x178] sm:$0xff]
    %v1610 = vld [vmem:[%s4 + $0x180] sm:$0xff]
    %v1611 = vld [vmem:[%s4 + $0x188] sm:$0xff]
    %v1612 = vld [vmem:[%s4 + $0x190] sm:$0xff]
    %v1613 = vld [vmem:[%s4 + $0x198] sm:$0xff]
    %v1614 = vld [vmem:[%s4 + $0x1a0] sm:$0xff]
    %v1615 = vld [vmem:[%s4 + $0x1a8] sm:$0xff]
    %v1616 = vld [vmem:[%s4 + $0x1b0] sm:$0xff]
    %v1617 = vld [vmem:[%s4 + $0x1b8] sm:$0xff]
    %v1618 = vld [vmem:[%s4 + $0x1c0] sm:$0xff]
    %v1619 = vld [vmem:[%s4 + $0x1c8] sm:$0xff]
    %v1620 = vld [vmem:[%s4 + $0x1d0] sm:$0xff]
    %v1621 = vld [vmem:[%s4 + $0x1d8] sm:$0xff]
    %v1622 = vld [vmem:[%s4 + $0x1e0] sm:$0xff]
    %v1623 = vld [vmem:[%s4 + $0x1e8] sm:$0xff]
    %v1624 = vld [vmem:[%s4 + $0x1f0] sm:$0xff]
    %v1625 = vld [vmem:[%s4 + $0x1f8] sm:$0xff]
    %1626 = vmatprep.subr.mxu0 %v1563
    %1627 = vmatpush1.msra.mxu0 %v1562
    %1628 = vmatprep.subr.mxu0 %v1567
    %1629 = vmatpush1.msra.mxu0 %v1566
    %1630 = vmatprep.subr.mxu0 %v1571
    %1631 = vmatpush1.msra.mxu0 %v1570
    %1632 = vmatprep.subr.mxu0 %v1575
    %1633 = vmatpush1.msra.mxu0 %v1574
    %1634 = vmatprep.subr.mxu0 %v1579
    %1635 = vmatpush1.msra.mxu0 %v1578
    %1636 = vmatprep.subr.mxu0 %v1583
    %1637 = vmatpush1.msra.mxu0 %v1582
    %1638 = vmatprep.subr.mxu0 %v1587
    %1639 = vmatpush1.msra.mxu0 %v1586
    %1640 = vmatprep.subr.mxu0 %v1591
    %1641 = vmatpush1.msra.mxu0 %v1590
    %1642 = vmatprep.subr.mxu0 %v1595
    %1643 = vmatpush1.msra.mxu0 %v1594
    %1644 = vmatprep.subr.mxu0 %v1599
    %1645 = vmatpush1.msra.mxu0 %v1598
    %1646 = vmatprep.subr.mxu0 %v1603
    %1647 = vmatpush1.msra.mxu0 %v1602
    %1648 = vmatprep.subr.mxu0 %v1607
    %1649 = vmatpush1.msra.mxu0 %v1606
    %1650 = vmatprep.subr.mxu0 %v1611
    %1651 = vmatpush1.msra.mxu0 %v1610
    %1652 = vmatprep.subr.mxu0 %v1615
    %1653 = vmatpush1.msra.mxu0 %v1614
    %1654 = vmatprep.subr.mxu0 %v1619
    %1655 = vmatpush1.msra.mxu0 %v1618
    %1656 = vmatprep.subr.mxu0 %v1623
    %1657 = vmatpush1.msra.mxu0 %v1622
    %1658 = vmatprep.subr.mxu0 0.0
    %1659 = vmatpush1.msra.mxu0 0.0
    %1660 = vmatprep.subr.mxu0 0.0
    %1661 = vmatpush1.msra.mxu0 0.0
    %1662 = vmatprep.subr.mxu0 0.0
    %1663 = vmatpush1.msra.mxu0 0.0
    %1664 = vmatprep.subr.mxu0 0.0
    %1665 = vmatpush1.msra.mxu0 0.0
    %1666 = vmatprep.subr.mxu0 0.0
    %1667 = vmatpush1.msra.mxu0 0.0
    %1668 = vmatprep.subr.mxu0 0.0
    %1669 = vmatpush1.msra.mxu0 0.0
    %1670 = vmatprep.subr.mxu0 0.0
    %1671 = vmatpush1.msra.mxu0 0.0
    %1672 = vmatprep.subr.mxu0 0.0
    %1673 = vmatpush1.msra.mxu0 0.0
    %1674 = vmatprep.subr.mxu0 0.0
    %1675 = vmatpush1.msra.mxu0 0.0
    %1676 = vmatprep.subr.mxu0 0.0
    %1677 = vmatpush1.msra.mxu0 0.0
    %1678 = vmatprep.subr.mxu0 0.0
    %1679 = vmatpush1.msra.mxu0 0.0
    %1680 = vmatprep.subr.mxu0 0.0
    %1681 = vmatpush1.msra.mxu0 0.0
    %1682 = vmatprep.subr.mxu0 0.0
    %1683 = vmatpush1.msra.mxu0 0.0
    %1684 = vmatprep.subr.mxu0 0.0
    %1685 = vmatpush1.msra.mxu0 0.0
    %1686 = vmatprep.subr.mxu0 0.0
    %1687 = vmatpush1.msra.mxu0 0.0
    %1688 = vmatprep.subr.mxu0 0.0
    %1689 = vmatpush1.msra.mxu0 0.0
    %1690 = vmatprep.mubr.f32.mxu0 0.0
    %1691 = vmatmul.mubr.f32.gmra.mrb[0].mxu0 %v1559
    %v1692 = vpop.f32.mrb[0].mxu0
    %v1693 = vadd.f32 0.0, %v1692
    %v1694 = vpop.f32.mrb[0].mxu0
    %v1695 = vadd.f32 0.0, %v1694
    %1696 = vdwg.mxu0
    %1697 = vmatprep.subr.mxu0 %v1565
    %1698 = vmatpush1.msra.mxu0 %v1564
    %1699 = vmatprep.subr.mxu0 %v1569
    %1700 = vmatpush1.msra.mxu0 %v1568
    %1701 = vmatprep.subr.mxu0 %v1573
    %1702 = vmatpush1.msra.mxu0 %v1572
    %1703 = vmatprep.subr.mxu0 %v1577
    %1704 = vmatpush1.msra.mxu0 %v1576
    %1705 = vmatprep.subr.mxu0 %v1581
    %1706 = vmatpush1.msra.mxu0 %v1580
    %1707 = vmatprep.subr.mxu0 %v1585
    %1708 = vmatpush1.msra.mxu0 %v1584
    %1709 = vmatprep.subr.mxu0 %v1589
    %1710 = vmatpush1.msra.mxu0 %v1588
    %1711 = vmatprep.subr.mxu0 %v1593
    %1712 = vmatpush1.msra.mxu0 %v1592
    %1713 = vmatprep.subr.mxu0 %v1597
    %1714 = vmatpush1.msra.mxu0 %v1596
    %1715 = vmatprep.subr.mxu0 %v1601
    %1716 = vmatpush1.msra.mxu0 %v1600
    %1717 = vmatprep.subr.mxu0 %v1605
    %1718 = vmatpush1.msra.mxu0 %v1604
    %1719 = vmatprep.subr.mxu0 %v1609
    %1720 = vmatpush1.msra.mxu0 %v1608
    %1721 = vmatprep.subr.mxu0 %v1613
    %1722 = vmatpush1.msra.mxu0 %v1612
    %1723 = vmatprep.subr.mxu0 %v1617
    %1724 = vmatpush1.msra.mxu0 %v1616
    %1725 = vmatprep.subr.mxu0 %v1621
    %1726 = vmatpush1.msra.mxu0 %v1620
    %1727 = vmatprep.subr.mxu0 %v1625
    %1728 = vmatpush1.msra.mxu0 %v1624
    %1729 = vmatprep.subr.mxu0 0.0
    %1730 = vmatpush1.msra.mxu0 0.0
    %1731 = vmatprep.subr.mxu0 0.0
    %1732 = vmatpush1.msra.mxu0 0.0
    %1733 = vmatprep.subr.mxu0 0.0
    %1734 = vmatpush1.msra.mxu0 0.0
    %1735 = vmatprep.subr.mxu0 0.0
    %1736 = vmatpush1.msra.mxu0 0.0
    %1737 = vmatprep.subr.mxu0 0.0
    %1738 = vmatpush1.msra.mxu0 0.0
    %1739 = vmatprep.subr.mxu0 0.0
    %1740 = vmatpush1.msra.mxu0 0.0
    %1741 = vmatprep.subr.mxu0 0.0
    %1742 = vmatpush1.msra.mxu0 0.0
    %1743 = vmatprep.subr.mxu0 0.0
    %1744 = vmatpush1.msra.mxu0 0.0
    %1745 = vmatprep.subr.mxu0 0.0
    %1746 = vmatpush1.msra.mxu0 0.0
    %1747 = vmatprep.subr.mxu0 0.0
    %1748 = vmatpush1.msra.mxu0 0.0
    %1749 = vmatprep.subr.mxu0 0.0
    %1750 = vmatpush1.msra.mxu0 0.0
    %1751 = vmatprep.subr.mxu0 0.0
    %1752 = vmatpush1.msra.mxu0 0.0
    %1753 = vmatprep.subr.mxu0 0.0
    %1754 = vmatpush1.msra.mxu0 0.0
    %1755 = vmatprep.subr.mxu0 0.0
    %1756 = vmatpush1.msra.mxu0 0.0
    %1757 = vmatprep.subr.mxu0 0.0
    %1758 = vmatpush1.msra.mxu0 0.0
    %1759 = vmatprep.subr.mxu0 0.0
    %1760 = vmatpush1.msra.mxu0 0.0
    %1761 = vmatprep.mubr.f32.mxu0 0.0
    %1762 = vmatmul.mubr.f32.gmra.mrb[0].mxu0 %v1559
    %v1763 = vpop.f32.mrb[0].mxu0
    %v1764 = vadd.f32 0.0, %v1763
    %v1765 = vpop.f32.mrb[0].mxu0
    %v1766 = vadd.f32 0.0, %v1765
    %1767 = vdwg.mxu0
    %v1768 = vld [vmem:[%s5] sm:$0xff]
    %v1769 = vld [vmem:[%s5 + $0x8] sm:$0xff]
    %v1770 = vld [vmem:[%s5 + $0x10] sm:$0xff]
    %v1771 = vld [vmem:[%s5 + $0x18] sm:$0xff]
    %v1772 = vld [vmem:[%s5 + $0x20] sm:$0xff]
    %v1773 = vld [vmem:[%s5 + $0x28] sm:$0xff]
    %v1774 = vld [vmem:[%s5 + $0x30] sm:$0xff]
    %v1775 = vld [vmem:[%s5 + $0x38] sm:$0xff]
    %v1776 = vld [vmem:[%s5 + $0x40] sm:$0xff]
    %v1777 = vld [vmem:[%s5 + $0x48] sm:$0xff]
    %v1778 = vld [vmem:[%s5 + $0x50] sm:$0xff]
    %v1779 = vld [vmem:[%s5 + $0x58] sm:$0xff]
    %v1780 = vld [vmem:[%s5 + $0x60] sm:$0xff]
    %v1781 = vld [vmem:[%s5 + $0x68] sm:$0xff]
    %v1782 = vld [vmem:[%s5 + $0x70] sm:$0xff]
    %v1783 = vld [vmem:[%s5 + $0x78] sm:$0xff]
    %1784 = vmatprep.subr.mxu0 0.0
    %1785 = vmatpush1.msra.mxu0 %v1768
    %1786 = vmatprep.subr.mxu0 0.0
    %1787 = vmatpush1.msra.mxu0 %v1769
    %1788 = vmatprep.subr.mxu0 0.0
    %1789 = vmatpush1.msra.mxu0 %v1770
    %1790 = vmatprep.subr.mxu0 0.0
    %1791 = vmatpush1.msra.mxu0 %v1771
    %1792 = vmatprep.subr.mxu0 0.0
    %1793 = vmatpush1.msra.mxu0 %v1772
    %1794 = vmatprep.subr.mxu0 0.0
    %1795 = vmatpush1.msra.mxu0 %v1773
    %1796 = vmatprep.subr.mxu0 0.0
    %1797 = vmatpush1.msra.mxu0 %v1774
    %1798 = vmatprep.subr.mxu0 0.0
    %1799 = vmatpush1.msra.mxu0 %v1775
    %1800 = vmatprep.subr.mxu0 0.0
    %1801 = vmatpush1.msra.mxu0 %v1776
    %1802 = vmatprep.subr.mxu0 0.0
    %1803 = vmatpush1.msra.mxu0 %v1777
    %1804 = vmatprep.subr.mxu0 0.0
    %1805 = vmatpush1.msra.mxu0 %v1778
    %1806 = vmatprep.subr.mxu0 0.0
    %1807 = vmatpush1.msra.mxu0 %v1779
    %1808 = vmatprep.subr.mxu0 0.0
    %1809 = vmatpush1.msra.mxu0 %v1780
    %1810 = vmatprep.subr.mxu0 0.0
    %1811 = vmatpush1.msra.mxu0 %v1781
    %1812 = vmatprep.subr.mxu0 0.0
    %1813 = vmatpush1.msra.mxu0 %v1782
    %1814 = vmatprep.subr.mxu0 0.0
    %1815 = vmatpush1.msra.mxu0 %v1783
    %1816 = vmatprep.subr.mxu0 0.0
    %1817 = vmatpush1.msra.mxu0 0.0
    %1818 = vmatprep.subr.mxu0 0.0
    %1819 = vmatpush1.msra.mxu0 0.0
    %1820 = vmatprep.subr.mxu0 0.0
    %1821 = vmatpush1.msra.mxu0 0.0
    %1822 = vmatprep.subr.mxu0 0.0
    %1823 = vmatpush1.msra.mxu0 0.0
    %1824 = vmatprep.subr.mxu0 0.0
    %1825 = vmatpush1.msra.mxu0 0.0
    %1826 = vmatprep.subr.mxu0 0.0
    %1827 = vmatpush1.msra.mxu0 0.0
    %1828 = vmatprep.subr.mxu0 0.0
    %1829 = vmatpush1.msra.mxu0 0.0
    %1830 = vmatprep.subr.mxu0 0.0
    %1831 = vmatpush1.msra.mxu0 0.0
    %1832 = vmatprep.subr.mxu0 0.0
    %1833 = vmatpush1.msra.mxu0 0.0
    %1834 = vmatprep.subr.mxu0 0.0
    %1835 = vmatpush1.msra.mxu0 0.0
    %1836 = vmatprep.subr.mxu0 0.0
    %1837 = vmatpush1.msra.mxu0 0.0
    %1838 = vmatprep.subr.mxu0 0.0
    %1839 = vmatpush1.msra.mxu0 0.0
    %1840 = vmatprep.subr.mxu0 0.0
    %1841 = vmatpush1.msra.mxu0 0.0
    %1842 = vmatprep.subr.mxu0 0.0
    %1843 = vmatpush1.msra.mxu0 0.0
    %1844 = vmatprep.subr.mxu0 0.0
    %1845 = vmatpush1.msra.mxu0 0.0
    %1846 = vmatprep.subr.mxu0 0.0
    %1847 = vmatpush1.msra.mxu0 0.0
    %1848 = vmatprep.mubr.f32.mxu0 0.0
    %1849 = vmatmul.mubr.f32.gmra.mrb[0].mxu0 %v1557
    %v1850 = vpop.f32.mrb[0].mxu0
    %v1851 = vadd.f32 0.0, %v1850
    %v1852 = vpop.f32.mrb[0].mxu0
    %1853 = vdwg.mxu0
    %v1854 = vadd.f32 %v479, %v1851
    %v1855 = vtanh.pop %v1854
    %v1856 = vsub.f32 %v1557, %v1855
    %1858 = vset.pattern.permute.xlu0 0
    %1859 = vperm.xlu0 %1858, %v87
    %v1860 = vpop.permute.xlu0 %1859
    %v1862 = vmul.f32 %v1855, %v1860
    %v1863 = vadd.f32 %v1856, %v1862
    %v1864 = vadd.f32 %v462, %v1693
    %v1865 = vxor.u32 %v1864, 2147483648
    %v1866 = vmul.f32 %v1865, 1.442695
    %v1867 = vpow.pop %v1866
    %v1868 = vadd.f32 %v1867, 1.0
    %v1869 = vrcp.pop %v1868
    %v1870 = vmul.f32 1.0, %v1869
    %v1871 = vrot.slane %v462, 2
    %v1873 = vadd.f32 %v1871, %v1695
    %v1874 = vxor.u32 %v1873, 2147483648
    %v1875 = vmul.f32 %v1874, 1.442695
    %v1876 = vpow.pop %v1875
    %v1877 = vadd.f32 %v1876, 1.0
    %v1878 = vrcp.pop %v1877
    %v1879 = vmul.f32 1.0, %v1878
    %v1880 = vrot.slane %v462, 4
    %v1882 = vadd.f32 %v1880, %v1764
    %v1883 = vxor.u32 %v1882, 2147483648
    %v1884 = vmul.f32 %v1883, 1.442695
    %v1885 = vpow.pop %v1884
    %v1886 = vadd.f32 %v1885, 1.0
    %v1887 = vrcp.pop %v1886
    %v1888 = vmul.f32 1.0, %v1887
    %v1889 = vrot.slane %v462, 6
    %v1891 = vadd.f32 %v1889, %v1766
    %v1892 = vtanh.pop %v1891
    %v1893 = vmul.f32 %v1879, %v1863
    %v1894 = vmul.f32 %v1870, %v1892
    %v1895 = vadd.f32 %v1893, %v1894
    %v1896 = vtanh.pop %v1895
    %v1897 = vmul.f32 %v1888, %v1896
    %s1898 = scalar_lea.vmem %s13, 6
    %1899 = vst [vmem:[%s1898] sm:$0x3] %v1897
    %v1900 = vld [vmem:[%s4] sm:$0xff]
    %v1901 = vld [vmem:[%s4 + $0x8] sm:$0xff]
    %v1902 = vld [vmem:[%s4 + $0x10] sm:$0xff]
    %v1903 = vld [vmem:[%s4 + $0x18] sm:$0xff]
    %v1904 = vld [vmem:[%s4 + $0x20] sm:$0xff]
    %v1905 = vld [vmem:[%s4 + $0x28] sm:$0xff]
    %v1906 = vld [vmem:[%s4 + $0x30] sm:$0xff]
    %v1907 = vld [vmem:[%s4 + $0x38] sm:$0xff]
    %v1908 = vld [vmem:[%s4 + $0x40] sm:$0xff]
    %v1909 = vld [vmem:[%s4 + $0x48] sm:$0xff]
    %v1910 = vld [vmem:[%s4 + $0x50] sm:$0xff]
    %v1911 = vld [vmem:[%s4 + $0x58] sm:$0xff]
    %v1912 = vld [vmem:[%s4 + $0x60] sm:$0xff]
    %v1913 = vld [vmem:[%s4 + $0x68] sm:$0xff]
    %v1914 = vld [vmem:[%s4 + $0x70] sm:$0xff]
    %v1915 = vld [vmem:[%s4 + $0x78] sm:$0xff]
    %v1916 = vld [vmem:[%s4 + $0x80] sm:$0xff]
    %v1917 = vld [vmem:[%s4 + $0x88] sm:$0xff]
    %v1918 = vld [vmem:[%s4 + $0x90] sm:$0xff]
    %v1919 = vld [vmem:[%s4 + $0x98] sm:$0xff]
    %v1920 = vld [vmem:[%s4 + $0xa0] sm:$0xff]
    %v1921 = vld [vmem:[%s4 + $0xa8] sm:$0xff]
    %v1922 = vld [vmem:[%s4 + $0xb0] sm:$0xff]
    %v1923 = vld [vmem:[%s4 + $0xb8] sm:$0xff]
    %v1924 = vld [vmem:[%s4 + $0xc0] sm:$0xff]
    %v1925 = vld [vmem:[%s4 + $0xc8] sm:$0xff]
    %v1926 = vld [vmem:[%s4 + $0xd0] sm:$0xff]
    %v1927 = vld [vmem:[%s4 + $0xd8] sm:$0xff]
    %v1928 = vld [vmem:[%s4 + $0xe0] sm:$0xff]
    %v1929 = vld [vmem:[%s4 + $0xe8] sm:$0xff]
    %v1930 = vld [vmem:[%s4 + $0xf0] sm:$0xff]
    %v1931 = vld [vmem:[%s4 + $0xf8] sm:$0xff]
    %v1932 = vld [vmem:[%s4 + $0x100] sm:$0xff]
    %v1933 = vld [vmem:[%s4 + $0x108] sm:$0xff]
    %v1934 = vld [vmem:[%s4 + $0x110] sm:$0xff]
    %v1935 = vld [vmem:[%s4 + $0x118] sm:$0xff]
    %v1936 = vld [vmem:[%s4 + $0x120] sm:$0xff]
    %v1937 = vld [vmem:[%s4 + $0x128] sm:$0xff]
    %v1938 = vld [vmem:[%s4 + $0x130] sm:$0xff]
    %v1939 = vld [vmem:[%s4 + $0x138] sm:$0xff]
    %v1940 = vld [vmem:[%s4 + $0x140] sm:$0xff]
    %v1941 = vld [vmem:[%s4 + $0x148] sm:$0xff]
    %v1942 = vld [vmem:[%s4 + $0x150] sm:$0xff]
    %v1943 = vld [vmem:[%s4 + $0x158] sm:$0xff]
    %v1944 = vld [vmem:[%s4 + $0x160] sm:$0xff]
    %v1945 = vld [vmem:[%s4 + $0x168] sm:$0xff]
    %v1946 = vld [vmem:[%s4 + $0x170] sm:$0xff]
    %v1947 = vld [vmem:[%s4 + $0x178] sm:$0xff]
    %v1948 = vld [vmem:[%s4 + $0x180] sm:$0xff]
    %v1949 = vld [vmem:[%s4 + $0x188] sm:$0xff]
    %v1950 = vld [vmem:[%s4 + $0x190] sm:$0xff]
    %v1951 = vld [vmem:[%s4 + $0x198] sm:$0xff]
    %v1952 = vld [vmem:[%s4 + $0x1a0] sm:$0xff]
    %v1953 = vld [vmem:[%s4 + $0x1a8] sm:$0xff]
    %v1954 = vld [vmem:[%s4 + $0x1b0] sm:$0xff]
    %v1955 = vld [vmem:[%s4 + $0x1b8] sm:$0xff]
    %v1956 = vld [vmem:[%s4 + $0x1c0] sm:$0xff]
    %v1957 = vld [vmem:[%s4 + $0x1c8] sm:$0xff]
    %v1958 = vld [vmem:[%s4 + $0x1d0] sm:$0xff]
    %v1959 = vld [vmem:[%s4 + $0x1d8] sm:$0xff]
    %v1960 = vld [vmem:[%s4 + $0x1e0] sm:$0xff]
    %v1961 = vld [vmem:[%s4 + $0x1e8] sm:$0xff]
    %v1962 = vld [vmem:[%s4 + $0x1f0] sm:$0xff]
    %v1963 = vld [vmem:[%s4 + $0x1f8] sm:$0xff]
    %1964 = vmatprep.subr.mxu0 %v1901
    %1965 = vmatpush1.msra.mxu0 %v1900
    %1966 = vmatprep.subr.mxu0 %v1905
    %1967 = vmatpush1.msra.mxu0 %v1904
    %1968 = vmatprep.subr.mxu0 %v1909
    %1969 = vmatpush1.msra.mxu0 %v1908
    %1970 = vmatprep.subr.mxu0 %v1913
    %1971 = vmatpush1.msra.mxu0 %v1912
    %1972 = vmatprep.subr.mxu0 %v1917
    %1973 = vmatpush1.msra.mxu0 %v1916
    %1974 = vmatprep.subr.mxu0 %v1921
    %1975 = vmatpush1.msra.mxu0 %v1920
    %1976 = vmatprep.subr.mxu0 %v1925
    %1977 = vmatpush1.msra.mxu0 %v1924
    %1978 = vmatprep.subr.mxu0 %v1929
    %1979 = vmatpush1.msra.mxu0 %v1928
    %1980 = vmatprep.subr.mxu0 %v1933
    %1981 = vmatpush1.msra.mxu0 %v1932
    %1982 = vmatprep.subr.mxu0 %v1937
    %1983 = vmatpush1.msra.mxu0 %v1936
    %1984 = vmatprep.subr.mxu0 %v1941
    %1985 = vmatpush1.msra.mxu0 %v1940
    %1986 = vmatprep.subr.mxu0 %v1945
    %1987 = vmatpush1.msra.mxu0 %v1944
    %1988 = vmatprep.subr.mxu0 %v1949
    %1989 = vmatpush1.msra.mxu0 %v1948
    %1990 = vmatprep.subr.mxu0 %v1953
    %1991 = vmatpush1.msra.mxu0 %v1952
    %1992 = vmatprep.subr.mxu0 %v1957
    %1993 = vmatpush1.msra.mxu0 %v1956
    %1994 = vmatprep.subr.mxu0 %v1961
    %1995 = vmatpush1.msra.mxu0 %v1960
    %1996 = vmatprep.subr.mxu0 0.0
    %1997 = vmatpush1.msra.mxu0 0.0
    %1998 = vmatprep.subr.mxu0 0.0
    %1999 = vmatpush1.msra.mxu0 0.0
    %2000 = vmatprep.subr.mxu0 0.0
    %2001 = vmatpush1.msra.mxu0 0.0
    %2002 = vmatprep.subr.mxu0 0.0
    %2003 = vmatpush1.msra.mxu0 0.0
    %2004 = vmatprep.subr.mxu0 0.0
    %2005 = vmatpush1.msra.mxu0 0.0
    %2006 = vmatprep.subr.mxu0 0.0
    %2007 = vmatpush1.msra.mxu0 0.0
    %2008 = vmatprep.subr.mxu0 0.0
    %2009 = vmatpush1.msra.mxu0 0.0
    %2010 = vmatprep.subr.mxu0 0.0
    %2011 = vmatpush1.msra.mxu0 0.0
    %2012 = vmatprep.subr.mxu0 0.0
    %2013 = vmatpush1.msra.mxu0 0.0
    %2014 = vmatprep.subr.mxu0 0.0
    %2015 = vmatpush1.msra.mxu0 0.0
    %2016 = vmatprep.subr.mxu0 0.0
    %2017 = vmatpush1.msra.mxu0 0.0
    %2018 = vmatprep.subr.mxu0 0.0
    %2019 = vmatpush1.msra.mxu0 0.0
    %2020 = vmatprep.subr.mxu0 0.0
    %2021 = vmatpush1.msra.mxu0 0.0
    %2022 = vmatprep.subr.mxu0 0.0
    %2023 = vmatpush1.msra.mxu0 0.0
    %2024 = vmatprep.subr.mxu0 0.0
    %2025 = vmatpush1.msra.mxu0 0.0
    %2026 = vmatprep.subr.mxu0 0.0
    %2027 = vmatpush1.msra.mxu0 0.0
    %2028 = vmatprep.mubr.f32.mxu0 0.0
    %2029 = vmatmul.mubr.f32.gmra.mrb[0].mxu0 %v1897
    %v2030 = vpop.f32.mrb[0].mxu0
    %v2031 = vadd.f32 0.0, %v2030
    %v2032 = vpop.f32.mrb[0].mxu0
    %v2033 = vadd.f32 0.0, %v2032
    %2034 = vdwg.mxu0
    %2035 = vmatprep.subr.mxu0 %v1903
    %2036 = vmatpush1.msra.mxu0 %v1902
    %2037 = vmatprep.subr.mxu0 %v1907
    %2038 = vmatpush1.msra.mxu0 %v1906
    %2039 = vmatprep.subr.mxu0 %v1911
    %2040 = vmatpush1.msra.mxu0 %v1910
    %2041 = vmatprep.subr.mxu0 %v1915
    %2042 = vmatpush1.msra.mxu0 %v1914
    %2043 = vmatprep.subr.mxu0 %v1919
    %2044 = vmatpush1.msra.mxu0 %v1918
    %2045 = vmatprep.subr.mxu0 %v1923
    %2046 = vmatpush1.msra.mxu0 %v1922
    %2047 = vmatprep.subr.mxu0 %v1927
    %2048 = vmatpush1.msra.mxu0 %v1926
    %2049 = vmatprep.subr.mxu0 %v1931
    %2050 = vmatpush1.msra.mxu0 %v1930
    %2051 = vmatprep.subr.mxu0 %v1935
    %2052 = vmatpush1.msra.mxu0 %v1934
    %2053 = vmatprep.subr.mxu0 %v1939
    %2054 = vmatpush1.msra.mxu0 %v1938
    %2055 = vmatprep.subr.mxu0 %v1943
    %2056 = vmatpush1.msra.mxu0 %v1942
    %2057 = vmatprep.subr.mxu0 %v1947
    %2058 = vmatpush1.msra.mxu0 %v1946
    %2059 = vmatprep.subr.mxu0 %v1951
    %2060 = vmatpush1.msra.mxu0 %v1950
    %2061 = vmatprep.subr.mxu0 %v1955
    %2062 = vmatpush1.msra.mxu0 %v1954
    %2063 = vmatprep.subr.mxu0 %v1959
    %2064 = vmatpush1.msra.mxu0 %v1958
    %2065 = vmatprep.subr.mxu0 %v1963
    %2066 = vmatpush1.msra.mxu0 %v1962
    %2067 = vmatprep.subr.mxu0 0.0
    %2068 = vmatpush1.msra.mxu0 0.0
    %2069 = vmatprep.subr.mxu0 0.0
    %2070 = vmatpush1.msra.mxu0 0.0
    %2071 = vmatprep.subr.mxu0 0.0
    %2072 = vmatpush1.msra.mxu0 0.0
    %2073 = vmatprep.subr.mxu0 0.0
    %2074 = vmatpush1.msra.mxu0 0.0
    %2075 = vmatprep.subr.mxu0 0.0
    %2076 = vmatpush1.msra.mxu0 0.0
    %2077 = vmatprep.subr.mxu0 0.0
    %2078 = vmatpush1.msra.mxu0 0.0
    %2079 = vmatprep.subr.mxu0 0.0
    %2080 = vmatpush1.msra.mxu0 0.0
    %2081 = vmatprep.subr.mxu0 0.0
    %2082 = vmatpush1.msra.mxu0 0.0
    %2083 = vmatprep.subr.mxu0 0.0
    %2084 = vmatpush1.msra.mxu0 0.0
    %2085 = vmatprep.subr.mxu0 0.0
    %2086 = vmatpush1.msra.mxu0 0.0
    %2087 = vmatprep.subr.mxu0 0.0
    %2088 = vmatpush1.msra.mxu0 0.0
    %2089 = vmatprep.subr.mxu0 0.0
    %2090 = vmatpush1.msra.mxu0 0.0
    %2091 = vmatprep.subr.mxu0 0.0
    %2092 = vmatpush1.msra.mxu0 0.0
    %2093 = vmatprep.subr.mxu0 0.0
    %2094 = vmatpush1.msra.mxu0 0.0
    %2095 = vmatprep.subr.mxu0 0.0
    %2096 = vmatpush1.msra.mxu0 0.0
    %2097 = vmatprep.subr.mxu0 0.0
    %2098 = vmatpush1.msra.mxu0 0.0
    %2099 = vmatprep.mubr.f32.mxu0 0.0
    %2100 = vmatmul.mubr.f32.gmra.mrb[0].mxu0 %v1897
    %v2101 = vpop.f32.mrb[0].mxu0
    %v2102 = vadd.f32 0.0, %v2101
    %v2103 = vpop.f32.mrb[0].mxu0
    %v2104 = vadd.f32 0.0, %v2103
    %2105 = vdwg.mxu0
    %v2106 = vld [vmem:[%s5] sm:$0xff]
    %v2107 = vld [vmem:[%s5 + $0x8] sm:$0xff]
    %v2108 = vld [vmem:[%s5 + $0x10] sm:$0xff]
    %v2109 = vld [vmem:[%s5 + $0x18] sm:$0xff]
    %v2110 = vld [vmem:[%s5 + $0x20] sm:$0xff]
    %v2111 = vld [vmem:[%s5 + $0x28] sm:$0xff]
    %v2112 = vld [vmem:[%s5 + $0x30] sm:$0xff]
    %v2113 = vld [vmem:[%s5 + $0x38] sm:$0xff]
    %v2114 = vld [vmem:[%s5 + $0x40] sm:$0xff]
    %v2115 = vld [vmem:[%s5 + $0x48] sm:$0xff]
    %v2116 = vld [vmem:[%s5 + $0x50] sm:$0xff]
    %v2117 = vld [vmem:[%s5 + $0x58] sm:$0xff]
    %v2118 = vld [vmem:[%s5 + $0x60] sm:$0xff]
    %v2119 = vld [vmem:[%s5 + $0x68] sm:$0xff]
    %v2120 = vld [vmem:[%s5 + $0x70] sm:$0xff]
    %v2121 = vld [vmem:[%s5 + $0x78] sm:$0xff]
    %2122 = vmatprep.subr.mxu0 0.0
    %2123 = vmatpush1.msra.mxu0 %v2106
    %2124 = vmatprep.subr.mxu0 0.0
    %2125 = vmatpush1.msra.mxu0 %v2107
    %2126 = vmatprep.subr.mxu0 0.0
    %2127 = vmatpush1.msra.mxu0 %v2108
    %2128 = vmatprep.subr.mxu0 0.0
    %2129 = vmatpush1.msra.mxu0 %v2109
    %2130 = vmatprep.subr.mxu0 0.0
    %2131 = vmatpush1.msra.mxu0 %v2110
    %2132 = vmatprep.subr.mxu0 0.0
    %2133 = vmatpush1.msra.mxu0 %v2111
    %2134 = vmatprep.subr.mxu0 0.0
    %2135 = vmatpush1.msra.mxu0 %v2112
    %2136 = vmatprep.subr.mxu0 0.0
    %2137 = vmatpush1.msra.mxu0 %v2113
    %2138 = vmatprep.subr.mxu0 0.0
    %2139 = vmatpush1.msra.mxu0 %v2114
    %2140 = vmatprep.subr.mxu0 0.0
    %2141 = vmatpush1.msra.mxu0 %v2115
    %2142 = vmatprep.subr.mxu0 0.0
    %2143 = vmatpush1.msra.mxu0 %v2116
    %2144 = vmatprep.subr.mxu0 0.0
    %2145 = vmatpush1.msra.mxu0 %v2117
    %2146 = vmatprep.subr.mxu0 0.0
    %2147 = vmatpush1.msra.mxu0 %v2118
    %2148 = vmatprep.subr.mxu0 0.0
    %2149 = vmatpush1.msra.mxu0 %v2119
    %2150 = vmatprep.subr.mxu0 0.0
    %2151 = vmatpush1.msra.mxu0 %v2120
    %2152 = vmatprep.subr.mxu0 0.0
    %2153 = vmatpush1.msra.mxu0 %v2121
    %2154 = vmatprep.subr.mxu0 0.0
    %2155 = vmatpush1.msra.mxu0 0.0
    %2156 = vmatprep.subr.mxu0 0.0
    %2157 = vmatpush1.msra.mxu0 0.0
    %2158 = vmatprep.subr.mxu0 0.0
    %2159 = vmatpush1.msra.mxu0 0.0
    %2160 = vmatprep.subr.mxu0 0.0
    %2161 = vmatpush1.msra.mxu0 0.0
    %2162 = vmatprep.subr.mxu0 0.0
    %2163 = vmatpush1.msra.mxu0 0.0
    %2164 = vmatprep.subr.mxu0 0.0
    %2165 = vmatpush1.msra.mxu0 0.0
    %2166 = vmatprep.subr.mxu0 0.0
    %2167 = vmatpush1.msra.mxu0 0.0
    %2168 = vmatprep.subr.mxu0 0.0
    %2169 = vmatpush1.msra.mxu0 0.0
    %2170 = vmatprep.subr.mxu0 0.0
    %2171 = vmatpush1.msra.mxu0 0.0
    %2172 = vmatprep.subr.mxu0 0.0
    %2173 = vmatpush1.msra.mxu0 0.0
    %2174 = vmatprep.subr.mxu0 0.0
    %2175 = vmatpush1.msra.mxu0 0.0
    %2176 = vmatprep.subr.mxu0 0.0
    %2177 = vmatpush1.msra.mxu0 0.0
    %2178 = vmatprep.subr.mxu0 0.0
    %2179 = vmatpush1.msra.mxu0 0.0
    %2180 = vmatprep.subr.mxu0 0.0
    %2181 = vmatpush1.msra.mxu0 0.0
    %2182 = vmatprep.subr.mxu0 0.0
    %2183 = vmatpush1.msra.mxu0 0.0
    %2184 = vmatprep.subr.mxu0 0.0
    %2185 = vmatpush1.msra.mxu0 0.0
    %2186 = vmatprep.mubr.f32.mxu0 0.0
    %2187 = vmatmul.mubr.f32.gmra.mrb[0].mxu0 %v1895
    %v2188 = vpop.f32.mrb[0].mxu0
    %v2189 = vadd.f32 0.0, %v2188
    %v2190 = vpop.f32.mrb[0].mxu0
    %2191 = vdwg.mxu0
    %v2192 = vadd.f32 %v523, %v2189
    %v2193 = vtanh.pop %v2192
    %v2194 = vsub.f32 %v1895, %v2193
    %2196 = vset.pattern.permute.xlu0 0
    %2197 = vperm.xlu0 %2196, %v89
    %v2198 = vpop.permute.xlu0 %2197
    %v2200 = vmul.f32 %v2193, %v2198
    %v2201 = vadd.f32 %v2194, %v2200
    %v2202 = vadd.f32 %v512, %v2031
    %v2203 = vxor.u32 %v2202, 2147483648
    %v2204 = vmul.f32 %v2203, 1.442695
    %v2205 = vpow.pop %v2204
    %v2206 = vadd.f32 %v2205, 1.0
    %v2207 = vrcp.pop %v2206
    %v2208 = vmul.f32 1.0, %v2207
    %v2209 = vrot.slane %v512, 2
    %v2211 = vadd.f32 %v2209, %v2033
    %v2212 = vxor.u32 %v2211, 2147483648
    %v2213 = vmul.f32 %v2212, 1.442695
    %v2214 = vpow.pop %v2213
    %v2215 = vadd.f32 %v2214, 1.0
    %v2216 = vrcp.pop %v2215
    %v2217 = vmul.f32 1.0, %v2216
    %v2218 = vrot.slane %v512, 4
    %v2220 = vadd.f32 %v2218, %v2102
    %v2221 = vxor.u32 %v2220, 2147483648
    %v2222 = vmul.f32 %v2221, 1.442695
    %v2223 = vpow.pop %v2222
    %v2224 = vadd.f32 %v2223, 1.0
    %v2225 = vrcp.pop %v2224
    %v2226 = vmul.f32 1.0, %v2225
    %v2227 = vrot.slane %v512, 6
    %v2229 = vadd.f32 %v2227, %v2104
    %v2230 = vtanh.pop %v2229
    %v2231 = vmul.f32 %v2217, %v2201
    %v2232 = vmul.f32 %v2208, %v2230
    %v2233 = vadd.f32 %v2231, %v2232
    %v2234 = vtanh.pop %v2233
    %v2235 = vmul.f32 %v2226, %v2234
    %s2236 = scalar_lea.vmem %s13, 8
    %2237 = vst [vmem:[%s2236] sm:$0x3] %v2235
    %v2238 = vld [vmem:[%s4] sm:$0xff]
    %v2239 = vld [vmem:[%s4 + $0x8] sm:$0xff]
    %v2240 = vld [vmem:[%s4 + $0x10] sm:$0xff]
    %v2241 = vld [vmem:[%s4 + $0x18] sm:$0xff]
    %v2242 = vld [vmem:[%s4 + $0x20] sm:$0xff]
    %v2243 = vld [vmem:[%s4 + $0x28] sm:$0xff]
    %v2244 = vld [vmem:[%s4 + $0x30] sm:$0xff]
    %v2245 = vld [vmem:[%s4 + $0x38] sm:$0xff]
    %v2246 = vld [vmem:[%s4 + $0x40] sm:$0xff]
    %v2247 = vld [vmem:[%s4 + $0x48] sm:$0xff]
    %v2248 = vld [vmem:[%s4 + $0x50] sm:$0xff]
    %v2249 = vld [vmem:[%s4 + $0x58] sm:$0xff]
    %v2250 = vld [vmem:[%s4 + $0x60] sm:$0xff]
    %v2251 = vld [vmem:[%s4 + $0x68] sm:$0xff]
    %v2252 = vld [vmem:[%s4 + $0x70] sm:$0xff]
    %v2253 = vld [vmem:[%s4 + $0x78] sm:$0xff]
    %v2254 = vld [vmem:[%s4 + $0x80] sm:$0xff]
    %v2255 = vld [vmem:[%s4 + $0x88] sm:$0xff]
    %v2256 = vld [vmem:[%s4 + $0x90] sm:$0xff]
    %v2257 = vld [vmem:[%s4 + $0x98] sm:$0xff]
    %v2258 = vld [vmem:[%s4 + $0xa0] sm:$0xff]
    %v2259 = vld [vmem:[%s4 + $0xa8] sm:$0xff]
    %v2260 = vld [vmem:[%s4 + $0xb0] sm:$0xff]
    %v2261 = vld [vmem:[%s4 + $0xb8] sm:$0xff]
    %v2262 = vld [vmem:[%s4 + $0xc0] sm:$0xff]
    %v2263 = vld [vmem:[%s4 + $0xc8] sm:$0xff]
    %v2264 = vld [vmem:[%s4 + $0xd0] sm:$0xff]
    %v2265 = vld [vmem:[%s4 + $0xd8] sm:$0xff]
    %v2266 = vld [vmem:[%s4 + $0xe0] sm:$0xff]
    %v2267 = vld [vmem:[%s4 + $0xe8] sm:$0xff]
    %v2268 = vld [vmem:[%s4 + $0xf0] sm:$0xff]
    %v2269 = vld [vmem:[%s4 + $0xf8] sm:$0xff]
    %v2270 = vld [vmem:[%s4 + $0x100] sm:$0xff]
    %v2271 = vld [vmem:[%s4 + $0x108] sm:$0xff]
    %v2272 = vld [vmem:[%s4 + $0x110] sm:$0xff]
    %v2273 = vld [vmem:[%s4 + $0x118] sm:$0xff]
    %v2274 = vld [vmem:[%s4 + $0x120] sm:$0xff]
    %v2275 = vld [vmem:[%s4 + $0x128] sm:$0xff]
    %v2276 = vld [vmem:[%s4 + $0x130] sm:$0xff]
    %v2277 = vld [vmem:[%s4 + $0x138] sm:$0xff]
    %v2278 = vld [vmem:[%s4 + $0x140] sm:$0xff]
    %v2279 = vld [vmem:[%s4 + $0x148] sm:$0xff]
    %v2280 = vld [vmem:[%s4 + $0x150] sm:$0xff]
    %v2281 = vld [vmem:[%s4 + $0x158] sm:$0xff]
    %v2282 = vld [vmem:[%s4 + $0x160] sm:$0xff]
    %v2283 = vld [vmem:[%s4 + $0x168] sm:$0xff]
    %v2284 = vld [vmem:[%s4 + $0x170] sm:$0xff]
    %v2285 = vld [vmem:[%s4 + $0x178] sm:$0xff]
    %v2286 = vld [vmem:[%s4 + $0x180] sm:$0xff]
    %v2287 = vld [vmem:[%s4 + $0x188] sm:$0xff]
    %v2288 = vld [vmem:[%s4 + $0x190] sm:$0xff]
    %v2289 = vld [vmem:[%s4 + $0x198] sm:$0xff]
    %v2290 = vld [vmem:[%s4 + $0x1a0] sm:$0xff]
    %v2291 = vld [vmem:[%s4 + $0x1a8] sm:$0xff]
    %v2292 = vld [vmem:[%s4 + $0x1b0] sm:$0xff]
    %v2293 = vld [vmem:[%s4 + $0x1b8] sm:$0xff]
    %v2294 = vld [vmem:[%s4 + $0x1c0] sm:$0xff]
    %v2295 = vld [vmem:[%s4 + $0x1c8] sm:$0xff]
    %v2296 = vld [vmem:[%s4 + $0x1d0] sm:$0xff]
    %v2297 = vld [vmem:[%s4 + $0x1d8] sm:$0xff]
    %v2298 = vld [vmem:[%s4 + $0x1e0] sm:$0xff]
    %v2299 = vld [vmem:[%s4 + $0x1e8] sm:$0xff]
    %v2300 = vld [vmem:[%s4 + $0x1f0] sm:$0xff]
    %v2301 = vld [vmem:[%s4 + $0x1f8] sm:$0xff]
    %2302 = vmatprep.subr.mxu0 %v2239
    %2303 = vmatpush1.msra.mxu0 %v2238
    %2304 = vmatprep.subr.mxu0 %v2243
    %2305 = vmatpush1.msra.mxu0 %v2242
    %2306 = vmatprep.subr.mxu0 %v2247
    %2307 = vmatpush1.msra.mxu0 %v2246
    %2308 = vmatprep.subr.mxu0 %v2251
    %2309 = vmatpush1.msra.mxu0 %v2250
    %2310 = vmatprep.subr.mxu0 %v2255
    %2311 = vmatpush1.msra.mxu0 %v2254
    %2312 = vmatprep.subr.mxu0 %v2259
    %2313 = vmatpush1.msra.mxu0 %v2258
    %2314 = vmatprep.subr.mxu0 %v2263
    %2315 = vmatpush1.msra.mxu0 %v2262
    %2316 = vmatprep.subr.mxu0 %v2267
    %2317 = vmatpush1.msra.mxu0 %v2266
    %2318 = vmatprep.subr.mxu0 %v2271
    %2319 = vmatpush1.msra.mxu0 %v2270
    %2320 = vmatprep.subr.mxu0 %v2275
    %2321 = vmatpush1.msra.mxu0 %v2274
    %2322 = vmatprep.subr.mxu0 %v2279
    %2323 = vmatpush1.msra.mxu0 %v2278
    %2324 = vmatprep.subr.mxu0 %v2283
    %2325 = vmatpush1.msra.mxu0 %v2282
    %2326 = vmatprep.subr.mxu0 %v2287
    %2327 = vmatpush1.msra.mxu0 %v2286
    %2328 = vmatprep.subr.mxu0 %v2291
    %2329 = vmatpush1.msra.mxu0 %v2290
    %2330 = vmatprep.subr.mxu0 %v2295
    %2331 = vmatpush1.msra.mxu0 %v2294
    %2332 = vmatprep.subr.mxu0 %v2299
    %2333 = vmatpush1.msra.mxu0 %v2298
    %2334 = vmatprep.subr.mxu0 0.0
    %2335 = vmatpush1.msra.mxu0 0.0
    %2336 = vmatprep.subr.mxu0 0.0
    %2337 = vmatpush1.msra.mxu0 0.0
    %2338 = vmatprep.subr.mxu0 0.0
    %2339 = vmatpush1.msra.mxu0 0.0
    %2340 = vmatprep.subr.mxu0 0.0
    %2341 = vmatpush1.msra.mxu0 0.0
    %2342 = vmatprep.subr.mxu0 0.0
    %2343 = vmatpush1.msra.mxu0 0.0
    %2344 = vmatprep.subr.mxu0 0.0
    %2345 = vmatpush1.msra.mxu0 0.0
    %2346 = vmatprep.subr.mxu0 0.0
    %2347 = vmatpush1.msra.mxu0 0.0
    %2348 = vmatprep.subr.mxu0 0.0
    %2349 = vmatpush1.msra.mxu0 0.0
    %2350 = vmatprep.subr.mxu0 0.0
    %2351 = vmatpush1.msra.mxu0 0.0
    %2352 = vmatprep.subr.mxu0 0.0
    %2353 = vmatpush1.msra.mxu0 0.0
    %2354 = vmatprep.subr.mxu0 0.0
    %2355 = vmatpush1.msra.mxu0 0.0
    %2356 = vmatprep.subr.mxu0 0.0
    %2357 = vmatpush1.msra.mxu0 0.0
    %2358 = vmatprep.subr.mxu0 0.0
    %2359 = vmatpush1.msra.mxu0 0.0
    %2360 = vmatprep.subr.mxu0 0.0
    %2361 = vmatpush1.msra.mxu0 0.0
    %2362 = vmatprep.subr.mxu0 0.0
    %2363 = vmatpush1.msra.mxu0 0.0
    %2364 = vmatprep.subr.mxu0 0.0
    %2365 = vmatpush1.msra.mxu0 0.0
    %2366 = vmatprep.mubr.f32.mxu0 0.0
    %2367 = vmatmul.mubr.f32.gmra.mrb[0].mxu0 %v2235
    %v2368 = vpop.f32.mrb[0].mxu0
    %v2369 = vadd.f32 0.0, %v2368
    %v2370 = vpop.f32.mrb[0].mxu0
    %v2371 = vadd.f32 0.0, %v2370
    %2372 = vdwg.mxu0
    %2373 = vmatprep.subr.mxu0 %v2241
    %2374 = vmatpush1.msra.mxu0 %v2240
    %2375 = vmatprep.subr.mxu0 %v2245
    %2376 = vmatpush1.msra.mxu0 %v2244
    %2377 = vmatprep.subr.mxu0 %v2249
    %2378 = vmatpush1.msra.mxu0 %v2248
    %2379 = vmatprep.subr.mxu0 %v2253
    %2380 = vmatpush1.msra.mxu0 %v2252
    %2381 = vmatprep.subr.mxu0 %v2257
    %2382 = vmatpush1.msra.mxu0 %v2256
    %2383 = vmatprep.subr.mxu0 %v2261
    %2384 = vmatpush1.msra.mxu0 %v2260
    %2385 = vmatprep.subr.mxu0 %v2265
    %2386 = vmatpush1.msra.mxu0 %v2264
    %2387 = vmatprep.subr.mxu0 %v2269
    %2388 = vmatpush1.msra.mxu0 %v2268
    %2389 = vmatprep.subr.mxu0 %v2273
    %2390 = vmatpush1.msra.mxu0 %v2272
    %2391 = vmatprep.subr.mxu0 %v2277
    %2392 = vmatpush1.msra.mxu0 %v2276
    %2393 = vmatprep.subr.mxu0 %v2281
    %2394 = vmatpush1.msra.mxu0 %v2280
    %2395 = vmatprep.subr.mxu0 %v2285
    %2396 = vmatpush1.msra.mxu0 %v2284
    %2397 = vmatprep.subr.mxu0 %v2289
    %2398 = vmatpush1.msra.mxu0 %v2288
    %2399 = vmatprep.subr.mxu0 %v2293
    %2400 = vmatpush1.msra.mxu0 %v2292
    %2401 = vmatprep.subr.mxu0 %v2297
    %2402 = vmatpush1.msra.mxu0 %v2296
    %2403 = vmatprep.subr.mxu0 %v2301
    %2404 = vmatpush1.msra.mxu0 %v2300
    %2405 = vmatprep.subr.mxu0 0.0
    %2406 = vmatpush1.msra.mxu0 0.0
    %2407 = vmatprep.subr.mxu0 0.0
    %2408 = vmatpush1.msra.mxu0 0.0
    %2409 = vmatprep.subr.mxu0 0.0
    %2410 = vmatpush1.msra.mxu0 0.0
    %2411 = vmatprep.subr.mxu0 0.0
    %2412 = vmatpush1.msra.mxu0 0.0
    %2413 = vmatprep.subr.mxu0 0.0
    %2414 = vmatpush1.msra.mxu0 0.0
    %2415 = vmatprep.subr.mxu0 0.0
    %2416 = vmatpush1.msra.mxu0 0.0
    %2417 = vmatprep.subr.mxu0 0.0
    %2418 = vmatpush1.msra.mxu0 0.0
    %2419 = vmatprep.subr.mxu0 0.0
    %2420 = vmatpush1.msra.mxu0 0.0
    %2421 = vmatprep.subr.mxu0 0.0
    %2422 = vmatpush1.msra.mxu0 0.0
    %2423 = vmatprep.subr.mxu0 0.0
    %2424 = vmatpush1.msra.mxu0 0.0
    %2425 = vmatprep.subr.mxu0 0.0
    %2426 = vmatpush1.msra.mxu0 0.0
    %2427 = vmatprep.subr.mxu0 0.0
    %2428 = vmatpush1.msra.mxu0 0.0
    %2429 = vmatprep.subr.mxu0 0.0
    %2430 = vmatpush1.msra.mxu0 0.0
    %2431 = vmatprep.subr.mxu0 0.0
    %2432 = vmatpush1.msra.mxu0 0.0
    %2433 = vmatprep.subr.mxu0 0.0
    %2434 = vmatpush1.msra.mxu0 0.0
    %2435 = vmatprep.subr.mxu0 0.0
    %2436 = vmatpush1.msra.mxu0 0.0
    %2437 = vmatprep.mubr.f32.mxu0 0.0
    %2438 = vmatmul.mubr.f32.gmra.mrb[0].mxu0 %v2235
    %v2439 = vpop.f32.mrb[0].mxu0
    %v2440 = vadd.f32 0.0, %v2439
    %v2441 = vpop.f32.mrb[0].mxu0
    %v2442 = vadd.f32 0.0, %v2441
    %2443 = vdwg.mxu0
    %v2444 = vld [vmem:[%s5] sm:$0xff]
    %v2445 = vld [vmem:[%s5 + $0x8] sm:$0xff]
    %v2446 = vld [vmem:[%s5 + $0x10] sm:$0xff]
    %v2447 = vld [vmem:[%s5 + $0x18] sm:$0xff]
    %v2448 = vld [vmem:[%s5 + $0x20] sm:$0xff]
    %v2449 = vld [vmem:[%s5 + $0x28] sm:$0xff]
    %v2450 = vld [vmem:[%s5 + $0x30] sm:$0xff]
    %v2451 = vld [vmem:[%s5 + $0x38] sm:$0xff]
    %v2452 = vld [vmem:[%s5 + $0x40] sm:$0xff]
    %v2453 = vld [vmem:[%s5 + $0x48] sm:$0xff]
    %v2454 = vld [vmem:[%s5 + $0x50] sm:$0xff]
    %v2455 = vld [vmem:[%s5 + $0x58] sm:$0xff]
    %v2456 = vld [vmem:[%s5 + $0x60] sm:$0xff]
    %v2457 = vld [vmem:[%s5 + $0x68] sm:$0xff]
    %v2458 = vld [vmem:[%s5 + $0x70] sm:$0xff]
    %v2459 = vld [vmem:[%s5 + $0x78] sm:$0xff]
    %2460 = vmatprep.subr.mxu0 0.0
    %2461 = vmatpush1.msra.mxu0 %v2444
    %2462 = vmatprep.subr.mxu0 0.0
    %2463 = vmatpush1.msra.mxu0 %v2445
    %2464 = vmatprep.subr.mxu0 0.0
    %2465 = vmatpush1.msra.mxu0 %v2446
    %2466 = vmatprep.subr.mxu0 0.0
    %2467 = vmatpush1.msra.mxu0 %v2447
    %2468 = vmatprep.subr.mxu0 0.0
    %2469 = vmatpush1.msra.mxu0 %v2448
    %2470 = vmatprep.subr.mxu0 0.0
    %2471 = vmatpush1.msra.mxu0 %v2449
    %2472 = vmatprep.subr.mxu0 0.0
    %2473 = vmatpush1.msra.mxu0 %v2450
    %2474 = vmatprep.subr.mxu0 0.0
    %2475 = vmatpush1.msra.mxu0 %v2451
    %2476 = vmatprep.subr.mxu0 0.0
    %2477 = vmatpush1.msra.mxu0 %v2452
    %2478 = vmatprep.subr.mxu0 0.0
    %2479 = vmatpush1.msra.mxu0 %v2453
    %2480 = vmatprep.subr.mxu0 0.0
    %2481 = vmatpush1.msra.mxu0 %v2454
    %2482 = vmatprep.subr.mxu0 0.0
    %2483 = vmatpush1.msra.mxu0 %v2455
    %2484 = vmatprep.subr.mxu0 0.0
    %2485 = vmatpush1.msra.mxu0 %v2456
    %2486 = vmatprep.subr.mxu0 0.0
    %2487 = vmatpush1.msra.mxu0 %v2457
    %2488 = vmatprep.subr.mxu0 0.0
    %2489 = vmatpush1.msra.mxu0 %v2458
    %2490 = vmatprep.subr.mxu0 0.0
    %2491 = vmatpush1.msra.mxu0 %v2459
    %2492 = vmatprep.subr.mxu0 0.0
    %2493 = vmatpush1.msra.mxu0 0.0
    %2494 = vmatprep.subr.mxu0 0.0
    %2495 = vmatpush1.msra.mxu0 0.0
    %2496 = vmatprep.subr.mxu0 0.0
    %2497 = vmatpush1.msra.mxu0 0.0
    %2498 = vmatprep.subr.mxu0 0.0
    %2499 = vmatpush1.msra.mxu0 0.0
    %2500 = vmatprep.subr.mxu0 0.0
    %2501 = vmatpush1.msra.mxu0 0.0
    %2502 = vmatprep.subr.mxu0 0.0
    %2503 = vmatpush1.msra.mxu0 0.0
    %2504 = vmatprep.subr.mxu0 0.0
    %2505 = vmatpush1.msra.mxu0 0.0
    %2506 = vmatprep.subr.mxu0 0.0
    %2507 = vmatpush1.msra.mxu0 0.0
    %2508 = vmatprep.subr.mxu0 0.0
    %2509 = vmatpush1.msra.mxu0 0.0
    %2510 = vmatprep.subr.mxu0 0.0
    %2511 = vmatpush1.msra.mxu0 0.0
    %2512 = vmatprep.subr.mxu0 0.0
    %2513 = vmatpush1.msra.mxu0 0.0
    %2514 = vmatprep.subr.mxu0 0.0
    %2515 = vmatpush1.msra.mxu0 0.0
    %2516 = vmatprep.subr.mxu0 0.0
    %2517 = vmatpush1.msra.mxu0 0.0
    %2518 = vmatprep.subr.mxu0 0.0
    %2519 = vmatpush1.msra.mxu0 0.0
    %2520 = vmatprep.subr.mxu0 0.0
    %2521 = vmatpush1.msra.mxu0 0.0
    %2522 = vmatprep.subr.mxu0 0.0
    %2523 = vmatpush1.msra.mxu0 0.0
    %2524 = vmatprep.mubr.f32.mxu0 0.0
    %2525 = vmatmul.mubr.f32.gmra.mrb[0].mxu0 %v2233
    %v2526 = vpop.f32.mrb[0].mxu0
    %v2527 = vadd.f32 0.0, %v2526
    %v2528 = vpop.f32.mrb[0].mxu0
    %2529 = vdwg.mxu0
    %v2530 = vadd.f32 %v531, %v2527
    %v2531 = vtanh.pop %v2530
    %v2532 = vsub.f32 %v2233, %v2531
    %2534 = vset.pattern.permute.xlu0 0
    %2535 = vperm.xlu0 %2534, %v91
    %v2536 = vpop.permute.xlu0 %2535
    %v2538 = vmul.f32 %v2531, %v2536
    %v2539 = vadd.f32 %v2532, %v2538
    %v2540 = vadd.f32 %v513, %v2369
    %v2541 = vxor.u32 %v2540, 2147483648
    %v2542 = vmul.f32 %v2541, 1.442695
    %v2543 = vpow.pop %v2542
    %v2544 = vadd.f32 %v2543, 1.0
    %v2545 = vrcp.pop %v2544
    %v2546 = vmul.f32 1.0, %v2545
    %v2547 = vrot.slane %v513, 2
    %v2549 = vadd.f32 %v2547, %v2371
    %v2550 = vxor.u32 %v2549, 2147483648
    %v2551 = vmul.f32 %v2550, 1.442695
    %v2552 = vpow.pop %v2551
    %v2553 = vadd.f32 %v2552, 1.0
    %v2554 = vrcp.pop %v2553
    %v2555 = vmul.f32 1.0, %v2554
    %v2556 = vrot.slane %v513, 4
    %v2558 = vadd.f32 %v2556, %v2440
    %v2559 = vxor.u32 %v2558, 2147483648
    %v2560 = vmul.f32 %v2559, 1.442695
    %v2561 = vpow.pop %v2560
    %v2562 = vadd.f32 %v2561, 1.0
    %v2563 = vrcp.pop %v2562
    %v2564 = vmul.f32 1.0, %v2563
    %v2565 = vrot.slane %v513, 6
    %v2567 = vadd.f32 %v2565, %v2442
    %v2568 = vtanh.pop %v2567
    %v2569 = vmul.f32 %v2555, %v2539
    %v2570 = vmul.f32 %v2546, %v2568
    %v2571 = vadd.f32 %v2569, %v2570
    %v2572 = vtanh.pop %v2571
    %v2573 = vmul.f32 %v2564, %v2572
    %s2574 = scalar_lea.vmem %s13, 10
    %2575 = vst [vmem:[%s2574] sm:$0x3] %v2573
    %v2576 = vld [vmem:[%s4] sm:$0xff]
    %v2577 = vld [vmem:[%s4 + $0x8] sm:$0xff]
    %v2578 = vld [vmem:[%s4 + $0x10] sm:$0xff]
    %v2579 = vld [vmem:[%s4 + $0x18] sm:$0xff]
    %v2580 = vld [vmem:[%s4 + $0x20] sm:$0xff]
    %v2581 = vld [vmem:[%s4 + $0x28] sm:$0xff]
    %v2582 = vld [vmem:[%s4 + $0x30] sm:$0xff]
    %v2583 = vld [vmem:[%s4 + $0x38] sm:$0xff]
    %v2584 = vld [vmem:[%s4 + $0x40] sm:$0xff]
    %v2585 = vld [vmem:[%s4 + $0x48] sm:$0xff]
    %v2586 = vld [vmem:[%s4 + $0x50] sm:$0xff]
    %v2587 = vld [vmem:[%s4 + $0x58] sm:$0xff]
    %v2588 = vld [vmem:[%s4 + $0x60] sm:$0xff]
    %v2589 = vld [vmem:[%s4 + $0x68] sm:$0xff]
    %v2590 = vld [vmem:[%s4 + $0x70] sm:$0xff]
    %v2591 = vld [vmem:[%s4 + $0x78] sm:$0xff]
    %v2592 = vld [vmem:[%s4 + $0x80] sm:$0xff]
    %v2593 = vld [vmem:[%s4 + $0x88] sm:$0xff]
    %v2594 = vld [vmem:[%s4 + $0x90] sm:$0xff]
    %v2595 = vld [vmem:[%s4 + $0x98] sm:$0xff]
    %v2596 = vld [vmem:[%s4 + $0xa0] sm:$0xff]
    %v2597 = vld [vmem:[%s4 + $0xa8] sm:$0xff]
    %v2598 = vld [vmem:[%s4 + $0xb0] sm:$0xff]
    %v2599 = vld [vmem:[%s4 + $0xb8] sm:$0xff]
    %v2600 = vld [vmem:[%s4 + $0xc0] sm:$0xff]
    %v2601 = vld [vmem:[%s4 + $0xc8] sm:$0xff]
    %v2602 = vld [vmem:[%s4 + $0xd0] sm:$0xff]
    %v2603 = vld [vmem:[%s4 + $0xd8] sm:$0xff]
    %v2604 = vld [vmem:[%s4 + $0xe0] sm:$0xff]
    %v2605 = vld [vmem:[%s4 + $0xe8] sm:$0xff]
    %v2606 = vld [vmem:[%s4 + $0xf0] sm:$0xff]
    %v2607 = vld [vmem:[%s4 + $0xf8] sm:$0xff]
    %v2608 = vld [vmem:[%s4 + $0x100] sm:$0xff]
    %v2609 = vld [vmem:[%s4 + $0x108] sm:$0xff]
    %v2610 = vld [vmem:[%s4 + $0x110] sm:$0xff]
    %v2611 = vld [vmem:[%s4 + $0x118] sm:$0xff]
    %v2612 = vld [vmem:[%s4 + $0x120] sm:$0xff]
    %v2613 = vld [vmem:[%s4 + $0x128] sm:$0xff]
    %v2614 = vld [vmem:[%s4 + $0x130] sm:$0xff]
    %v2615 = vld [vmem:[%s4 + $0x138] sm:$0xff]
    %v2616 = vld [vmem:[%s4 + $0x140] sm:$0xff]
    %v2617 = vld [vmem:[%s4 + $0x148] sm:$0xff]
    %v2618 = vld [vmem:[%s4 + $0x150] sm:$0xff]
    %v2619 = vld [vmem:[%s4 + $0x158] sm:$0xff]
    %v2620 = vld [vmem:[%s4 + $0x160] sm:$0xff]
    %v2621 = vld [vmem:[%s4 + $0x168] sm:$0xff]
    %v2622 = vld [vmem:[%s4 + $0x170] sm:$0xff]
    %v2623 = vld [vmem:[%s4 + $0x178] sm:$0xff]
    %v2624 = vld [vmem:[%s4 + $0x180] sm:$0xff]
    %v2625 = vld [vmem:[%s4 + $0x188] sm:$0xff]
    %v2626 = vld [vmem:[%s4 + $0x190] sm:$0xff]
    %v2627 = vld [vmem:[%s4 + $0x198] sm:$0xff]
    %v2628 = vld [vmem:[%s4 + $0x1a0] sm:$0xff]
    %v2629 = vld [vmem:[%s4 + $0x1a8] sm:$0xff]
    %v2630 = vld [vmem:[%s4 + $0x1b0] sm:$0xff]
    %v2631 = vld [vmem:[%s4 + $0x1b8] sm:$0xff]
    %v2632 = vld [vmem:[%s4 + $0x1c0] sm:$0xff]
    %v2633 = vld [vmem:[%s4 + $0x1c8] sm:$0xff]
    %v2634 = vld [vmem:[%s4 + $0x1d0] sm:$0xff]
    %v2635 = vld [vmem:[%s4 + $0x1d8] sm:$0xff]
    %v2636 = vld [vmem:[%s4 + $0x1e0] sm:$0xff]
    %v2637 = vld [vmem:[%s4 + $0x1e8] sm:$0xff]
    %v2638 = vld [vmem:[%s4 + $0x1f0] sm:$0xff]
    %v2639 = vld [vmem:[%s4 + $0x1f8] sm:$0xff]
    %2640 = vmatprep.subr.mxu0 %v2577
    %2641 = vmatpush1.msra.mxu0 %v2576
    %2642 = vmatprep.subr.mxu0 %v2581
    %2643 = vmatpush1.msra.mxu0 %v2580
    %2644 = vmatprep.subr.mxu0 %v2585
    %2645 = vmatpush1.msra.mxu0 %v2584
    %2646 = vmatprep.subr.mxu0 %v2589
    %2647 = vmatpush1.msra.mxu0 %v2588
    %2648 = vmatprep.subr.mxu0 %v2593
    %2649 = vmatpush1.msra.mxu0 %v2592
    %2650 = vmatprep.subr.mxu0 %v2597
    %2651 = vmatpush1.msra.mxu0 %v2596
    %2652 = vmatprep.subr.mxu0 %v2601
    %2653 = vmatpush1.msra.mxu0 %v2600
    %2654 = vmatprep.subr.mxu0 %v2605
    %2655 = vmatpush1.msra.mxu0 %v2604
    %2656 = vmatprep.subr.mxu0 %v2609
    %2657 = vmatpush1.msra.mxu0 %v2608
    %2658 = vmatprep.subr.mxu0 %v2613
    %2659 = vmatpush1.msra.mxu0 %v2612
    %2660 = vmatprep.subr.mxu0 %v2617
    %2661 = vmatpush1.msra.mxu0 %v2616
    %2662 = vmatprep.subr.mxu0 %v2621
    %2663 = vmatpush1.msra.mxu0 %v2620
    %2664 = vmatprep.subr.mxu0 %v2625
    %2665 = vmatpush1.msra.mxu0 %v2624
    %2666 = vmatprep.subr.mxu0 %v2629
    %2667 = vmatpush1.msra.mxu0 %v2628
    %2668 = vmatprep.subr.mxu0 %v2633
    %2669 = vmatpush1.msra.mxu0 %v2632
    %2670 = vmatprep.subr.mxu0 %v2637
    %2671 = vmatpush1.msra.mxu0 %v2636
    %2672 = vmatprep.subr.mxu0 0.0
    %2673 = vmatpush1.msra.mxu0 0.0
    %2674 = vmatprep.subr.mxu0 0.0
    %2675 = vmatpush1.msra.mxu0 0.0
    %2676 = vmatprep.subr.mxu0 0.0
    %2677 = vmatpush1.msra.mxu0 0.0
    %2678 = vmatprep.subr.mxu0 0.0
    %2679 = vmatpush1.msra.mxu0 0.0
    %2680 = vmatprep.subr.mxu0 0.0
    %2681 = vmatpush1.msra.mxu0 0.0
    %2682 = vmatprep.subr.mxu0 0.0
    %2683 = vmatpush1.msra.mxu0 0.0
    %2684 = vmatprep.subr.mxu0 0.0
    %2685 = vmatpush1.msra.mxu0 0.0
    %2686 = vmatprep.subr.mxu0 0.0
    %2687 = vmatpush1.msra.mxu0 0.0
    %2688 = vmatprep.subr.mxu0 0.0
    %2689 = vmatpush1.msra.mxu0 0.0
    %2690 = vmatprep.subr.mxu0 0.0
    %2691 = vmatpush1.msra.mxu0 0.0
    %2692 = vmatprep.subr.mxu0 0.0
    %2693 = vmatpush1.msra.mxu0 0.0
    %2694 = vmatprep.subr.mxu0 0.0
    %2695 = vmatpush1.msra.mxu0 0.0
    %2696 = vmatprep.subr.mxu0 0.0
    %2697 = vmatpush1.msra.mxu0 0.0
    %2698 = vmatprep.subr.mxu0 0.0
    %2699 = vmatpush1.msra.mxu0 0.0
    %2700 = vmatprep.subr.mxu0 0.0
    %2701 = vmatpush1.msra.mxu0 0.0
    %2702 = vmatprep.subr.mxu0 0.0
    %2703 = vmatpush1.msra.mxu0 0.0
    %2704 = vmatprep.mubr.f32.mxu0 0.0
    %2705 = vmatmul.mubr.f32.gmra.mrb[0].mxu0 %v2573
    %v2706 = vpop.f32.mrb[0].mxu0
    %v2707 = vadd.f32 0.0, %v2706
    %v2708 = vpop.f32.mrb[0].mxu0
    %v2709 = vadd.f32 0.0, %v2708
    %2710 = vdwg.mxu0
    %2711 = vmatprep.subr.mxu0 %v2579
    %2712 = vmatpush1.msra.mxu0 %v2578
    %2713 = vmatprep.subr.mxu0 %v2583
    %2714 = vmatpush1.msra.mxu0 %v2582
    %2715 = vmatprep.subr.mxu0 %v2587
    %2716 = vmatpush1.msra.mxu0 %v2586
    %2717 = vmatprep.subr.mxu0 %v2591
    %2718 = vmatpush1.msra.mxu0 %v2590
    %2719 = vmatprep.subr.mxu0 %v2595
    %2720 = vmatpush1.msra.mxu0 %v2594
    %2721 = vmatprep.subr.mxu0 %v2599
    %2722 = vmatpush1.msra.mxu0 %v2598
    %2723 = vmatprep.subr.mxu0 %v2603
    %2724 = vmatpush1.msra.mxu0 %v2602
    %2725 = vmatprep.subr.mxu0 %v2607
    %2726 = vmatpush1.msra.mxu0 %v2606
    %2727 = vmatprep.subr.mxu0 %v2611
    %2728 = vmatpush1.msra.mxu0 %v2610
    %2729 = vmatprep.subr.mxu0 %v2615
    %2730 = vmatpush1.msra.mxu0 %v2614
    %2731 = vmatprep.subr.mxu0 %v2619
    %2732 = vmatpush1.msra.mxu0 %v2618
    %2733 = vmatprep.subr.mxu0 %v2623
    %2734 = vmatpush1.msra.mxu0 %v2622
    %2735 = vmatprep.subr.mxu0 %v2627
    %2736 = vmatpush1.msra.mxu0 %v2626
    %2737 = vmatprep.subr.mxu0 %v2631
    %2738 = vmatpush1.msra.mxu0 %v2630
    %2739 = vmatprep.subr.mxu0 %v2635
    %2740 = vmatpush1.msra.mxu0 %v2634
    %2741 = vmatprep.subr.mxu0 %v2639
    %2742 = vmatpush1.msra.mxu0 %v2638
    %2743 = vmatprep.subr.mxu0 0.0
    %2744 = vmatpush1.msra.mxu0 0.0
    %2745 = vmatprep.subr.mxu0 0.0
    %2746 = vmatpush1.msra.mxu0 0.0
    %2747 = vmatprep.subr.mxu0 0.0
    %2748 = vmatpush1.msra.mxu0 0.0
    %2749 = vmatprep.subr.mxu0 0.0
    %2750 = vmatpush1.msra.mxu0 0.0
    %2751 = vmatprep.subr.mxu0 0.0
    %2752 = vmatpush1.msra.mxu0 0.0
    %2753 = vmatprep.subr.mxu0 0.0
    %2754 = vmatpush1.msra.mxu0 0.0
    %2755 = vmatprep.subr.mxu0 0.0
    %2756 = vmatpush1.msra.mxu0 0.0
    %2757 = vmatprep.subr.mxu0 0.0
    %2758 = vmatpush1.msra.mxu0 0.0
    %2759 = vmatprep.subr.mxu0 0.0
    %2760 = vmatpush1.msra.mxu0 0.0
    %2761 = vmatprep.subr.mxu0 0.0
    %2762 = vmatpush1.msra.mxu0 0.0
    %2763 = vmatprep.subr.mxu0 0.0
    %2764 = vmatpush1.msra.mxu0 0.0
    %2765 = vmatprep.subr.mxu0 0.0
    %2766 = vmatpush1.msra.mxu0 0.0
    %2767 = vmatprep.subr.mxu0 0.0
    %2768 = vmatpush1.msra.mxu0 0.0
    %2769 = vmatprep.subr.mxu0 0.0
    %2770 = vmatpush1.msra.mxu0 0.0
    %2771 = vmatprep.subr.mxu0 0.0
    %2772 = vmatpush1.msra.mxu0 0.0
    %2773 = vmatprep.subr.mxu0 0.0
    %2774 = vmatpush1.msra.mxu0 0.0
    %2775 = vmatprep.mubr.f32.mxu0 0.0
    %2776 = vmatmul.mubr.f32.gmra.mrb[0].mxu0 %v2573
    %v2777 = vpop.f32.mrb[0].mxu0
    %v2778 = vadd.f32 0.0, %v2777
    %v2779 = vpop.f32.mrb[0].mxu0
    %v2780 = vadd.f32 0.0, %v2779
    %2781 = vdwg.mxu0
    %v2782 = vld [vmem:[%s5] sm:$0xff]
    %v2783 = vld [vmem:[%s5 + $0x8] sm:$0xff]
    %v2784 = vld [vmem:[%s5 + $0x10] sm:$0xff]
    %v2785 = vld [vmem:[%s5 + $0x18] sm:$0xff]
    %v2786 = vld [vmem:[%s5 + $0x20] sm:$0xff]
    %v2787 = vld [vmem:[%s5 + $0x28] sm:$0xff]
    %v2788 = vld [vmem:[%s5 + $0x30] sm:$0xff]
    %v2789 = vld [vmem:[%s5 + $0x38] sm:$0xff]
    %v2790 = vld [vmem:[%s5 + $0x40] sm:$0xff]
    %v2791 = vld [vmem:[%s5 + $0x48] sm:$0xff]
    %v2792 = vld [vmem:[%s5 + $0x50] sm:$0xff]
    %v2793 = vld [vmem:[%s5 + $0x58] sm:$0xff]
    %v2794 = vld [vmem:[%s5 + $0x60] sm:$0xff]
    %v2795 = vld [vmem:[%s5 + $0x68] sm:$0xff]
    %v2796 = vld [vmem:[%s5 + $0x70] sm:$0xff]
    %v2797 = vld [vmem:[%s5 + $0x78] sm:$0xff]
    %2798 = vmatprep.subr.mxu0 0.0
    %2799 = vmatpush1.msra.mxu0 %v2782
    %2800 = vmatprep.subr.mxu0 0.0
    %2801 = vmatpush1.msra.mxu0 %v2783
    %2802 = vmatprep.subr.mxu0 0.0
    %2803 = vmatpush1.msra.mxu0 %v2784
    %2804 = vmatprep.subr.mxu0 0.0
    %2805 = vmatpush1.msra.mxu0 %v2785
    %2806 = vmatprep.subr.mxu0 0.0
    %2807 = vmatpush1.msra.mxu0 %v2786
    %2808 = vmatprep.subr.mxu0 0.0
    %2809 = vmatpush1.msra.mxu0 %v2787
    %2810 = vmatprep.subr.mxu0 0.0
    %2811 = vmatpush1.msra.mxu0 %v2788
    %2812 = vmatprep.subr.mxu0 0.0
    %2813 = vmatpush1.msra.mxu0 %v2789
    %2814 = vmatprep.subr.mxu0 0.0
    %2815 = vmatpush1.msra.mxu0 %v2790
    %2816 = vmatprep.subr.mxu0 0.0
    %2817 = vmatpush1.msra.mxu0 %v2791
    %2818 = vmatprep.subr.mxu0 0.0
    %2819 = vmatpush1.msra.mxu0 %v2792
    %2820 = vmatprep.subr.mxu0 0.0
    %2821 = vmatpush1.msra.mxu0 %v2793
    %2822 = vmatprep.subr.mxu0 0.0
    %2823 = vmatpush1.msra.mxu0 %v2794
    %2824 = vmatprep.subr.mxu0 0.0
    %2825 = vmatpush1.msra.mxu0 %v2795
    %2826 = vmatprep.subr.mxu0 0.0
    %2827 = vmatpush1.msra.mxu0 %v2796
    %2828 = vmatprep.subr.mxu0 0.0
    %2829 = vmatpush1.msra.mxu0 %v2797
    %2830 = vmatprep.subr.mxu0 0.0
    %2831 = vmatpush1.msra.mxu0 0.0
    %2832 = vmatprep.subr.mxu0 0.0
    %2833 = vmatpush1.msra.mxu0 0.0
    %2834 = vmatprep.subr.mxu0 0.0
    %2835 = vmatpush1.msra.mxu0 0.0
    %2836 = vmatprep.subr.mxu0 0.0
    %2837 = vmatpush1.msra.mxu0 0.0
    %2838 = vmatprep.subr.mxu0 0.0
    %2839 = vmatpush1.msra.mxu0 0.0
    %2840 = vmatprep.subr.mxu0 0.0
    %2841 = vmatpush1.msra.mxu0 0.0
    %2842 = vmatprep.subr.mxu0 0.0
    %2843 = vmatpush1.msra.mxu0 0.0
    %2844 = vmatprep.subr.mxu0 0.0
    %2845 = vmatpush1.msra.mxu0 0.0
    %2846 = vmatprep.subr.mxu0 0.0
    %2847 = vmatpush1.msra.mxu0 0.0
    %2848 = vmatprep.subr.mxu0 0.0
    %2849 = vmatpush1.msra.mxu0 0.0
    %2850 = vmatprep.subr.mxu0 0.0
    %2851 = vmatpush1.msra.mxu0 0.0
    %2852 = vmatprep.subr.mxu0 0.0
    %2853 = vmatpush1.msra.mxu0 0.0
    %2854 = vmatprep.subr.mxu0 0.0
    %2855 = vmatpush1.msra.mxu0 0.0
    %2856 = vmatprep.subr.mxu0 0.0
    %2857 = vmatpush1.msra.mxu0 0.0
    %2858 = vmatprep.subr.mxu0 0.0
    %2859 = vmatpush1.msra.mxu0 0.0
    %2860 = vmatprep.subr.mxu0 0.0
    %2861 = vmatpush1.msra.mxu0 0.0
    %2862 = vmatprep.mubr.f32.mxu0 0.0
    %2863 = vmatmul.mubr.f32.gmra.mrb[0].mxu0 %v2571
    %v2864 = vpop.f32.mrb[0].mxu0
    %v2865 = vadd.f32 0.0, %v2864
    %v2866 = vpop.f32.mrb[0].mxu0
    %2867 = vdwg.mxu0
    %v2868 = vadd.f32 %v530, %v2865
    %v2869 = vtanh.pop %v2868
    %v2870 = vsub.f32 %v2571, %v2869
    %2872 = vset.pattern.permute.xlu0 0
    %2873 = vperm.xlu0 %2872, %v93
    %v2874 = vpop.permute.xlu0 %2873
    %v2876 = vmul.f32 %v2869, %v2874
    %v2877 = vadd.f32 %v2870, %v2876
    %v2878 = vadd.f32 %v514, %v2707
    %v2879 = vxor.u32 %v2878, 2147483648
    %v2880 = vmul.f32 %v2879, 1.442695
    %v2881 = vpow.pop %v2880
    %v2882 = vadd.f32 %v2881, 1.0
    %v2883 = vrcp.pop %v2882
    %v2884 = vmul.f32 1.0, %v2883
    %v2885 = vrot.slane %v514, 2
    %v2887 = vadd.f32 %v2885, %v2709
    %v2888 = vxor.u32 %v2887, 2147483648
    %v2889 = vmul.f32 %v2888, 1.442695
    %v2890 = vpow.pop %v2889
    %v2891 = vadd.f32 %v2890, 1.0
    %v2892 = vrcp.pop %v2891
    %v2893 = vmul.f32 1.0, %v2892
    %v2894 = vrot.slane %v514, 4
    %v2896 = vadd.f32 %v2894, %v2778
    %v2897 = vxor.u32 %v2896, 2147483648
    %v2898 = vmul.f32 %v2897, 1.442695
    %v2899 = vpow.pop %v2898
    %v2900 = vadd.f32 %v2899, 1.0
    %v2901 = vrcp.pop %v2900
    %v2902 = vmul.f32 1.0, %v2901
    %v2903 = vrot.slane %v514, 6
    %v2905 = vadd.f32 %v2903, %v2780
    %v2906 = vtanh.pop %v2905
    %v2907 = vmul.f32 %v2893, %v2877
    %v2908 = vmul.f32 %v2884, %v2906
    %v2909 = vadd.f32 %v2907, %v2908
    %v2910 = vtanh.pop %v2909
    %v2911 = vmul.f32 %v2902, %v2910
    %s2912 = scalar_lea.vmem %s13, 12
    %2913 = vst [vmem:[%s2912] sm:$0x3] %v2911
    %v2914 = vld [vmem:[%s4] sm:$0xff]
    %v2915 = vld [vmem:[%s4 + $0x8] sm:$0xff]
    %v2916 = vld [vmem:[%s4 + $0x10] sm:$0xff]
    %v2917 = vld [vmem:[%s4 + $0x18] sm:$0xff]
    %v2918 = vld [vmem:[%s4 + $0x20] sm:$0xff]
    %v2919 = vld [vmem:[%s4 + $0x28] sm:$0xff]
    %v2920 = vld [vmem:[%s4 + $0x30] sm:$0xff]
    %v2921 = vld [vmem:[%s4 + $0x38] sm:$0xff]
    %v2922 = vld [vmem:[%s4 + $0x40] sm:$0xff]
    %v2923 = vld [vmem:[%s4 + $0x48] sm:$0xff]
    %v2924 = vld [vmem:[%s4 + $0x50] sm:$0xff]
    %v2925 = vld [vmem:[%s4 + $0x58] sm:$0xff]
    %v2926 = vld [vmem:[%s4 + $0x60] sm:$0xff]
    %v2927 = vld [vmem:[%s4 + $0x68] sm:$0xff]
    %v2928 = vld [vmem:[%s4 + $0x70] sm:$0xff]
    %v2929 = vld [vmem:[%s4 + $0x78] sm:$0xff]
    %v2930 = vld [vmem:[%s4 + $0x80] sm:$0xff]
    %v2931 = vld [vmem:[%s4 + $0x88] sm:$0xff]
    %v2932 = vld [vmem:[%s4 + $0x90] sm:$0xff]
    %v2933 = vld [vmem:[%s4 + $0x98] sm:$0xff]
    %v2934 = vld [vmem:[%s4 + $0xa0] sm:$0xff]
    %v2935 = vld [vmem:[%s4 + $0xa8] sm:$0xff]
    %v2936 = vld [vmem:[%s4 + $0xb0] sm:$0xff]
    %v2937 = vld [vmem:[%s4 + $0xb8] sm:$0xff]
    %v2938 = vld [vmem:[%s4 + $0xc0] sm:$0xff]
    %v2939 = vld [vmem:[%s4 + $0xc8] sm:$0xff]
    %v2940 = vld [vmem:[%s4 + $0xd0] sm:$0xff]
    %v2941 = vld [vmem:[%s4 + $0xd8] sm:$0xff]
    %v2942 = vld [vmem:[%s4 + $0xe0] sm:$0xff]
    %v2943 = vld [vmem:[%s4 + $0xe8] sm:$0xff]
    %v2944 = vld [vmem:[%s4 + $0xf0] sm:$0xff]
    %v2945 = vld [vmem:[%s4 + $0xf8] sm:$0xff]
    %v2946 = vld [vmem:[%s4 + $0x100] sm:$0xff]
    %v2947 = vld [vmem:[%s4 + $0x108] sm:$0xff]
    %v2948 = vld [vmem:[%s4 + $0x110] sm:$0xff]
    %v2949 = vld [vmem:[%s4 + $0x118] sm:$0xff]
    %v2950 = vld [vmem:[%s4 + $0x120] sm:$0xff]
    %v2951 = vld [vmem:[%s4 + $0x128] sm:$0xff]
    %v2952 = vld [vmem:[%s4 + $0x130] sm:$0xff]
    %v2953 = vld [vmem:[%s4 + $0x138] sm:$0xff]
    %v2954 = vld [vmem:[%s4 + $0x140] sm:$0xff]
    %v2955 = vld [vmem:[%s4 + $0x148] sm:$0xff]
    %v2956 = vld [vmem:[%s4 + $0x150] sm:$0xff]
    %v2957 = vld [vmem:[%s4 + $0x158] sm:$0xff]
    %v2958 = vld [vmem:[%s4 + $0x160] sm:$0xff]
    %v2959 = vld [vmem:[%s4 + $0x168] sm:$0xff]
    %v2960 = vld [vmem:[%s4 + $0x170] sm:$0xff]
    %v2961 = vld [vmem:[%s4 + $0x178] sm:$0xff]
    %v2962 = vld [vmem:[%s4 + $0x180] sm:$0xff]
    %v2963 = vld [vmem:[%s4 + $0x188] sm:$0xff]
    %v2964 = vld [vmem:[%s4 + $0x190] sm:$0xff]
    %v2965 = vld [vmem:[%s4 + $0x198] sm:$0xff]
    %v2966 = vld [vmem:[%s4 + $0x1a0] sm:$0xff]
    %v2967 = vld [vmem:[%s4 + $0x1a8] sm:$0xff]
    %v2968 = vld [vmem:[%s4 + $0x1b0] sm:$0xff]
    %v2969 = vld [vmem:[%s4 + $0x1b8] sm:$0xff]
    %v2970 = vld [vmem:[%s4 + $0x1c0] sm:$0xff]
    %v2971 = vld [vmem:[%s4 + $0x1c8] sm:$0xff]
    %v2972 = vld [vmem:[%s4 + $0x1d0] sm:$0xff]
    %v2973 = vld [vmem:[%s4 + $0x1d8] sm:$0xff]
    %v2974 = vld [vmem:[%s4 + $0x1e0] sm:$0xff]
    %v2975 = vld [vmem:[%s4 + $0x1e8] sm:$0xff]
    %v2976 = vld [vmem:[%s4 + $0x1f0] sm:$0xff]
    %v2977 = vld [vmem:[%s4 + $0x1f8] sm:$0xff]
    %2978 = vmatprep.subr.mxu0 %v2915
    %2979 = vmatpush1.msra.mxu0 %v2914
    %2980 = vmatprep.subr.mxu0 %v2919
    %2981 = vmatpush1.msra.mxu0 %v2918
    %2982 = vmatprep.subr.mxu0 %v2923
    %2983 = vmatpush1.msra.mxu0 %v2922
    %2984 = vmatprep.subr.mxu0 %v2927
    %2985 = vmatpush1.msra.mxu0 %v2926
    %2986 = vmatprep.subr.mxu0 %v2931
    %2987 = vmatpush1.msra.mxu0 %v2930
    %2988 = vmatprep.subr.mxu0 %v2935
    %2989 = vmatpush1.msra.mxu0 %v2934
    %2990 = vmatprep.subr.mxu0 %v2939
    %2991 = vmatpush1.msra.mxu0 %v2938
    %2992 = vmatprep.subr.mxu0 %v2943
    %2993 = vmatpush1.msra.mxu0 %v2942
    %2994 = vmatprep.subr.mxu0 %v2947
    %2995 = vmatpush1.msra.mxu0 %v2946
    %2996 = vmatprep.subr.mxu0 %v2951
    %2997 = vmatpush1.msra.mxu0 %v2950
    %2998 = vmatprep.subr.mxu0 %v2955
    %2999 = vmatpush1.msra.mxu0 %v2954
    %3000 = vmatprep.subr.mxu0 %v2959
    %3001 = vmatpush1.msra.mxu0 %v2958
    %3002 = vmatprep.subr.mxu0 %v2963
    %3003 = vmatpush1.msra.mxu0 %v2962
    %3004 = vmatprep.subr.mxu0 %v2967
    %3005 = vmatpush1.msra.mxu0 %v2966
    %3006 = vmatprep.subr.mxu0 %v2971
    %3007 = vmatpush1.msra.mxu0 %v2970
    %3008 = vmatprep.subr.mxu0 %v2975
    %3009 = vmatpush1.msra.mxu0 %v2974
    %3010 = vmatprep.subr.mxu0 0.0
    %3011 = vmatpush1.msra.mxu0 0.0
    %3012 = vmatprep.subr.mxu0 0.0
    %3013 = vmatpush1.msra.mxu0 0.0
    %3014 = vmatprep.subr.mxu0 0.0
    %3015 = vmatpush1.msra.mxu0 0.0
    %3016 = vmatprep.subr.mxu0 0.0
    %3017 = vmatpush1.msra.mxu0 0.0
    %3018 = vmatprep.subr.mxu0 0.0
    %3019 = vmatpush1.msra.mxu0 0.0
    %3020 = vmatprep.subr.mxu0 0.0
    %3021 = vmatpush1.msra.mxu0 0.0
    %3022 = vmatprep.subr.mxu0 0.0
    %3023 = vmatpush1.msra.mxu0 0.0
    %3024 = vmatprep.subr.mxu0 0.0
    %3025 = vmatpush1.msra.mxu0 0.0
    %3026 = vmatprep.subr.mxu0 0.0
    %3027 = vmatpush1.msra.mxu0 0.0
    %3028 = vmatprep.subr.mxu0 0.0
    %3029 = vmatpush1.msra.mxu0 0.0
    %3030 = vmatprep.subr.mxu0 0.0
    %3031 = vmatpush1.msra.mxu0 0.0
    %3032 = vmatprep.subr.mxu0 0.0
    %3033 = vmatpush1.msra.mxu0 0.0
    %3034 = vmatprep.subr.mxu0 0.0
    %3035 = vmatpush1.msra.mxu0 0.0
    %3036 = vmatprep.subr.mxu0 0.0
    %3037 = vmatpush1.msra.mxu0 0.0
    %3038 = vmatprep.subr.mxu0 0.0
    %3039 = vmatpush1.msra.mxu0 0.0
    %3040 = vmatprep.subr.mxu0 0.0
    %3041 = vmatpush1.msra.mxu0 0.0
    %3042 = vmatprep.mubr.f32.mxu0 0.0
    %3043 = vmatmul.mubr.f32.gmra.mrb[0].mxu0 %v2911
    %v3044 = vpop.f32.mrb[0].mxu0
    %v3045 = vadd.f32 0.0, %v3044
    %v3046 = vpop.f32.mrb[0].mxu0
    %v3047 = vadd.f32 0.0, %v3046
    %3048 = vdwg.mxu0
    %3049 = vmatprep.subr.mxu0 %v2917
    %3050 = vmatpush1.msra.mxu0 %v2916
    %3051 = vmatprep.subr.mxu0 %v2921
    %3052 = vmatpush1.msra.mxu0 %v2920
    %3053 = vmatprep.subr.mxu0 %v2925
    %3054 = vmatpush1.msra.mxu0 %v2924
    %3055 = vmatprep.subr.mxu0 %v2929
    %3056 = vmatpush1.msra.mxu0 %v2928
    %3057 = vmatprep.subr.mxu0 %v2933
    %3058 = vmatpush1.msra.mxu0 %v2932
    %3059 = vmatprep.subr.mxu0 %v2937
    %3060 = vmatpush1.msra.mxu0 %v2936
    %3061 = vmatprep.subr.mxu0 %v2941
    %3062 = vmatpush1.msra.mxu0 %v2940
    %3063 = vmatprep.subr.mxu0 %v2945
    %3064 = vmatpush1.msra.mxu0 %v2944
    %3065 = vmatprep.subr.mxu0 %v2949
    %3066 = vmatpush1.msra.mxu0 %v2948
    %3067 = vmatprep.subr.mxu0 %v2953
    %3068 = vmatpush1.msra.mxu0 %v2952
    %3069 = vmatprep.subr.mxu0 %v2957
    %3070 = vmatpush1.msra.mxu0 %v2956
    %3071 = vmatprep.subr.mxu0 %v2961
    %3072 = vmatpush1.msra.mxu0 %v2960
    %3073 = vmatprep.subr.mxu0 %v2965
    %3074 = vmatpush1.msra.mxu0 %v2964
    %3075 = vmatprep.subr.mxu0 %v2969
    %3076 = vmatpush1.msra.mxu0 %v2968
    %3077 = vmatprep.subr.mxu0 %v2973
    %3078 = vmatpush1.msra.mxu0 %v2972
    %3079 = vmatprep.subr.mxu0 %v2977
    %3080 = vmatpush1.msra.mxu0 %v2976
    %3081 = vmatprep.subr.mxu0 0.0
    %3082 = vmatpush1.msra.mxu0 0.0
    %3083 = vmatprep.subr.mxu0 0.0
    %3084 = vmatpush1.msra.mxu0 0.0
    %3085 = vmatprep.subr.mxu0 0.0
    %3086 = vmatpush1.msra.mxu0 0.0
    %3087 = vmatprep.subr.mxu0 0.0
    %3088 = vmatpush1.msra.mxu0 0.0
    %3089 = vmatprep.subr.mxu0 0.0
    %3090 = vmatpush1.msra.mxu0 0.0
    %3091 = vmatprep.subr.mxu0 0.0
    %3092 = vmatpush1.msra.mxu0 0.0
    %3093 = vmatprep.subr.mxu0 0.0
    %3094 = vmatpush1.msra.mxu0 0.0
    %3095 = vmatprep.subr.mxu0 0.0
    %3096 = vmatpush1.msra.mxu0 0.0
    %3097 = vmatprep.subr.mxu0 0.0
    %3098 = vmatpush1.msra.mxu0 0.0
    %3099 = vmatprep.subr.mxu0 0.0
    %3100 = vmatpush1.msra.mxu0 0.0
    %3101 = vmatprep.subr.mxu0 0.0
    %3102 = vmatpush1.msra.mxu0 0.0
    %3103 = vmatprep.subr.mxu0 0.0
    %3104 = vmatpush1.msra.mxu0 0.0
    %3105 = vmatprep.subr.mxu0 0.0
    %3106 = vmatpush1.msra.mxu0 0.0
    %3107 = vmatprep.subr.mxu0 0.0
    %3108 = vmatpush1.msra.mxu0 0.0
    %3109 = vmatprep.subr.mxu0 0.0
    %3110 = vmatpush1.msra.mxu0 0.0
    %3111 = vmatprep.subr.mxu0 0.0
    %3112 = vmatpush1.msra.mxu0 0.0
    %3113 = vmatprep.mubr.f32.mxu0 0.0
    %3114 = vmatmul.mubr.f32.gmra.mrb[0].mxu0 %v2911
    %v3115 = vpop.f32.mrb[0].mxu0
    %v3116 = vadd.f32 0.0, %v3115
    %v3117 = vpop.f32.mrb[0].mxu0
    %v3118 = vadd.f32 0.0, %v3117
    %3119 = vdwg.mxu0
    %v3120 = vld [vmem:[%s5] sm:$0xff]
    %v3121 = vld [vmem:[%s5 + $0x8] sm:$0xff]
    %v3122 = vld [vmem:[%s5 + $0x10] sm:$0xff]
    %v3123 = vld [vmem:[%s5 + $0x18] sm:$0xff]
    %v3124 = vld [vmem:[%s5 + $0x20] sm:$0xff]
    %v3125 = vld [vmem:[%s5 + $0x28] sm:$0xff]
    %v3126 = vld [vmem:[%s5 + $0x30] sm:$0xff]
    %v3127 = vld [vmem:[%s5 + $0x38] sm:$0xff]
    %v3128 = vld [vmem:[%s5 + $0x40] sm:$0xff]
    %v3129 = vld [vmem:[%s5 + $0x48] sm:$0xff]
    %v3130 = vld [vmem:[%s5 + $0x50] sm:$0xff]
    %v3131 = vld [vmem:[%s5 + $0x58] sm:$0xff]
    %v3132 = vld [vmem:[%s5 + $0x60] sm:$0xff]
    %v3133 = vld [vmem:[%s5 + $0x68] sm:$0xff]
    %v3134 = vld [vmem:[%s5 + $0x70] sm:$0xff]
    %v3135 = vld [vmem:[%s5 + $0x78] sm:$0xff]
    %3136 = vmatprep.subr.mxu0 0.0
    %3137 = vmatpush1.msra.mxu0 %v3120
    %3138 = vmatprep.subr.mxu0 0.0
    %3139 = vmatpush1.msra.mxu0 %v3121
    %3140 = vmatprep.subr.mxu0 0.0
    %3141 = vmatpush1.msra.mxu0 %v3122
    %3142 = vmatprep.subr.mxu0 0.0
    %3143 = vmatpush1.msra.mxu0 %v3123
    %3144 = vmatprep.subr.mxu0 0.0
    %3145 = vmatpush1.msra.mxu0 %v3124
    %3146 = vmatprep.subr.mxu0 0.0
    %3147 = vmatpush1.msra.mxu0 %v3125
    %3148 = vmatprep.subr.mxu0 0.0
    %3149 = vmatpush1.msra.mxu0 %v3126
    %3150 = vmatprep.subr.mxu0 0.0
    %3151 = vmatpush1.msra.mxu0 %v3127
    %3152 = vmatprep.subr.mxu0 0.0
    %3153 = vmatpush1.msra.mxu0 %v3128
    %3154 = vmatprep.subr.mxu0 0.0
    %3155 = vmatpush1.msra.mxu0 %v3129
    %3156 = vmatprep.subr.mxu0 0.0
    %3157 = vmatpush1.msra.mxu0 %v3130
    %3158 = vmatprep.subr.mxu0 0.0
    %3159 = vmatpush1.msra.mxu0 %v3131
    %3160 = vmatprep.subr.mxu0 0.0
    %3161 = vmatpush1.msra.mxu0 %v3132
    %3162 = vmatprep.subr.mxu0 0.0
    %3163 = vmatpush1.msra.mxu0 %v3133
    %3164 = vmatprep.subr.mxu0 0.0
    %3165 = vmatpush1.msra.mxu0 %v3134
    %3166 = vmatprep.subr.mxu0 0.0
    %3167 = vmatpush1.msra.mxu0 %v3135
    %3168 = vmatprep.subr.mxu0 0.0
    %3169 = vmatpush1.msra.mxu0 0.0
    %3170 = vmatprep.subr.mxu0 0.0
    %3171 = vmatpush1.msra.mxu0 0.0
    %3172 = vmatprep.subr.mxu0 0.0
    %3173 = vmatpush1.msra.mxu0 0.0
    %3174 = vmatprep.subr.mxu0 0.0
    %3175 = vmatpush1.msra.mxu0 0.0
    %3176 = vmatprep.subr.mxu0 0.0
    %3177 = vmatpush1.msra.mxu0 0.0
    %3178 = vmatprep.subr.mxu0 0.0
    %3179 = vmatpush1.msra.mxu0 0.0
    %3180 = vmatprep.subr.mxu0 0.0
    %3181 = vmatpush1.msra.mxu0 0.0
    %3182 = vmatprep.subr.mxu0 0.0
    %3183 = vmatpush1.msra.mxu0 0.0
    %3184 = vmatprep.subr.mxu0 0.0
    %3185 = vmatpush1.msra.mxu0 0.0
    %3186 = vmatprep.subr.mxu0 0.0
    %3187 = vmatpush1.msra.mxu0 0.0
    %3188 = vmatprep.subr.mxu0 0.0
    %3189 = vmatpush1.msra.mxu0 0.0
    %3190 = vmatprep.subr.mxu0 0.0
    %3191 = vmatpush1.msra.mxu0 0.0
    %3192 = vmatprep.subr.mxu0 0.0
    %3193 = vmatpush1.msra.mxu0 0.0
    %3194 = vmatprep.subr.mxu0 0.0
    %3195 = vmatpush1.msra.mxu0 0.0
    %3196 = vmatprep.subr.mxu0 0.0
    %3197 = vmatpush1.msra.mxu0 0.0
    %3198 = vmatprep.subr.mxu0 0.0
    %3199 = vmatpush1.msra.mxu0 0.0
    %3200 = vmatprep.mubr.f32.mxu0 0.0
    %3201 = vmatmul.mubr.f32.gmra.mrb[0].mxu0 %v2909
    %v3202 = vpop.f32.mrb[0].mxu0
    %v3203 = vadd.f32 0.0, %v3202
    %v3204 = vpop.f32.mrb[0].mxu0
    %3205 = vdwg.mxu0
    %v3206 = vadd.f32 %v532, %v3203
    %v3207 = vtanh.pop %v3206
    %v3208 = vsub.f32 %v2909, %v3207
    %3210 = vset.pattern.permute.xlu0 0
    %3211 = vperm.xlu0 %3210, %v95
    %v3212 = vpop.permute.xlu0 %3211
    %v3214 = vmul.f32 %v3207, %v3212
    %v3215 = vadd.f32 %v3208, %v3214
    %v3216 = vadd.f32 %v515, %v3045
    %v3217 = vxor.u32 %v3216, 2147483648
    %v3218 = vmul.f32 %v3217, 1.442695
    %v3219 = vpow.pop %v3218
    %v3220 = vadd.f32 %v3219, 1.0
    %v3221 = vrcp.pop %v3220
    %v3222 = vmul.f32 1.0, %v3221
    %v3223 = vrot.slane %v515, 2
    %v3225 = vadd.f32 %v3223, %v3047
    %v3226 = vxor.u32 %v3225, 2147483648
    %v3227 = vmul.f32 %v3226, 1.442695
    %v3228 = vpow.pop %v3227
    %v3229 = vadd.f32 %v3228, 1.0
    %v3230 = vrcp.pop %v3229
    %v3231 = vmul.f32 1.0, %v3230
    %v3232 = vrot.slane %v515, 4
    %v3234 = vadd.f32 %v3232, %v3116
    %v3235 = vxor.u32 %v3234, 2147483648
    %v3236 = vmul.f32 %v3235, 1.442695
    %v3237 = vpow.pop %v3236
    %v3238 = vadd.f32 %v3237, 1.0
    %v3239 = vrcp.pop %v3238
    %v3240 = vmul.f32 1.0, %v3239
    %v3241 = vrot.slane %v515, 6
    %v3243 = vadd.f32 %v3241, %v3118
    %v3244 = vtanh.pop %v3243
    %v3245 = vmul.f32 %v3231, %v3215
    %v3246 = vmul.f32 %v3222, %v3244
    %v3247 = vadd.f32 %v3245, %v3246
    %v3248 = vtanh.pop %v3247
    %v3249 = vmul.f32 %v3240, %v3248
    %s3250 = scalar_lea.vmem %s13, 14
    %3251 = vst [vmem:[%s3250] sm:$0x3] %v3249
    %v3252 = vld [vmem:[%s13] sm:$0x3]
    %v3253 = vld [vmem:[%s13 + $0x2] sm:$0x3]
    %v3254 = vld [vmem:[%s13 + $0x4] sm:$0x3]
    %v3255 = vld [vmem:[%s13 + $0x6] sm:$0x3]
    %v3256 = vld [vmem:[%s13 + $0x8] sm:$0x3]
    %v3257 = vld [vmem:[%s13 + $0xa] sm:$0x3]
    %v3258 = vld [vmem:[%s13 + $0xc] sm:$0x3]
    %v3259 = vld [vmem:[%s13 + $0xe] sm:$0x3]
    %v3260 = vld [vmem:[%s6] sm:$0xff]
    %v3261 = vld [vmem:[%s6 + $0x8] sm:$0xff]
    %v3262 = vld [vmem:[%s6 + $0x10] sm:$0xff]
    %v3263 = vld [vmem:[%s6 + $0x18] sm:$0xff]
    %v3264 = vld [vmem:[%s6 + $0x20] sm:$0xff]
    %v3265 = vld [vmem:[%s6 + $0x28] sm:$0xff]
    %v3266 = vld [vmem:[%s6 + $0x30] sm:$0xff]
    %v3267 = vld [vmem:[%s6 + $0x38] sm:$0xff]
    %v3268 = vld [vmem:[%s6 + $0x40] sm:$0xff]
    %v3269 = vld [vmem:[%s6 + $0x48] sm:$0xff]
    %v3270 = vld [vmem:[%s6 + $0x50] sm:$0xff]
    %v3271 = vld [vmem:[%s6 + $0x58] sm:$0xff]
    %v3272 = vld [vmem:[%s6 + $0x60] sm:$0xff]
    %v3273 = vld [vmem:[%s6 + $0x68] sm:$0xff]
    %v3274 = vld [vmem:[%s6 + $0x70] sm:$0xff]
    %v3275 = vld [vmem:[%s6 + $0x78] sm:$0xff]
    %v3276 = vld [vmem:[%s6 + $0x80] sm:$0xff]
    %v3277 = vld [vmem:[%s6 + $0x88] sm:$0xff]
    %v3278 = vld [vmem:[%s6 + $0x90] sm:$0xff]
    %v3279 = vld [vmem:[%s6 + $0x98] sm:$0xff]
    %v3280 = vld [vmem:[%s6 + $0xa0] sm:$0xff]
    %v3281 = vld [vmem:[%s6 + $0xa8] sm:$0xff]
    %v3282 = vld [vmem:[%s6 + $0xb0] sm:$0xff]
    %v3283 = vld [vmem:[%s6 + $0xb8] sm:$0xff]
    %v3284 = vld [vmem:[%s6 + $0xc0] sm:$0xff]
    %v3285 = vld [vmem:[%s6 + $0xc8] sm:$0xff]
    %v3286 = vld [vmem:[%s6 + $0xd0] sm:$0xff]
    %v3287 = vld [vmem:[%s6 + $0xd8] sm:$0xff]
    %v3288 = vld [vmem:[%s6 + $0xe0] sm:$0xff]
    %v3289 = vld [vmem:[%s6 + $0xe8] sm:$0xff]
    %v3290 = vld [vmem:[%s6 + $0xf0] sm:$0xff]
    %v3291 = vld [vmem:[%s6 + $0xf8] sm:$0xff]
    %v3292 = vld [vmem:[%s6 + $0x100] sm:$0xff]
    %v3293 = vld [vmem:[%s6 + $0x108] sm:$0xff]
    %v3294 = vld [vmem:[%s6 + $0x110] sm:$0xff]
    %v3295 = vld [vmem:[%s6 + $0x118] sm:$0xff]
    %v3296 = vld [vmem:[%s6 + $0x120] sm:$0xff]
    %v3297 = vld [vmem:[%s6 + $0x128] sm:$0xff]
    %v3298 = vld [vmem:[%s6 + $0x130] sm:$0xff]
    %v3299 = vld [vmem:[%s6 + $0x138] sm:$0xff]
    %v3300 = vld [vmem:[%s6 + $0x140] sm:$0xff]
    %v3301 = vld [vmem:[%s6 + $0x148] sm:$0xff]
    %v3302 = vld [vmem:[%s6 + $0x150] sm:$0xff]
    %v3303 = vld [vmem:[%s6 + $0x158] sm:$0xff]
    %v3304 = vld [vmem:[%s6 + $0x160] sm:$0xff]
    %v3305 = vld [vmem:[%s6 + $0x168] sm:$0xff]
    %v3306 = vld [vmem:[%s6 + $0x170] sm:$0xff]
    %v3307 = vld [vmem:[%s6 + $0x178] sm:$0xff]
    %v3308 = vld [vmem:[%s6 + $0x180] sm:$0xff]
    %v3309 = vld [vmem:[%s6 + $0x188] sm:$0xff]
    %v3310 = vld [vmem:[%s6 + $0x190] sm:$0xff]
    %v3311 = vld [vmem:[%s6 + $0x198] sm:$0xff]
    %v3312 = vld [vmem:[%s6 + $0x1a0] sm:$0xff]
    %v3313 = vld [vmem:[%s6 + $0x1a8] sm:$0xff]
    %v3314 = vld [vmem:[%s6 + $0x1b0] sm:$0xff]
    %v3315 = vld [vmem:[%s6 + $0x1b8] sm:$0xff]
    %v3316 = vld [vmem:[%s6 + $0x1c0] sm:$0xff]
    %v3317 = vld [vmem:[%s6 + $0x1c8] sm:$0xff]
    %v3318 = vld [vmem:[%s6 + $0x1d0] sm:$0xff]
    %v3319 = vld [vmem:[%s6 + $0x1d8] sm:$0xff]
    %v3320 = vld [vmem:[%s6 + $0x1e0] sm:$0xff]
    %v3321 = vld [vmem:[%s6 + $0x1e8] sm:$0xff]
    %v3322 = vld [vmem:[%s6 + $0x1f0] sm:$0xff]
    %v3323 = vld [vmem:[%s6 + $0x1f8] sm:$0xff]
    %v3324 = vld [vmem:[%s6 + $0x200] sm:$0xff]
    %v3325 = vld [vmem:[%s6 + $0x208] sm:$0xff]
    %v3326 = vld [vmem:[%s6 + $0x210] sm:$0xff]
    %v3327 = vld [vmem:[%s6 + $0x218] sm:$0xff]
    %v3328 = vld [vmem:[%s6 + $0x220] sm:$0xff]
    %v3329 = vld [vmem:[%s6 + $0x228] sm:$0xff]
    %v3330 = vld [vmem:[%s6 + $0x230] sm:$0xff]
    %v3331 = vld [vmem:[%s6 + $0x238] sm:$0xff]
    %v3332 = vld [vmem:[%s6 + $0x240] sm:$0xff]
    %v3333 = vld [vmem:[%s6 + $0x248] sm:$0xff]
    %v3334 = vld [vmem:[%s6 + $0x250] sm:$0xff]
    %v3335 = vld [vmem:[%s6 + $0x258] sm:$0xff]
    %v3336 = vld [vmem:[%s6 + $0x260] sm:$0xff]
    %v3337 = vld [vmem:[%s6 + $0x268] sm:$0xff]
    %v3338 = vld [vmem:[%s6 + $0x270] sm:$0xff]
    %v3339 = vld [vmem:[%s6 + $0x278] sm:$0xff]
    %v3340 = vld [vmem:[%s7] sm:$0x1f]
    %v3342 = vlaneseq
    %v3343 = vshrl.u32 %v3342, 7
    %v3344 = vsub.s32 0, %v3343
    %v3345 = vrot.slane %v3340, %v3344
    %v3346 = vlaneseq
    %v3347 = vshrl.u32 %v3346, 7
    %v3348 = vsub.s32 1, %v3347
    %v3349 = vrot.slane %v3340, %v3348
    %v3350 = vlaneseq
    %v3351 = vshrl.u32 %v3350, 7
    %v3352 = vsub.s32 2, %v3351
    %v3353 = vrot.slane %v3340, %v3352
    %v3354 = vlaneseq
    %v3355 = vshrl.u32 %v3354, 7
    %v3356 = vsub.s32 3, %v3355
    %v3357 = vrot.slane %v3340, %v3356
    %v3358 = vlaneseq
    %v3359 = vshrl.u32 %v3358, 7
    %v3360 = vsub.s32 4, %v3359
    %v3361 = vrot.slane %v3340, %v3360
    %v3375 = vcombine.low %v3252, %v3253
    %v3376 = vcombine.low %v3254, %v3255
    %v3378 = vunpack.c.l.s4 1983009808
    %v3379 = vunpack.c.0.s8 %v3378
    %v3380 = vlaneseq
    %v3381 = vshrl.u32 %v3380, 7
    %v3382 = vsub.s32 %v3379, %v3381
    %v3383 = vrot.slane %v3375, %v3382
    %v3385 = vunpack.c.l.s4 1983009808
    %v3386 = vunpack.c.0.s8 %v3385
    %v3387 = vlaneseq
    %v3388 = vshrl.u32 %v3387, 7
    %v3389 = vsub.s32 %v3386, %v3388
    %v3390 = vrot.slane %v3376, %v3389
    %v3391 = vcombine.low %v3383, %v3390
    %v3392 = vcombine.low %v3256, %v3257
    %v3393 = vcombine.low %v3258, %v3259
    %v3395 = vunpack.c.l.s4 1983009808
    %v3396 = vunpack.c.0.s8 %v3395
    %v3397 = vlaneseq
    %v3398 = vshrl.u32 %v3397, 7
    %v3399 = vsub.s32 %v3396, %v3398
    %v3400 = vrot.slane %v3392, %v3399
    %v3402 = vunpack.c.l.s4 1983009808
    %v3403 = vunpack.c.0.s8 %v3402
    %v3404 = vlaneseq
    %v3405 = vshrl.u32 %v3404, 7
    %v3406 = vsub.s32 %v3403, %v3405
    %v3407 = vrot.slane %v3393, %v3406
    %v3408 = vcombine.low %v3400, %v3407
    %3411 = vmatprep.subr.mxu0 %v3261
    %3412 = vmatpush1.msra.mxu0 %v3260
    %3413 = vmatprep.subr.mxu0 %v3266
    %3414 = vmatpush1.msra.mxu0 %v3265
    %3415 = vmatprep.subr.mxu0 %v3271
    %3416 = vmatpush1.msra.mxu0 %v3270
    %3417 = vmatprep.subr.mxu0 %v3276
    %3418 = vmatpush1.msra.mxu0 %v3275
    %3419 = vmatprep.subr.mxu0 %v3281
    %3420 = vmatpush1.msra.mxu0 %v3280
    %3421 = vmatprep.subr.mxu0 %v3286
    %3422 = vmatpush1.msra.mxu0 %v3285
    %3423 = vmatprep.subr.mxu0 %v3291
    %3424 = vmatpush1.msra.mxu0 %v3290
    %3425 = vmatprep.subr.mxu0 %v3296
    %3426 = vmatpush1.msra.mxu0 %v3295
    %3427 = vmatprep.subr.mxu0 %v3301
    %3428 = vmatpush1.msra.mxu0 %v3300
    %3429 = vmatprep.subr.mxu0 %v3306
    %3430 = vmatpush1.msra.mxu0 %v3305
    %3431 = vmatprep.subr.mxu0 %v3311
    %3432 = vmatpush1.msra.mxu0 %v3310
    %3433 = vmatprep.subr.mxu0 %v3316
    %3434 = vmatpush1.msra.mxu0 %v3315
    %3435 = vmatprep.subr.mxu0 %v3321
    %3436 = vmatpush1.msra.mxu0 %v3320
    %3437 = vmatprep.subr.mxu0 %v3326
    %3438 = vmatpush1.msra.mxu0 %v3325
    %3439 = vmatprep.subr.mxu0 %v3331
    %3440 = vmatpush1.msra.mxu0 %v3330
    %3441 = vmatprep.subr.mxu0 %v3336
    %3442 = vmatpush1.msra.mxu0 %v3335
    %3443 = vmatprep.subr.mxu0 0.0
    %3444 = vmatpush1.msra.mxu0 0.0
    %3445 = vmatprep.subr.mxu0 0.0
    %3446 = vmatpush1.msra.mxu0 0.0
    %3447 = vmatprep.subr.mxu0 0.0
    %3448 = vmatpush1.msra.mxu0 0.0
    %3449 = vmatprep.subr.mxu0 0.0
    %3450 = vmatpush1.msra.mxu0 0.0
    %3451 = vmatprep.subr.mxu0 0.0
    %3452 = vmatpush1.msra.mxu0 0.0
    %3453 = vmatprep.subr.mxu0 0.0
    %3454 = vmatpush1.msra.mxu0 0.0
    %3455 = vmatprep.subr.mxu0 0.0
    %3456 = vmatpush1.msra.mxu0 0.0
    %3457 = vmatprep.subr.mxu0 0.0
    %3458 = vmatpush1.msra.mxu0 0.0
    %3459 = vmatprep.subr.mxu0 0.0
    %3460 = vmatpush1.msra.mxu0 0.0
    %3461 = vmatprep.subr.mxu0 0.0
    %3462 = vmatpush1.msra.mxu0 0.0
    %3463 = vmatprep.subr.mxu0 0.0
    %3464 = vmatpush1.msra.mxu0 0.0
    %3465 = vmatprep.subr.mxu0 0.0
    %3466 = vmatpush1.msra.mxu0 0.0
    %3467 = vmatprep.subr.mxu0 0.0
    %3468 = vmatpush1.msra.mxu0 0.0
    %3469 = vmatprep.subr.mxu0 0.0
    %3470 = vmatpush1.msra.mxu0 0.0
    %3471 = vmatprep.subr.mxu0 0.0
    %3472 = vmatpush1.msra.mxu0 0.0
    %3473 = vmatprep.subr.mxu0 0.0
    %3474 = vmatpush1.msra.mxu0 0.0
    %3475 = vmatprep.mubr.f32.mxu0 0.0
    %3476 = vmatmul.mubr.f32.gmra.mrb[0].mxu0 %v3391
    %v3477 = vpop.f32.mrb[0].mxu0
    %v3478 = vadd.f32 %v3345, %v3477
    %v3479 = vpop.f32.mrb[0].mxu0
    %v3480 = vadd.f32 %v3349, %v3479
    %3481 = vmatprep.mubr.f32.mxu0 0.0
    %3482 = vmatmul.mubr.f32.gmra.mrb[0].mxu0 %v3408
    %v3483 = vpop.f32.mrb[0].mxu0
    %v3484 = vadd.f32 %v3345, %v3483
    %v3485 = vpop.f32.mrb[0].mxu0
    %v3486 = vadd.f32 %v3349, %v3485
    %3487 = vdwg.mxu0
    %3488 = vmatprep.subr.mxu0 %v3263
    %3489 = vmatpush1.msra.mxu0 %v3262
    %3490 = vmatprep.subr.mxu0 %v3268
    %3491 = vmatpush1.msra.mxu0 %v3267
    %3492 = vmatprep.subr.mxu0 %v3273
    %3493 = vmatpush1.msra.mxu0 %v3272
    %3494 = vmatprep.subr.mxu0 %v3278
    %3495 = vmatpush1.msra.mxu0 %v3277
    %3496 = vmatprep.subr.mxu0 %v3283
    %3497 = vmatpush1.msra.mxu0 %v3282
    %3498 = vmatprep.subr.mxu0 %v3288
    %3499 = vmatpush1.msra.mxu0 %v3287
    %3500 = vmatprep.subr.mxu0 %v3293
    %3501 = vmatpush1.msra.mxu0 %v3292
    %3502 = vmatprep.subr.mxu0 %v3298
    %3503 = vmatpush1.msra.mxu0 %v3297
    %3504 = vmatprep.subr.mxu0 %v3303
    %3505 = vmatpush1.msra.mxu0 %v3302
    %3506 = vmatprep.subr.mxu0 %v3308
    %3507 = vmatpush1.msra.mxu0 %v3307
    %3508 = vmatprep.subr.mxu0 %v3313
    %3509 = vmatpush1.msra.mxu0 %v3312
    %3510 = vmatprep.subr.mxu0 %v3318
    %3511 = vmatpush1.msra.mxu0 %v3317
    %3512 = vmatprep.subr.mxu0 %v3323
    %3513 = vmatpush1.msra.mxu0 %v3322
    %3514 = vmatprep.subr.mxu0 %v3328
    %3515 = vmatpush1.msra.mxu0 %v3327
    %3516 = vmatprep.subr.mxu0 %v3333
    %3517 = vmatpush1.msra.mxu0 %v3332
    %3518 = vmatprep.subr.mxu0 %v3338
    %3519 = vmatpush1.msra.mxu0 %v3337
    %3520 = vmatprep.subr.mxu0 0.0
    %3521 = vmatpush1.msra.mxu0 0.0
    %3522 = vmatprep.subr.mxu0 0.0
    %3523 = vmatpush1.msra.mxu0 0.0
    %3524 = vmatprep.subr.mxu0 0.0
    %3525 = vmatpush1.msra.mxu0 0.0
    %3526 = vmatprep.subr.mxu0 0.0
    %3527 = vmatpush1.msra.mxu0 0.0
    %3528 = vmatprep.subr.mxu0 0.0
    %3529 = vmatpush1.msra.mxu0 0.0
    %3530 = vmatprep.subr.mxu0 0.0
    %3531 = vmatpush1.msra.mxu0 0.0
    %3532 = vmatprep.subr.mxu0 0.0
    %3533 = vmatpush1.msra.mxu0 0.0
    %3534 = vmatprep.subr.mxu0 0.0
    %3535 = vmatpush1.msra.mxu0 0.0
    %3536 = vmatprep.subr.mxu0 0.0
    %3537 = vmatpush1.msra.mxu0 0.0
    %3538 = vmatprep.subr.mxu0 0.0
    %3539 = vmatpush1.msra.mxu0 0.0
    %3540 = vmatprep.subr.mxu0 0.0
    %3541 = vmatpush1.msra.mxu0 0.0
    %3542 = vmatprep.subr.mxu0 0.0
    %3543 = vmatpush1.msra.mxu0 0.0
    %3544 = vmatprep.subr.mxu0 0.0
    %3545 = vmatpush1.msra.mxu0 0.0
    %3546 = vmatprep.subr.mxu0 0.0
    %3547 = vmatpush1.msra.mxu0 0.0
    %3548 = vmatprep.subr.mxu0 0.0
    %3549 = vmatpush1.msra.mxu0 0.0
    %3550 = vmatprep.subr.mxu0 0.0
    %3551 = vmatpush1.msra.mxu0 0.0
    %3552 = vmatprep.mubr.f32.mxu0 0.0
    %3553 = vmatmul.mubr.f32.gmra.mrb[0].mxu0 %v3391
    %v3554 = vpop.f32.mrb[0].mxu0
    %v3555 = vadd.f32 %v3353, %v3554
    %v3556 = vpop.f32.mrb[0].mxu0
    %v3557 = vadd.f32 %v3357, %v3556
    %3558 = vmatprep.mubr.f32.mxu0 0.0
    %3559 = vmatmul.mubr.f32.gmra.mrb[0].mxu0 %v3408
    %v3560 = vpop.f32.mrb[0].mxu0
    %v3561 = vadd.f32 %v3353, %v3560
    %v3562 = vpop.f32.mrb[0].mxu0
    %v3563 = vadd.f32 %v3357, %v3562
    %3564 = vdwg.mxu0
    %3565 = vmatprep.subr.mxu0 0.0
    %3566 = vmatpush1.msra.mxu0 %v3264
    %3567 = vmatprep.subr.mxu0 0.0
    %3568 = vmatpush1.msra.mxu0 %v3269
    %3569 = vmatprep.subr.mxu0 0.0
    %3570 = vmatpush1.msra.mxu0 %v3274
    %3571 = vmatprep.subr.mxu0 0.0
    %3572 = vmatpush1.msra.mxu0 %v3279
    %3573 = vmatprep.subr.mxu0 0.0
    %3574 = vmatpush1.msra.mxu0 %v3284
    %3575 = vmatprep.subr.mxu0 0.0
    %3576 = vmatpush1.msra.mxu0 %v3289
    %3577 = vmatprep.subr.mxu0 0.0
    %3578 = vmatpush1.msra.mxu0 %v3294
    %3579 = vmatprep.subr.mxu0 0.0
    %3580 = vmatpush1.msra.mxu0 %v3299
    %3581 = vmatprep.subr.mxu0 0.0
    %3582 = vmatpush1.msra.mxu0 %v3304
    %3583 = vmatprep.subr.mxu0 0.0
    %3584 = vmatpush1.msra.mxu0 %v3309
    %3585 = vmatprep.subr.mxu0 0.0
    %3586 = vmatpush1.msra.mxu0 %v3314
    %3587 = vmatprep.subr.mxu0 0.0
    %3588 = vmatpush1.msra.mxu0 %v3319
    %3589 = vmatprep.subr.mxu0 0.0
    %3590 = vmatpush1.msra.mxu0 %v3324
    %3591 = vmatprep.subr.mxu0 0.0
    %3592 = vmatpush1.msra.mxu0 %v3329
    %3593 = vmatprep.subr.mxu0 0.0
    %3594 = vmatpush1.msra.mxu0 %v3334
    %3595 = vmatprep.subr.mxu0 0.0
    %3596 = vmatpush1.msra.mxu0 %v3339
    %3597 = vmatprep.subr.mxu0 0.0
    %3598 = vmatpush1.msra.mxu0 0.0
    %3599 = vmatprep.subr.mxu0 0.0
    %3600 = vmatpush1.msra.mxu0 0.0
    %3601 = vmatprep.subr.mxu0 0.0
    %3602 = vmatpush1.msra.mxu0 0.0
    %3603 = vmatprep.subr.mxu0 0.0
    %3604 = vmatpush1.msra.mxu0 0.0
    %3605 = vmatprep.subr.mxu0 0.0
    %3606 = vmatpush1.msra.mxu0 0.0
    %3607 = vmatprep.subr.mxu0 0.0
    %3608 = vmatpush1.msra.mxu0 0.0
    %3609 = vmatprep.subr.mxu0 0.0
    %3610 = vmatpush1.msra.mxu0 0.0
    %3611 = vmatprep.subr.mxu0 0.0
    %3612 = vmatpush1.msra.mxu0 0.0
    %3613 = vmatprep.subr.mxu0 0.0
    %3614 = vmatpush1.msra.mxu0 0.0
    %3615 = vmatprep.subr.mxu0 0.0
    %3616 = vmatpush1.msra.mxu0 0.0
    %3617 = vmatprep.subr.mxu0 0.0
    %3618 = vmatpush1.msra.mxu0 0.0
    %3619 = vmatprep.subr.mxu0 0.0
    %3620 = vmatpush1.msra.mxu0 0.0
    %3621 = vmatprep.subr.mxu0 0.0
    %3622 = vmatpush1.msra.mxu0 0.0
    %3623 = vmatprep.subr.mxu0 0.0
    %3624 = vmatpush1.msra.mxu0 0.0
    %3625 = vmatprep.subr.mxu0 0.0
    %3626 = vmatpush1.msra.mxu0 0.0
    %3627 = vmatprep.subr.mxu0 0.0
    %3628 = vmatpush1.msra.mxu0 0.0
    %3629 = vmatprep.mubr.f32.mxu0 0.0
    %3630 = vmatmul.mubr.f32.gmra.mrb[0].mxu0 %v3391
    %v3631 = vpop.f32.mrb[0].mxu0
    %v3632 = vadd.f32 %v3361, %v3631
    %v3633 = vpop.f32.mrb[0].mxu0
    %3634 = vmatprep.mubr.f32.mxu0 0.0
    %3635 = vmatmul.mubr.f32.gmra.mrb[0].mxu0 %v3408
    %v3636 = vpop.f32.mrb[0].mxu0
    %v3637 = vadd.f32 %v3361, %v3636
    %v3638 = vpop.f32.mrb[0].mxu0
    %3639 = vdwg.mxu0
    %v3650 = vcombine.low %v3478, %v3480
    %v3651 = vcombine.high %v3478, %v3480
    %v3652 = vcombine.low %v3555, %v3557
    %v3653 = vcombine.high %v3555, %v3557
    %v3655 = vunpack.c.l.s4 1983009808
    %v3656 = vunpack.c.0.s8 %v3655
    %v3657 = vlaneseq
    %v3658 = vshrl.u32 %v3657, 7
    %v3659 = vsub.s32 %v3656, %v3658
    %v3660 = vrot.slane %v3650, %v3659
    %v3662 = vunpack.c.l.s4 1983009808
    %v3663 = vunpack.c.0.s8 %v3662
    %v3664 = vlaneseq
    %v3665 = vshrl.u32 %v3664, 7
    %v3666 = vsub.s32 %v3663, %v3665
    %v3667 = vrot.slane %v3651, %v3666
    %v3669 = vunpack.c.l.s4 1983009808
    %v3670 = vunpack.c.0.s8 %v3669
    %v3671 = vlaneseq
    %v3672 = vshrl.u32 %v3671, 7
    %v3673 = vsub.s32 %v3670, %v3672
    %v3674 = vrot.slane %v3652, %v3673
    %v3676 = vunpack.c.l.s4 1983009808
    %v3677 = vunpack.c.0.s8 %v3676
    %v3678 = vlaneseq
    %v3679 = vshrl.u32 %v3678, 7
    %v3680 = vsub.s32 %v3677, %v3679
    %v3681 = vrot.slane %v3653, %v3680
    %v3682 = vcombine.low %v3660, %v3674
    %v3683 = vcombine.high %v3660, %v3674
    %v3684 = vcombine.low %v3667, %v3681
    %v3685 = vcombine.high %v3667, %v3681
    %v3686 = vcombine.high %v3632, %v3632
    %v3688 = vunpack.c.l.s4 1983009808
    %v3689 = vunpack.c.0.s8 %v3688
    %v3690 = vlaneseq
    %v3691 = vshrl.u32 %v3690, 7
    %v3692 = vsub.s32 %v3689, %v3691
    %v3693 = vrot.slane %v3632, %v3692
    %v3695 = vunpack.c.l.s4 1983009808
    %v3696 = vunpack.c.0.s8 %v3695
    %v3697 = vlaneseq
    %v3698 = vshrl.u32 %v3697, 7
    %v3699 = vsub.s32 %v3696, %v3698
    %v3700 = vrot.slane %v3686, %v3699
    %v3701 = vcombine.high %v3693, %v3693
    %v3702 = vcombine.high %v3700, %v3700
    %v3703 = vcombine.low %v3484, %v3486
    %v3704 = vcombine.high %v3484, %v3486
    %v3705 = vcombine.low %v3561, %v3563
    %v3706 = vcombine.high %v3561, %v3563
    %v3708 = vunpack.c.l.s4 1983009808
    %v3709 = vunpack.c.0.s8 %v3708
    %v3710 = vlaneseq
    %v3711 = vshrl.u32 %v3710, 7
    %v3712 = vsub.s32 %v3709, %v3711
    %v3713 = vrot.slane %v3703, %v3712
    %v3715 = vunpack.c.l.s4 1983009808
    %v3716 = vunpack.c.0.s8 %v3715
    %v3717 = vlaneseq
    %v3718 = vshrl.u32 %v3717, 7
    %v3719 = vsub.s32 %v3716, %v3718
    %v3720 = vrot.slane %v3704, %v3719
    %v3722 = vunpack.c.l.s4 1983009808
    %v3723 = vunpack.c.0.s8 %v3722
    %v3724 = vlaneseq
    %v3725 = vshrl.u32 %v3724, 7
    %v3726 = vsub.s32 %v3723, %v3725
    %v3727 = vrot.slane %v3705, %v3726
    %v3729 = vunpack.c.l.s4 1983009808
    %v3730 = vunpack.c.0.s8 %v3729
    %v3731 = vlaneseq
    %v3732 = vshrl.u32 %v3731, 7
    %v3733 = vsub.s32 %v3730, %v3732
    %v3734 = vrot.slane %v3706, %v3733
    %v3735 = vcombine.low %v3713, %v3727
    %v3736 = vcombine.high %v3713, %v3727
    %v3737 = vcombine.low %v3720, %v3734
    %v3738 = vcombine.high %v3720, %v3734
    %v3739 = vcombine.high %v3637, %v3637
    %v3741 = vunpack.c.l.s4 1983009808
    %v3742 = vunpack.c.0.s8 %v3741
    %v3743 = vlaneseq
    %v3744 = vshrl.u32 %v3743, 7
    %v3745 = vsub.s32 %v3742, %v3744
    %v3746 = vrot.slane %v3637, %v3745
    %v3748 = vunpack.c.l.s4 1983009808
    %v3749 = vunpack.c.0.s8 %v3748
    %v3750 = vlaneseq
    %v3751 = vshrl.u32 %v3750, 7
    %v3752 = vsub.s32 %v3749, %v3751
    %v3753 = vrot.slane %v3739, %v3752
    %v3754 = vcombine.high %v3746, %v3746
    %v3755 = vcombine.high %v3753, %v3753
    %v3772 = vld [vmem:[%s8] sm:$0xff]
    %v3773 = vld [vmem:[%s8 + $0x8] sm:$0xff]
    %v3774 = vld [vmem:[%s8 + $0x10] sm:$0xff]
    %v3775 = vld [vmem:[%s8 + $0x18] sm:$0xff]
    %v3776 = vld [vmem:[%s8 + $0x20] sm:$0xff]
    %v3777 = vld [vmem:[%s8 + $0x28] sm:$0xff]
    %v3778 = vld [vmem:[%s8 + $0x30] sm:$0xff]
    %v3779 = vld [vmem:[%s8 + $0x38] sm:$0xff]
    %v3780 = vld [vmem:[%s8 + $0x40] sm:$0xff]
    %v3781 = vld [vmem:[%s8 + $0x48] sm:$0xff]
    %v3782 = vld [vmem:[%s8 + $0x50] sm:$0xff]
    %v3783 = vld [vmem:[%s8 + $0x58] sm:$0xff]
    %v3784 = vld [vmem:[%s8 + $0x60] sm:$0xff]
    %v3785 = vld [vmem:[%s8 + $0x68] sm:$0xff]
    %v3786 = vld [vmem:[%s8 + $0x70] sm:$0xff]
    %v3787 = vld [vmem:[%s8 + $0x78] sm:$0xff]
    %v3788 = vld [vmem:[%s8 + $0x80] sm:$0xff]
    %v3789 = vld [vmem:[%s8 + $0x88] sm:$0xff]
    %v3790 = vld [vmem:[%s8 + $0x90] sm:$0xff]
    %v3791 = vld [vmem:[%s8 + $0x98] sm:$0xff]
    %v3792 = vld [vmem:[%s8 + $0xa0] sm:$0xff]
    %v3793 = vld [vmem:[%s8 + $0xa8] sm:$0xff]
    %v3794 = vld [vmem:[%s8 + $0xb0] sm:$0xff]
    %v3795 = vld [vmem:[%s8 + $0xb8] sm:$0xff]
    %v3796 = vld [vmem:[%s8 + $0xc0] sm:$0xff]
    %v3797 = vld [vmem:[%s8 + $0xc8] sm:$0xff]
    %v3798 = vld [vmem:[%s8 + $0xd0] sm:$0xff]
    %v3799 = vld [vmem:[%s8 + $0xd8] sm:$0xff]
    %v3800 = vld [vmem:[%s8 + $0xe0] sm:$0xff]
    %v3801 = vld [vmem:[%s8 + $0xe8] sm:$0xff]
    %v3802 = vld [vmem:[%s8 + $0xf0] sm:$0xff]
    %v3803 = vld [vmem:[%s8 + $0xf8] sm:$0xff]
    %v3804 = vld [vmem:[%s8 + $0x100] sm:$0xff]
    %v3805 = vld [vmem:[%s8 + $0x108] sm:$0xff]
    %v3806 = vld [vmem:[%s8 + $0x110] sm:$0xff]
    %v3807 = vld [vmem:[%s8 + $0x118] sm:$0xff]
    %v3808 = vld [vmem:[%s8 + $0x120] sm:$0xff]
    %v3809 = vld [vmem:[%s8 + $0x128] sm:$0xff]
    %v3810 = vld [vmem:[%s8 + $0x130] sm:$0xff]
    %v3811 = vld [vmem:[%s8 + $0x138] sm:$0xff]
    %v3812 = vld [vmem:[%s8 + $0x140] sm:$0xff]
    %v3813 = vld [vmem:[%s8 + $0x148] sm:$0xff]
    %v3814 = vld [vmem:[%s8 + $0x150] sm:$0xff]
    %v3815 = vld [vmem:[%s8 + $0x158] sm:$0xff]
    %v3816 = vld [vmem:[%s8 + $0x160] sm:$0xff]
    %v3817 = vld [vmem:[%s8 + $0x168] sm:$0xff]
    %v3818 = vld [vmem:[%s8 + $0x170] sm:$0xff]
    %v3819 = vld [vmem:[%s8 + $0x178] sm:$0xff]
    %v3820 = vld [vmem:[%s8 + $0x180] sm:$0xff]
    %v3821 = vld [vmem:[%s8 + $0x188] sm:$0xff]
    %v3822 = vld [vmem:[%s8 + $0x190] sm:$0xff]
    %v3823 = vld [vmem:[%s8 + $0x198] sm:$0xff]
    %v3824 = vld [vmem:[%s8 + $0x1a0] sm:$0xff]
    %v3825 = vld [vmem:[%s8 + $0x1a8] sm:$0xff]
    %v3826 = vld [vmem:[%s8 + $0x1b0] sm:$0xff]
    %v3827 = vld [vmem:[%s8 + $0x1b8] sm:$0xff]
    %v3828 = vld [vmem:[%s8 + $0x1c0] sm:$0xff]
    %v3829 = vld [vmem:[%s8 + $0x1c8] sm:$0xff]
    %v3830 = vld [vmem:[%s8 + $0x1d0] sm:$0xff]
    %v3831 = vld [vmem:[%s8 + $0x1d8] sm:$0xff]
    %v3832 = vld [vmem:[%s8 + $0x1e0] sm:$0xff]
    %v3833 = vld [vmem:[%s8 + $0x1e8] sm:$0xff]
    %v3834 = vld [vmem:[%s8 + $0x1f0] sm:$0xff]
    %v3835 = vld [vmem:[%s8 + $0x1f8] sm:$0xff]
    %3836 = vmatprep.subr.mxu0 %v3773
    %3837 = vmatpush1.msra.mxu0 %v3772
    %3838 = vmatprep.subr.mxu0 %v3777
    %3839 = vmatpush1.msra.mxu0 %v3776
    %3840 = vmatprep.subr.mxu0 %v3781
    %3841 = vmatpush1.msra.mxu0 %v3780
    %3842 = vmatprep.subr.mxu0 %v3785
    %3843 = vmatpush1.msra.mxu0 %v3784
    %3844 = vmatprep.subr.mxu0 %v3789
    %3845 = vmatpush1.msra.mxu0 %v3788
    %3846 = vmatprep.subr.mxu0 %v3793
    %3847 = vmatpush1.msra.mxu0 %v3792
    %3848 = vmatprep.subr.mxu0 %v3797
    %3849 = vmatpush1.msra.mxu0 %v3796
    %3850 = vmatprep.subr.mxu0 %v3801
    %3851 = vmatpush1.msra.mxu0 %v3800
    %3852 = vmatprep.subr.mxu0 %v3805
    %3853 = vmatpush1.msra.mxu0 %v3804
    %3854 = vmatprep.subr.mxu0 %v3809
    %3855 = vmatpush1.msra.mxu0 %v3808
    %3856 = vmatprep.subr.mxu0 %v3813
    %3857 = vmatpush1.msra.mxu0 %v3812
    %3858 = vmatprep.subr.mxu0 %v3817
    %3859 = vmatpush1.msra.mxu0 %v3816
    %3860 = vmatprep.subr.mxu0 %v3821
    %3861 = vmatpush1.msra.mxu0 %v3820
    %3862 = vmatprep.subr.mxu0 %v3825
    %3863 = vmatpush1.msra.mxu0 %v3824
    %3864 = vmatprep.subr.mxu0 %v3829
    %3865 = vmatpush1.msra.mxu0 %v3828
    %3866 = vmatprep.subr.mxu0 %v3833
    %3867 = vmatpush1.msra.mxu0 %v3832
    %3868 = vmatprep.subr.mxu0 0.0
    %3869 = vmatpush1.msra.mxu0 0.0
    %3870 = vmatprep.subr.mxu0 0.0
    %3871 = vmatpush1.msra.mxu0 0.0
    %3872 = vmatprep.subr.mxu0 0.0
    %3873 = vmatpush1.msra.mxu0 0.0
    %3874 = vmatprep.subr.mxu0 0.0
    %3875 = vmatpush1.msra.mxu0 0.0
    %3876 = vmatprep.subr.mxu0 0.0
    %3877 = vmatpush1.msra.mxu0 0.0
    %3878 = vmatprep.subr.mxu0 0.0
    %3879 = vmatpush1.msra.mxu0 0.0
    %3880 = vmatprep.subr.mxu0 0.0
    %3881 = vmatpush1.msra.mxu0 0.0
    %3882 = vmatprep.subr.mxu0 0.0
    %3883 = vmatpush1.msra.mxu0 0.0
    %3884 = vmatprep.subr.mxu0 0.0
    %3885 = vmatpush1.msra.mxu0 0.0
    %3886 = vmatprep.subr.mxu0 0.0
    %3887 = vmatpush1.msra.mxu0 0.0
    %3888 = vmatprep.subr.mxu0 0.0
    %3889 = vmatpush1.msra.mxu0 0.0
    %3890 = vmatprep.subr.mxu0 0.0
    %3891 = vmatpush1.msra.mxu0 0.0
    %3892 = vmatprep.subr.mxu0 0.0
    %3893 = vmatpush1.msra.mxu0 0.0
    %3894 = vmatprep.subr.mxu0 0.0
    %3895 = vmatpush1.msra.mxu0 0.0
    %3896 = vmatprep.subr.mxu0 0.0
    %3897 = vmatpush1.msra.mxu0 0.0
    %3898 = vmatprep.subr.mxu0 0.0
    %3899 = vmatpush1.msra.mxu0 0.0
    %3900 = vmatprep.mubr.f32.mxu0 0.0
    %3901 = vmatmul.mubr.f32.gmra.mrb[0].mxu0 0.0
    %v3902 = vpop.f32.mrb[0].mxu0
    %v3903 = vadd.f32 0.0, %v3902
    %v3904 = vpop.f32.mrb[0].mxu0
    %v3905 = vadd.f32 0.0, %v3904
    %3906 = vdwg.mxu0
    %3907 = vmatprep.subr.mxu0 %v3775
    %3908 = vmatpush1.msra.mxu0 %v3774
    %3909 = vmatprep.subr.mxu0 %v3779
    %3910 = vmatpush1.msra.mxu0 %v3778
    %3911 = vmatprep.subr.mxu0 %v3783
    %3912 = vmatpush1.msra.mxu0 %v3782
    %3913 = vmatprep.subr.mxu0 %v3787
    %3914 = vmatpush1.msra.mxu0 %v3786
    %3915 = vmatprep.subr.mxu0 %v3791
    %3916 = vmatpush1.msra.mxu0 %v3790
    %3917 = vmatprep.subr.mxu0 %v3795
    %3918 = vmatpush1.msra.mxu0 %v3794
    %3919 = vmatprep.subr.mxu0 %v3799
    %3920 = vmatpush1.msra.mxu0 %v3798
    %3921 = vmatprep.subr.mxu0 %v3803
    %3922 = vmatpush1.msra.mxu0 %v3802
    %3923 = vmatprep.subr.mxu0 %v3807
    %3924 = vmatpush1.msra.mxu0 %v3806
    %3925 = vmatprep.subr.mxu0 %v3811
    %3926 = vmatpush1.msra.mxu0 %v3810
    %3927 = vmatprep.subr.mxu0 %v3815
    %3928 = vmatpush1.msra.mxu0 %v3814
    %3929 = vmatprep.subr.mxu0 %v3819
    %3930 = vmatpush1.msra.mxu0 %v3818
    %3931 = vmatprep.subr.mxu0 %v3823
    %3932 = vmatpush1.msra.mxu0 %v3822
    %3933 = vmatprep.subr.mxu0 %v3827
    %3934 = vmatpush1.msra.mxu0 %v3826
    %3935 = vmatprep.subr.mxu0 %v3831
    %3936 = vmatpush1.msra.mxu0 %v3830
    %3937 = vmatprep.subr.mxu0 %v3835
    %3938 = vmatpush1.msra.mxu0 %v3834
    %3939 = vmatprep.subr.mxu0 0.0
    %3940 = vmatpush1.msra.mxu0 0.0
    %3941 = vmatprep.subr.mxu0 0.0
    %3942 = vmatpush1.msra.mxu0 0.0
    %3943 = vmatprep.subr.mxu0 0.0
    %3944 = vmatpush1.msra.mxu0 0.0
    %3945 = vmatprep.subr.mxu0 0.0
    %3946 = vmatpush1.msra.mxu0 0.0
    %3947 = vmatprep.subr.mxu0 0.0
    %3948 = vmatpush1.msra.mxu0 0.0
    %3949 = vmatprep.subr.mxu0 0.0
    %3950 = vmatpush1.msra.mxu0 0.0
    %3951 = vmatprep.subr.mxu0 0.0
    %3952 = vmatpush1.msra.mxu0 0.0
    %3953 = vmatprep.subr.mxu0 0.0
    %3954 = vmatpush1.msra.mxu0 0.0
    %3955 = vmatprep.subr.mxu0 0.0
    %3956 = vmatpush1.msra.mxu0 0.0
    %3957 = vmatprep.subr.mxu0 0.0
    %3958 = vmatpush1.msra.mxu0 0.0
    %3959 = vmatprep.subr.mxu0 0.0
    %3960 = vmatpush1.msra.mxu0 0.0
    %3961 = vmatprep.subr.mxu0 0.0
    %3962 = vmatpush1.msra.mxu0 0.0
    %3963 = vmatprep.subr.mxu0 0.0
    %3964 = vmatpush1.msra.mxu0 0.0
    %3965 = vmatprep.subr.mxu0 0.0
    %3966 = vmatpush1.msra.mxu0 0.0
    %3967 = vmatprep.subr.mxu0 0.0
    %3968 = vmatpush1.msra.mxu0 0.0
    %3969 = vmatprep.subr.mxu0 0.0
    %3970 = vmatpush1.msra.mxu0 0.0
    %3971 = vmatprep.mubr.f32.mxu0 0.0
    %3972 = vmatmul.mubr.f32.gmra.mrb[0].mxu0 0.0
    %v3973 = vpop.f32.mrb[0].mxu0
    %v3974 = vadd.f32 0.0, %v3973
    %v3975 = vpop.f32.mrb[0].mxu0
    %v3976 = vadd.f32 0.0, %v3975
    %3977 = vdwg.mxu0
    %v3978 = vld [vmem:[%s9] sm:$0xff]
    %v3979 = vld [vmem:[%s9 + $0x8] sm:$0xff]
    %v3980 = vld [vmem:[%s9 + $0x10] sm:$0xff]
    %v3981 = vld [vmem:[%s9 + $0x18] sm:$0xff]
    %v3982 = vld [vmem:[%s9 + $0x20] sm:$0xff]
    %v3983 = vld [vmem:[%s9 + $0x28] sm:$0xff]
    %v3984 = vld [vmem:[%s9 + $0x30] sm:$0xff]
    %v3985 = vld [vmem:[%s9 + $0x38] sm:$0xff]
    %v3986 = vld [vmem:[%s9 + $0x40] sm:$0xff]
    %v3987 = vld [vmem:[%s9 + $0x48] sm:$0xff]
    %v3988 = vld [vmem:[%s9 + $0x50] sm:$0xff]
    %v3989 = vld [vmem:[%s9 + $0x58] sm:$0xff]
    %v3990 = vld [vmem:[%s9 + $0x60] sm:$0xff]
    %v3991 = vld [vmem:[%s9 + $0x68] sm:$0xff]
    %v3992 = vld [vmem:[%s9 + $0x70] sm:$0xff]
    %v3993 = vld [vmem:[%s9 + $0x78] sm:$0xff]
    %3994 = vmatprep.subr.mxu0 0.0
    %3995 = vmatpush1.msra.mxu0 %v3978
    %3996 = vmatprep.subr.mxu0 0.0
    %3997 = vmatpush1.msra.mxu0 %v3979
    %3998 = vmatprep.subr.mxu0 0.0
    %3999 = vmatpush1.msra.mxu0 %v3980
    %4000 = vmatprep.subr.mxu0 0.0
    %4001 = vmatpush1.msra.mxu0 %v3981
    %4002 = vmatprep.subr.mxu0 0.0
    %4003 = vmatpush1.msra.mxu0 %v3982
    %4004 = vmatprep.subr.mxu0 0.0
    %4005 = vmatpush1.msra.mxu0 %v3983
    %4006 = vmatprep.subr.mxu0 0.0
    %4007 = vmatpush1.msra.mxu0 %v3984
    %4008 = vmatprep.subr.mxu0 0.0
    %4009 = vmatpush1.msra.mxu0 %v3985
    %4010 = vmatprep.subr.mxu0 0.0
    %4011 = vmatpush1.msra.mxu0 %v3986
    %4012 = vmatprep.subr.mxu0 0.0
    %4013 = vmatpush1.msra.mxu0 %v3987
    %4014 = vmatprep.subr.mxu0 0.0
    %4015 = vmatpush1.msra.mxu0 %v3988
    %4016 = vmatprep.subr.mxu0 0.0
    %4017 = vmatpush1.msra.mxu0 %v3989
    %4018 = vmatprep.subr.mxu0 0.0
    %4019 = vmatpush1.msra.mxu0 %v3990
    %4020 = vmatprep.subr.mxu0 0.0
    %4021 = vmatpush1.msra.mxu0 %v3991
    %4022 = vmatprep.subr.mxu0 0.0
    %4023 = vmatpush1.msra.mxu0 %v3992
    %4024 = vmatprep.subr.mxu0 0.0
    %4025 = vmatpush1.msra.mxu0 %v3993
    %4026 = vmatprep.subr.mxu0 0.0
    %4027 = vmatpush1.msra.mxu0 0.0
    %4028 = vmatprep.subr.mxu0 0.0
    %4029 = vmatpush1.msra.mxu0 0.0
    %4030 = vmatprep.subr.mxu0 0.0
    %4031 = vmatpush1.msra.mxu0 0.0
    %4032 = vmatprep.subr.mxu0 0.0
    %4033 = vmatpush1.msra.mxu0 0.0
    %4034 = vmatprep.subr.mxu0 0.0
    %4035 = vmatpush1.msra.mxu0 0.0
    %4036 = vmatprep.subr.mxu0 0.0
    %4037 = vmatpush1.msra.mxu0 0.0
    %4038 = vmatprep.subr.mxu0 0.0
    %4039 = vmatpush1.msra.mxu0 0.0
    %4040 = vmatprep.subr.mxu0 0.0
    %4041 = vmatpush1.msra.mxu0 0.0
    %4042 = vmatprep.subr.mxu0 0.0
    %4043 = vmatpush1.msra.mxu0 0.0
    %4044 = vmatprep.subr.mxu0 0.0
    %4045 = vmatpush1.msra.mxu0 0.0
    %4046 = vmatprep.subr.mxu0 0.0
    %4047 = vmatpush1.msra.mxu0 0.0
    %4048 = vmatprep.subr.mxu0 0.0
    %4049 = vmatpush1.msra.mxu0 0.0
    %4050 = vmatprep.subr.mxu0 0.0
    %4051 = vmatpush1.msra.mxu0 0.0
    %4052 = vmatprep.subr.mxu0 0.0
    %4053 = vmatpush1.msra.mxu0 0.0
    %4054 = vmatprep.subr.mxu0 0.0
    %4055 = vmatpush1.msra.mxu0 0.0
    %4056 = vmatprep.subr.mxu0 0.0
    %4057 = vmatpush1.msra.mxu0 0.0
    %4058 = vmatprep.mubr.f32.mxu0 0.0
    %4059 = vmatmul.mubr.f32.gmra.mrb[0].mxu0 0.0
    %v4060 = vpop.f32.mrb[0].mxu0
    %v4061 = vadd.f32 0.0, %v4060
    %v4062 = vpop.f32.mrb[0].mxu0
    %4063 = vdwg.mxu0
    %v4064 = vadd.f32 %v3693, %v4061
    %v4065 = vtanh.pop %v4064
    %v4066 = vsub.f32 0.0, %v4065
    %v4067 = vmul.f32 %v4065, %v847
    %v4068 = vadd.f32 %v4066, %v4067
    %v4069 = vadd.f32 %v3682, %v3903
    %v4070 = vxor.u32 %v4069, 2147483648
    %v4071 = vmul.f32 %v4070, 1.442695
    %v4072 = vpow.pop %v4071
    %v4073 = vadd.f32 %v4072, 1.0
    %v4074 = vrcp.pop %v4073
    %v4075 = vmul.f32 1.0, %v4074
    %v4076 = vrot.slane %v3682, 2
    %v4078 = vadd.f32 %v4076, %v3905
    %v4079 = vxor.u32 %v4078, 2147483648
    %v4080 = vmul.f32 %v4079, 1.442695
    %v4081 = vpow.pop %v4080
    %v4082 = vadd.f32 %v4081, 1.0
    %v4083 = vrcp.pop %v4082
    %v4084 = vmul.f32 1.0, %v4083
    %v4085 = vrot.slane %v3682, 4
    %v4087 = vadd.f32 %v4085, %v3974
    %v4088 = vxor.u32 %v4087, 2147483648
    %v4089 = vmul.f32 %v4088, 1.442695
    %v4090 = vpow.pop %v4089
    %v4091 = vadd.f32 %v4090, 1.0
    %v4092 = vrcp.pop %v4091
    %v4093 = vmul.f32 1.0, %v4092
    %v4094 = vrot.slane %v3682, 6
    %v4096 = vadd.f32 %v4094, %v3976
    %v4097 = vtanh.pop %v4096
    %v4098 = vmul.f32 %v4084, %v4068
    %v4099 = vmul.f32 %v4075, %v4097
    %v4100 = vadd.f32 %v4098, %v4099
    %v4101 = vtanh.pop %v4100
    %v4102 = vmul.f32 %v4093, %v4101
    %4103 = vst [vmem:[%s14] sm:$0x3] %v4102
    %v4104 = vld [vmem:[%s8] sm:$0xff]
    %v4105 = vld [vmem:[%s8 + $0x8] sm:$0xff]
    %v4106 = vld [vmem:[%s8 + $0x10] sm:$0xff]
    %v4107 = vld [vmem:[%s8 + $0x18] sm:$0xff]
    %v4108 = vld [vmem:[%s8 + $0x20] sm:$0xff]
    %v4109 = vld [vmem:[%s8 + $0x28] sm:$0xff]
    %v4110 = vld [vmem:[%s8 + $0x30] sm:$0xff]
    %v4111 = vld [vmem:[%s8 + $0x38] sm:$0xff]
    %v4112 = vld [vmem:[%s8 + $0x40] sm:$0xff]
    %v4113 = vld [vmem:[%s8 + $0x48] sm:$0xff]
    %v4114 = vld [vmem:[%s8 + $0x50] sm:$0xff]
    %v4115 = vld [vmem:[%s8 + $0x58] sm:$0xff]
    %v4116 = vld [vmem:[%s8 + $0x60] sm:$0xff]
    %v4117 = vld [vmem:[%s8 + $0x68] sm:$0xff]
    %v4118 = vld [vmem:[%s8 + $0x70] sm:$0xff]
    %v4119 = vld [vmem:[%s8 + $0x78] sm:$0xff]
    %v4120 = vld [vmem:[%s8 + $0x80] sm:$0xff]
    %v4121 = vld [vmem:[%s8 + $0x88] sm:$0xff]
    %v4122 = vld [vmem:[%s8 + $0x90] sm:$0xff]
    %v4123 = vld [vmem:[%s8 + $0x98] sm:$0xff]
    %v4124 = vld [vmem:[%s8 + $0xa0] sm:$0xff]
    %v4125 = vld [vmem:[%s8 + $0xa8] sm:$0xff]
    %v4126 = vld [vmem:[%s8 + $0xb0] sm:$0xff]
    %v4127 = vld [vmem:[%s8 + $0xb8] sm:$0xff]
    %v4128 = vld [vmem:[%s8 + $0xc0] sm:$0xff]
    %v4129 = vld [vmem:[%s8 + $0xc8] sm:$0xff]
    %v4130 = vld [vmem:[%s8 + $0xd0] sm:$0xff]
    %v4131 = vld [vmem:[%s8 + $0xd8] sm:$0xff]
    %v4132 = vld [vmem:[%s8 + $0xe0] sm:$0xff]
    %v4133 = vld [vmem:[%s8 + $0xe8] sm:$0xff]
    %v4134 = vld [vmem:[%s8 + $0xf0] sm:$0xff]
    %v4135 = vld [vmem:[%s8 + $0xf8] sm:$0xff]
    %v4136 = vld [vmem:[%s8 + $0x100] sm:$0xff]
    %v4137 = vld [vmem:[%s8 + $0x108] sm:$0xff]
    %v4138 = vld [vmem:[%s8 + $0x110] sm:$0xff]
    %v4139 = vld [vmem:[%s8 + $0x118] sm:$0xff]
    %v4140 = vld [vmem:[%s8 + $0x120] sm:$0xff]
    %v4141 = vld [vmem:[%s8 + $0x128] sm:$0xff]
    %v4142 = vld [vmem:[%s8 + $0x130] sm:$0xff]
    %v4143 = vld [vmem:[%s8 + $0x138] sm:$0xff]
    %v4144 = vld [vmem:[%s8 + $0x140] sm:$0xff]
    %v4145 = vld [vmem:[%s8 + $0x148] sm:$0xff]
    %v4146 = vld [vmem:[%s8 + $0x150] sm:$0xff]
    %v4147 = vld [vmem:[%s8 + $0x158] sm:$0xff]
    %v4148 = vld [vmem:[%s8 + $0x160] sm:$0xff]
    %v4149 = vld [vmem:[%s8 + $0x168] sm:$0xff]
    %v4150 = vld [vmem:[%s8 + $0x170] sm:$0xff]
    %v4151 = vld [vmem:[%s8 + $0x178] sm:$0xff]
    %v4152 = vld [vmem:[%s8 + $0x180] sm:$0xff]
    %v4153 = vld [vmem:[%s8 + $0x188] sm:$0xff]
    %v4154 = vld [vmem:[%s8 + $0x190] sm:$0xff]
    %v4155 = vld [vmem:[%s8 + $0x198] sm:$0xff]
    %v4156 = vld [vmem:[%s8 + $0x1a0] sm:$0xff]
    %v4157 = vld [vmem:[%s8 + $0x1a8] sm:$0xff]
    %v4158 = vld [vmem:[%s8 + $0x1b0] sm:$0xff]
    %v4159 = vld [vmem:[%s8 + $0x1b8] sm:$0xff]
    %v4160 = vld [vmem:[%s8 + $0x1c0] sm:$0xff]
    %v4161 = vld [vmem:[%s8 + $0x1c8] sm:$0xff]
    %v4162 = vld [vmem:[%s8 + $0x1d0] sm:$0xff]
    %v4163 = vld [vmem:[%s8 + $0x1d8] sm:$0xff]
    %v4164 = vld [vmem:[%s8 + $0x1e0] sm:$0xff]
    %v4165 = vld [vmem:[%s8 + $0x1e8] sm:$0xff]
    %v4166 = vld [vmem:[%s8 + $0x1f0] sm:$0xff]
    %v4167 = vld [vmem:[%s8 + $0x1f8] sm:$0xff]
    %4168 = vmatprep.subr.mxu0 %v4105
    %4169 = vmatpush1.msra.mxu0 %v4104
    %4170 = vmatprep.subr.mxu0 %v4109
    %4171 = vmatpush1.msra.mxu0 %v4108
    %4172 = vmatprep.subr.mxu0 %v4113
    %4173 = vmatpush1.msra.mxu0 %v4112
    %4174 = vmatprep.subr.mxu0 %v4117
    %4175 = vmatpush1.msra.mxu0 %v4116
    %4176 = vmatprep.subr.mxu0 %v4121
    %4177 = vmatpush1.msra.mxu0 %v4120
    %4178 = vmatprep.subr.mxu0 %v4125
    %4179 = vmatpush1.msra.mxu0 %v4124
    %4180 = vmatprep.subr.mxu0 %v4129
    %4181 = vmatpush1.msra.mxu0 %v4128
    %4182 = vmatprep.subr.mxu0 %v4133
    %4183 = vmatpush1.msra.mxu0 %v4132
    %4184 = vmatprep.subr.mxu0 %v4137
    %4185 = vmatpush1.msra.mxu0 %v4136
    %4186 = vmatprep.subr.mxu0 %v4141
    %4187 = vmatpush1.msra.mxu0 %v4140
    %4188 = vmatprep.subr.mxu0 %v4145
    %4189 = vmatpush1.msra.mxu0 %v4144
    %4190 = vmatprep.subr.mxu0 %v4149
    %4191 = vmatpush1.msra.mxu0 %v4148
    %4192 = vmatprep.subr.mxu0 %v4153
    %4193 = vmatpush1.msra.mxu0 %v4152
    %4194 = vmatprep.subr.mxu0 %v4157
    %4195 = vmatpush1.msra.mxu0 %v4156
    %4196 = vmatprep.subr.mxu0 %v4161
    %4197 = vmatpush1.msra.mxu0 %v4160
    %4198 = vmatprep.subr.mxu0 %v4165
    %4199 = vmatpush1.msra.mxu0 %v4164
    %4200 = vmatprep.subr.mxu0 0.0
    %4201 = vmatpush1.msra.mxu0 0.0
    %4202 = vmatprep.subr.mxu0 0.0
    %4203 = vmatpush1.msra.mxu0 0.0
    %4204 = vmatprep.subr.mxu0 0.0
    %4205 = vmatpush1.msra.mxu0 0.0
    %4206 = vmatprep.subr.mxu0 0.0
    %4207 = vmatpush1.msra.mxu0 0.0
    %4208 = vmatprep.subr.mxu0 0.0
    %4209 = vmatpush1.msra.mxu0 0.0
    %4210 = vmatprep.subr.mxu0 0.0
    %4211 = vmatpush1.msra.mxu0 0.0
    %4212 = vmatprep.subr.mxu0 0.0
    %4213 = vmatpush1.msra.mxu0 0.0
    %4214 = vmatprep.subr.mxu0 0.0
    %4215 = vmatpush1.msra.mxu0 0.0
    %4216 = vmatprep.subr.mxu0 0.0
    %4217 = vmatpush1.msra.mxu0 0.0
    %4218 = vmatprep.subr.mxu0 0.0
    %4219 = vmatpush1.msra.mxu0 0.0
    %4220 = vmatprep.subr.mxu0 0.0
    %4221 = vmatpush1.msra.mxu0 0.0
    %4222 = vmatprep.subr.mxu0 0.0
    %4223 = vmatpush1.msra.mxu0 0.0
    %4224 = vmatprep.subr.mxu0 0.0
    %4225 = vmatpush1.msra.mxu0 0.0
    %4226 = vmatprep.subr.mxu0 0.0
    %4227 = vmatpush1.msra.mxu0 0.0
    %4228 = vmatprep.subr.mxu0 0.0
    %4229 = vmatpush1.msra.mxu0 0.0
    %4230 = vmatprep.subr.mxu0 0.0
    %4231 = vmatpush1.msra.mxu0 0.0
    %4232 = vmatprep.mubr.f32.mxu0 0.0
    %4233 = vmatmul.mubr.f32.gmra.mrb[0].mxu0 %v4102
    %v4234 = vpop.f32.mrb[0].mxu0
    %v4235 = vadd.f32 0.0, %v4234
    %v4236 = vpop.f32.mrb[0].mxu0
    %v4237 = vadd.f32 0.0, %v4236
    %4238 = vdwg.mxu0
    %4239 = vmatprep.subr.mxu0 %v4107
    %4240 = vmatpush1.msra.mxu0 %v4106
    %4241 = vmatprep.subr.mxu0 %v4111
    %4242 = vmatpush1.msra.mxu0 %v4110
    %4243 = vmatprep.subr.mxu0 %v4115
    %4244 = vmatpush1.msra.mxu0 %v4114
    %4245 = vmatprep.subr.mxu0 %v4119
    %4246 = vmatpush1.msra.mxu0 %v4118
    %4247 = vmatprep.subr.mxu0 %v4123
    %4248 = vmatpush1.msra.mxu0 %v4122
    %4249 = vmatprep.subr.mxu0 %v4127
    %4250 = vmatpush1.msra.mxu0 %v4126
    %4251 = vmatprep.subr.mxu0 %v4131
    %4252 = vmatpush1.msra.mxu0 %v4130
    %4253 = vmatprep.subr.mxu0 %v4135
    %4254 = vmatpush1.msra.mxu0 %v4134
    %4255 = vmatprep.subr.mxu0 %v4139
    %4256 = vmatpush1.msra.mxu0 %v4138
    %4257 = vmatprep.subr.mxu0 %v4143
    %4258 = vmatpush1.msra.mxu0 %v4142
    %4259 = vmatprep.subr.mxu0 %v4147
    %4260 = vmatpush1.msra.mxu0 %v4146
    %4261 = vmatprep.subr.mxu0 %v4151
    %4262 = vmatpush1.msra.mxu0 %v4150
    %4263 = vmatprep.subr.mxu0 %v4155
    %4264 = vmatpush1.msra.mxu0 %v4154
    %4265 = vmatprep.subr.mxu0 %v4159
    %4266 = vmatpush1.msra.mxu0 %v4158
    %4267 = vmatprep.subr.mxu0 %v4163
    %4268 = vmatpush1.msra.mxu0 %v4162
    %4269 = vmatprep.subr.mxu0 %v4167
    %4270 = vmatpush1.msra.mxu0 %v4166
    %4271 = vmatprep.subr.mxu0 0.0
    %4272 = vmatpush1.msra.mxu0 0.0
    %4273 = vmatprep.subr.mxu0 0.0
    %4274 = vmatpush1.msra.mxu0 0.0
    %4275 = vmatprep.subr.mxu0 0.0
    %4276 = vmatpush1.msra.mxu0 0.0
    %4277 = vmatprep.subr.mxu0 0.0
    %4278 = vmatpush1.msra.mxu0 0.0
    %4279 = vmatprep.subr.mxu0 0.0
    %4280 = vmatpush1.msra.mxu0 0.0
    %4281 = vmatprep.subr.mxu0 0.0
    %4282 = vmatpush1.msra.mxu0 0.0
    %4283 = vmatprep.subr.mxu0 0.0
    %4284 = vmatpush1.msra.mxu0 0.0
    %4285 = vmatprep.subr.mxu0 0.0
    %4286 = vmatpush1.msra.mxu0 0.0
    %4287 = vmatprep.subr.mxu0 0.0
    %4288 = vmatpush1.msra.mxu0 0.0
    %4289 = vmatprep.subr.mxu0 0.0
    %4290 = vmatpush1.msra.mxu0 0.0
    %4291 = vmatprep.subr.mxu0 0.0
    %4292 = vmatpush1.msra.mxu0 0.0
    %4293 = vmatprep.subr.mxu0 0.0
    %4294 = vmatpush1.msra.mxu0 0.0
    %4295 = vmatprep.subr.mxu0 0.0
    %4296 = vmatpush1.msra.mxu0 0.0
    %4297 = vmatprep.subr.mxu0 0.0
    %4298 = vmatpush1.msra.mxu0 0.0
    %4299 = vmatprep.subr.mxu0 0.0
    %4300 = vmatpush1.msra.mxu0 0.0
    %4301 = vmatprep.subr.mxu0 0.0
    %4302 = vmatpush1.msra.mxu0 0.0
    %4303 = vmatprep.mubr.f32.mxu0 0.0
    %4304 = vmatmul.mubr.f32.gmra.mrb[0].mxu0 %v4102
    %v4305 = vpop.f32.mrb[0].mxu0
    %v4306 = vadd.f32 0.0, %v4305
    %v4307 = vpop.f32.mrb[0].mxu0
    %v4308 = vadd.f32 0.0, %v4307
    %4309 = vdwg.mxu0
    %v4310 = vld [vmem:[%s9] sm:$0xff]
    %v4311 = vld [vmem:[%s9 + $0x8] sm:$0xff]
    %v4312 = vld [vmem:[%s9 + $0x10] sm:$0xff]
    %v4313 = vld [vmem:[%s9 + $0x18] sm:$0xff]
    %v4314 = vld [vmem:[%s9 + $0x20] sm:$0xff]
    %v4315 = vld [vmem:[%s9 + $0x28] sm:$0xff]
    %v4316 = vld [vmem:[%s9 + $0x30] sm:$0xff]
    %v4317 = vld [vmem:[%s9 + $0x38] sm:$0xff]
    %v4318 = vld [vmem:[%s9 + $0x40] sm:$0xff]
    %v4319 = vld [vmem:[%s9 + $0x48] sm:$0xff]
    %v4320 = vld [vmem:[%s9 + $0x50] sm:$0xff]
    %v4321 = vld [vmem:[%s9 + $0x58] sm:$0xff]
    %v4322 = vld [vmem:[%s9 + $0x60] sm:$0xff]
    %v4323 = vld [vmem:[%s9 + $0x68] sm:$0xff]
    %v4324 = vld [vmem:[%s9 + $0x70] sm:$0xff]
    %v4325 = vld [vmem:[%s9 + $0x78] sm:$0xff]
    %4326 = vmatprep.subr.mxu0 0.0
    %4327 = vmatpush1.msra.mxu0 %v4310
    %4328 = vmatprep.subr.mxu0 0.0
    %4329 = vmatpush1.msra.mxu0 %v4311
    %4330 = vmatprep.subr.mxu0 0.0
    %4331 = vmatpush1.msra.mxu0 %v4312
    %4332 = vmatprep.subr.mxu0 0.0
    %4333 = vmatpush1.msra.mxu0 %v4313
    %4334 = vmatprep.subr.mxu0 0.0
    %4335 = vmatpush1.msra.mxu0 %v4314
    %4336 = vmatprep.subr.mxu0 0.0
    %4337 = vmatpush1.msra.mxu0 %v4315
    %4338 = vmatprep.subr.mxu0 0.0
    %4339 = vmatpush1.msra.mxu0 %v4316
    %4340 = vmatprep.subr.mxu0 0.0
    %4341 = vmatpush1.msra.mxu0 %v4317
    %4342 = vmatprep.subr.mxu0 0.0
    %4343 = vmatpush1.msra.mxu0 %v4318
    %4344 = vmatprep.subr.mxu0 0.0
    %4345 = vmatpush1.msra.mxu0 %v4319
    %4346 = vmatprep.subr.mxu0 0.0
    %4347 = vmatpush1.msra.mxu0 %v4320
    %4348 = vmatprep.subr.mxu0 0.0
    %4349 = vmatpush1.msra.mxu0 %v4321
    %4350 = vmatprep.subr.mxu0 0.0
    %4351 = vmatpush1.msra.mxu0 %v4322
    %4352 = vmatprep.subr.mxu0 0.0
    %4353 = vmatpush1.msra.mxu0 %v4323
    %4354 = vmatprep.subr.mxu0 0.0
    %4355 = vmatpush1.msra.mxu0 %v4324
    %4356 = vmatprep.subr.mxu0 0.0
    %4357 = vmatpush1.msra.mxu0 %v4325
    %4358 = vmatprep.subr.mxu0 0.0
    %4359 = vmatpush1.msra.mxu0 0.0
    %4360 = vmatprep.subr.mxu0 0.0
    %4361 = vmatpush1.msra.mxu0 0.0
    %4362 = vmatprep.subr.mxu0 0.0
    %4363 = vmatpush1.msra.mxu0 0.0
    %4364 = vmatprep.subr.mxu0 0.0
    %4365 = vmatpush1.msra.mxu0 0.0
    %4366 = vmatprep.subr.mxu0 0.0
    %4367 = vmatpush1.msra.mxu0 0.0
    %4368 = vmatprep.subr.mxu0 0.0
    %4369 = vmatpush1.msra.mxu0 0.0
    %4370 = vmatprep.subr.mxu0 0.0
    %4371 = vmatpush1.msra.mxu0 0.0
    %4372 = vmatprep.subr.mxu0 0.0
    %4373 = vmatpush1.msra.mxu0 0.0
    %4374 = vmatprep.subr.mxu0 0.0
    %4375 = vmatpush1.msra.mxu0 0.0
    %4376 = vmatprep.subr.mxu0 0.0
    %4377 = vmatpush1.msra.mxu0 0.0
    %4378 = vmatprep.subr.mxu0 0.0
    %4379 = vmatpush1.msra.mxu0 0.0
    %4380 = vmatprep.subr.mxu0 0.0
    %4381 = vmatpush1.msra.mxu0 0.0
    %4382 = vmatprep.subr.mxu0 0.0
    %4383 = vmatpush1.msra.mxu0 0.0
    %4384 = vmatprep.subr.mxu0 0.0
    %4385 = vmatpush1.msra.mxu0 0.0
    %4386 = vmatprep.subr.mxu0 0.0
    %4387 = vmatpush1.msra.mxu0 0.0
    %4388 = vmatprep.subr.mxu0 0.0
    %4389 = vmatpush1.msra.mxu0 0.0
    %4390 = vmatprep.mubr.f32.mxu0 0.0
    %4391 = vmatmul.mubr.f32.gmra.mrb[0].mxu0 %v4100
    %v4392 = vpop.f32.mrb[0].mxu0
    %v4393 = vadd.f32 0.0, %v4392
    %v4394 = vpop.f32.mrb[0].mxu0
    %4395 = vdwg.mxu0
    %v4396 = vadd.f32 %v3701, %v4393
    %v4397 = vtanh.pop %v4396
    %v4398 = vsub.f32 %v4100, %v4397
    %v4399 = vmul.f32 %v4397, %v1184
    %v4400 = vadd.f32 %v4398, %v4399
    %v4401 = vadd.f32 %v3683, %v4235
    %v4402 = vxor.u32 %v4401, 2147483648
    %v4403 = vmul.f32 %v4402, 1.442695
    %v4404 = vpow.pop %v4403
    %v4405 = vadd.f32 %v4404, 1.0
    %v4406 = vrcp.pop %v4405
    %v4407 = vmul.f32 1.0, %v4406
    %v4408 = vrot.slane %v3683, 2
    %v4410 = vadd.f32 %v4408, %v4237
    %v4411 = vxor.u32 %v4410, 2147483648
    %v4412 = vmul.f32 %v4411, 1.442695
    %v4413 = vpow.pop %v4412
    %v4414 = vadd.f32 %v4413, 1.0
    %v4415 = vrcp.pop %v4414
    %v4416 = vmul.f32 1.0, %v4415
    %v4417 = vrot.slane %v3683, 4
    %v4419 = vadd.f32 %v4417, %v4306
    %v4420 = vxor.u32 %v4419, 2147483648
    %v4421 = vmul.f32 %v4420, 1.442695
    %v4422 = vpow.pop %v4421
    %v4423 = vadd.f32 %v4422, 1.0
    %v4424 = vrcp.pop %v4423
    %v4425 = vmul.f32 1.0, %v4424
    %v4426 = vrot.slane %v3683, 6
    %v4428 = vadd.f32 %v4426, %v4308
    %v4429 = vtanh.pop %v4428
    %v4430 = vmul.f32 %v4416, %v4400
    %v4431 = vmul.f32 %v4407, %v4429
    %v4432 = vadd.f32 %v4430, %v4431
    %v4433 = vtanh.pop %v4432
    %v4434 = vmul.f32 %v4425, %v4433
    %s4435 = scalar_lea.vmem %s14, 2
    %4436 = vst [vmem:[%s4435] sm:$0x3] %v4434
    %v4437 = vld [vmem:[%s8] sm:$0xff]
    %v4438 = vld [vmem:[%s8 + $0x8] sm:$0xff]
    %v4439 = vld [vmem:[%s8 + $0x10] sm:$0xff]
    %v4440 = vld [vmem:[%s8 + $0x18] sm:$0xff]
    %v4441 = vld [vmem:[%s8 + $0x20] sm:$0xff]
    %v4442 = vld [vmem:[%s8 + $0x28] sm:$0xff]
    %v4443 = vld [vmem:[%s8 + $0x30] sm:$0xff]
    %v4444 = vld [vmem:[%s8 + $0x38] sm:$0xff]
    %v4445 = vld [vmem:[%s8 + $0x40] sm:$0xff]
    %v4446 = vld [vmem:[%s8 + $0x48] sm:$0xff]
    %v4447 = vld [vmem:[%s8 + $0x50] sm:$0xff]
    %v4448 = vld [vmem:[%s8 + $0x58] sm:$0xff]
    %v4449 = vld [vmem:[%s8 + $0x60] sm:$0xff]
    %v4450 = vld [vmem:[%s8 + $0x68] sm:$0xff]
    %v4451 = vld [vmem:[%s8 + $0x70] sm:$0xff]
    %v4452 = vld [vmem:[%s8 + $0x78] sm:$0xff]
    %v4453 = vld [vmem:[%s8 + $0x80] sm:$0xff]
    %v4454 = vld [vmem:[%s8 + $0x88] sm:$0xff]
    %v4455 = vld [vmem:[%s8 + $0x90] sm:$0xff]
    %v4456 = vld [vmem:[%s8 + $0x98] sm:$0xff]
    %v4457 = vld [vmem:[%s8 + $0xa0] sm:$0xff]
    %v4458 = vld [vmem:[%s8 + $0xa8] sm:$0xff]
    %v4459 = vld [vmem:[%s8 + $0xb0] sm:$0xff]
    %v4460 = vld [vmem:[%s8 + $0xb8] sm:$0xff]
    %v4461 = vld [vmem:[%s8 + $0xc0] sm:$0xff]
    %v4462 = vld [vmem:[%s8 + $0xc8] sm:$0xff]
    %v4463 = vld [vmem:[%s8 + $0xd0] sm:$0xff]
    %v4464 = vld [vmem:[%s8 + $0xd8] sm:$0xff]
    %v4465 = vld [vmem:[%s8 + $0xe0] sm:$0xff]
    %v4466 = vld [vmem:[%s8 + $0xe8] sm:$0xff]
    %v4467 = vld [vmem:[%s8 + $0xf0] sm:$0xff]
    %v4468 = vld [vmem:[%s8 + $0xf8] sm:$0xff]
    %v4469 = vld [vmem:[%s8 + $0x100] sm:$0xff]
    %v4470 = vld [vmem:[%s8 + $0x108] sm:$0xff]
    %v4471 = vld [vmem:[%s8 + $0x110] sm:$0xff]
    %v4472 = vld [vmem:[%s8 + $0x118] sm:$0xff]
    %v4473 = vld [vmem:[%s8 + $0x120] sm:$0xff]
    %v4474 = vld [vmem:[%s8 + $0x128] sm:$0xff]
    %v4475 = vld [vmem:[%s8 + $0x130] sm:$0xff]
    %v4476 = vld [vmem:[%s8 + $0x138] sm:$0xff]
    %v4477 = vld [vmem:[%s8 + $0x140] sm:$0xff]
    %v4478 = vld [vmem:[%s8 + $0x148] sm:$0xff]
    %v4479 = vld [vmem:[%s8 + $0x150] sm:$0xff]
    %v4480 = vld [vmem:[%s8 + $0x158] sm:$0xff]
    %v4481 = vld [vmem:[%s8 + $0x160] sm:$0xff]
    %v4482 = vld [vmem:[%s8 + $0x168] sm:$0xff]
    %v4483 = vld [vmem:[%s8 + $0x170] sm:$0xff]
    %v4484 = vld [vmem:[%s8 + $0x178] sm:$0xff]
    %v4485 = vld [vmem:[%s8 + $0x180] sm:$0xff]
    %v4486 = vld [vmem:[%s8 + $0x188] sm:$0xff]
    %v4487 = vld [vmem:[%s8 + $0x190] sm:$0xff]
    %v4488 = vld [vmem:[%s8 + $0x198] sm:$0xff]
    %v4489 = vld [vmem:[%s8 + $0x1a0] sm:$0xff]
    %v4490 = vld [vmem:[%s8 + $0x1a8] sm:$0xff]
    %v4491 = vld [vmem:[%s8 + $0x1b0] sm:$0xff]
    %v4492 = vld [vmem:[%s8 + $0x1b8] sm:$0xff]
    %v4493 = vld [vmem:[%s8 + $0x1c0] sm:$0xff]
    %v4494 = vld [vmem:[%s8 + $0x1c8] sm:$0xff]
    %v4495 = vld [vmem:[%s8 + $0x1d0] sm:$0xff]
    %v4496 = vld [vmem:[%s8 + $0x1d8] sm:$0xff]
    %v4497 = vld [vmem:[%s8 + $0x1e0] sm:$0xff]
    %v4498 = vld [vmem:[%s8 + $0x1e8] sm:$0xff]
    %v4499 = vld [vmem:[%s8 + $0x1f0] sm:$0xff]
    %v4500 = vld [vmem:[%s8 + $0x1f8] sm:$0xff]
    %4501 = vmatprep.subr.mxu0 %v4438
    %4502 = vmatpush1.msra.mxu0 %v4437
    %4503 = vmatprep.subr.mxu0 %v4442
    %4504 = vmatpush1.msra.mxu0 %v4441
    %4505 = vmatprep.subr.mxu0 %v4446
    %4506 = vmatpush1.msra.mxu0 %v4445
    %4507 = vmatprep.subr.mxu0 %v4450
    %4508 = vmatpush1.msra.mxu0 %v4449
    %4509 = vmatprep.subr.mxu0 %v4454
    %4510 = vmatpush1.msra.mxu0 %v4453
    %4511 = vmatprep.subr.mxu0 %v4458
    %4512 = vmatpush1.msra.mxu0 %v4457
    %4513 = vmatprep.subr.mxu0 %v4462
    %4514 = vmatpush1.msra.mxu0 %v4461
    %4515 = vmatprep.subr.mxu0 %v4466
    %4516 = vmatpush1.msra.mxu0 %v4465
    %4517 = vmatprep.subr.mxu0 %v4470
    %4518 = vmatpush1.msra.mxu0 %v4469
    %4519 = vmatprep.subr.mxu0 %v4474
    %4520 = vmatpush1.msra.mxu0 %v4473
    %4521 = vmatprep.subr.mxu0 %v4478
    %4522 = vmatpush1.msra.mxu0 %v4477
    %4523 = vmatprep.subr.mxu0 %v4482
    %4524 = vmatpush1.msra.mxu0 %v4481
    %4525 = vmatprep.subr.mxu0 %v4486
    %4526 = vmatpush1.msra.mxu0 %v4485
    %4527 = vmatprep.subr.mxu0 %v4490
    %4528 = vmatpush1.msra.mxu0 %v4489
    %4529 = vmatprep.subr.mxu0 %v4494
    %4530 = vmatpush1.msra.mxu0 %v4493
    %4531 = vmatprep.subr.mxu0 %v4498
    %4532 = vmatpush1.msra.mxu0 %v4497
    %4533 = vmatprep.subr.mxu0 0.0
    %4534 = vmatpush1.msra.mxu0 0.0
    %4535 = vmatprep.subr.mxu0 0.0
    %4536 = vmatpush1.msra.mxu0 0.0
    %4537 = vmatprep.subr.mxu0 0.0
    %4538 = vmatpush1.msra.mxu0 0.0
    %4539 = vmatprep.subr.mxu0 0.0
    %4540 = vmatpush1.msra.mxu0 0.0
    %4541 = vmatprep.subr.mxu0 0.0
    %4542 = vmatpush1.msra.mxu0 0.0
    %4543 = vmatprep.subr.mxu0 0.0
    %4544 = vmatpush1.msra.mxu0 0.0
    %4545 = vmatprep.subr.mxu0 0.0
    %4546 = vmatpush1.msra.mxu0 0.0
    %4547 = vmatprep.subr.mxu0 0.0
    %4548 = vmatpush1.msra.mxu0 0.0
    %4549 = vmatprep.subr.mxu0 0.0
    %4550 = vmatpush1.msra.mxu0 0.0
    %4551 = vmatprep.subr.mxu0 0.0
    %4552 = vmatpush1.msra.mxu0 0.0
    %4553 = vmatprep.subr.mxu0 0.0
    %4554 = vmatpush1.msra.mxu0 0.0
    %4555 = vmatprep.subr.mxu0 0.0
    %4556 = vmatpush1.msra.mxu0 0.0
    %4557 = vmatprep.subr.mxu0 0.0
    %4558 = vmatpush1.msra.mxu0 0.0
    %4559 = vmatprep.subr.mxu0 0.0
    %4560 = vmatpush1.msra.mxu0 0.0
    %4561 = vmatprep.subr.mxu0 0.0
    %4562 = vmatpush1.msra.mxu0 0.0
    %4563 = vmatprep.subr.mxu0 0.0
    %4564 = vmatpush1.msra.mxu0 0.0
    %4565 = vmatprep.mubr.f32.mxu0 0.0
    %4566 = vmatmul.mubr.f32.gmra.mrb[0].mxu0 %v4434
    %v4567 = vpop.f32.mrb[0].mxu0
    %v4568 = vadd.f32 0.0, %v4567
    %v4569 = vpop.f32.mrb[0].mxu0
    %v4570 = vadd.f32 0.0, %v4569
    %4571 = vdwg.mxu0
    %4572 = vmatprep.subr.mxu0 %v4440
    %4573 = vmatpush1.msra.mxu0 %v4439
    %4574 = vmatprep.subr.mxu0 %v4444
    %4575 = vmatpush1.msra.mxu0 %v4443
    %4576 = vmatprep.subr.mxu0 %v4448
    %4577 = vmatpush1.msra.mxu0 %v4447
    %4578 = vmatprep.subr.mxu0 %v4452
    %4579 = vmatpush1.msra.mxu0 %v4451
    %4580 = vmatprep.subr.mxu0 %v4456
    %4581 = vmatpush1.msra.mxu0 %v4455
    %4582 = vmatprep.subr.mxu0 %v4460
    %4583 = vmatpush1.msra.mxu0 %v4459
    %4584 = vmatprep.subr.mxu0 %v4464
    %4585 = vmatpush1.msra.mxu0 %v4463
    %4586 = vmatprep.subr.mxu0 %v4468
    %4587 = vmatpush1.msra.mxu0 %v4467
    %4588 = vmatprep.subr.mxu0 %v4472
    %4589 = vmatpush1.msra.mxu0 %v4471
    %4590 = vmatprep.subr.mxu0 %v4476
    %4591 = vmatpush1.msra.mxu0 %v4475
    %4592 = vmatprep.subr.mxu0 %v4480
    %4593 = vmatpush1.msra.mxu0 %v4479
    %4594 = vmatprep.subr.mxu0 %v4484
    %4595 = vmatpush1.msra.mxu0 %v4483
    %4596 = vmatprep.subr.mxu0 %v4488
    %4597 = vmatpush1.msra.mxu0 %v4487
    %4598 = vmatprep.subr.mxu0 %v4492
    %4599 = vmatpush1.msra.mxu0 %v4491
    %4600 = vmatprep.subr.mxu0 %v4496
    %4601 = vmatpush1.msra.mxu0 %v4495
    %4602 = vmatprep.subr.mxu0 %v4500
    %4603 = vmatpush1.msra.mxu0 %v4499
    %4604 = vmatprep.subr.mxu0 0.0
    %4605 = vmatpush1.msra.mxu0 0.0
    %4606 = vmatprep.subr.mxu0 0.0
    %4607 = vmatpush1.msra.mxu0 0.0
    %4608 = vmatprep.subr.mxu0 0.0
    %4609 = vmatpush1.msra.mxu0 0.0
    %4610 = vmatprep.subr.mxu0 0.0
    %4611 = vmatpush1.msra.mxu0 0.0
    %4612 = vmatprep.subr.mxu0 0.0
    %4613 = vmatpush1.msra.mxu0 0.0
    %4614 = vmatprep.subr.mxu0 0.0
    %4615 = vmatpush1.msra.mxu0 0.0
    %4616 = vmatprep.subr.mxu0 0.0
    %4617 = vmatpush1.msra.mxu0 0.0
    %4618 = vmatprep.subr.mxu0 0.0
    %4619 = vmatpush1.msra.mxu0 0.0
    %4620 = vmatprep.subr.mxu0 0.0
    %4621 = vmatpush1.msra.mxu0 0.0
    %4622 = vmatprep.subr.mxu0 0.0
    %4623 = vmatpush1.msra.mxu0 0.0
    %4624 = vmatprep.subr.mxu0 0.0
    %4625 = vmatpush1.msra.mxu0 0.0
    %4626 = vmatprep.subr.mxu0 0.0
    %4627 = vmatpush1.msra.mxu0 0.0
    %4628 = vmatprep.subr.mxu0 0.0
    %4629 = vmatpush1.msra.mxu0 0.0
    %4630 = vmatprep.subr.mxu0 0.0
    %4631 = vmatpush1.msra.mxu0 0.0
    %4632 = vmatprep.subr.mxu0 0.0
    %4633 = vmatpush1.msra.mxu0 0.0
    %4634 = vmatprep.subr.mxu0 0.0
    %4635 = vmatpush1.msra.mxu0 0.0
    %4636 = vmatprep.mubr.f32.mxu0 0.0
    %4637 = vmatmul.mubr.f32.gmra.mrb[0].mxu0 %v4434
    %v4638 = vpop.f32.mrb[0].mxu0
    %v4639 = vadd.f32 0.0, %v4638
    %v4640 = vpop.f32.mrb[0].mxu0
    %v4641 = vadd.f32 0.0, %v4640
    %4642 = vdwg.mxu0
    %v4643 = vld [vmem:[%s9] sm:$0xff]
    %v4644 = vld [vmem:[%s9 + $0x8] sm:$0xff]
    %v4645 = vld [vmem:[%s9 + $0x10] sm:$0xff]
    %v4646 = vld [vmem:[%s9 + $0x18] sm:$0xff]
    %v4647 = vld [vmem:[%s9 + $0x20] sm:$0xff]
    %v4648 = vld [vmem:[%s9 + $0x28] sm:$0xff]
    %v4649 = vld [vmem:[%s9 + $0x30] sm:$0xff]
    %v4650 = vld [vmem:[%s9 + $0x38] sm:$0xff]
    %v4651 = vld [vmem:[%s9 + $0x40] sm:$0xff]
    %v4652 = vld [vmem:[%s9 + $0x48] sm:$0xff]
    %v4653 = vld [vmem:[%s9 + $0x50] sm:$0xff]
    %v4654 = vld [vmem:[%s9 + $0x58] sm:$0xff]
    %v4655 = vld [vmem:[%s9 + $0x60] sm:$0xff]
    %v4656 = vld [vmem:[%s9 + $0x68] sm:$0xff]
    %v4657 = vld [vmem:[%s9 + $0x70] sm:$0xff]
    %v4658 = vld [vmem:[%s9 + $0x78] sm:$0xff]
    %4659 = vmatprep.subr.mxu0 0.0
    %4660 = vmatpush1.msra.mxu0 %v4643
    %4661 = vmatprep.subr.mxu0 0.0
    %4662 = vmatpush1.msra.mxu0 %v4644
    %4663 = vmatprep.subr.mxu0 0.0
    %4664 = vmatpush1.msra.mxu0 %v4645
    %4665 = vmatprep.subr.mxu0 0.0
    %4666 = vmatpush1.msra.mxu0 %v4646
    %4667 = vmatprep.subr.mxu0 0.0
    %4668 = vmatpush1.msra.mxu0 %v4647
    %4669 = vmatprep.subr.mxu0 0.0
    %4670 = vmatpush1.msra.mxu0 %v4648
    %4671 = vmatprep.subr.mxu0 0.0
    %4672 = vmatpush1.msra.mxu0 %v4649
    %4673 = vmatprep.subr.mxu0 0.0
    %4674 = vmatpush1.msra.mxu0 %v4650
    %4675 = vmatprep.subr.mxu0 0.0
    %4676 = vmatpush1.msra.mxu0 %v4651
    %4677 = vmatprep.subr.mxu0 0.0
    %4678 = vmatpush1.msra.mxu0 %v4652
    %4679 = vmatprep.subr.mxu0 0.0
    %4680 = vmatpush1.msra.mxu0 %v4653
    %4681 = vmatprep.subr.mxu0 0.0
    %4682 = vmatpush1.msra.mxu0 %v4654
    %4683 = vmatprep.subr.mxu0 0.0
    %4684 = vmatpush1.msra.mxu0 %v4655
    %4685 = vmatprep.subr.mxu0 0.0
    %4686 = vmatpush1.msra.mxu0 %v4656
    %4687 = vmatprep.subr.mxu0 0.0
    %4688 = vmatpush1.msra.mxu0 %v4657
    %4689 = vmatprep.subr.mxu0 0.0
    %4690 = vmatpush1.msra.mxu0 %v4658
    %4691 = vmatprep.subr.mxu0 0.0
    %4692 = vmatpush1.msra.mxu0 0.0
    %4693 = vmatprep.subr.mxu0 0.0
    %4694 = vmatpush1.msra.mxu0 0.0
    %4695 = vmatprep.subr.mxu0 0.0
    %4696 = vmatpush1.msra.mxu0 0.0
    %4697 = vmatprep.subr.mxu0 0.0
    %4698 = vmatpush1.msra.mxu0 0.0
    %4699 = vmatprep.subr.mxu0 0.0
    %4700 = vmatpush1.msra.mxu0 0.0
    %4701 = vmatprep.subr.mxu0 0.0
    %4702 = vmatpush1.msra.mxu0 0.0
    %4703 = vmatprep.subr.mxu0 0.0
    %4704 = vmatpush1.msra.mxu0 0.0
    %4705 = vmatprep.subr.mxu0 0.0
    %4706 = vmatpush1.msra.mxu0 0.0
    %4707 = vmatprep.subr.mxu0 0.0
    %4708 = vmatpush1.msra.mxu0 0.0
    %4709 = vmatprep.subr.mxu0 0.0
    %4710 = vmatpush1.msra.mxu0 0.0
    %4711 = vmatprep.subr.mxu0 0.0
    %4712 = vmatpush1.msra.mxu0 0.0
    %4713 = vmatprep.subr.mxu0 0.0
    %4714 = vmatpush1.msra.mxu0 0.0
    %4715 = vmatprep.subr.mxu0 0.0
    %4716 = vmatpush1.msra.mxu0 0.0
    %4717 = vmatprep.subr.mxu0 0.0
    %4718 = vmatpush1.msra.mxu0 0.0
    %4719 = vmatprep.subr.mxu0 0.0
    %4720 = vmatpush1.msra.mxu0 0.0
    %4721 = vmatprep.subr.mxu0 0.0
    %4722 = vmatpush1.msra.mxu0 0.0
    %4723 = vmatprep.mubr.f32.mxu0 0.0
    %4724 = vmatmul.mubr.f32.gmra.mrb[0].mxu0 %v4432
    %v4725 = vpop.f32.mrb[0].mxu0
    %v4726 = vadd.f32 0.0, %v4725
    %v4727 = vpop.f32.mrb[0].mxu0
    %4728 = vdwg.mxu0
    %v4729 = vadd.f32 %v3700, %v4726
    %v4730 = vtanh.pop %v4729
    %v4731 = vsub.f32 %v4432, %v4730
    %v4732 = vmul.f32 %v4730, %v1522
    %v4733 = vadd.f32 %v4731, %v4732
    %v4734 = vadd.f32 %v3684, %v4568
    %v4735 = vxor.u32 %v4734, 2147483648
    %v4736 = vmul.f32 %v4735, 1.442695
    %v4737 = vpow.pop %v4736
    %v4738 = vadd.f32 %v4737, 1.0
    %v4739 = vrcp.pop %v4738
    %v4740 = vmul.f32 1.0, %v4739
    %v4741 = vrot.slane %v3684, 2
    %v4743 = vadd.f32 %v4741, %v4570
    %v4744 = vxor.u32 %v4743, 2147483648
    %v4745 = vmul.f32 %v4744, 1.442695
    %v4746 = vpow.pop %v4745
    %v4747 = vadd.f32 %v4746, 1.0
    %v4748 = vrcp.pop %v4747
    %v4749 = vmul.f32 1.0, %v4748
    %v4750 = vrot.slane %v3684, 4
    %v4752 = vadd.f32 %v4750, %v4639
    %v4753 = vxor.u32 %v4752, 2147483648
    %v4754 = vmul.f32 %v4753, 1.442695
    %v4755 = vpow.pop %v4754
    %v4756 = vadd.f32 %v4755, 1.0
    %v4757 = vrcp.pop %v4756
    %v4758 = vmul.f32 1.0, %v4757
    %v4759 = vrot.slane %v3684, 6
    %v4761 = vadd.f32 %v4759, %v4641
    %v4762 = vtanh.pop %v4761
    %v4763 = vmul.f32 %v4749, %v4733
    %v4764 = vmul.f32 %v4740, %v4762
    %v4765 = vadd.f32 %v4763, %v4764
    %v4766 = vtanh.pop %v4765
    %v4767 = vmul.f32 %v4758, %v4766
    %s4768 = scalar_lea.vmem %s14, 4
    %4769 = vst [vmem:[%s4768] sm:$0x3] %v4767
    %v4770 = vld [vmem:[%s8] sm:$0xff]
    %v4771 = vld [vmem:[%s8 + $0x8] sm:$0xff]
    %v4772 = vld [vmem:[%s8 + $0x10] sm:$0xff]
    %v4773 = vld [vmem:[%s8 + $0x18] sm:$0xff]
    %v4774 = vld [vmem:[%s8 + $0x20] sm:$0xff]
    %v4775 = vld [vmem:[%s8 + $0x28] sm:$0xff]
    %v4776 = vld [vmem:[%s8 + $0x30] sm:$0xff]
    %v4777 = vld [vmem:[%s8 + $0x38] sm:$0xff]
    %v4778 = vld [vmem:[%s8 + $0x40] sm:$0xff]
    %v4779 = vld [vmem:[%s8 + $0x48] sm:$0xff]
    %v4780 = vld [vmem:[%s8 + $0x50] sm:$0xff]
    %v4781 = vld [vmem:[%s8 + $0x58] sm:$0xff]
    %v4782 = vld [vmem:[%s8 + $0x60] sm:$0xff]
    %v4783 = vld [vmem:[%s8 + $0x68] sm:$0xff]
    %v4784 = vld [vmem:[%s8 + $0x70] sm:$0xff]
    %v4785 = vld [vmem:[%s8 + $0x78] sm:$0xff]
    %v4786 = vld [vmem:[%s8 + $0x80] sm:$0xff]
    %v4787 = vld [vmem:[%s8 + $0x88] sm:$0xff]
    %v4788 = vld [vmem:[%s8 + $0x90] sm:$0xff]
    %v4789 = vld [vmem:[%s8 + $0x98] sm:$0xff]
    %v4790 = vld [vmem:[%s8 + $0xa0] sm:$0xff]
    %v4791 = vld [vmem:[%s8 + $0xa8] sm:$0xff]
    %v4792 = vld [vmem:[%s8 + $0xb0] sm:$0xff]
    %v4793 = vld [vmem:[%s8 + $0xb8] sm:$0xff]
    %v4794 = vld [vmem:[%s8 + $0xc0] sm:$0xff]
    %v4795 = vld [vmem:[%s8 + $0xc8] sm:$0xff]
    %v4796 = vld [vmem:[%s8 + $0xd0] sm:$0xff]
    %v4797 = vld [vmem:[%s8 + $0xd8] sm:$0xff]
    %v4798 = vld [vmem:[%s8 + $0xe0] sm:$0xff]
    %v4799 = vld [vmem:[%s8 + $0xe8] sm:$0xff]
    %v4800 = vld [vmem:[%s8 + $0xf0] sm:$0xff]
    %v4801 = vld [vmem:[%s8 + $0xf8] sm:$0xff]
    %v4802 = vld [vmem:[%s8 + $0x100] sm:$0xff]
    %v4803 = vld [vmem:[%s8 + $0x108] sm:$0xff]
    %v4804 = vld [vmem:[%s8 + $0x110] sm:$0xff]
    %v4805 = vld [vmem:[%s8 + $0x118] sm:$0xff]
    %v4806 = vld [vmem:[%s8 + $0x120] sm:$0xff]
    %v4807 = vld [vmem:[%s8 + $0x128] sm:$0xff]
    %v4808 = vld [vmem:[%s8 + $0x130] sm:$0xff]
    %v4809 = vld [vmem:[%s8 + $0x138] sm:$0xff]
    %v4810 = vld [vmem:[%s8 + $0x140] sm:$0xff]
    %v4811 = vld [vmem:[%s8 + $0x148] sm:$0xff]
    %v4812 = vld [vmem:[%s8 + $0x150] sm:$0xff]
    %v4813 = vld [vmem:[%s8 + $0x158] sm:$0xff]
    %v4814 = vld [vmem:[%s8 + $0x160] sm:$0xff]
    %v4815 = vld [vmem:[%s8 + $0x168] sm:$0xff]
    %v4816 = vld [vmem:[%s8 + $0x170] sm:$0xff]
    %v4817 = vld [vmem:[%s8 + $0x178] sm:$0xff]
    %v4818 = vld [vmem:[%s8 + $0x180] sm:$0xff]
    %v4819 = vld [vmem:[%s8 + $0x188] sm:$0xff]
    %v4820 = vld [vmem:[%s8 + $0x190] sm:$0xff]
    %v4821 = vld [vmem:[%s8 + $0x198] sm:$0xff]
    %v4822 = vld [vmem:[%s8 + $0x1a0] sm:$0xff]
    %v4823 = vld [vmem:[%s8 + $0x1a8] sm:$0xff]
    %v4824 = vld [vmem:[%s8 + $0x1b0] sm:$0xff]
    %v4825 = vld [vmem:[%s8 + $0x1b8] sm:$0xff]
    %v4826 = vld [vmem:[%s8 + $0x1c0] sm:$0xff]
    %v4827 = vld [vmem:[%s8 + $0x1c8] sm:$0xff]
    %v4828 = vld [vmem:[%s8 + $0x1d0] sm:$0xff]
    %v4829 = vld [vmem:[%s8 + $0x1d8] sm:$0xff]
    %v4830 = vld [vmem:[%s8 + $0x1e0] sm:$0xff]
    %v4831 = vld [vmem:[%s8 + $0x1e8] sm:$0xff]
    %v4832 = vld [vmem:[%s8 + $0x1f0] sm:$0xff]
    %v4833 = vld [vmem:[%s8 + $0x1f8] sm:$0xff]
    %4834 = vmatprep.subr.mxu0 %v4771
    %4835 = vmatpush1.msra.mxu0 %v4770
    %4836 = vmatprep.subr.mxu0 %v4775
    %4837 = vmatpush1.msra.mxu0 %v4774
    %4838 = vmatprep.subr.mxu0 %v4779
    %4839 = vmatpush1.msra.mxu0 %v4778
    %4840 = vmatprep.subr.mxu0 %v4783
    %4841 = vmatpush1.msra.mxu0 %v4782
    %4842 = vmatprep.subr.mxu0 %v4787
    %4843 = vmatpush1.msra.mxu0 %v4786
    %4844 = vmatprep.subr.mxu0 %v4791
    %4845 = vmatpush1.msra.mxu0 %v4790
    %4846 = vmatprep.subr.mxu0 %v4795
    %4847 = vmatpush1.msra.mxu0 %v4794
    %4848 = vmatprep.subr.mxu0 %v4799
    %4849 = vmatpush1.msra.mxu0 %v4798
    %4850 = vmatprep.subr.mxu0 %v4803
    %4851 = vmatpush1.msra.mxu0 %v4802
    %4852 = vmatprep.subr.mxu0 %v4807
    %4853 = vmatpush1.msra.mxu0 %v4806
    %4854 = vmatprep.subr.mxu0 %v4811
    %4855 = vmatpush1.msra.mxu0 %v4810
    %4856 = vmatprep.subr.mxu0 %v4815
    %4857 = vmatpush1.msra.mxu0 %v4814
    %4858 = vmatprep.subr.mxu0 %v4819
    %4859 = vmatpush1.msra.mxu0 %v4818
    %4860 = vmatprep.subr.mxu0 %v4823
    %4861 = vmatpush1.msra.mxu0 %v4822
    %4862 = vmatprep.subr.mxu0 %v4827
    %4863 = vmatpush1.msra.mxu0 %v4826
    %4864 = vmatprep.subr.mxu0 %v4831
    %4865 = vmatpush1.msra.mxu0 %v4830
    %4866 = vmatprep.subr.mxu0 0.0
    %4867 = vmatpush1.msra.mxu0 0.0
    %4868 = vmatprep.subr.mxu0 0.0
    %4869 = vmatpush1.msra.mxu0 0.0
    %4870 = vmatprep.subr.mxu0 0.0
    %4871 = vmatpush1.msra.mxu0 0.0
    %4872 = vmatprep.subr.mxu0 0.0
    %4873 = vmatpush1.msra.mxu0 0.0
    %4874 = vmatprep.subr.mxu0 0.0
    %4875 = vmatpush1.msra.mxu0 0.0
    %4876 = vmatprep.subr.mxu0 0.0
    %4877 = vmatpush1.msra.mxu0 0.0
    %4878 = vmatprep.subr.mxu0 0.0
    %4879 = vmatpush1.msra.mxu0 0.0
    %4880 = vmatprep.subr.mxu0 0.0
    %4881 = vmatpush1.msra.mxu0 0.0
    %4882 = vmatprep.subr.mxu0 0.0
    %4883 = vmatpush1.msra.mxu0 0.0
    %4884 = vmatprep.subr.mxu0 0.0
    %4885 = vmatpush1.msra.mxu0 0.0
    %4886 = vmatprep.subr.mxu0 0.0
    %4887 = vmatpush1.msra.mxu0 0.0
    %4888 = vmatprep.subr.mxu0 0.0
    %4889 = vmatpush1.msra.mxu0 0.0
    %4890 = vmatprep.subr.mxu0 0.0
    %4891 = vmatpush1.msra.mxu0 0.0
    %4892 = vmatprep.subr.mxu0 0.0
    %4893 = vmatpush1.msra.mxu0 0.0
    %4894 = vmatprep.subr.mxu0 0.0
    %4895 = vmatpush1.msra.mxu0 0.0
    %4896 = vmatprep.subr.mxu0 0.0
    %4897 = vmatpush1.msra.mxu0 0.0
    %4898 = vmatprep.mubr.f32.mxu0 0.0
    %4899 = vmatmul.mubr.f32.gmra.mrb[0].mxu0 %v4767
    %v4900 = vpop.f32.mrb[0].mxu0
    %v4901 = vadd.f32 0.0, %v4900
    %v4902 = vpop.f32.mrb[0].mxu0
    %v4903 = vadd.f32 0.0, %v4902
    %4904 = vdwg.mxu0
    %4905 = vmatprep.subr.mxu0 %v4773
    %4906 = vmatpush1.msra.mxu0 %v4772
    %4907 = vmatprep.subr.mxu0 %v4777
    %4908 = vmatpush1.msra.mxu0 %v4776
    %4909 = vmatprep.subr.mxu0 %v4781
    %4910 = vmatpush1.msra.mxu0 %v4780
    %4911 = vmatprep.subr.mxu0 %v4785
    %4912 = vmatpush1.msra.mxu0 %v4784
    %4913 = vmatprep.subr.mxu0 %v4789
    %4914 = vmatpush1.msra.mxu0 %v4788
    %4915 = vmatprep.subr.mxu0 %v4793
    %4916 = vmatpush1.msra.mxu0 %v4792
    %4917 = vmatprep.subr.mxu0 %v4797
    %4918 = vmatpush1.msra.mxu0 %v4796
    %4919 = vmatprep.subr.mxu0 %v4801
    %4920 = vmatpush1.msra.mxu0 %v4800
    %4921 = vmatprep.subr.mxu0 %v4805
    %4922 = vmatpush1.msra.mxu0 %v4804
    %4923 = vmatprep.subr.mxu0 %v4809
    %4924 = vmatpush1.msra.mxu0 %v4808
    %4925 = vmatprep.subr.mxu0 %v4813
    %4926 = vmatpush1.msra.mxu0 %v4812
    %4927 = vmatprep.subr.mxu0 %v4817
    %4928 = vmatpush1.msra.mxu0 %v4816
    %4929 = vmatprep.subr.mxu0 %v4821
    %4930 = vmatpush1.msra.mxu0 %v4820
    %4931 = vmatprep.subr.mxu0 %v4825
    %4932 = vmatpush1.msra.mxu0 %v4824
    %4933 = vmatprep.subr.mxu0 %v4829
    %4934 = vmatpush1.msra.mxu0 %v4828
    %4935 = vmatprep.subr.mxu0 %v4833
    %4936 = vmatpush1.msra.mxu0 %v4832
    %4937 = vmatprep.subr.mxu0 0.0
    %4938 = vmatpush1.msra.mxu0 0.0
    %4939 = vmatprep.subr.mxu0 0.0
    %4940 = vmatpush1.msra.mxu0 0.0
    %4941 = vmatprep.subr.mxu0 0.0
    %4942 = vmatpush1.msra.mxu0 0.0
    %4943 = vmatprep.subr.mxu0 0.0
    %4944 = vmatpush1.msra.mxu0 0.0
    %4945 = vmatprep.subr.mxu0 0.0
    %4946 = vmatpush1.msra.mxu0 0.0
    %4947 = vmatprep.subr.mxu0 0.0
    %4948 = vmatpush1.msra.mxu0 0.0
    %4949 = vmatprep.subr.mxu0 0.0
    %4950 = vmatpush1.msra.mxu0 0.0
    %4951 = vmatprep.subr.mxu0 0.0
    %4952 = vmatpush1.msra.mxu0 0.0
    %4953 = vmatprep.subr.mxu0 0.0
    %4954 = vmatpush1.msra.mxu0 0.0
    %4955 = vmatprep.subr.mxu0 0.0
    %4956 = vmatpush1.msra.mxu0 0.0
    %4957 = vmatprep.subr.mxu0 0.0
    %4958 = vmatpush1.msra.mxu0 0.0
    %4959 = vmatprep.subr.mxu0 0.0
    %4960 = vmatpush1.msra.mxu0 0.0
    %4961 = vmatprep.subr.mxu0 0.0
    %4962 = vmatpush1.msra.mxu0 0.0
    %4963 = vmatprep.subr.mxu0 0.0
    %4964 = vmatpush1.msra.mxu0 0.0
    %4965 = vmatprep.subr.mxu0 0.0
    %4966 = vmatpush1.msra.mxu0 0.0
    %4967 = vmatprep.subr.mxu0 0.0
    %4968 = vmatpush1.msra.mxu0 0.0
    %4969 = vmatprep.mubr.f32.mxu0 0.0
    %4970 = vmatmul.mubr.f32.gmra.mrb[0].mxu0 %v4767
    %v4971 = vpop.f32.mrb[0].mxu0
    %v4972 = vadd.f32 0.0, %v4971
    %v4973 = vpop.f32.mrb[0].mxu0
    %v4974 = vadd.f32 0.0, %v4973
    %4975 = vdwg.mxu0
    %v4976 = vld [vmem:[%s9] sm:$0xff]
    %v4977 = vld [vmem:[%s9 + $0x8] sm:$0xff]
    %v4978 = vld [vmem:[%s9 + $0x10] sm:$0xff]
    %v4979 = vld [vmem:[%s9 + $0x18] sm:$0xff]
    %v4980 = vld [vmem:[%s9 + $0x20] sm:$0xff]
    %v4981 = vld [vmem:[%s9 + $0x28] sm:$0xff]
    %v4982 = vld [vmem:[%s9 + $0x30] sm:$0xff]
    %v4983 = vld [vmem:[%s9 + $0x38] sm:$0xff]
    %v4984 = vld [vmem:[%s9 + $0x40] sm:$0xff]
    %v4985 = vld [vmem:[%s9 + $0x48] sm:$0xff]
    %v4986 = vld [vmem:[%s9 + $0x50] sm:$0xff]
    %v4987 = vld [vmem:[%s9 + $0x58] sm:$0xff]
    %v4988 = vld [vmem:[%s9 + $0x60] sm:$0xff]
    %v4989 = vld [vmem:[%s9 + $0x68] sm:$0xff]
    %v4990 = vld [vmem:[%s9 + $0x70] sm:$0xff]
    %v4991 = vld [vmem:[%s9 + $0x78] sm:$0xff]
    %4992 = vmatprep.subr.mxu0 0.0
    %4993 = vmatpush1.msra.mxu0 %v4976
    %4994 = vmatprep.subr.mxu0 0.0
    %4995 = vmatpush1.msra.mxu0 %v4977
    %4996 = vmatprep.subr.mxu0 0.0
    %4997 = vmatpush1.msra.mxu0 %v4978
    %4998 = vmatprep.subr.mxu0 0.0
    %4999 = vmatpush1.msra.mxu0 %v4979
    %5000 = vmatprep.subr.mxu0 0.0
    %5001 = vmatpush1.msra.mxu0 %v4980
    %5002 = vmatprep.subr.mxu0 0.0
    %5003 = vmatpush1.msra.mxu0 %v4981
    %5004 = vmatprep.subr.mxu0 0.0
    %5005 = vmatpush1.msra.mxu0 %v4982
    %5006 = vmatprep.subr.mxu0 0.0
    %5007 = vmatpush1.msra.mxu0 %v4983
    %5008 = vmatprep.subr.mxu0 0.0
    %5009 = vmatpush1.msra.mxu0 %v4984
    %5010 = vmatprep.subr.mxu0 0.0
    %5011 = vmatpush1.msra.mxu0 %v4985
    %5012 = vmatprep.subr.mxu0 0.0
    %5013 = vmatpush1.msra.mxu0 %v4986
    %5014 = vmatprep.subr.mxu0 0.0
    %5015 = vmatpush1.msra.mxu0 %v4987
    %5016 = vmatprep.subr.mxu0 0.0
    %5017 = vmatpush1.msra.mxu0 %v4988
    %5018 = vmatprep.subr.mxu0 0.0
    %5019 = vmatpush1.msra.mxu0 %v4989
    %5020 = vmatprep.subr.mxu0 0.0
    %5021 = vmatpush1.msra.mxu0 %v4990
    %5022 = vmatprep.subr.mxu0 0.0
    %5023 = vmatpush1.msra.mxu0 %v4991
    %5024 = vmatprep.subr.mxu0 0.0
    %5025 = vmatpush1.msra.mxu0 0.0
    %5026 = vmatprep.subr.mxu0 0.0
    %5027 = vmatpush1.msra.mxu0 0.0
    %5028 = vmatprep.subr.mxu0 0.0
    %5029 = vmatpush1.msra.mxu0 0.0
    %5030 = vmatprep.subr.mxu0 0.0
    %5031 = vmatpush1.msra.mxu0 0.0
    %5032 = vmatprep.subr.mxu0 0.0
    %5033 = vmatpush1.msra.mxu0 0.0
    %5034 = vmatprep.subr.mxu0 0.0
    %5035 = vmatpush1.msra.mxu0 0.0
    %5036 = vmatprep.subr.mxu0 0.0
    %5037 = vmatpush1.msra.mxu0 0.0
    %5038 = vmatprep.subr.mxu0 0.0
    %5039 = vmatpush1.msra.mxu0 0.0
    %5040 = vmatprep.subr.mxu0 0.0
    %5041 = vmatpush1.msra.mxu0 0.0
    %5042 = vmatprep.subr.mxu0 0.0
    %5043 = vmatpush1.msra.mxu0 0.0
    %5044 = vmatprep.subr.mxu0 0.0
    %5045 = vmatpush1.msra.mxu0 0.0
    %5046 = vmatprep.subr.mxu0 0.0
    %5047 = vmatpush1.msra.mxu0 0.0
    %5048 = vmatprep.subr.mxu0 0.0
    %5049 = vmatpush1.msra.mxu0 0.0
    %5050 = vmatprep.subr.mxu0 0.0
    %5051 = vmatpush1.msra.mxu0 0.0
    %5052 = vmatprep.subr.mxu0 0.0
    %5053 = vmatpush1.msra.mxu0 0.0
    %5054 = vmatprep.subr.mxu0 0.0
    %5055 = vmatpush1.msra.mxu0 0.0
    %5056 = vmatprep.mubr.f32.mxu0 0.0
    %5057 = vmatmul.mubr.f32.gmra.mrb[0].mxu0 %v4765
    %v5058 = vpop.f32.mrb[0].mxu0
    %v5059 = vadd.f32 0.0, %v5058
    %v5060 = vpop.f32.mrb[0].mxu0
    %5061 = vdwg.mxu0
    %v5062 = vadd.f32 %v3702, %v5059
    %v5063 = vtanh.pop %v5062
    %v5064 = vsub.f32 %v4765, %v5063
    %v5065 = vmul.f32 %v5063, %v1860
    %v5066 = vadd.f32 %v5064, %v5065
    %v5067 = vadd.f32 %v3685, %v4901
    %v5068 = vxor.u32 %v5067, 2147483648
    %v5069 = vmul.f32 %v5068, 1.442695
    %v5070 = vpow.pop %v5069
    %v5071 = vadd.f32 %v5070, 1.0
    %v5072 = vrcp.pop %v5071
    %v5073 = vmul.f32 1.0, %v5072
    %v5074 = vrot.slane %v3685, 2
    %v5076 = vadd.f32 %v5074, %v4903
    %v5077 = vxor.u32 %v5076, 2147483648
    %v5078 = vmul.f32 %v5077, 1.442695
    %v5079 = vpow.pop %v5078
    %v5080 = vadd.f32 %v5079, 1.0
    %v5081 = vrcp.pop %v5080
    %v5082 = vmul.f32 1.0, %v5081
    %v5083 = vrot.slane %v3685, 4
    %v5085 = vadd.f32 %v5083, %v4972
    %v5086 = vxor.u32 %v5085, 2147483648
    %v5087 = vmul.f32 %v5086, 1.442695
    %v5088 = vpow.pop %v5087
    %v5089 = vadd.f32 %v5088, 1.0
    %v5090 = vrcp.pop %v5089
    %v5091 = vmul.f32 1.0, %v5090
    %v5092 = vrot.slane %v3685, 6
    %v5094 = vadd.f32 %v5092, %v4974
    %v5095 = vtanh.pop %v5094
    %v5096 = vmul.f32 %v5082, %v5066
    %v5097 = vmul.f32 %v5073, %v5095
    %v5098 = vadd.f32 %v5096, %v5097
    %v5099 = vtanh.pop %v5098
    %v5100 = vmul.f32 %v5091, %v5099
    %s5101 = scalar_lea.vmem %s14, 6
    %5102 = vst [vmem:[%s5101] sm:$0x3] %v5100
    %v5103 = vld [vmem:[%s8] sm:$0xff]
    %v5104 = vld [vmem:[%s8 + $0x8] sm:$0xff]
    %v5105 = vld [vmem:[%s8 + $0x10] sm:$0xff]
    %v5106 = vld [vmem:[%s8 + $0x18] sm:$0xff]
    %v5107 = vld [vmem:[%s8 + $0x20] sm:$0xff]
    %v5108 = vld [vmem:[%s8 + $0x28] sm:$0xff]
    %v5109 = vld [vmem:[%s8 + $0x30] sm:$0xff]
    %v5110 = vld [vmem:[%s8 + $0x38] sm:$0xff]
    %v5111 = vld [vmem:[%s8 + $0x40] sm:$0xff]
    %v5112 = vld [vmem:[%s8 + $0x48] sm:$0xff]
    %v5113 = vld [vmem:[%s8 + $0x50] sm:$0xff]
    %v5114 = vld [vmem:[%s8 + $0x58] sm:$0xff]
    %v5115 = vld [vmem:[%s8 + $0x60] sm:$0xff]
    %v5116 = vld [vmem:[%s8 + $0x68] sm:$0xff]
    %v5117 = vld [vmem:[%s8 + $0x70] sm:$0xff]
    %v5118 = vld [vmem:[%s8 + $0x78] sm:$0xff]
    %v5119 = vld [vmem:[%s8 + $0x80] sm:$0xff]
    %v5120 = vld [vmem:[%s8 + $0x88] sm:$0xff]
    %v5121 = vld [vmem:[%s8 + $0x90] sm:$0xff]
    %v5122 = vld [vmem:[%s8 + $0x98] sm:$0xff]
    %v5123 = vld [vmem:[%s8 + $0xa0] sm:$0xff]
    %v5124 = vld [vmem:[%s8 + $0xa8] sm:$0xff]
    %v5125 = vld [vmem:[%s8 + $0xb0] sm:$0xff]
    %v5126 = vld [vmem:[%s8 + $0xb8] sm:$0xff]
    %v5127 = vld [vmem:[%s8 + $0xc0] sm:$0xff]
    %v5128 = vld [vmem:[%s8 + $0xc8] sm:$0xff]
    %v5129 = vld [vmem:[%s8 + $0xd0] sm:$0xff]
    %v5130 = vld [vmem:[%s8 + $0xd8] sm:$0xff]
    %v5131 = vld [vmem:[%s8 + $0xe0] sm:$0xff]
    %v5132 = vld [vmem:[%s8 + $0xe8] sm:$0xff]
    %v5133 = vld [vmem:[%s8 + $0xf0] sm:$0xff]
    %v5134 = vld [vmem:[%s8 + $0xf8] sm:$0xff]
    %v5135 = vld [vmem:[%s8 + $0x100] sm:$0xff]
    %v5136 = vld [vmem:[%s8 + $0x108] sm:$0xff]
    %v5137 = vld [vmem:[%s8 + $0x110] sm:$0xff]
    %v5138 = vld [vmem:[%s8 + $0x118] sm:$0xff]
    %v5139 = vld [vmem:[%s8 + $0x120] sm:$0xff]
    %v5140 = vld [vmem:[%s8 + $0x128] sm:$0xff]
    %v5141 = vld [vmem:[%s8 + $0x130] sm:$0xff]
    %v5142 = vld [vmem:[%s8 + $0x138] sm:$0xff]
    %v5143 = vld [vmem:[%s8 + $0x140] sm:$0xff]
    %v5144 = vld [vmem:[%s8 + $0x148] sm:$0xff]
    %v5145 = vld [vmem:[%s8 + $0x150] sm:$0xff]
    %v5146 = vld [vmem:[%s8 + $0x158] sm:$0xff]
    %v5147 = vld [vmem:[%s8 + $0x160] sm:$0xff]
    %v5148 = vld [vmem:[%s8 + $0x168] sm:$0xff]
    %v5149 = vld [vmem:[%s8 + $0x170] sm:$0xff]
    %v5150 = vld [vmem:[%s8 + $0x178] sm:$0xff]
    %v5151 = vld [vmem:[%s8 + $0x180] sm:$0xff]
    %v5152 = vld [vmem:[%s8 + $0x188] sm:$0xff]
    %v5153 = vld [vmem:[%s8 + $0x190] sm:$0xff]
    %v5154 = vld [vmem:[%s8 + $0x198] sm:$0xff]
    %v5155 = vld [vmem:[%s8 + $0x1a0] sm:$0xff]
    %v5156 = vld [vmem:[%s8 + $0x1a8] sm:$0xff]
    %v5157 = vld [vmem:[%s8 + $0x1b0] sm:$0xff]
    %v5158 = vld [vmem:[%s8 + $0x1b8] sm:$0xff]
    %v5159 = vld [vmem:[%s8 + $0x1c0] sm:$0xff]
    %v5160 = vld [vmem:[%s8 + $0x1c8] sm:$0xff]
    %v5161 = vld [vmem:[%s8 + $0x1d0] sm:$0xff]
    %v5162 = vld [vmem:[%s8 + $0x1d8] sm:$0xff]
    %v5163 = vld [vmem:[%s8 + $0x1e0] sm:$0xff]
    %v5164 = vld [vmem:[%s8 + $0x1e8] sm:$0xff]
    %v5165 = vld [vmem:[%s8 + $0x1f0] sm:$0xff]
    %v5166 = vld [vmem:[%s8 + $0x1f8] sm:$0xff]
    %5167 = vmatprep.subr.mxu0 %v5104
    %5168 = vmatpush1.msra.mxu0 %v5103
    %5169 = vmatprep.subr.mxu0 %v5108
    %5170 = vmatpush1.msra.mxu0 %v5107
    %5171 = vmatprep.subr.mxu0 %v5112
    %5172 = vmatpush1.msra.mxu0 %v5111
    %5173 = vmatprep.subr.mxu0 %v5116
    %5174 = vmatpush1.msra.mxu0 %v5115
    %5175 = vmatprep.subr.mxu0 %v5120
    %5176 = vmatpush1.msra.mxu0 %v5119
    %5177 = vmatprep.subr.mxu0 %v5124
    %5178 = vmatpush1.msra.mxu0 %v5123
    %5179 = vmatprep.subr.mxu0 %v5128
    %5180 = vmatpush1.msra.mxu0 %v5127
    %5181 = vmatprep.subr.mxu0 %v5132
    %5182 = vmatpush1.msra.mxu0 %v5131
    %5183 = vmatprep.subr.mxu0 %v5136
    %5184 = vmatpush1.msra.mxu0 %v5135
    %5185 = vmatprep.subr.mxu0 %v5140
    %5186 = vmatpush1.msra.mxu0 %v5139
    %5187 = vmatprep.subr.mxu0 %v5144
    %5188 = vmatpush1.msra.mxu0 %v5143
    %5189 = vmatprep.subr.mxu0 %v5148
    %5190 = vmatpush1.msra.mxu0 %v5147
    %5191 = vmatprep.subr.mxu0 %v5152
    %5192 = vmatpush1.msra.mxu0 %v5151
    %5193 = vmatprep.subr.mxu0 %v5156
    %5194 = vmatpush1.msra.mxu0 %v5155
    %5195 = vmatprep.subr.mxu0 %v5160
    %5196 = vmatpush1.msra.mxu0 %v5159
    %5197 = vmatprep.subr.mxu0 %v5164
    %5198 = vmatpush1.msra.mxu0 %v5163
    %5199 = vmatprep.subr.mxu0 0.0
    %5200 = vmatpush1.msra.mxu0 0.0
    %5201 = vmatprep.subr.mxu0 0.0
    %5202 = vmatpush1.msra.mxu0 0.0
    %5203 = vmatprep.subr.mxu0 0.0
    %5204 = vmatpush1.msra.mxu0 0.0
    %5205 = vmatprep.subr.mxu0 0.0
    %5206 = vmatpush1.msra.mxu0 0.0
    %5207 = vmatprep.subr.mxu0 0.0
    %5208 = vmatpush1.msra.mxu0 0.0
    %5209 = vmatprep.subr.mxu0 0.0
    %5210 = vmatpush1.msra.mxu0 0.0
    %5211 = vmatprep.subr.mxu0 0.0
    %5212 = vmatpush1.msra.mxu0 0.0
    %5213 = vmatprep.subr.mxu0 0.0
    %5214 = vmatpush1.msra.mxu0 0.0
    %5215 = vmatprep.subr.mxu0 0.0
    %5216 = vmatpush1.msra.mxu0 0.0
    %5217 = vmatprep.subr.mxu0 0.0
    %5218 = vmatpush1.msra.mxu0 0.0
    %5219 = vmatprep.subr.mxu0 0.0
    %5220 = vmatpush1.msra.mxu0 0.0
    %5221 = vmatprep.subr.mxu0 0.0
    %5222 = vmatpush1.msra.mxu0 0.0
    %5223 = vmatprep.subr.mxu0 0.0
    %5224 = vmatpush1.msra.mxu0 0.0
    %5225 = vmatprep.subr.mxu0 0.0
    %5226 = vmatpush1.msra.mxu0 0.0
    %5227 = vmatprep.subr.mxu0 0.0
    %5228 = vmatpush1.msra.mxu0 0.0
    %5229 = vmatprep.subr.mxu0 0.0
    %5230 = vmatpush1.msra.mxu0 0.0
    %5231 = vmatprep.mubr.f32.mxu0 0.0
    %5232 = vmatmul.mubr.f32.gmra.mrb[0].mxu0 %v5100
    %v5233 = vpop.f32.mrb[0].mxu0
    %v5234 = vadd.f32 0.0, %v5233
    %v5235 = vpop.f32.mrb[0].mxu0
    %v5236 = vadd.f32 0.0, %v5235
    %5237 = vdwg.mxu0
    %5238 = vmatprep.subr.mxu0 %v5106
    %5239 = vmatpush1.msra.mxu0 %v5105
    %5240 = vmatprep.subr.mxu0 %v5110
    %5241 = vmatpush1.msra.mxu0 %v5109
    %5242 = vmatprep.subr.mxu0 %v5114
    %5243 = vmatpush1.msra.mxu0 %v5113
    %5244 = vmatprep.subr.mxu0 %v5118
    %5245 = vmatpush1.msra.mxu0 %v5117
    %5246 = vmatprep.subr.mxu0 %v5122
    %5247 = vmatpush1.msra.mxu0 %v5121
    %5248 = vmatprep.subr.mxu0 %v5126
    %5249 = vmatpush1.msra.mxu0 %v5125
    %5250 = vmatprep.subr.mxu0 %v5130
    %5251 = vmatpush1.msra.mxu0 %v5129
    %5252 = vmatprep.subr.mxu0 %v5134
    %5253 = vmatpush1.msra.mxu0 %v5133
    %5254 = vmatprep.subr.mxu0 %v5138
    %5255 = vmatpush1.msra.mxu0 %v5137
    %5256 = vmatprep.subr.mxu0 %v5142
    %5257 = vmatpush1.msra.mxu0 %v5141
    %5258 = vmatprep.subr.mxu0 %v5146
    %5259 = vmatpush1.msra.mxu0 %v5145
    %5260 = vmatprep.subr.mxu0 %v5150
    %5261 = vmatpush1.msra.mxu0 %v5149
    %5262 = vmatprep.subr.mxu0 %v5154
    %5263 = vmatpush1.msra.mxu0 %v5153
    %5264 = vmatprep.subr.mxu0 %v5158
    %5265 = vmatpush1.msra.mxu0 %v5157
    %5266 = vmatprep.subr.mxu0 %v5162
    %5267 = vmatpush1.msra.mxu0 %v5161
    %5268 = vmatprep.subr.mxu0 %v5166
    %5269 = vmatpush1.msra.mxu0 %v5165
    %5270 = vmatprep.subr.mxu0 0.0
    %5271 = vmatpush1.msra.mxu0 0.0
    %5272 = vmatprep.subr.mxu0 0.0
    %5273 = vmatpush1.msra.mxu0 0.0
    %5274 = vmatprep.subr.mxu0 0.0
    %5275 = vmatpush1.msra.mxu0 0.0
    %5276 = vmatprep.subr.mxu0 0.0
    %5277 = vmatpush1.msra.mxu0 0.0
    %5278 = vmatprep.subr.mxu0 0.0
    %5279 = vmatpush1.msra.mxu0 0.0
    %5280 = vmatprep.subr.mxu0 0.0
    %5281 = vmatpush1.msra.mxu0 0.0
    %5282 = vmatprep.subr.mxu0 0.0
    %5283 = vmatpush1.msra.mxu0 0.0
    %5284 = vmatprep.subr.mxu0 0.0
    %5285 = vmatpush1.msra.mxu0 0.0
    %5286 = vmatprep.subr.mxu0 0.0
    %5287 = vmatpush1.msra.mxu0 0.0
    %5288 = vmatprep.subr.mxu0 0.0
    %5289 = vmatpush1.msra.mxu0 0.0
    %5290 = vmatprep.subr.mxu0 0.0
    %5291 = vmatpush1.msra.mxu0 0.0
    %5292 = vmatprep.subr.mxu0 0.0
    %5293 = vmatpush1.msra.mxu0 0.0
    %5294 = vmatprep.subr.mxu0 0.0
    %5295 = vmatpush1.msra.mxu0 0.0
    %5296 = vmatprep.subr.mxu0 0.0
    %5297 = vmatpush1.msra.mxu0 0.0
    %5298 = vmatprep.subr.mxu0 0.0
    %5299 = vmatpush1.msra.mxu0 0.0
    %5300 = vmatprep.subr.mxu0 0.0
    %5301 = vmatpush1.msra.mxu0 0.0
    %5302 = vmatprep.mubr.f32.mxu0 0.0
    %5303 = vmatmul.mubr.f32.gmra.mrb[0].mxu0 %v5100
    %v5304 = vpop.f32.mrb[0].mxu0
    %v5305 = vadd.f32 0.0, %v5304
    %v5306 = vpop.f32.mrb[0].mxu0
    %v5307 = vadd.f32 0.0, %v5306
    %5308 = vdwg.mxu0
    %v5309 = vld [vmem:[%s9] sm:$0xff]
    %v5310 = vld [vmem:[%s9 + $0x8] sm:$0xff]
    %v5311 = vld [vmem:[%s9 + $0x10] sm:$0xff]
    %v5312 = vld [vmem:[%s9 + $0x18] sm:$0xff]
    %v5313 = vld [vmem:[%s9 + $0x20] sm:$0xff]
    %v5314 = vld [vmem:[%s9 + $0x28] sm:$0xff]
    %v5315 = vld [vmem:[%s9 + $0x30] sm:$0xff]
    %v5316 = vld [vmem:[%s9 + $0x38] sm:$0xff]
    %v5317 = vld [vmem:[%s9 + $0x40] sm:$0xff]
    %v5318 = vld [vmem:[%s9 + $0x48] sm:$0xff]
    %v5319 = vld [vmem:[%s9 + $0x50] sm:$0xff]
    %v5320 = vld [vmem:[%s9 + $0x58] sm:$0xff]
    %v5321 = vld [vmem:[%s9 + $0x60] sm:$0xff]
    %v5322 = vld [vmem:[%s9 + $0x68] sm:$0xff]
    %v5323 = vld [vmem:[%s9 + $0x70] sm:$0xff]
    %v5324 = vld [vmem:[%s9 + $0x78] sm:$0xff]
    %5325 = vmatprep.subr.mxu0 0.0
    %5326 = vmatpush1.msra.mxu0 %v5309
    %5327 = vmatprep.subr.mxu0 0.0
    %5328 = vmatpush1.msra.mxu0 %v5310
    %5329 = vmatprep.subr.mxu0 0.0
    %5330 = vmatpush1.msra.mxu0 %v5311
    %5331 = vmatprep.subr.mxu0 0.0
    %5332 = vmatpush1.msra.mxu0 %v5312
    %5333 = vmatprep.subr.mxu0 0.0
    %5334 = vmatpush1.msra.mxu0 %v5313
    %5335 = vmatprep.subr.mxu0 0.0
    %5336 = vmatpush1.msra.mxu0 %v5314
    %5337 = vmatprep.subr.mxu0 0.0
    %5338 = vmatpush1.msra.mxu0 %v5315
    %5339 = vmatprep.subr.mxu0 0.0
    %5340 = vmatpush1.msra.mxu0 %v5316
    %5341 = vmatprep.subr.mxu0 0.0
    %5342 = vmatpush1.msra.mxu0 %v5317
    %5343 = vmatprep.subr.mxu0 0.0
    %5344 = vmatpush1.msra.mxu0 %v5318
    %5345 = vmatprep.subr.mxu0 0.0
    %5346 = vmatpush1.msra.mxu0 %v5319
    %5347 = vmatprep.subr.mxu0 0.0
    %5348 = vmatpush1.msra.mxu0 %v5320
    %5349 = vmatprep.subr.mxu0 0.0
    %5350 = vmatpush1.msra.mxu0 %v5321
    %5351 = vmatprep.subr.mxu0 0.0
    %5352 = vmatpush1.msra.mxu0 %v5322
    %5353 = vmatprep.subr.mxu0 0.0
    %5354 = vmatpush1.msra.mxu0 %v5323
    %5355 = vmatprep.subr.mxu0 0.0
    %5356 = vmatpush1.msra.mxu0 %v5324
    %5357 = vmatprep.subr.mxu0 0.0
    %5358 = vmatpush1.msra.mxu0 0.0
    %5359 = vmatprep.subr.mxu0 0.0
    %5360 = vmatpush1.msra.mxu0 0.0
    %5361 = vmatprep.subr.mxu0 0.0
    %5362 = vmatpush1.msra.mxu0 0.0
    %5363 = vmatprep.subr.mxu0 0.0
    %5364 = vmatpush1.msra.mxu0 0.0
    %5365 = vmatprep.subr.mxu0 0.0
    %5366 = vmatpush1.msra.mxu0 0.0
    %5367 = vmatprep.subr.mxu0 0.0
    %5368 = vmatpush1.msra.mxu0 0.0
    %5369 = vmatprep.subr.mxu0 0.0
    %5370 = vmatpush1.msra.mxu0 0.0
    %5371 = vmatprep.subr.mxu0 0.0
    %5372 = vmatpush1.msra.mxu0 0.0
    %5373 = vmatprep.subr.mxu0 0.0
    %5374 = vmatpush1.msra.mxu0 0.0
    %5375 = vmatprep.subr.mxu0 0.0
    %5376 = vmatpush1.msra.mxu0 0.0
    %5377 = vmatprep.subr.mxu0 0.0
    %5378 = vmatpush1.msra.mxu0 0.0
    %5379 = vmatprep.subr.mxu0 0.0
    %5380 = vmatpush1.msra.mxu0 0.0
    %5381 = vmatprep.subr.mxu0 0.0
    %5382 = vmatpush1.msra.mxu0 0.0
    %5383 = vmatprep.subr.mxu0 0.0
    %5384 = vmatpush1.msra.mxu0 0.0
    %5385 = vmatprep.subr.mxu0 0.0
    %5386 = vmatpush1.msra.mxu0 0.0
    %5387 = vmatprep.subr.mxu0 0.0
    %5388 = vmatpush1.msra.mxu0 0.0
    %5389 = vmatprep.mubr.f32.mxu0 0.0
    %5390 = vmatmul.mubr.f32.gmra.mrb[0].mxu0 %v5098
    %v5391 = vpop.f32.mrb[0].mxu0
    %v5392 = vadd.f32 0.0, %v5391
    %v5393 = vpop.f32.mrb[0].mxu0
    %5394 = vdwg.mxu0
    %v5395 = vadd.f32 %v3746, %v5392
    %v5396 = vtanh.pop %v5395
    %v5397 = vsub.f32 %v5098, %v5396
    %v5398 = vmul.f32 %v5396, %v2198
    %v5399 = vadd.f32 %v5397, %v5398
    %v5400 = vadd.f32 %v3735, %v5234
    %v5401 = vxor.u32 %v5400, 2147483648
    %v5402 = vmul.f32 %v5401, 1.442695
    %v5403 = vpow.pop %v5402
    %v5404 = vadd.f32 %v5403, 1.0
    %v5405 = vrcp.pop %v5404
    %v5406 = vmul.f32 1.0, %v5405
    %v5407 = vrot.slane %v3735, 2
    %v5409 = vadd.f32 %v5407, %v5236
    %v5410 = vxor.u32 %v5409, 2147483648
    %v5411 = vmul.f32 %v5410, 1.442695
    %v5412 = vpow.pop %v5411
    %v5413 = vadd.f32 %v5412, 1.0
    %v5414 = vrcp.pop %v5413
    %v5415 = vmul.f32 1.0, %v5414
    %v5416 = vrot.slane %v3735, 4
    %v5418 = vadd.f32 %v5416, %v5305
    %v5419 = vxor.u32 %v5418, 2147483648
    %v5420 = vmul.f32 %v5419, 1.442695
    %v5421 = vpow.pop %v5420
    %v5422 = vadd.f32 %v5421, 1.0
    %v5423 = vrcp.pop %v5422
    %v5424 = vmul.f32 1.0, %v5423
    %v5425 = vrot.slane %v3735, 6
    %v5427 = vadd.f32 %v5425, %v5307
    %v5428 = vtanh.pop %v5427
    %v5429 = vmul.f32 %v5415, %v5399
    %v5430 = vmul.f32 %v5406, %v5428
    %v5431 = vadd.f32 %v5429, %v5430
    %v5432 = vtanh.pop %v5431
    %v5433 = vmul.f32 %v5424, %v5432
    %s5434 = scalar_lea.vmem %s14, 8
    %5435 = vst [vmem:[%s5434] sm:$0x3] %v5433
    %v5436 = vld [vmem:[%s8] sm:$0xff]
    %v5437 = vld [vmem:[%s8 + $0x8] sm:$0xff]
    %v5438 = vld [vmem:[%s8 + $0x10] sm:$0xff]
    %v5439 = vld [vmem:[%s8 + $0x18] sm:$0xff]
    %v5440 = vld [vmem:[%s8 + $0x20] sm:$0xff]
    %v5441 = vld [vmem:[%s8 + $0x28] sm:$0xff]
    %v5442 = vld [vmem:[%s8 + $0x30] sm:$0xff]
    %v5443 = vld [vmem:[%s8 + $0x38] sm:$0xff]
    %v5444 = vld [vmem:[%s8 + $0x40] sm:$0xff]
    %v5445 = vld [vmem:[%s8 + $0x48] sm:$0xff]
    %v5446 = vld [vmem:[%s8 + $0x50] sm:$0xff]
    %v5447 = vld [vmem:[%s8 + $0x58] sm:$0xff]
    %v5448 = vld [vmem:[%s8 + $0x60] sm:$0xff]
    %v5449 = vld [vmem:[%s8 + $0x68] sm:$0xff]
    %v5450 = vld [vmem:[%s8 + $0x70] sm:$0xff]
    %v5451 = vld [vmem:[%s8 + $0x78] sm:$0xff]
    %v5452 = vld [vmem:[%s8 + $0x80] sm:$0xff]
    %v5453 = vld [vmem:[%s8 + $0x88] sm:$0xff]
    %v5454 = vld [vmem:[%s8 + $0x90] sm:$0xff]
    %v5455 = vld [vmem:[%s8 + $0x98] sm:$0xff]
    %v5456 = vld [vmem:[%s8 + $0xa0] sm:$0xff]
    %v5457 = vld [vmem:[%s8 + $0xa8] sm:$0xff]
    %v5458 = vld [vmem:[%s8 + $0xb0] sm:$0xff]
    %v5459 = vld [vmem:[%s8 + $0xb8] sm:$0xff]
    %v5460 = vld [vmem:[%s8 + $0xc0] sm:$0xff]
    %v5461 = vld [vmem:[%s8 + $0xc8] sm:$0xff]
    %v5462 = vld [vmem:[%s8 + $0xd0] sm:$0xff]
    %v5463 = vld [vmem:[%s8 + $0xd8] sm:$0xff]
    %v5464 = vld [vmem:[%s8 + $0xe0] sm:$0xff]
    %v5465 = vld [vmem:[%s8 + $0xe8] sm:$0xff]
    %v5466 = vld [vmem:[%s8 + $0xf0] sm:$0xff]
    %v5467 = vld [vmem:[%s8 + $0xf8] sm:$0xff]
    %v5468 = vld [vmem:[%s8 + $0x100] sm:$0xff]
    %v5469 = vld [vmem:[%s8 + $0x108] sm:$0xff]
    %v5470 = vld [vmem:[%s8 + $0x110] sm:$0xff]
    %v5471 = vld [vmem:[%s8 + $0x118] sm:$0xff]
    %v5472 = vld [vmem:[%s8 + $0x120] sm:$0xff]
    %v5473 = vld [vmem:[%s8 + $0x128] sm:$0xff]
    %v5474 = vld [vmem:[%s8 + $0x130] sm:$0xff]
    %v5475 = vld [vmem:[%s8 + $0x138] sm:$0xff]
    %v5476 = vld [vmem:[%s8 + $0x140] sm:$0xff]
    %v5477 = vld [vmem:[%s8 + $0x148] sm:$0xff]
    %v5478 = vld [vmem:[%s8 + $0x150] sm:$0xff]
    %v5479 = vld [vmem:[%s8 + $0x158] sm:$0xff]
    %v5480 = vld [vmem:[%s8 + $0x160] sm:$0xff]
    %v5481 = vld [vmem:[%s8 + $0x168] sm:$0xff]
    %v5482 = vld [vmem:[%s8 + $0x170] sm:$0xff]
    %v5483 = vld [vmem:[%s8 + $0x178] sm:$0xff]
    %v5484 = vld [vmem:[%s8 + $0x180] sm:$0xff]
    %v5485 = vld [vmem:[%s8 + $0x188] sm:$0xff]
    %v5486 = vld [vmem:[%s8 + $0x190] sm:$0xff]
    %v5487 = vld [vmem:[%s8 + $0x198] sm:$0xff]
    %v5488 = vld [vmem:[%s8 + $0x1a0] sm:$0xff]
    %v5489 = vld [vmem:[%s8 + $0x1a8] sm:$0xff]
    %v5490 = vld [vmem:[%s8 + $0x1b0] sm:$0xff]
    %v5491 = vld [vmem:[%s8 + $0x1b8] sm:$0xff]
    %v5492 = vld [vmem:[%s8 + $0x1c0] sm:$0xff]
    %v5493 = vld [vmem:[%s8 + $0x1c8] sm:$0xff]
    %v5494 = vld [vmem:[%s8 + $0x1d0] sm:$0xff]
    %v5495 = vld [vmem:[%s8 + $0x1d8] sm:$0xff]
    %v5496 = vld [vmem:[%s8 + $0x1e0] sm:$0xff]
    %v5497 = vld [vmem:[%s8 + $0x1e8] sm:$0xff]
    %v5498 = vld [vmem:[%s8 + $0x1f0] sm:$0xff]
    %v5499 = vld [vmem:[%s8 + $0x1f8] sm:$0xff]
    %5500 = vmatprep.subr.mxu0 %v5437
    %5501 = vmatpush1.msra.mxu0 %v5436
    %5502 = vmatprep.subr.mxu0 %v5441
    %5503 = vmatpush1.msra.mxu0 %v5440
    %5504 = vmatprep.subr.mxu0 %v5445
    %5505 = vmatpush1.msra.mxu0 %v5444
    %5506 = vmatprep.subr.mxu0 %v5449
    %5507 = vmatpush1.msra.mxu0 %v5448
    %5508 = vmatprep.subr.mxu0 %v5453
    %5509 = vmatpush1.msra.mxu0 %v5452
    %5510 = vmatprep.subr.mxu0 %v5457
    %5511 = vmatpush1.msra.mxu0 %v5456
    %5512 = vmatprep.subr.mxu0 %v5461
    %5513 = vmatpush1.msra.mxu0 %v5460
    %5514 = vmatprep.subr.mxu0 %v5465
    %5515 = vmatpush1.msra.mxu0 %v5464
    %5516 = vmatprep.subr.mxu0 %v5469
    %5517 = vmatpush1.msra.mxu0 %v5468
    %5518 = vmatprep.subr.mxu0 %v5473
    %5519 = vmatpush1.msra.mxu0 %v5472
    %5520 = vmatprep.subr.mxu0 %v5477
    %5521 = vmatpush1.msra.mxu0 %v5476
    %5522 = vmatprep.subr.mxu0 %v5481
    %5523 = vmatpush1.msra.mxu0 %v5480
    %5524 = vmatprep.subr.mxu0 %v5485
    %5525 = vmatpush1.msra.mxu0 %v5484
    %5526 = vmatprep.subr.mxu0 %v5489
    %5527 = vmatpush1.msra.mxu0 %v5488
    %5528 = vmatprep.subr.mxu0 %v5493
    %5529 = vmatpush1.msra.mxu0 %v5492
    %5530 = vmatprep.subr.mxu0 %v5497
    %5531 = vmatpush1.msra.mxu0 %v5496
    %5532 = vmatprep.subr.mxu0 0.0
    %5533 = vmatpush1.msra.mxu0 0.0
    %5534 = vmatprep.subr.mxu0 0.0
    %5535 = vmatpush1.msra.mxu0 0.0
    %5536 = vmatprep.subr.mxu0 0.0
    %5537 = vmatpush1.msra.mxu0 0.0
    %5538 = vmatprep.subr.mxu0 0.0
    %5539 = vmatpush1.msra.mxu0 0.0
    %5540 = vmatprep.subr.mxu0 0.0
    %5541 = vmatpush1.msra.mxu0 0.0
    %5542 = vmatprep.subr.mxu0 0.0
    %5543 = vmatpush1.msra.mxu0 0.0
    %5544 = vmatprep.subr.mxu0 0.0
    %5545 = vmatpush1.msra.mxu0 0.0
    %5546 = vmatprep.subr.mxu0 0.0
    %5547 = vmatpush1.msra.mxu0 0.0
    %5548 = vmatprep.subr.mxu0 0.0
    %5549 = vmatpush1.msra.mxu0 0.0
    %5550 = vmatprep.subr.mxu0 0.0
    %5551 = vmatpush1.msra.mxu0 0.0
    %5552 = vmatprep.subr.mxu0 0.0
    %5553 = vmatpush1.msra.mxu0 0.0
    %5554 = vmatprep.subr.mxu0 0.0
    %5555 = vmatpush1.msra.mxu0 0.0
    %5556 = vmatprep.subr.mxu0 0.0
    %5557 = vmatpush1.msra.mxu0 0.0
    %5558 = vmatprep.subr.mxu0 0.0
    %5559 = vmatpush1.msra.mxu0 0.0
    %5560 = vmatprep.subr.mxu0 0.0
    %5561 = vmatpush1.msra.mxu0 0.0
    %5562 = vmatprep.subr.mxu0 0.0
    %5563 = vmatpush1.msra.mxu0 0.0
    %5564 = vmatprep.mubr.f32.mxu0 0.0
    %5565 = vmatmul.mubr.f32.gmra.mrb[0].mxu0 %v5433
    %v5566 = vpop.f32.mrb[0].mxu0
    %v5567 = vadd.f32 0.0, %v5566
    %v5568 = vpop.f32.mrb[0].mxu0
    %v5569 = vadd.f32 0.0, %v5568
    %5570 = vdwg.mxu0
    %5571 = vmatprep.subr.mxu0 %v5439
    %5572 = vmatpush1.msra.mxu0 %v5438
    %5573 = vmatprep.subr.mxu0 %v5443
    %5574 = vmatpush1.msra.mxu0 %v5442
    %5575 = vmatprep.subr.mxu0 %v5447
    %5576 = vmatpush1.msra.mxu0 %v5446
    %5577 = vmatprep.subr.mxu0 %v5451
    %5578 = vmatpush1.msra.mxu0 %v5450
    %5579 = vmatprep.subr.mxu0 %v5455
    %5580 = vmatpush1.msra.mxu0 %v5454
    %5581 = vmatprep.subr.mxu0 %v5459
    %5582 = vmatpush1.msra.mxu0 %v5458
    %5583 = vmatprep.subr.mxu0 %v5463
    %5584 = vmatpush1.msra.mxu0 %v5462
    %5585 = vmatprep.subr.mxu0 %v5467
    %5586 = vmatpush1.msra.mxu0 %v5466
    %5587 = vmatprep.subr.mxu0 %v5471
    %5588 = vmatpush1.msra.mxu0 %v5470
    %5589 = vmatprep.subr.mxu0 %v5475
    %5590 = vmatpush1.msra.mxu0 %v5474
    %5591 = vmatprep.subr.mxu0 %v5479
    %5592 = vmatpush1.msra.mxu0 %v5478
    %5593 = vmatprep.subr.mxu0 %v5483
    %5594 = vmatpush1.msra.mxu0 %v5482
    %5595 = vmatprep.subr.mxu0 %v5487
    %5596 = vmatpush1.msra.mxu0 %v5486
    %5597 = vmatprep.subr.mxu0 %v5491
    %5598 = vmatpush1.msra.mxu0 %v5490
    %5599 = vmatprep.subr.mxu0 %v5495
    %5600 = vmatpush1.msra.mxu0 %v5494
    %5601 = vmatprep.subr.mxu0 %v5499
    %5602 = vmatpush1.msra.mxu0 %v5498
    %5603 = vmatprep.subr.mxu0 0.0
    %5604 = vmatpush1.msra.mxu0 0.0
    %5605 = vmatprep.subr.mxu0 0.0
    %5606 = vmatpush1.msra.mxu0 0.0
    %5607 = vmatprep.subr.mxu0 0.0
    %5608 = vmatpush1.msra.mxu0 0.0
    %5609 = vmatprep.subr.mxu0 0.0
    %5610 = vmatpush1.msra.mxu0 0.0
    %5611 = vmatprep.subr.mxu0 0.0
    %5612 = vmatpush1.msra.mxu0 0.0
    %5613 = vmatprep.subr.mxu0 0.0
    %5614 = vmatpush1.msra.mxu0 0.0
    %5615 = vmatprep.subr.mxu0 0.0
    %5616 = vmatpush1.msra.mxu0 0.0
    %5617 = vmatprep.subr.mxu0 0.0
    %5618 = vmatpush1.msra.mxu0 0.0
    %5619 = vmatprep.subr.mxu0 0.0
    %5620 = vmatpush1.msra.mxu0 0.0
    %5621 = vmatprep.subr.mxu0 0.0
    %5622 = vmatpush1.msra.mxu0 0.0
    %5623 = vmatprep.subr.mxu0 0.0
    %5624 = vmatpush1.msra.mxu0 0.0
    %5625 = vmatprep.subr.mxu0 0.0
    %5626 = vmatpush1.msra.mxu0 0.0
    %5627 = vmatprep.subr.mxu0 0.0
    %5628 = vmatpush1.msra.mxu0 0.0
    %5629 = vmatprep.subr.mxu0 0.0
    %5630 = vmatpush1.msra.mxu0 0.0
    %5631 = vmatprep.subr.mxu0 0.0
    %5632 = vmatpush1.msra.mxu0 0.0
    %5633 = vmatprep.subr.mxu0 0.0
    %5634 = vmatpush1.msra.mxu0 0.0
    %5635 = vmatprep.mubr.f32.mxu0 0.0
    %5636 = vmatmul.mubr.f32.gmra.mrb[0].mxu0 %v5433
    %v5637 = vpop.f32.mrb[0].mxu0
    %v5638 = vadd.f32 0.0, %v5637
    %v5639 = vpop.f32.mrb[0].mxu0
    %v5640 = vadd.f32 0.0, %v5639
    %5641 = vdwg.mxu0
    %v5642 = vld [vmem:[%s9] sm:$0xff]
    %v5643 = vld [vmem:[%s9 + $0x8] sm:$0xff]
    %v5644 = vld [vmem:[%s9 + $0x10] sm:$0xff]
    %v5645 = vld [vmem:[%s9 + $0x18] sm:$0xff]
    %v5646 = vld [vmem:[%s9 + $0x20] sm:$0xff]
    %v5647 = vld [vmem:[%s9 + $0x28] sm:$0xff]
    %v5648 = vld [vmem:[%s9 + $0x30] sm:$0xff]
    %v5649 = vld [vmem:[%s9 + $0x38] sm:$0xff]
    %v5650 = vld [vmem:[%s9 + $0x40] sm:$0xff]
    %v5651 = vld [vmem:[%s9 + $0x48] sm:$0xff]
    %v5652 = vld [vmem:[%s9 + $0x50] sm:$0xff]
    %v5653 = vld [vmem:[%s9 + $0x58] sm:$0xff]
    %v5654 = vld [vmem:[%s9 + $0x60] sm:$0xff]
    %v5655 = vld [vmem:[%s9 + $0x68] sm:$0xff]
    %v5656 = vld [vmem:[%s9 + $0x70] sm:$0xff]
    %v5657 = vld [vmem:[%s9 + $0x78] sm:$0xff]
    %5658 = vmatprep.subr.mxu0 0.0
    %5659 = vmatpush1.msra.mxu0 %v5642
    %5660 = vmatprep.subr.mxu0 0.0
    %5661 = vmatpush1.msra.mxu0 %v5643
    %5662 = vmatprep.subr.mxu0 0.0
    %5663 = vmatpush1.msra.mxu0 %v5644
    %5664 = vmatprep.subr.mxu0 0.0
    %5665 = vmatpush1.msra.mxu0 %v5645
    %5666 = vmatprep.subr.mxu0 0.0
    %5667 = vmatpush1.msra.mxu0 %v5646
    %5668 = vmatprep.subr.mxu0 0.0
    %5669 = vmatpush1.msra.mxu0 %v5647
    %5670 = vmatprep.subr.mxu0 0.0
    %5671 = vmatpush1.msra.mxu0 %v5648
    %5672 = vmatprep.subr.mxu0 0.0
    %5673 = vmatpush1.msra.mxu0 %v5649
    %5674 = vmatprep.subr.mxu0 0.0
    %5675 = vmatpush1.msra.mxu0 %v5650
    %5676 = vmatprep.subr.mxu0 0.0
    %5677 = vmatpush1.msra.mxu0 %v5651
    %5678 = vmatprep.subr.mxu0 0.0
    %5679 = vmatpush1.msra.mxu0 %v5652
    %5680 = vmatprep.subr.mxu0 0.0
    %5681 = vmatpush1.msra.mxu0 %v5653
    %5682 = vmatprep.subr.mxu0 0.0
    %5683 = vmatpush1.msra.mxu0 %v5654
    %5684 = vmatprep.subr.mxu0 0.0
    %5685 = vmatpush1.msra.mxu0 %v5655
    %5686 = vmatprep.subr.mxu0 0.0
    %5687 = vmatpush1.msra.mxu0 %v5656
    %5688 = vmatprep.subr.mxu0 0.0
    %5689 = vmatpush1.msra.mxu0 %v5657
    %5690 = vmatprep.subr.mxu0 0.0
    %5691 = vmatpush1.msra.mxu0 0.0
    %5692 = vmatprep.subr.mxu0 0.0
    %5693 = vmatpush1.msra.mxu0 0.0
    %5694 = vmatprep.subr.mxu0 0.0
    %5695 = vmatpush1.msra.mxu0 0.0
    %5696 = vmatprep.subr.mxu0 0.0
    %5697 = vmatpush1.msra.mxu0 0.0
    %5698 = vmatprep.subr.mxu0 0.0
    %5699 = vmatpush1.msra.mxu0 0.0
    %5700 = vmatprep.subr.mxu0 0.0
    %5701 = vmatpush1.msra.mxu0 0.0
    %5702 = vmatprep.subr.mxu0 0.0
    %5703 = vmatpush1.msra.mxu0 0.0
    %5704 = vmatprep.subr.mxu0 0.0
    %5705 = vmatpush1.msra.mxu0 0.0
    %5706 = vmatprep.subr.mxu0 0.0
    %5707 = vmatpush1.msra.mxu0 0.0
    %5708 = vmatprep.subr.mxu0 0.0
    %5709 = vmatpush1.msra.mxu0 0.0
    %5710 = vmatprep.subr.mxu0 0.0
    %5711 = vmatpush1.msra.mxu0 0.0
    %5712 = vmatprep.subr.mxu0 0.0
    %5713 = vmatpush1.msra.mxu0 0.0
    %5714 = vmatprep.subr.mxu0 0.0
    %5715 = vmatpush1.msra.mxu0 0.0
    %5716 = vmatprep.subr.mxu0 0.0
    %5717 = vmatpush1.msra.mxu0 0.0
    %5718 = vmatprep.subr.mxu0 0.0
    %5719 = vmatpush1.msra.mxu0 0.0
    %5720 = vmatprep.subr.mxu0 0.0
    %5721 = vmatpush1.msra.mxu0 0.0
    %5722 = vmatprep.mubr.f32.mxu0 0.0
    %5723 = vmatmul.mubr.f32.gmra.mrb[0].mxu0 %v5431
    %v5724 = vpop.f32.mrb[0].mxu0
    %v5725 = vadd.f32 0.0, %v5724
    %v5726 = vpop.f32.mrb[0].mxu0
    %5727 = vdwg.mxu0
    %v5728 = vadd.f32 %v3754, %v5725
    %v5729 = vtanh.pop %v5728
    %v5730 = vsub.f32 %v5431, %v5729
    %v5731 = vmul.f32 %v5729, %v2536
    %v5732 = vadd.f32 %v5730, %v5731
    %v5733 = vadd.f32 %v3736, %v5567
    %v5734 = vxor.u32 %v5733, 2147483648
    %v5735 = vmul.f32 %v5734, 1.442695
    %v5736 = vpow.pop %v5735
    %v5737 = vadd.f32 %v5736, 1.0
    %v5738 = vrcp.pop %v5737
    %v5739 = vmul.f32 1.0, %v5738
    %v5740 = vrot.slane %v3736, 2
    %v5742 = vadd.f32 %v5740, %v5569
    %v5743 = vxor.u32 %v5742, 2147483648
    %v5744 = vmul.f32 %v5743, 1.442695
    %v5745 = vpow.pop %v5744
    %v5746 = vadd.f32 %v5745, 1.0
    %v5747 = vrcp.pop %v5746
    %v5748 = vmul.f32 1.0, %v5747
    %v5749 = vrot.slane %v3736, 4
    %v5751 = vadd.f32 %v5749, %v5638
    %v5752 = vxor.u32 %v5751, 2147483648
    %v5753 = vmul.f32 %v5752, 1.442695
    %v5754 = vpow.pop %v5753
    %v5755 = vadd.f32 %v5754, 1.0
    %v5756 = vrcp.pop %v5755
    %v5757 = vmul.f32 1.0, %v5756
    %v5758 = vrot.slane %v3736, 6
    %v5760 = vadd.f32 %v5758, %v5640
    %v5761 = vtanh.pop %v5760
    %v5762 = vmul.f32 %v5748, %v5732
    %v5763 = vmul.f32 %v5739, %v5761
    %v5764 = vadd.f32 %v5762, %v5763
    %v5765 = vtanh.pop %v5764
    %v5766 = vmul.f32 %v5757, %v5765
    %s5767 = scalar_lea.vmem %s14, 10
    %5768 = vst [vmem:[%s5767] sm:$0x3] %v5766
    %v5769 = vld [vmem:[%s8] sm:$0xff]
    %v5770 = vld [vmem:[%s8 + $0x8] sm:$0xff]
    %v5771 = vld [vmem:[%s8 + $0x10] sm:$0xff]
    %v5772 = vld [vmem:[%s8 + $0x18] sm:$0xff]
    %v5773 = vld [vmem:[%s8 + $0x20] sm:$0xff]
    %v5774 = vld [vmem:[%s8 + $0x28] sm:$0xff]
    %v5775 = vld [vmem:[%s8 + $0x30] sm:$0xff]
    %v5776 = vld [vmem:[%s8 + $0x38] sm:$0xff]
    %v5777 = vld [vmem:[%s8 + $0x40] sm:$0xff]
    %v5778 = vld [vmem:[%s8 + $0x48] sm:$0xff]
    %v5779 = vld [vmem:[%s8 + $0x50] sm:$0xff]
    %v5780 = vld [vmem:[%s8 + $0x58] sm:$0xff]
    %v5781 = vld [vmem:[%s8 + $0x60] sm:$0xff]
    %v5782 = vld [vmem:[%s8 + $0x68] sm:$0xff]
    %v5783 = vld [vmem:[%s8 + $0x70] sm:$0xff]
    %v5784 = vld [vmem:[%s8 + $0x78] sm:$0xff]
    %v5785 = vld [vmem:[%s8 + $0x80] sm:$0xff]
    %v5786 = vld [vmem:[%s8 + $0x88] sm:$0xff]
    %v5787 = vld [vmem:[%s8 + $0x90] sm:$0xff]
    %v5788 = vld [vmem:[%s8 + $0x98] sm:$0xff]
    %v5789 = vld [vmem:[%s8 + $0xa0] sm:$0xff]
    %v5790 = vld [vmem:[%s8 + $0xa8] sm:$0xff]
    %v5791 = vld [vmem:[%s8 + $0xb0] sm:$0xff]
    %v5792 = vld [vmem:[%s8 + $0xb8] sm:$0xff]
    %v5793 = vld [vmem:[%s8 + $0xc0] sm:$0xff]
    %v5794 = vld [vmem:[%s8 + $0xc8] sm:$0xff]
    %v5795 = vld [vmem:[%s8 + $0xd0] sm:$0xff]
    %v5796 = vld [vmem:[%s8 + $0xd8] sm:$0xff]
    %v5797 = vld [vmem:[%s8 + $0xe0] sm:$0xff]
    %v5798 = vld [vmem:[%s8 + $0xe8] sm:$0xff]
    %v5799 = vld [vmem:[%s8 + $0xf0] sm:$0xff]
    %v5800 = vld [vmem:[%s8 + $0xf8] sm:$0xff]
    %v5801 = vld [vmem:[%s8 + $0x100] sm:$0xff]
    %v5802 = vld [vmem:[%s8 + $0x108] sm:$0xff]
    %v5803 = vld [vmem:[%s8 + $0x110] sm:$0xff]
    %v5804 = vld [vmem:[%s8 + $0x118] sm:$0xff]
    %v5805 = vld [vmem:[%s8 + $0x120] sm:$0xff]
    %v5806 = vld [vmem:[%s8 + $0x128] sm:$0xff]
    %v5807 = vld [vmem:[%s8 + $0x130] sm:$0xff]
    %v5808 = vld [vmem:[%s8 + $0x138] sm:$0xff]
    %v5809 = vld [vmem:[%s8 + $0x140] sm:$0xff]
    %v5810 = vld [vmem:[%s8 + $0x148] sm:$0xff]
    %v5811 = vld [vmem:[%s8 + $0x150] sm:$0xff]
    %v5812 = vld [vmem:[%s8 + $0x158] sm:$0xff]
    %v5813 = vld [vmem:[%s8 + $0x160] sm:$0xff]
    %v5814 = vld [vmem:[%s8 + $0x168] sm:$0xff]
    %v5815 = vld [vmem:[%s8 + $0x170] sm:$0xff]
    %v5816 = vld [vmem:[%s8 + $0x178] sm:$0xff]
    %v5817 = vld [vmem:[%s8 + $0x180] sm:$0xff]
    %v5818 = vld [vmem:[%s8 + $0x188] sm:$0xff]
    %v5819 = vld [vmem:[%s8 + $0x190] sm:$0xff]
    %v5820 = vld [vmem:[%s8 + $0x198] sm:$0xff]
    %v5821 = vld [vmem:[%s8 + $0x1a0] sm:$0xff]
    %v5822 = vld [vmem:[%s8 + $0x1a8] sm:$0xff]
    %v5823 = vld [vmem:[%s8 + $0x1b0] sm:$0xff]
    %v5824 = vld [vmem:[%s8 + $0x1b8] sm:$0xff]
    %v5825 = vld [vmem:[%s8 + $0x1c0] sm:$0xff]
    %v5826 = vld [vmem:[%s8 + $0x1c8] sm:$0xff]
    %v5827 = vld [vmem:[%s8 + $0x1d0] sm:$0xff]
    %v5828 = vld [vmem:[%s8 + $0x1d8] sm:$0xff]
    %v5829 = vld [vmem:[%s8 + $0x1e0] sm:$0xff]
    %v5830 = vld [vmem:[%s8 + $0x1e8] sm:$0xff]
    %v5831 = vld [vmem:[%s8 + $0x1f0] sm:$0xff]
    %v5832 = vld [vmem:[%s8 + $0x1f8] sm:$0xff]
    %5833 = vmatprep.subr.mxu0 %v5770
    %5834 = vmatpush1.msra.mxu0 %v5769
    %5835 = vmatprep.subr.mxu0 %v5774
    %5836 = vmatpush1.msra.mxu0 %v5773
    %5837 = vmatprep.subr.mxu0 %v5778
    %5838 = vmatpush1.msra.mxu0 %v5777
    %5839 = vmatprep.subr.mxu0 %v5782
    %5840 = vmatpush1.msra.mxu0 %v5781
    %5841 = vmatprep.subr.mxu0 %v5786
    %5842 = vmatpush1.msra.mxu0 %v5785
    %5843 = vmatprep.subr.mxu0 %v5790
    %5844 = vmatpush1.msra.mxu0 %v5789
    %5845 = vmatprep.subr.mxu0 %v5794
    %5846 = vmatpush1.msra.mxu0 %v5793
    %5847 = vmatprep.subr.mxu0 %v5798
    %5848 = vmatpush1.msra.mxu0 %v5797
    %5849 = vmatprep.subr.mxu0 %v5802
    %5850 = vmatpush1.msra.mxu0 %v5801
    %5851 = vmatprep.subr.mxu0 %v5806
    %5852 = vmatpush1.msra.mxu0 %v5805
    %5853 = vmatprep.subr.mxu0 %v5810
    %5854 = vmatpush1.msra.mxu0 %v5809
    %5855 = vmatprep.subr.mxu0 %v5814
    %5856 = vmatpush1.msra.mxu0 %v5813
    %5857 = vmatprep.subr.mxu0 %v5818
    %5858 = vmatpush1.msra.mxu0 %v5817
    %5859 = vmatprep.subr.mxu0 %v5822
    %5860 = vmatpush1.msra.mxu0 %v5821
    %5861 = vmatprep.subr.mxu0 %v5826
    %5862 = vmatpush1.msra.mxu0 %v5825
    %5863 = vmatprep.subr.mxu0 %v5830
    %5864 = vmatpush1.msra.mxu0 %v5829
    %5865 = vmatprep.subr.mxu0 0.0
    %5866 = vmatpush1.msra.mxu0 0.0
    %5867 = vmatprep.subr.mxu0 0.0
    %5868 = vmatpush1.msra.mxu0 0.0
    %5869 = vmatprep.subr.mxu0 0.0
    %5870 = vmatpush1.msra.mxu0 0.0
    %5871 = vmatprep.subr.mxu0 0.0
    %5872 = vmatpush1.msra.mxu0 0.0
    %5873 = vmatprep.subr.mxu0 0.0
    %5874 = vmatpush1.msra.mxu0 0.0
    %5875 = vmatprep.subr.mxu0 0.0
    %5876 = vmatpush1.msra.mxu0 0.0
    %5877 = vmatprep.subr.mxu0 0.0
    %5878 = vmatpush1.msra.mxu0 0.0
    %5879 = vmatprep.subr.mxu0 0.0
    %5880 = vmatpush1.msra.mxu0 0.0
    %5881 = vmatprep.subr.mxu0 0.0
    %5882 = vmatpush1.msra.mxu0 0.0
    %5883 = vmatprep.subr.mxu0 0.0
    %5884 = vmatpush1.msra.mxu0 0.0
    %5885 = vmatprep.subr.mxu0 0.0
    %5886 = vmatpush1.msra.mxu0 0.0
    %5887 = vmatprep.subr.mxu0 0.0
    %5888 = vmatpush1.msra.mxu0 0.0
    %5889 = vmatprep.subr.mxu0 0.0
    %5890 = vmatpush1.msra.mxu0 0.0
    %5891 = vmatprep.subr.mxu0 0.0
    %5892 = vmatpush1.msra.mxu0 0.0
    %5893 = vmatprep.subr.mxu0 0.0
    %5894 = vmatpush1.msra.mxu0 0.0
    %5895 = vmatprep.subr.mxu0 0.0
    %5896 = vmatpush1.msra.mxu0 0.0
    %5897 = vmatprep.mubr.f32.mxu0 0.0
    %5898 = vmatmul.mubr.f32.gmra.mrb[0].mxu0 %v5766
    %v5899 = vpop.f32.mrb[0].mxu0
    %v5900 = vadd.f32 0.0, %v5899
    %v5901 = vpop.f32.mrb[0].mxu0
    %v5902 = vadd.f32 0.0, %v5901
    %5903 = vdwg.mxu0
    %5904 = vmatprep.subr.mxu0 %v5772
    %5905 = vmatpush1.msra.mxu0 %v5771
    %5906 = vmatprep.subr.mxu0 %v5776
    %5907 = vmatpush1.msra.mxu0 %v5775
    %5908 = vmatprep.subr.mxu0 %v5780
    %5909 = vmatpush1.msra.mxu0 %v5779
    %5910 = vmatprep.subr.mxu0 %v5784
    %5911 = vmatpush1.msra.mxu0 %v5783
    %5912 = vmatprep.subr.mxu0 %v5788
    %5913 = vmatpush1.msra.mxu0 %v5787
    %5914 = vmatprep.subr.mxu0 %v5792
    %5915 = vmatpush1.msra.mxu0 %v5791
    %5916 = vmatprep.subr.mxu0 %v5796
    %5917 = vmatpush1.msra.mxu0 %v5795
    %5918 = vmatprep.subr.mxu0 %v5800
    %5919 = vmatpush1.msra.mxu0 %v5799
    %5920 = vmatprep.subr.mxu0 %v5804
    %5921 = vmatpush1.msra.mxu0 %v5803
    %5922 = vmatprep.subr.mxu0 %v5808
    %5923 = vmatpush1.msra.mxu0 %v5807
    %5924 = vmatprep.subr.mxu0 %v5812
    %5925 = vmatpush1.msra.mxu0 %v5811
    %5926 = vmatprep.subr.mxu0 %v5816
    %5927 = vmatpush1.msra.mxu0 %v5815
    %5928 = vmatprep.subr.mxu0 %v5820
    %5929 = vmatpush1.msra.mxu0 %v5819
    %5930 = vmatprep.subr.mxu0 %v5824
    %5931 = vmatpush1.msra.mxu0 %v5823
    %5932 = vmatprep.subr.mxu0 %v5828
    %5933 = vmatpush1.msra.mxu0 %v5827
    %5934 = vmatprep.subr.mxu0 %v5832
    %5935 = vmatpush1.msra.mxu0 %v5831
    %5936 = vmatprep.subr.mxu0 0.0
    %5937 = vmatpush1.msra.mxu0 0.0
    %5938 = vmatprep.subr.mxu0 0.0
    %5939 = vmatpush1.msra.mxu0 0.0
    %5940 = vmatprep.subr.mxu0 0.0
    %5941 = vmatpush1.msra.mxu0 0.0
    %5942 = vmatprep.subr.mxu0 0.0
    %5943 = vmatpush1.msra.mxu0 0.0
    %5944 = vmatprep.subr.mxu0 0.0
    %5945 = vmatpush1.msra.mxu0 0.0
    %5946 = vmatprep.subr.mxu0 0.0
    %5947 = vmatpush1.msra.mxu0 0.0
    %5948 = vmatprep.subr.mxu0 0.0
    %5949 = vmatpush1.msra.mxu0 0.0
    %5950 = vmatprep.subr.mxu0 0.0
    %5951 = vmatpush1.msra.mxu0 0.0
    %5952 = vmatprep.subr.mxu0 0.0
    %5953 = vmatpush1.msra.mxu0 0.0
    %5954 = vmatprep.subr.mxu0 0.0
    %5955 = vmatpush1.msra.mxu0 0.0
    %5956 = vmatprep.subr.mxu0 0.0
    %5957 = vmatpush1.msra.mxu0 0.0
    %5958 = vmatprep.subr.mxu0 0.0
    %5959 = vmatpush1.msra.mxu0 0.0
    %5960 = vmatprep.subr.mxu0 0.0
    %5961 = vmatpush1.msra.mxu0 0.0
    %5962 = vmatprep.subr.mxu0 0.0
    %5963 = vmatpush1.msra.mxu0 0.0
    %5964 = vmatprep.subr.mxu0 0.0
    %5965 = vmatpush1.msra.mxu0 0.0
    %5966 = vmatprep.subr.mxu0 0.0
    %5967 = vmatpush1.msra.mxu0 0.0
    %5968 = vmatprep.mubr.f32.mxu0 0.0
    %5969 = vmatmul.mubr.f32.gmra.mrb[0].mxu0 %v5766
    %v5970 = vpop.f32.mrb[0].mxu0
    %v5971 = vadd.f32 0.0, %v5970
    %v5972 = vpop.f32.mrb[0].mxu0
    %v5973 = vadd.f32 0.0, %v5972
    %5974 = vdwg.mxu0
    %v5975 = vld [vmem:[%s9] sm:$0xff]
    %v5976 = vld [vmem:[%s9 + $0x8] sm:$0xff]
    %v5977 = vld [vmem:[%s9 + $0x10] sm:$0xff]
    %v5978 = vld [vmem:[%s9 + $0x18] sm:$0xff]
    %v5979 = vld [vmem:[%s9 + $0x20] sm:$0xff]
    %v5980 = vld [vmem:[%s9 + $0x28] sm:$0xff]
    %v5981 = vld [vmem:[%s9 + $0x30] sm:$0xff]
    %v5982 = vld [vmem:[%s9 + $0x38] sm:$0xff]
    %v5983 = vld [vmem:[%s9 + $0x40] sm:$0xff]
    %v5984 = vld [vmem:[%s9 + $0x48] sm:$0xff]
    %v5985 = vld [vmem:[%s9 + $0x50] sm:$0xff]
    %v5986 = vld [vmem:[%s9 + $0x58] sm:$0xff]
    %v5987 = vld [vmem:[%s9 + $0x60] sm:$0xff]
    %v5988 = vld [vmem:[%s9 + $0x68] sm:$0xff]
    %v5989 = vld [vmem:[%s9 + $0x70] sm:$0xff]
    %v5990 = vld [vmem:[%s9 + $0x78] sm:$0xff]
    %5991 = vmatprep.subr.mxu0 0.0
    %5992 = vmatpush1.msra.mxu0 %v5975
    %5993 = vmatprep.subr.mxu0 0.0
    %5994 = vmatpush1.msra.mxu0 %v5976
    %5995 = vmatprep.subr.mxu0 0.0
    %5996 = vmatpush1.msra.mxu0 %v5977
    %5997 = vmatprep.subr.mxu0 0.0
    %5998 = vmatpush1.msra.mxu0 %v5978
    %5999 = vmatprep.subr.mxu0 0.0
    %6000 = vmatpush1.msra.mxu0 %v5979
    %6001 = vmatprep.subr.mxu0 0.0
    %6002 = vmatpush1.msra.mxu0 %v5980
    %6003 = vmatprep.subr.mxu0 0.0
    %6004 = vmatpush1.msra.mxu0 %v5981
    %6005 = vmatprep.subr.mxu0 0.0
    %6006 = vmatpush1.msra.mxu0 %v5982
    %6007 = vmatprep.subr.mxu0 0.0
    %6008 = vmatpush1.msra.mxu0 %v5983
    %6009 = vmatprep.subr.mxu0 0.0
    %6010 = vmatpush1.msra.mxu0 %v5984
    %6011 = vmatprep.subr.mxu0 0.0
    %6012 = vmatpush1.msra.mxu0 %v5985
    %6013 = vmatprep.subr.mxu0 0.0
    %6014 = vmatpush1.msra.mxu0 %v5986
    %6015 = vmatprep.subr.mxu0 0.0
    %6016 = vmatpush1.msra.mxu0 %v5987
    %6017 = vmatprep.subr.mxu0 0.0
    %6018 = vmatpush1.msra.mxu0 %v5988
    %6019 = vmatprep.subr.mxu0 0.0
    %6020 = vmatpush1.msra.mxu0 %v5989
    %6021 = vmatprep.subr.mxu0 0.0
    %6022 = vmatpush1.msra.mxu0 %v5990
    %6023 = vmatprep.subr.mxu0 0.0
    %6024 = vmatpush1.msra.mxu0 0.0
    %6025 = vmatprep.subr.mxu0 0.0
    %6026 = vmatpush1.msra.mxu0 0.0
    %6027 = vmatprep.subr.mxu0 0.0
    %6028 = vmatpush1.msra.mxu0 0.0
    %6029 = vmatprep.subr.mxu0 0.0
    %6030 = vmatpush1.msra.mxu0 0.0
    %6031 = vmatprep.subr.mxu0 0.0
    %6032 = vmatpush1.msra.mxu0 0.0
    %6033 = vmatprep.subr.mxu0 0.0
    %6034 = vmatpush1.msra.mxu0 0.0
    %6035 = vmatprep.subr.mxu0 0.0
    %6036 = vmatpush1.msra.mxu0 0.0
    %6037 = vmatprep.subr.mxu0 0.0
    %6038 = vmatpush1.msra.mxu0 0.0
    %6039 = vmatprep.subr.mxu0 0.0
    %6040 = vmatpush1.msra.mxu0 0.0
    %6041 = vmatprep.subr.mxu0 0.0
    %6042 = vmatpush1.msra.mxu0 0.0
    %6043 = vmatprep.subr.mxu0 0.0
    %6044 = vmatpush1.msra.mxu0 0.0
    %6045 = vmatprep.subr.mxu0 0.0
    %6046 = vmatpush1.msra.mxu0 0.0
    %6047 = vmatprep.subr.mxu0 0.0
    %6048 = vmatpush1.msra.mxu0 0.0
    %6049 = vmatprep.subr.mxu0 0.0
    %6050 = vmatpush1.msra.mxu0 0.0
    %6051 = vmatprep.subr.mxu0 0.0
    %6052 = vmatpush1.msra.mxu0 0.0
    %6053 = vmatprep.subr.mxu0 0.0
    %6054 = vmatpush1.msra.mxu0 0.0
    %6055 = vmatprep.mubr.f32.mxu0 0.0
    %6056 = vmatmul.mubr.f32.gmra.mrb[0].mxu0 %v5764
    %v6057 = vpop.f32.mrb[0].mxu0
    %v6058 = vadd.f32 0.0, %v6057
    %v6059 = vpop.f32.mrb[0].mxu0
    %6060 = vdwg.mxu0
    %v6061 = vadd.f32 %v3753, %v6058
    %v6062 = vtanh.pop %v6061
    %v6063 = vsub.f32 %v5764, %v6062
    %v6064 = vmul.f32 %v6062, %v2874
    %v6065 = vadd.f32 %v6063, %v6064
    %v6066 = vadd.f32 %v3737, %v5900
    %v6067 = vxor.u32 %v6066, 2147483648
    %v6068 = vmul.f32 %v6067, 1.442695
    %v6069 = vpow.pop %v6068
    %v6070 = vadd.f32 %v6069, 1.0
    %v6071 = vrcp.pop %v6070
    %v6072 = vmul.f32 1.0, %v6071
    %v6073 = vrot.slane %v3737, 2
    %v6075 = vadd.f32 %v6073, %v5902
    %v6076 = vxor.u32 %v6075, 2147483648
    %v6077 = vmul.f32 %v6076, 1.442695
    %v6078 = vpow.pop %v6077
    %v6079 = vadd.f32 %v6078, 1.0
    %v6080 = vrcp.pop %v6079
    %v6081 = vmul.f32 1.0, %v6080
    %v6082 = vrot.slane %v3737, 4
    %v6084 = vadd.f32 %v6082, %v5971
    %v6085 = vxor.u32 %v6084, 2147483648
    %v6086 = vmul.f32 %v6085, 1.442695
    %v6087 = vpow.pop %v6086
    %v6088 = vadd.f32 %v6087, 1.0
    %v6089 = vrcp.pop %v6088
    %v6090 = vmul.f32 1.0, %v6089
    %v6091 = vrot.slane %v3737, 6
    %v6093 = vadd.f32 %v6091, %v5973
    %v6094 = vtanh.pop %v6093
    %v6095 = vmul.f32 %v6081, %v6065
    %v6096 = vmul.f32 %v6072, %v6094
    %v6097 = vadd.f32 %v6095, %v6096
    %v6098 = vtanh.pop %v6097
    %v6099 = vmul.f32 %v6090, %v6098
    %s6100 = scalar_lea.vmem %s14, 12
    %6101 = vst [vmem:[%s6100] sm:$0x3] %v6099
    %v6102 = vld [vmem:[%s8] sm:$0xff]
    %v6103 = vld [vmem:[%s8 + $0x8] sm:$0xff]
    %v6104 = vld [vmem:[%s8 + $0x10] sm:$0xff]
    %v6105 = vld [vmem:[%s8 + $0x18] sm:$0xff]
    %v6106 = vld [vmem:[%s8 + $0x20] sm:$0xff]
    %v6107 = vld [vmem:[%s8 + $0x28] sm:$0xff]
    %v6108 = vld [vmem:[%s8 + $0x30] sm:$0xff]
    %v6109 = vld [vmem:[%s8 + $0x38] sm:$0xff]
    %v6110 = vld [vmem:[%s8 + $0x40] sm:$0xff]
    %v6111 = vld [vmem:[%s8 + $0x48] sm:$0xff]
    %v6112 = vld [vmem:[%s8 + $0x50] sm:$0xff]
    %v6113 = vld [vmem:[%s8 + $0x58] sm:$0xff]
    %v6114 = vld [vmem:[%s8 + $0x60] sm:$0xff]
    %v6115 = vld [vmem:[%s8 + $0x68] sm:$0xff]
    %v6116 = vld [vmem:[%s8 + $0x70] sm:$0xff]
    %v6117 = vld [vmem:[%s8 + $0x78] sm:$0xff]
    %v6118 = vld [vmem:[%s8 + $0x80] sm:$0xff]
    %v6119 = vld [vmem:[%s8 + $0x88] sm:$0xff]
    %v6120 = vld [vmem:[%s8 + $0x90] sm:$0xff]
    %v6121 = vld [vmem:[%s8 + $0x98] sm:$0xff]
    %v6122 = vld [vmem:[%s8 + $0xa0] sm:$0xff]
    %v6123 = vld [vmem:[%s8 + $0xa8] sm:$0xff]
    %v6124 = vld [vmem:[%s8 + $0xb0] sm:$0xff]
    %v6125 = vld [vmem:[%s8 + $0xb8] sm:$0xff]
    %v6126 = vld [vmem:[%s8 + $0xc0] sm:$0xff]
    %v6127 = vld [vmem:[%s8 + $0xc8] sm:$0xff]
    %v6128 = vld [vmem:[%s8 + $0xd0] sm:$0xff]
    %v6129 = vld [vmem:[%s8 + $0xd8] sm:$0xff]
    %v6130 = vld [vmem:[%s8 + $0xe0] sm:$0xff]
    %v6131 = vld [vmem:[%s8 + $0xe8] sm:$0xff]
    %v6132 = vld [vmem:[%s8 + $0xf0] sm:$0xff]
    %v6133 = vld [vmem:[%s8 + $0xf8] sm:$0xff]
    %v6134 = vld [vmem:[%s8 + $0x100] sm:$0xff]
    %v6135 = vld [vmem:[%s8 + $0x108] sm:$0xff]
    %v6136 = vld [vmem:[%s8 + $0x110] sm:$0xff]
    %v6137 = vld [vmem:[%s8 + $0x118] sm:$0xff]
    %v6138 = vld [vmem:[%s8 + $0x120] sm:$0xff]
    %v6139 = vld [vmem:[%s8 + $0x128] sm:$0xff]
    %v6140 = vld [vmem:[%s8 + $0x130] sm:$0xff]
    %v6141 = vld [vmem:[%s8 + $0x138] sm:$0xff]
    %v6142 = vld [vmem:[%s8 + $0x140] sm:$0xff]
    %v6143 = vld [vmem:[%s8 + $0x148] sm:$0xff]
    %v6144 = vld [vmem:[%s8 + $0x150] sm:$0xff]
    %v6145 = vld [vmem:[%s8 + $0x158] sm:$0xff]
    %v6146 = vld [vmem:[%s8 + $0x160] sm:$0xff]
    %v6147 = vld [vmem:[%s8 + $0x168] sm:$0xff]
    %v6148 = vld [vmem:[%s8 + $0x170] sm:$0xff]
    %v6149 = vld [vmem:[%s8 + $0x178] sm:$0xff]
    %v6150 = vld [vmem:[%s8 + $0x180] sm:$0xff]
    %v6151 = vld [vmem:[%s8 + $0x188] sm:$0xff]
    %v6152 = vld [vmem:[%s8 + $0x190] sm:$0xff]
    %v6153 = vld [vmem:[%s8 + $0x198] sm:$0xff]
    %v6154 = vld [vmem:[%s8 + $0x1a0] sm:$0xff]
    %v6155 = vld [vmem:[%s8 + $0x1a8] sm:$0xff]
    %v6156 = vld [vmem:[%s8 + $0x1b0] sm:$0xff]
    %v6157 = vld [vmem:[%s8 + $0x1b8] sm:$0xff]
    %v6158 = vld [vmem:[%s8 + $0x1c0] sm:$0xff]
    %v6159 = vld [vmem:[%s8 + $0x1c8] sm:$0xff]
    %v6160 = vld [vmem:[%s8 + $0x1d0] sm:$0xff]
    %v6161 = vld [vmem:[%s8 + $0x1d8] sm:$0xff]
    %v6162 = vld [vmem:[%s8 + $0x1e0] sm:$0xff]
    %v6163 = vld [vmem:[%s8 + $0x1e8] sm:$0xff]
    %v6164 = vld [vmem:[%s8 + $0x1f0] sm:$0xff]
    %v6165 = vld [vmem:[%s8 + $0x1f8] sm:$0xff]
    %6166 = vmatprep.subr.mxu0 %v6103
    %6167 = vmatpush1.msra.mxu0 %v6102
    %6168 = vmatprep.subr.mxu0 %v6107
    %6169 = vmatpush1.msra.mxu0 %v6106
    %6170 = vmatprep.subr.mxu0 %v6111
    %6171 = vmatpush1.msra.mxu0 %v6110
    %6172 = vmatprep.subr.mxu0 %v6115
    %6173 = vmatpush1.msra.mxu0 %v6114
    %6174 = vmatprep.subr.mxu0 %v6119
    %6175 = vmatpush1.msra.mxu0 %v6118
    %6176 = vmatprep.subr.mxu0 %v6123
    %6177 = vmatpush1.msra.mxu0 %v6122
    %6178 = vmatprep.subr.mxu0 %v6127
    %6179 = vmatpush1.msra.mxu0 %v6126
    %6180 = vmatprep.subr.mxu0 %v6131
    %6181 = vmatpush1.msra.mxu0 %v6130
    %6182 = vmatprep.subr.mxu0 %v6135
    %6183 = vmatpush1.msra.mxu0 %v6134
    %6184 = vmatprep.subr.mxu0 %v6139
    %6185 = vmatpush1.msra.mxu0 %v6138
    %6186 = vmatprep.subr.mxu0 %v6143
    %6187 = vmatpush1.msra.mxu0 %v6142
    %6188 = vmatprep.subr.mxu0 %v6147
    %6189 = vmatpush1.msra.mxu0 %v6146
    %6190 = vmatprep.subr.mxu0 %v6151
    %6191 = vmatpush1.msra.mxu0 %v6150
    %6192 = vmatprep.subr.mxu0 %v6155
    %6193 = vmatpush1.msra.mxu0 %v6154
    %6194 = vmatprep.subr.mxu0 %v6159
    %6195 = vmatpush1.msra.mxu0 %v6158
    %6196 = vmatprep.subr.mxu0 %v6163
    %6197 = vmatpush1.msra.mxu0 %v6162
    %6198 = vmatprep.subr.mxu0 0.0
    %6199 = vmatpush1.msra.mxu0 0.0
    %6200 = vmatprep.subr.mxu0 0.0
    %6201 = vmatpush1.msra.mxu0 0.0
    %6202 = vmatprep.subr.mxu0 0.0
    %6203 = vmatpush1.msra.mxu0 0.0
    %6204 = vmatprep.subr.mxu0 0.0
    %6205 = vmatpush1.msra.mxu0 0.0
    %6206 = vmatprep.subr.mxu0 0.0
    %6207 = vmatpush1.msra.mxu0 0.0
    %6208 = vmatprep.subr.mxu0 0.0
    %6209 = vmatpush1.msra.mxu0 0.0
    %6210 = vmatprep.subr.mxu0 0.0
    %6211 = vmatpush1.msra.mxu0 0.0
    %6212 = vmatprep.subr.mxu0 0.0
    %6213 = vmatpush1.msra.mxu0 0.0
    %6214 = vmatprep.subr.mxu0 0.0
    %6215 = vmatpush1.msra.mxu0 0.0
    %6216 = vmatprep.subr.mxu0 0.0
    %6217 = vmatpush1.msra.mxu0 0.0
    %6218 = vmatprep.subr.mxu0 0.0
    %6219 = vmatpush1.msra.mxu0 0.0
    %6220 = vmatprep.subr.mxu0 0.0
    %6221 = vmatpush1.msra.mxu0 0.0
    %6222 = vmatprep.subr.mxu0 0.0
    %6223 = vmatpush1.msra.mxu0 0.0
    %6224 = vmatprep.subr.mxu0 0.0
    %6225 = vmatpush1.msra.mxu0 0.0
    %6226 = vmatprep.subr.mxu0 0.0
    %6227 = vmatpush1.msra.mxu0 0.0
    %6228 = vmatprep.subr.mxu0 0.0
    %6229 = vmatpush1.msra.mxu0 0.0
    %6230 = vmatprep.mubr.f32.mxu0 0.0
    %6231 = vmatmul.mubr.f32.gmra.mrb[0].mxu0 %v6099
    %v6232 = vpop.f32.mrb[0].mxu0
    %v6233 = vadd.f32 0.0, %v6232
    %v6234 = vpop.f32.mrb[0].mxu0
    %v6235 = vadd.f32 0.0, %v6234
    %6236 = vdwg.mxu0
    %6237 = vmatprep.subr.mxu0 %v6105
    %6238 = vmatpush1.msra.mxu0 %v6104
    %6239 = vmatprep.subr.mxu0 %v6109
    %6240 = vmatpush1.msra.mxu0 %v6108
    %6241 = vmatprep.subr.mxu0 %v6113
    %6242 = vmatpush1.msra.mxu0 %v6112
    %6243 = vmatprep.subr.mxu0 %v6117
    %6244 = vmatpush1.msra.mxu0 %v6116
    %6245 = vmatprep.subr.mxu0 %v6121
    %6246 = vmatpush1.msra.mxu0 %v6120
    %6247 = vmatprep.subr.mxu0 %v6125
    %6248 = vmatpush1.msra.mxu0 %v6124
    %6249 = vmatprep.subr.mxu0 %v6129
    %6250 = vmatpush1.msra.mxu0 %v6128
    %6251 = vmatprep.subr.mxu0 %v6133
    %6252 = vmatpush1.msra.mxu0 %v6132
    %6253 = vmatprep.subr.mxu0 %v6137
    %6254 = vmatpush1.msra.mxu0 %v6136
    %6255 = vmatprep.subr.mxu0 %v6141
    %6256 = vmatpush1.msra.mxu0 %v6140
    %6257 = vmatprep.subr.mxu0 %v6145
    %6258 = vmatpush1.msra.mxu0 %v6144
    %6259 = vmatprep.subr.mxu0 %v6149
    %6260 = vmatpush1.msra.mxu0 %v6148
    %6261 = vmatprep.subr.mxu0 %v6153
    %6262 = vmatpush1.msra.mxu0 %v6152
    %6263 = vmatprep.subr.mxu0 %v6157
    %6264 = vmatpush1.msra.mxu0 %v6156
    %6265 = vmatprep.subr.mxu0 %v6161
    %6266 = vmatpush1.msra.mxu0 %v6160
    %6267 = vmatprep.subr.mxu0 %v6165
    %6268 = vmatpush1.msra.mxu0 %v6164
    %6269 = vmatprep.subr.mxu0 0.0
    %6270 = vmatpush1.msra.mxu0 0.0
    %6271 = vmatprep.subr.mxu0 0.0
    %6272 = vmatpush1.msra.mxu0 0.0
    %6273 = vmatprep.subr.mxu0 0.0
    %6274 = vmatpush1.msra.mxu0 0.0
    %6275 = vmatprep.subr.mxu0 0.0
    %6276 = vmatpush1.msra.mxu0 0.0
    %6277 = vmatprep.subr.mxu0 0.0
    %6278 = vmatpush1.msra.mxu0 0.0
    %6279 = vmatprep.subr.mxu0 0.0
    %6280 = vmatpush1.msra.mxu0 0.0
    %6281 = vmatprep.subr.mxu0 0.0
    %6282 = vmatpush1.msra.mxu0 0.0
    %6283 = vmatprep.subr.mxu0 0.0
    %6284 = vmatpush1.msra.mxu0 0.0
    %6285 = vmatprep.subr.mxu0 0.0
    %6286 = vmatpush1.msra.mxu0 0.0
    %6287 = vmatprep.subr.mxu0 0.0
    %6288 = vmatpush1.msra.mxu0 0.0
    %6289 = vmatprep.subr.mxu0 0.0
    %6290 = vmatpush1.msra.mxu0 0.0
    %6291 = vmatprep.subr.mxu0 0.0
    %6292 = vmatpush1.msra.mxu0 0.0
    %6293 = vmatprep.subr.mxu0 0.0
    %6294 = vmatpush1.msra.mxu0 0.0
    %6295 = vmatprep.subr.mxu0 0.0
    %6296 = vmatpush1.msra.mxu0 0.0
    %6297 = vmatprep.subr.mxu0 0.0
    %6298 = vmatpush1.msra.mxu0 0.0
    %6299 = vmatprep.subr.mxu0 0.0
    %6300 = vmatpush1.msra.mxu0 0.0
    %6301 = vmatprep.mubr.f32.mxu0 0.0
    %6302 = vmatmul.mubr.f32.gmra.mrb[0].mxu0 %v6099
    %v6303 = vpop.f32.mrb[0].mxu0
    %v6304 = vadd.f32 0.0, %v6303
    %v6305 = vpop.f32.mrb[0].mxu0
    %v6306 = vadd.f32 0.0, %v6305
    %6307 = vdwg.mxu0
    %v6308 = vld [vmem:[%s9] sm:$0xff]
    %v6309 = vld [vmem:[%s9 + $0x8] sm:$0xff]
    %v6310 = vld [vmem:[%s9 + $0x10] sm:$0xff]
    %v6311 = vld [vmem:[%s9 + $0x18] sm:$0xff]
    %v6312 = vld [vmem:[%s9 + $0x20] sm:$0xff]
    %v6313 = vld [vmem:[%s9 + $0x28] sm:$0xff]
    %v6314 = vld [vmem:[%s9 + $0x30] sm:$0xff]
    %v6315 = vld [vmem:[%s9 + $0x38] sm:$0xff]
    %v6316 = vld [vmem:[%s9 + $0x40] sm:$0xff]
    %v6317 = vld [vmem:[%s9 + $0x48] sm:$0xff]
    %v6318 = vld [vmem:[%s9 + $0x50] sm:$0xff]
    %v6319 = vld [vmem:[%s9 + $0x58] sm:$0xff]
    %v6320 = vld [vmem:[%s9 + $0x60] sm:$0xff]
    %v6321 = vld [vmem:[%s9 + $0x68] sm:$0xff]
    %v6322 = vld [vmem:[%s9 + $0x70] sm:$0xff]
    %v6323 = vld [vmem:[%s9 + $0x78] sm:$0xff]
    %6324 = vmatprep.subr.mxu0 0.0
    %6325 = vmatpush1.msra.mxu0 %v6308
    %6326 = vmatprep.subr.mxu0 0.0
    %6327 = vmatpush1.msra.mxu0 %v6309
    %6328 = vmatprep.subr.mxu0 0.0
    %6329 = vmatpush1.msra.mxu0 %v6310
    %6330 = vmatprep.subr.mxu0 0.0
    %6331 = vmatpush1.msra.mxu0 %v6311
    %6332 = vmatprep.subr.mxu0 0.0
    %6333 = vmatpush1.msra.mxu0 %v6312
    %6334 = vmatprep.subr.mxu0 0.0
    %6335 = vmatpush1.msra.mxu0 %v6313
    %6336 = vmatprep.subr.mxu0 0.0
    %6337 = vmatpush1.msra.mxu0 %v6314
    %6338 = vmatprep.subr.mxu0 0.0
    %6339 = vmatpush1.msra.mxu0 %v6315
    %6340 = vmatprep.subr.mxu0 0.0
    %6341 = vmatpush1.msra.mxu0 %v6316
    %6342 = vmatprep.subr.mxu0 0.0
    %6343 = vmatpush1.msra.mxu0 %v6317
    %6344 = vmatprep.subr.mxu0 0.0
    %6345 = vmatpush1.msra.mxu0 %v6318
    %6346 = vmatprep.subr.mxu0 0.0
    %6347 = vmatpush1.msra.mxu0 %v6319
    %6348 = vmatprep.subr.mxu0 0.0
    %6349 = vmatpush1.msra.mxu0 %v6320
    %6350 = vmatprep.subr.mxu0 0.0
    %6351 = vmatpush1.msra.mxu0 %v6321
    %6352 = vmatprep.subr.mxu0 0.0
    %6353 = vmatpush1.msra.mxu0 %v6322
    %6354 = vmatprep.subr.mxu0 0.0
    %6355 = vmatpush1.msra.mxu0 %v6323
    %6356 = vmatprep.subr.mxu0 0.0
    %6357 = vmatpush1.msra.mxu0 0.0
    %6358 = vmatprep.subr.mxu0 0.0
    %6359 = vmatpush1.msra.mxu0 0.0
    %6360 = vmatprep.subr.mxu0 0.0
    %6361 = vmatpush1.msra.mxu0 0.0
    %6362 = vmatprep.subr.mxu0 0.0
    %6363 = vmatpush1.msra.mxu0 0.0
    %6364 = vmatprep.subr.mxu0 0.0
    %6365 = vmatpush1.msra.mxu0 0.0
    %6366 = vmatprep.subr.mxu0 0.0
    %6367 = vmatpush1.msra.mxu0 0.0
    %6368 = vmatprep.subr.mxu0 0.0
    %6369 = vmatpush1.msra.mxu0 0.0
    %6370 = vmatprep.subr.mxu0 0.0
    %6371 = vmatpush1.msra.mxu0 0.0
    %6372 = vmatprep.subr.mxu0 0.0
    %6373 = vmatpush1.msra.mxu0 0.0
    %6374 = vmatprep.subr.mxu0 0.0
    %6375 = vmatpush1.msra.mxu0 0.0
    %6376 = vmatprep.subr.mxu0 0.0
    %6377 = vmatpush1.msra.mxu0 0.0
    %6378 = vmatprep.subr.mxu0 0.0
    %6379 = vmatpush1.msra.mxu0 0.0
    %6380 = vmatprep.subr.mxu0 0.0
    %6381 = vmatpush1.msra.mxu0 0.0
    %6382 = vmatprep.subr.mxu0 0.0
    %6383 = vmatpush1.msra.mxu0 0.0
    %6384 = vmatprep.subr.mxu0 0.0
    %6385 = vmatpush1.msra.mxu0 0.0
    %6386 = vmatprep.subr.mxu0 0.0
    %6387 = vmatpush1.msra.mxu0 0.0
    %6388 = vmatprep.mubr.f32.mxu0 0.0
    %6389 = vmatmul.mubr.f32.gmra.mrb[0].mxu0 %v6097
    %v6390 = vpop.f32.mrb[0].mxu0
    %v6391 = vadd.f32 0.0, %v6390
    %v6392 = vpop.f32.mrb[0].mxu0
    %6393 = vdwg.mxu0
    %v6394 = vadd.f32 %v3755, %v6391
    %v6395 = vtanh.pop %v6394
    %v6396 = vsub.f32 %v6097, %v6395
    %v6397 = vmul.f32 %v6395, %v3212
    %v6398 = vadd.f32 %v6396, %v6397
    %v6399 = vadd.f32 %v3738, %v6233
    %v6400 = vxor.u32 %v6399, 2147483648
    %v6401 = vmul.f32 %v6400, 1.442695
    %v6402 = vpow.pop %v6401
    %v6403 = vadd.f32 %v6402, 1.0
    %v6404 = vrcp.pop %v6403
    %v6405 = vmul.f32 1.0, %v6404
    %v6406 = vrot.slane %v3738, 2
    %v6408 = vadd.f32 %v6406, %v6235
    %v6409 = vxor.u32 %v6408, 2147483648
    %v6410 = vmul.f32 %v6409, 1.442695
    %v6411 = vpow.pop %v6410
    %v6412 = vadd.f32 %v6411, 1.0
    %v6413 = vrcp.pop %v6412
    %v6414 = vmul.f32 1.0, %v6413
    %v6415 = vrot.slane %v3738, 4
    %v6417 = vadd.f32 %v6415, %v6304
    %v6418 = vxor.u32 %v6417, 2147483648
    %v6419 = vmul.f32 %v6418, 1.442695
    %v6420 = vpow.pop %v6419
    %v6421 = vadd.f32 %v6420, 1.0
    %v6422 = vrcp.pop %v6421
    %v6423 = vmul.f32 1.0, %v6422
    %v6424 = vrot.slane %v3738, 6
    %v6426 = vadd.f32 %v6424, %v6306
    %v6427 = vtanh.pop %v6426
    %v6428 = vmul.f32 %v6414, %v6398
    %v6429 = vmul.f32 %v6405, %v6427
    %v6430 = vadd.f32 %v6428, %v6429
    %v6431 = vtanh.pop %v6430
    %v6432 = vmul.f32 %v6423, %v6431
    %s6433 = scalar_lea.vmem %s14, 14
    %6434 = vst [vmem:[%s6433] sm:$0x3] %v6432
    %v6435 = vld [vmem:[%s14] sm:$0x3]
    %v6436 = vld [vmem:[%s14 + $0x2] sm:$0x3]
    %v6437 = vld [vmem:[%s14 + $0x4] sm:$0x3]
    %v6438 = vld [vmem:[%s14 + $0x6] sm:$0x3]
    %v6439 = vld [vmem:[%s14 + $0x8] sm:$0x3]
    %v6440 = vld [vmem:[%s14 + $0xa] sm:$0x3]
    %v6441 = vld [vmem:[%s14 + $0xc] sm:$0x3]
    %v6442 = vld [vmem:[%s14 + $0xe] sm:$0x3]
    %6443 = vst [vmem:[#allocation2] sm:$0x3] %v6432
    %6444 = vst [vmem:[#allocation4] sm:$0x3] %v6430
    %v6445 = vld [vmem:[%s10] sm:$0xff]
    %v6446 = vld [vmem:[%s10 + $0x8] sm:$0xff]
    %v6447 = vld [vmem:[%s10 + $0x10] sm:$0xff]
    %v6448 = vld [vmem:[%s10 + $0x18] sm:$0xff]
    %v6449 = vld [vmem:[%s10 + $0x20] sm:$0xff]
    %v6450 = vld [vmem:[%s10 + $0x28] sm:$0xff]
    %v6451 = vld [vmem:[%s10 + $0x30] sm:$0xff]
    %v6452 = vld [vmem:[%s10 + $0x38] sm:$0xff]
    %v6453 = vld [vmem:[%s10 + $0x40] sm:$0xff]
    %v6454 = vld [vmem:[%s10 + $0x48] sm:$0xff]
    %v6455 = vld [vmem:[%s10 + $0x50] sm:$0xff]
    %v6456 = vld [vmem:[%s10 + $0x58] sm:$0xff]
    %v6457 = vld [vmem:[%s10 + $0x60] sm:$0xff]
    %v6458 = vld [vmem:[%s10 + $0x68] sm:$0xff]
    %v6459 = vld [vmem:[%s10 + $0x70] sm:$0xff]
    %v6460 = vld [vmem:[%s10 + $0x78] sm:$0xff]
    %v6461 = vld [vmem:[%s11] sm:$0x1]
    %v6463 = vlaneseq
    %v6464 = vshrl.u32 %v6463, 7
    %v6465 = vsub.s32 0, %v6464
    %v6466 = vrot.slane %v6461, %v6465
    %v6476 = vcombine.low %v6435, %v6436
    %v6477 = vcombine.low %v6437, %v6438
    %v6479 = vunpack.c.l.s4 1983009808
    %v6480 = vunpack.c.0.s8 %v6479
    %v6481 = vlaneseq
    %v6482 = vshrl.u32 %v6481, 7
    %v6483 = vsub.s32 %v6480, %v6482
    %v6484 = vrot.slane %v6476, %v6483
    %v6486 = vunpack.c.l.s4 1983009808
    %v6487 = vunpack.c.0.s8 %v6486
    %v6488 = vlaneseq
    %v6489 = vshrl.u32 %v6488, 7
    %v6490 = vsub.s32 %v6487, %v6489
    %v6491 = vrot.slane %v6477, %v6490
    %v6492 = vcombine.low %v6484, %v6491
    %v6493 = vcombine.low %v6439, %v6440
    %v6494 = vcombine.low %v6441, %v6442
    %v6496 = vunpack.c.l.s4 1983009808
    %v6497 = vunpack.c.0.s8 %v6496
    %v6498 = vlaneseq
    %v6499 = vshrl.u32 %v6498, 7
    %v6500 = vsub.s32 %v6497, %v6499
    %v6501 = vrot.slane %v6493, %v6500
    %v6503 = vunpack.c.l.s4 1983009808
    %v6504 = vunpack.c.0.s8 %v6503
    %v6505 = vlaneseq
    %v6506 = vshrl.u32 %v6505, 7
    %v6507 = vsub.s32 %v6504, %v6506
    %v6508 = vrot.slane %v6494, %v6507
    %v6509 = vcombine.low %v6501, %v6508
    %6512 = vmatprep.subr.mxu0 0.0
    %6513 = vmatpush1.msra.mxu0 %v6445
    %6514 = vmatprep.subr.mxu0 0.0
    %6515 = vmatpush1.msra.mxu0 %v6446
    %6516 = vmatprep.subr.mxu0 0.0
    %6517 = vmatpush1.msra.mxu0 %v6447
    %6518 = vmatprep.subr.mxu0 0.0
    %6519 = vmatpush1.msra.mxu0 %v6448
    %6520 = vmatprep.subr.mxu0 0.0
    %6521 = vmatpush1.msra.mxu0 %v6449
    %6522 = vmatprep.subr.mxu0 0.0
    %6523 = vmatpush1.msra.mxu0 %v6450
    %6524 = vmatprep.subr.mxu0 0.0
    %6525 = vmatpush1.msra.mxu0 %v6451
    %6526 = vmatprep.subr.mxu0 0.0
    %6527 = vmatpush1.msra.mxu0 %v6452
    %6528 = vmatprep.subr.mxu0 0.0
    %6529 = vmatpush1.msra.mxu0 %v6453
    %6530 = vmatprep.subr.mxu0 0.0
    %6531 = vmatpush1.msra.mxu0 %v6454
    %6532 = vmatprep.subr.mxu0 0.0
    %6533 = vmatpush1.msra.mxu0 %v6455
    %6534 = vmatprep.subr.mxu0 0.0
    %6535 = vmatpush1.msra.mxu0 %v6456
    %6536 = vmatprep.subr.mxu0 0.0
    %6537 = vmatpush1.msra.mxu0 %v6457
    %6538 = vmatprep.subr.mxu0 0.0
    %6539 = vmatpush1.msra.mxu0 %v6458
    %6540 = vmatprep.subr.mxu0 0.0
    %6541 = vmatpush1.msra.mxu0 %v6459
    %6542 = vmatprep.subr.mxu0 0.0
    %6543 = vmatpush1.msra.mxu0 %v6460
    %6544 = vmatprep.subr.mxu0 0.0
    %6545 = vmatpush1.msra.mxu0 0.0
    %6546 = vmatprep.subr.mxu0 0.0
    %6547 = vmatpush1.msra.mxu0 0.0
    %6548 = vmatprep.subr.mxu0 0.0
    %6549 = vmatpush1.msra.mxu0 0.0
    %6550 = vmatprep.subr.mxu0 0.0
    %6551 = vmatpush1.msra.mxu0 0.0
    %6552 = vmatprep.subr.mxu0 0.0
    %6553 = vmatpush1.msra.mxu0 0.0
    %6554 = vmatprep.subr.mxu0 0.0
    %6555 = vmatpush1.msra.mxu0 0.0
    %6556 = vmatprep.subr.mxu0 0.0
    %6557 = vmatpush1.msra.mxu0 0.0
    %6558 = vmatprep.subr.mxu0 0.0
    %6559 = vmatpush1.msra.mxu0 0.0
    %6560 = vmatprep.subr.mxu0 0.0
    %6561 = vmatpush1.msra.mxu0 0.0
    %6562 = vmatprep.subr.mxu0 0.0
    %6563 = vmatpush1.msra.mxu0 0.0
    %6564 = vmatprep.subr.mxu0 0.0
    %6565 = vmatpush1.msra.mxu0 0.0
    %6566 = vmatprep.subr.mxu0 0.0
    %6567 = vmatpush1.msra.mxu0 0.0
    %6568 = vmatprep.subr.mxu0 0.0
    %6569 = vmatpush1.msra.mxu0 0.0
    %6570 = vmatprep.subr.mxu0 0.0
    %6571 = vmatpush1.msra.mxu0 0.0
    %6572 = vmatprep.subr.mxu0 0.0
    %6573 = vmatpush1.msra.mxu0 0.0
    %6574 = vmatprep.subr.mxu0 0.0
    %6575 = vmatpush1.msra.mxu0 0.0
    %6576 = vmatprep.mubr.f32.mxu0 0.0
    %6577 = vmatmul.mubr.f32.gmra.mrb[0].mxu0 %v6492
    %v6578 = vpop.f32.mrb[0].mxu0
    %v6579 = vadd.f32 %v6466, %v6578
    %v6580 = vpop.f32.mrb[0].mxu0
    %6581 = vmatprep.mubr.f32.mxu0 0.0
    %6582 = vmatmul.mubr.f32.gmra.mrb[0].mxu0 %v6509
    %v6583 = vpop.f32.mrb[0].mxu0
    %v6584 = vadd.f32 %v6466, %v6583
    %v6585 = vpop.f32.mrb[0].mxu0
    %6586 = vdwg.mxu0
    %v6589 = vcombine.high %v6579, %v6579
    %v6591 = vunpack.c.l.s4 1983009808
    %v6592 = vunpack.c.0.s8 %v6591
    %v6593 = vlaneseq
    %v6594 = vshrl.u32 %v6593, 7
    %v6595 = vsub.s32 %v6592, %v6594
    %v6596 = vrot.slane %v6579, %v6595
    %v6598 = vunpack.c.l.s4 1983009808
    %v6599 = vunpack.c.0.s8 %v6598
    %v6600 = vlaneseq
    %v6601 = vshrl.u32 %v6600, 7
    %v6602 = vsub.s32 %v6599, %v6601
    %v6603 = vrot.slane %v6589, %v6602
    %v6604 = vcombine.high %v6596, %v6596
    %v6605 = vcombine.high %v6603, %v6603
    %v6606 = vcombine.high %v6584, %v6584
    %v6608 = vunpack.c.l.s4 1983009808
    %v6609 = vunpack.c.0.s8 %v6608
    %v6610 = vlaneseq
    %v6611 = vshrl.u32 %v6610, 7
    %v6612 = vsub.s32 %v6609, %v6611
    %v6613 = vrot.slane %v6584, %v6612
    %v6615 = vunpack.c.l.s4 1983009808
    %v6616 = vunpack.c.0.s8 %v6615
    %v6617 = vlaneseq
    %v6618 = vshrl.u32 %v6617, 7
    %v6619 = vsub.s32 %v6616, %v6618
    %v6620 = vrot.slane %v6606, %v6619
    %v6621 = vcombine.high %v6613, %v6613
    %v6622 = vcombine.high %v6620, %v6620
    %6631 = vst [vmem:[%s12] sm:$0x3] %v6596
    %6632 = vst [vmem:[%s12 + $0x2] sm:$0x3] %v6604
    %6633 = vst [vmem:[%s12 + $0x4] sm:$0x3] %v6603
    %6634 = vst [vmem:[%s12 + $0x6] sm:$0x3] %v6605
    %6635 = vst [vmem:[%s12 + $0x8] sm:$0x3] %v6613
    %6636 = vst [vmem:[%s12 + $0xa] sm:$0x3] %v6621
    %6637 = vst [vmem:[%s12 + $0xc] sm:$0x3] %v6620
    %6638 = vst [vmem:[%s12 + $0xe] sm:$0x3] %v6622
    // Predicated region
    $region50: #{tlstm_model.1} parent=1 // pred_check
      _
    $region51: #{tlstm_model.1} parent=1 // pred_check_branch
      %6640 = sbr.rel (0) target = $region53
    $region52: #{tlstm_model.1} parent=1 // pred_region
      _
    $region53: #{tlstm_model.1} parent=1 // pred_fallthru
      _
    // Predicated region
    $region54: #{tlstm_model.1} parent=1 // pred_check
      _
    $region55: #{tlstm_model.1} parent=1 // pred_check_branch
      %6642 = sbr.rel (0) target = $region57
    $region56: #{tlstm_model.1} parent=1 // pred_region
      _
    $region57: #{tlstm_model.1} parent=1 // pred_fallthru
      _
    // Predicated region
    $region58: #{tlstm_model.1} parent=1 // pred_check
      _
    $region59: #{tlstm_model.1} parent=1 // pred_check_branch
      %6644 = sbr.rel (0) target = $region61
    $region60: #{tlstm_model.1} parent=1 // pred_region
      _
    $region61: #{tlstm_model.1} parent=1 // pred_fallthru
      _
    // Predicated region
    $region62: #{tlstm_model.1} parent=1 // pred_check
      _
    $region63: #{tlstm_model.1} parent=1 // pred_check_branch
      %6646 = sbr.rel (0) target = $region65
    $region64: #{tlstm_model.1} parent=1 // pred_region
      %s6648 = ssub.s32 32, 32
      %6649 = vsyncadd [#allocation3], %s6648
      %s6651 = sshll.u32 [#allocation2], 4
      %s6652 = int_to_ptr.vmem [resolvable:$true] %s6651
      %6654 = dma.vmem_to_hbm [thread:$0]  %s6652, 32, %s15, [#allocation3]
    $region65: #{tlstm_model.1} parent=1 // pred_fallthru
      _
    // Predicated region
    $region66: #{tlstm_model.1} parent=1 // pred_check
      _
    $region67: #{tlstm_model.1} parent=1 // pred_check_branch
      %6656 = sbr.rel (0) target = $region69
    $region68: #{tlstm_model.1} parent=1 // pred_region
      %s6658 = ssub.s32 32, 32
      %6659 = vsyncadd [#allocation5], %s6658
      %s6661 = sshll.u32 [#allocation4], 4
      %s6662 = int_to_ptr.vmem [resolvable:$true] %s6661
      %6664 = dma.vmem_to_hbm [thread:$0]  %s6662, 32, %s16, [#allocation5]
    $region69: #{tlstm_model.1} parent=1 // pred_fallthru
      _
    // Predicated region
    $region70: #{tlstm_model.1} parent=1 // pred_check
      _
    $region71: #{tlstm_model.1} parent=1 // pred_check_branch
      %6666 = sbr.rel (0) target = $region73
    $region72: #{tlstm_model.1} parent=1 // pred_region
      _
    $region73: #{tlstm_model.1} parent=1 // pred_fallthru
      _
    // Predicated region
    $region74: #{tlstm_model.1} parent=1 // pred_check
      _
    $region75: #{tlstm_model.1} parent=1 // pred_check_branch
      %6668 = sbr.rel (0) target = $region77
    $region76: #{tlstm_model.1} parent=1 // pred_region
      _
    $region77: #{tlstm_model.1} parent=1 // pred_fallthru
      _
    // Predicated region
    $region78: #{tlstm_model.1} parent=1 // pred_check
      _
    $region79: #{tlstm_model.1} parent=1 // pred_check_branch
      %6670 = sbr.rel (0) target = $region81
    $region80: #{tlstm_model.1} parent=1 // pred_region
      _
    $region81: #{tlstm_model.1} parent=1 // pred_fallthru
      _
    // Predicated region
    $region82: #{tlstm_model.1} parent=1 // pred_check
      _
    $region83: #{tlstm_model.1} parent=1 // pred_check_branch
      %6672 = sbr.rel (0) target = $region85
    $region84: #{tlstm_model.1} parent=1 // pred_region
      %6673 = dma.done [#allocation3], 32
    $region85: #{tlstm_model.1} parent=1 // pred_fallthru
      _
    // Predicated region
    $region86: #{tlstm_model.1} parent=1 // pred_check
      _
    $region87: #{tlstm_model.1} parent=1 // pred_check_branch
      %6675 = sbr.rel (0) target = $region89
    $region88: #{tlstm_model.1} parent=1 // pred_region
      %6676 = dma.done [#allocation5], 32
    $region89: #{tlstm_model.1} parent=1 // pred_fallthru
      _
    %6677 = vsyncpa [#allocation3], 1
    %6678 = vsyncpa [#allocation5], 1

</llo_original>
